<compile_context>
chip_gen: v6e
topology: v6e:2x2x1
jax: 0.10.0
libtpu: 0.0.40
codegen_flags: <defaults>
</compile_context>

<pallas_src>
import jax
import jax.numpy as jnp
from jax import lax
from jax.experimental import pallas as pl
from jax.experimental.pallas import tpu as pltpu


# ---------------------------------------------------------------------------
# Fused whole-network kernel.  One grid step == one batch tile of `bt` images.
#
# Layouts (rows always ordered (spatial, batch-within-tile)):
#   conv1 group c : [5*bt, 336]   lane = 16*j  + oc   (j  = conv1 col 0..20)
#   pool1 (wide)  : [5*bt, 320]   lane = 16*j  + ic   (cols t2 live at j=2*t2)
#   conv2 e/o     : [3*bt, 224]   lane = 32*j2 + oc   (j2 = conv2 col 0..6)
#   pool2 (wide)  : [3*bt, 192]   lane = 32*j2 + oc   (cols v  live at j2=2*v)
# The banded operators G1/G2' and the fc weight repacks reproduce PyTorch's
# NCHW semantics exactly (incl. the channel-major x.view(-1, 3*3*32) flatten).
# ---------------------------------------------------------------------------
def _net_kernel(x_ref, g1_ref, b1_ref, g2_ref, b2_ref,
                w1fc_ref, b1fc_ref, w2fc_ref, b2fc_ref, out_ref):
    f32, bf16 = jnp.float32, jnp.bfloat16
    bt = x_ref.shape[2]                      # batch tile (multiple of 16)

    # ---- input: 4 row-residue groups (r = image row mod 4), cast once -------
    xm = [x_ref[r].astype(bf16) for r in range(4)]             # each [7, bt, 28]

    # ---- conv1 (8x8 valid) + bias + ReLU, output rows grouped by i mod 4 ----
    # group c holds conv1 output rows {4s+c : s=0..4}; row 20 is never needed.
    def conv1_group(c):
        acc = jnp.zeros((5 * bt, 336), f32)
        for kh in range(8):
            r = (c + kh) % 4
            m = (c + kh) // 4
            band = xm[r][m:m + 5].reshape(5 * bt, 28)          # rows (s, b)
            acc = acc + jnp.dot(band, g1_ref[kh],
                                preferred_element_type=f32)
        return jnp.maximum(acc + b1_ref[...], 0.0)             # [5*bt, 336]

    # ---- maxpool1 2x2/2: vertical = group max, horizontal kept lane-wide ----
    # (even-column subsample is folded into G2'; no compaction stores)
    vp_e = jnp.maximum(conv1_group(0), conv1_group(1))         # pool rows 0,2,..,8
    hp_e = jnp.maximum(vp_e[:, 0:320], vp_e[:, 16:336]).astype(bf16)
    hp_e = hp_e.reshape(5, bt, 320)
    vp_o = jnp.maximum(conv1_group(2), conv1_group(3))         # pool rows 1,3,..,9
    hp_o = jnp.maximum(vp_o[:, 0:320], vp_o[:, 16:336]).astype(bf16)
    hp_o = hp_o.reshape(5, bt, 320)

    # ---- conv2 (4x4 valid, 16 ch) + bias + ReLU, even/odd output rows -------
    acc2e = jnp.zeros((3 * bt, 224), f32)                      # rows 0,2,4
    acc2o = jnp.zeros((3 * bt, 224), f32)                      # rows 1,3,5
    for kh in range(4):
        g = g2_ref[kh]                                         # [320, 224]
        n = kh // 2
        if kh % 2 == 0:
            be, bo = hp_e[n:n + 3], hp_o[n:n + 3]
        else:
            be, bo = hp_o[n:n + 3], hp_e[n + 1:n + 4]
        acc2e = acc2e + jnp.dot(be.reshape(3 * bt, 320), g,
                                preferred_element_type=f32)
        acc2o = acc2o + jnp.dot(bo.reshape(3 * bt, 320), g,
                                preferred_element_type=f32)
    a2e = jnp.maximum(acc2e + b2_ref[...], 0.0)
    a2o = jnp.maximum(acc2o + b2_ref[...], 0.0)

    # ---- maxpool2 2x2/2 ------------------------------------------------------
    vp2 = jnp.maximum(a2e, a2o)                                # [3*bt, 224]
    hp2 = jnp.maximum(vp2[:, 0:192], vp2[:, 32:224]).astype(bf16)
    hp2 = hp2.reshape(3, bt, 192)

    # ---- fc1 + ReLU (pool2 column subsample + flatten perm folded in W) -----
    acc3 = jnp.zeros((bt, 50), f32)
    for u in range(3):
        acc3 = acc3 + jnp.dot(hp2[u], w1fc_ref[u],
                              preferred_element_type=f32)
    h = jnp.maximum(acc3 + b1fc_ref[...], 0.0).astype(bf16)    # [bt, 50]

    # ---- fc2 (lane-padded to 128 cols) + log_softmax -------------------------
    logits = jnp.dot(h, w2fc_ref[...],
                     preferred_element_type=f32) + b2fc_ref[...]   # [bt, 128]
    mx = jnp.max(logits, axis=-1, keepdims=True)
    s = logits - mx
    lse = jnp.log(jnp.sum(jnp.exp(s), axis=-1, keepdims=True))
    out_ref[...] = (s - lse).astype(out_ref.dtype)             # [bt, 128]


# ---------------------------------------------------------------------------
# One-time parameter repack (all folds done in f32, single final bf16 cast).
# ---------------------------------------------------------------------------
def prepare_params(p):
    f32, bf16 = jnp.float32, jnp.bfloat16
    w1, b1 = p["conv1_w"].astype(f32), p["conv1_b"].astype(f32)    # [16,1,8,8]
    w2, b2 = p["conv2_w"].astype(f32), p["conv2_b"].astype(f32)    # [32,16,4,4]
    f1w, f1b = p["fc1_w"].astype(f32), p["fc1_b"].astype(f32)      # [50,288]
    f2w, f2b = p["fc2_w"].astype(f32), p["fc2_b"].astype(f32)      # [10,50]

    # conv1 banded operator: G1[kh, r, 16*j+oc] = w1[oc,0,kh,r-j] if 0<=r-j<8
    r = jnp.arange(28)[:, None]
    j = jnp.arange(21)[None, :]
    d = r - j
    valid = (d >= 0) & (d < 8)
    w1p = jnp.transpose(w1[:, 0], (1, 2, 0))                       # [kh, kw, oc]
    g1 = w1p[:, jnp.clip(d, 0, 7), :] * valid[None, :, :, None]
    g1 = g1.reshape(8, 28, 336).astype(bf16)
    b1row = jnp.tile(b1, 21).reshape(1, 336).astype(f32)

    # conv2 banded operator over the WIDE pool1 layout (even-column subsample
    # folded in): G2'[kh, 16*jw+ic, 32*j2+oc] = w2[oc,ic,kh,jw//2-j2]
    #   if jw even and 0 <= jw//2 - j2 < 4, else 0.
    jw = jnp.arange(20)
    j2 = jnp.arange(7)
    t2 = jw // 2
    d2 = t2[:, None] - j2[None, :]
    valid2 = ((jw % 2) == 0)[:, None] & (d2 >= 0) & (d2 < 4)
    w2p = jnp.transpose(w2, (2, 3, 1, 0))                          # [kh, kw, ic, oc]
    g2 = w2p[:, jnp.clip(d2, 0, 3), :, :]                          # [kh, jw, j2, ic, oc]
    g2 = g2 * valid2[None, :, :, None, None]
    g2 = jnp.transpose(g2, (0, 1, 3, 2, 4)).reshape(4, 320, 224).astype(bf16)
    b2row = jnp.tile(b2, 7).reshape(1, 224).astype(f32)

    # fc1, permuted to the wide pool2 layout (even-j2 columns carry pool2 col v):
    # W1fc[u, 32*(2v)+oc, m] = fc1_w[m, oc*9 + u*3 + v]; odd-j2 rows are zero.
    f1r = f1w.reshape(50, 32, 3, 3)                                # [m, oc, u, v]
    w1fc = jnp.zeros((3, 6, 32, 50), f32)
    w1fc = w1fc.at[:, 0::2, :, :].set(jnp.transpose(f1r, (2, 3, 1, 0)))
    w1fc = w1fc.reshape(3, 192, 50).astype(bf16)
    b1fc = f1b.reshape(1, 50).astype(f32)

    # fc2: lane-padded to 128 output columns; padded bias is hugely negative so
    # the 128-lane log_softmax equals the 10-lane one on the real columns.
    w2fc = jnp.zeros((50, 128), f32).at[:, :10].set(f2w.T).astype(bf16)
    b2fc = jnp.full((1, 128), -1e30, f32).at[0, :10].set(f2b)

    return dict(g1=g1, b1=b1row, g2=g2, b2=b2row,
                w1fc=w1fc, b1fc=b1fc, w2fc=w2fc, b2fc=b2fc)


# ---------------------------------------------------------------------------
# Forward pass: a single pallas_call, gridded over batch tiles.
# ---------------------------------------------------------------------------
def net_forward(x_nchw, k, *, block_b=128):
    n = x_nchw.shape[0]
    bt = min(int(block_b), ((n + 15) // 16) * 16)
    bt = max(16, (bt // 16) * 16)            # multiple of 16 -> aligned reshapes
    n_pad = ((n + bt - 1) // bt) * bt

    x = x_nchw.astype(jnp.float32)
    if n_pad != n:
        x = jnp.pad(x, ((0, n_pad - n), (0, 0), (0, 0), (0, 0)))

    # Layout plumbing only: split the 28 image rows by (row mod 4) and make the
    # batch the second-minor axis so every in-kernel band read is a contiguous
    # leading-dim slice.  [n,1,28,28] -> [4, 7, n_pad, 28].
    x_de = x[:, 0].reshape(n_pad, 7, 4, 28).transpose(2, 1, 0, 3)

    out = pl.pallas_call(
        _net_kernel,
        out_shape=jax.ShapeDtypeStruct((n_pad, 128), jnp.float32),
        grid_spec=pltpu.PrefetchScalarGridSpec(
            num_scalar_prefetch=0,
            grid=(n_pad // bt,),
            in_specs=[
                pl.BlockSpec((4, 7, bt, 28), lambda i: (0, 0, i, 0)),   # x (de-interleaved)
                pl.BlockSpec((8, 28, 336), lambda i: (0, 0, 0)),        # G1
                pl.BlockSpec((1, 336), lambda i: (0, 0)),               # b1 row
                pl.BlockSpec((4, 320, 224), lambda i: (0, 0, 0)),       # G2'
                pl.BlockSpec((1, 224), lambda i: (0, 0)),               # b2 row
                pl.BlockSpec((3, 192, 50), lambda i: (0, 0, 0)),        # fc1 W
                pl.BlockSpec((1, 50), lambda i: (0, 0)),                # fc1 b
                pl.BlockSpec((50, 128), lambda i: (0, 0)),              # fc2 W (padded)
                pl.BlockSpec((1, 128), lambda i: (0, 0)),               # fc2 b (padded)
            ],
            out_specs=pl.BlockSpec((bt, 128), lambda i: (i, 0)),
        ),
        compiler_params=pltpu.CompilerParams(
            dimension_semantics=("parallel",),
            vmem_limit_bytes=48 * 1024 * 1024,
        ),
    )(x_de, k["g1"], k["b1"], k["g2"], k["b2"],
      k["w1fc"], k["b1fc"], k["w2fc"], k["b2fc"])
    return out[:n, :10]


# ---------------------------------------------------------------------------
# Plain-JAX float32 reference (for correctness cross-check only).
# ---------------------------------------------------------------------------
def reference_forward(x_nchw, p):
    y = lax.conv_general_dilated(x_nchw, p["conv1_w"], (1, 1), "VALID",
                                 dimension_numbers=("NCHW", "OIHW", "NCHW"))
    y = jax.nn.relu(y + p["conv1_b"][None, :, None, None])
    y = lax.reduce_window(y, -jnp.inf, lax.max, (1, 1, 2, 2), (1, 1, 2, 2), "VALID")
    y = lax.conv_general_dilated(y, p["conv2_w"], (1, 1), "VALID",
                                 dimension_numbers=("NCHW", "OIHW", "NCHW"))
    y = jax.nn.relu(y + p["conv2_b"][None, :, None, None])
    y = lax.reduce_window(y, -jnp.inf, lax.max, (1, 1, 2, 2), (1, 1, 2, 2), "VALID")
    y = y.reshape(y.shape[0], 3 * 3 * 32)
    h = jax.nn.relu(y @ p["fc1_w"].T + p["fc1_b"])
    logits = h @ p["fc2_w"].T + p["fc2_b"]
    return jax.nn.log_softmax(logits, axis=-1)


def init_params(key):
    """Deterministic, PyTorch-default-style uniform(-1/sqrt(fan_in), ...) init."""
    ks = jax.random.split(key, 8)

    def u(k, shape, fan_in):
        bound = 1.0 / jnp.sqrt(jnp.float32(fan_in))
        return jax.random.uniform(k, shape, jnp.float32, -bound, bound)

    return {
        "conv1_w": u(ks[0], (16, 1, 8, 8), 1 * 8 * 8),
        "conv1_b": u(ks[1], (16,), 1 * 8 * 8),
        "conv2_w": u(ks[2], (32, 16, 4, 4), 16 * 4 * 4),
        "conv2_b": u(ks[3], (32,), 16 * 4 * 4),
        "fc1_w":   u(ks[4], (50, 288), 288),
        "fc1_b":   u(ks[5], (50,), 288),
        "fc2_w":   u(ks[6], (10, 50), 50),
        "fc2_b":   u(ks[7], (10,), 50),
    }


if __name__ == "__main__":
    key = jax.random.PRNGKey(0)
    pkey, xkey = jax.random.split(key)
    params = init_params(pkey)
    # NCHW input; the architecture requires 28x28 spatial (MNIST) so the
    # flattened feature size is exactly 3*3*32 = 288 for fc1.
    x = jax.random.normal(xkey, (32, 1, 28, 28), jnp.float32)

    packed = prepare_params(params)                      # one-time weight repack
    fwd = jax.jit(net_forward, static_argnames=("block_b",))
    out = jax.block_until_ready(fwd(x, packed, block_b=16))   # grid = 2 batch tiles

    assert out.shape == (32, 10)
    assert bool(jnp.all(jnp.isfinite(out)))
    row_sums = jnp.exp(out).sum(axis=1)                  # log_softmax rows exp-sum to 1
    assert bool(jnp.all(jnp.abs(row_sums - 1.0) < 1e-4))

    # Cross-check against the f32 JAX reference (bf16 MXU inputs => loose tol).
    ref = reference_forward(x, params)
    max_err = float(jnp.max(jnp.abs(out - ref)))
    assert max_err < 1e-1, f"kernel deviates from reference: {max_err}"

    print("KERNEL_OK")
</pallas_src>

<mosaic_0001>
module attributes {stable_mosaic.version = 11 : i64} {
  func.func @_net_kernel(%arg0: i32, %arg1: memref<4x7x16x28xf32, #tpu.memory_space<vmem>>, %arg2: memref<8x28x336xbf16, #tpu.memory_space<vmem>>, %arg3: memref<1x336xf32, #tpu.memory_space<vmem>>, %arg4: memref<4x320x224xbf16, #tpu.memory_space<vmem>>, %arg5: memref<1x224xf32, #tpu.memory_space<vmem>>, %arg6: memref<3x192x50xbf16, #tpu.memory_space<vmem>>, %arg7: memref<1x50xf32, #tpu.memory_space<vmem>>, %arg8: memref<50x128xbf16, #tpu.memory_space<vmem>>, %arg9: memref<1x128xf32, #tpu.memory_space<vmem>>, %arg10: memref<16x128xf32, #tpu.memory_space<vmem>>) attributes {dimension_semantics = [#tpu.dimension_semantics<parallel>], iteration_bounds = array<i64: 2>, scalar_prefetch = 0 : i64, scratch_operands = 0 : i64, tpu.core_type = #tpu.core_type<tc>, window_params = [{transform_indices = @transform_0, window_bounds = array<i64: 4, 7, 16, 28>}, {pipeline_mode = #tpu.pipeline_mode<synchronous>, transform_indices = @transform_1, window_bounds = array<i64: 8, 28, 336>}, {pipeline_mode = #tpu.pipeline_mode<synchronous>, transform_indices = @transform_2, window_bounds = array<i64: 1, 336>}, {pipeline_mode = #tpu.pipeline_mode<synchronous>, transform_indices = @transform_3, window_bounds = array<i64: 4, 320, 224>}, {pipeline_mode = #tpu.pipeline_mode<synchronous>, transform_indices = @transform_4, window_bounds = array<i64: 1, 224>}, {pipeline_mode = #tpu.pipeline_mode<synchronous>, transform_indices = @transform_5, window_bounds = array<i64: 3, 192, 50>}, {pipeline_mode = #tpu.pipeline_mode<synchronous>, transform_indices = @transform_6, window_bounds = array<i64: 1, 50>}, {pipeline_mode = #tpu.pipeline_mode<synchronous>, transform_indices = @transform_7, window_bounds = array<i64: 50, 128>}, {pipeline_mode = #tpu.pipeline_mode<synchronous>, transform_indices = @transform_8, window_bounds = array<i64: 1, 128>}, {transform_indices = @transform_9, window_bounds = array<i64: 16, 128>}]} {
    %c0 = arith.constant 0 : index
    %c0_0 = arith.constant 0 : index
    %c0_1 = arith.constant 0 : index
    %c0_2 = arith.constant 0 : index
    %0 = vector.load %arg1[%c0, %c0_0, %c0_1, %c0_2] : memref<4x7x16x28xf32, #tpu.memory_space<vmem>>, vector<1x7x16x28xf32>
    %1 = vector.shape_cast %0 : vector<1x7x16x28xf32> to vector<7x16x28xf32>
    %2 = arith.truncf %1 : vector<7x16x28xf32> to vector<7x16x28xbf16>
    %c1 = arith.constant 1 : index
    %c0_3 = arith.constant 0 : index
    %c0_4 = arith.constant 0 : index
    %c0_5 = arith.constant 0 : index
    %3 = vector.load %arg1[%c1, %c0_3, %c0_4, %c0_5] : memref<4x7x16x28xf32, #tpu.memory_space<vmem>>, vector<1x7x16x28xf32>
    %4 = vector.shape_cast %3 : vector<1x7x16x28xf32> to vector<7x16x28xf32>
    %5 = arith.truncf %4 : vector<7x16x28xf32> to vector<7x16x28xbf16>
    %c2 = arith.constant 2 : index
    %c0_6 = arith.constant 0 : index
    %c0_7 = arith.constant 0 : index
    %c0_8 = arith.constant 0 : index
    %6 = vector.load %arg1[%c2, %c0_6, %c0_7, %c0_8] : memref<4x7x16x28xf32, #tpu.memory_space<vmem>>, vector<1x7x16x28xf32>
    %7 = vector.shape_cast %6 : vector<1x7x16x28xf32> to vector<7x16x28xf32>
    %8 = arith.truncf %7 : vector<7x16x28xf32> to vector<7x16x28xbf16>
    %c3 = arith.constant 3 : index
    %c0_9 = arith.constant 0 : index
    %c0_10 = arith.constant 0 : index
    %c0_11 = arith.constant 0 : index
    %9 = vector.load %arg1[%c3, %c0_9, %c0_10, %c0_11] : memref<4x7x16x28xf32, #tpu.memory_space<vmem>>, vector<1x7x16x28xf32>
    %10 = vector.shape_cast %9 : vector<1x7x16x28xf32> to vector<7x16x28xf32>
    %11 = arith.truncf %10 : vector<7x16x28xf32> to vector<7x16x28xbf16>
    %cst = arith.constant 0.000000e+00 : f32
    %12 = vector.broadcast %cst : f32 to vector<80x336xf32>
    %13 = vector.extract_strided_slice %2 {offsets = [0, 0, 0], sizes = [5, 16, 28], strides = [1, 1, 1]} : vector<7x16x28xbf16> to vector<5x16x28xbf16>
    %14 = vector.shape_cast %13 : vector<5x16x28xbf16> to vector<80x28xbf16>
    %c0_12 = arith.constant 0 : index
    %c0_13 = arith.constant 0 : index
    %c0_14 = arith.constant 0 : index
    %15 = vector.load %arg2[%c0_12, %c0_13, %c0_14] : memref<8x28x336xbf16, #tpu.memory_space<vmem>>, vector<1x28x336xbf16>
    %16 = vector.shape_cast %15 : vector<1x28x336xbf16> to vector<28x336xbf16>
    %cst_15 = arith.constant dense<0.000000e+00> : vector<80x336xf32>
    %17 = tpu.matmul %14, %16, %cst_15 {dimension_numbers = #tpu.dot_dimension_numbers<[1], [0], [0], [1], [0, 0, 1, 1], [], []>} : vector<80x28xbf16>, vector<28x336xbf16>, vector<80x336xf32> -> vector<80x336xf32>
    %18 = arith.addf %12, %17 : vector<80x336xf32>
    %19 = vector.extract_strided_slice %5 {offsets = [0, 0, 0], sizes = [5, 16, 28], strides = [1, 1, 1]} : vector<7x16x28xbf16> to vector<5x16x28xbf16>
    %20 = vector.shape_cast %19 : vector<5x16x28xbf16> to vector<80x28xbf16>
    %c1_16 = arith.constant 1 : index
    %c0_17 = arith.constant 0 : index
    %c0_18 = arith.constant 0 : index
    %21 = vector.load %arg2[%c1_16, %c0_17, %c0_18] : memref<8x28x336xbf16, #tpu.memory_space<vmem>>, vector<1x28x336xbf16>
    %22 = vector.shape_cast %21 : vector<1x28x336xbf16> to vector<28x336xbf16>
    %cst_19 = arith.constant dense<0.000000e+00> : vector<80x336xf32>
    %23 = tpu.matmul %20, %22, %cst_19 {dimension_numbers = #tpu.dot_dimension_numbers<[1], [0], [0], [1], [0, 0, 1, 1], [], []>} : vector<80x28xbf16>, vector<28x336xbf16>, vector<80x336xf32> -> vector<80x336xf32>
    %24 = arith.addf %18, %23 : vector<80x336xf32>
    %25 = vector.extract_strided_slice %8 {offsets = [0, 0, 0], sizes = [5, 16, 28], strides = [1, 1, 1]} : vector<7x16x28xbf16> to vector<5x16x28xbf16>
    %26 = vector.shape_cast %25 : vector<5x16x28xbf16> to vector<80x28xbf16>
    %c2_20 = arith.constant 2 : index
    %c0_21 = arith.constant 0 : index
    %c0_22 = arith.constant 0 : index
    %27 = vector.load %arg2[%c2_20, %c0_21, %c0_22] : memref<8x28x336xbf16, #tpu.memory_space<vmem>>, vector<1x28x336xbf16>
    %28 = vector.shape_cast %27 : vector<1x28x336xbf16> to vector<28x336xbf16>
    %cst_23 = arith.constant dense<0.000000e+00> : vector<80x336xf32>
    %29 = tpu.matmul %26, %28, %cst_23 {dimension_numbers = #tpu.dot_dimension_numbers<[1], [0], [0], [1], [0, 0, 1, 1], [], []>} : vector<80x28xbf16>, vector<28x336xbf16>, vector<80x336xf32> -> vector<80x336xf32>
    %30 = arith.addf %24, %29 : vector<80x336xf32>
    %31 = vector.extract_strided_slice %11 {offsets = [0, 0, 0], sizes = [5, 16, 28], strides = [1, 1, 1]} : vector<7x16x28xbf16> to vector<5x16x28xbf16>
    %32 = vector.shape_cast %31 : vector<5x16x28xbf16> to vector<80x28xbf16>
    %c3_24 = arith.constant 3 : index
    %c0_25 = arith.constant 0 : index
    %c0_26 = arith.constant 0 : index
    %33 = vector.load %arg2[%c3_24, %c0_25, %c0_26] : memref<8x28x336xbf16, #tpu.memory_space<vmem>>, vector<1x28x336xbf16>
    %34 = vector.shape_cast %33 : vector<1x28x336xbf16> to vector<28x336xbf16>
    %cst_27 = arith.constant dense<0.000000e+00> : vector<80x336xf32>
    %35 = tpu.matmul %32, %34, %cst_27 {dimension_numbers = #tpu.dot_dimension_numbers<[1], [0], [0], [1], [0, 0, 1, 1], [], []>} : vector<80x28xbf16>, vector<28x336xbf16>, vector<80x336xf32> -> vector<80x336xf32>
    %36 = arith.addf %30, %35 : vector<80x336xf32>
    %37 = vector.extract_strided_slice %2 {offsets = [1, 0, 0], sizes = [5, 16, 28], strides = [1, 1, 1]} : vector<7x16x28xbf16> to vector<5x16x28xbf16>
    %38 = vector.shape_cast %37 : vector<5x16x28xbf16> to vector<80x28xbf16>
    %c4 = arith.constant 4 : index
    %c0_28 = arith.constant 0 : index
    %c0_29 = arith.constant 0 : index
    %39 = vector.load %arg2[%c4, %c0_28, %c0_29] : memref<8x28x336xbf16, #tpu.memory_space<vmem>>, vector<1x28x336xbf16>
    %40 = vector.shape_cast %39 : vector<1x28x336xbf16> to vector<28x336xbf16>
    %cst_30 = arith.constant dense<0.000000e+00> : vector<80x336xf32>
    %41 = tpu.matmul %38, %40, %cst_30 {dimension_numbers = #tpu.dot_dimension_numbers<[1], [0], [0], [1], [0, 0, 1, 1], [], []>} : vector<80x28xbf16>, vector<28x336xbf16>, vector<80x336xf32> -> vector<80x336xf32>
    %42 = arith.addf %36, %41 : vector<80x336xf32>
    %43 = vector.extract_strided_slice %5 {offsets = [1, 0, 0], sizes = [5, 16, 28], strides = [1, 1, 1]} : vector<7x16x28xbf16> to vector<5x16x28xbf16>
    %44 = vector.shape_cast %43 : vector<5x16x28xbf16> to vector<80x28xbf16>
    %c5 = arith.constant 5 : index
    %c0_31 = arith.constant 0 : index
    %c0_32 = arith.constant 0 : index
    %45 = vector.load %arg2[%c5, %c0_31, %c0_32] : memref<8x28x336xbf16, #tpu.memory_space<vmem>>, vector<1x28x336xbf16>
    %46 = vector.shape_cast %45 : vector<1x28x336xbf16> to vector<28x336xbf16>
    %cst_33 = arith.constant dense<0.000000e+00> : vector<80x336xf32>
    %47 = tpu.matmul %44, %46, %cst_33 {dimension_numbers = #tpu.dot_dimension_numbers<[1], [0], [0], [1], [0, 0, 1, 1], [], []>} : vector<80x28xbf16>, vector<28x336xbf16>, vector<80x336xf32> -> vector<80x336xf32>
    %48 = arith.addf %42, %47 : vector<80x336xf32>
    %49 = vector.extract_strided_slice %8 {offsets = [1, 0, 0], sizes = [5, 16, 28], strides = [1, 1, 1]} : vector<7x16x28xbf16> to vector<5x16x28xbf16>
    %50 = vector.shape_cast %49 : vector<5x16x28xbf16> to vector<80x28xbf16>
    %c6 = arith.constant 6 : index
    %c0_34 = arith.constant 0 : index
    %c0_35 = arith.constant 0 : index
    %51 = vector.load %arg2[%c6, %c0_34, %c0_35] : memref<8x28x336xbf16, #tpu.memory_space<vmem>>, vector<1x28x336xbf16>
    %52 = vector.shape_cast %51 : vector<1x28x336xbf16> to vector<28x336xbf16>
    %cst_36 = arith.constant dense<0.000000e+00> : vector<80x336xf32>
    %53 = tpu.matmul %50, %52, %cst_36 {dimension_numbers = #tpu.dot_dimension_numbers<[1], [0], [0], [1], [0, 0, 1, 1], [], []>} : vector<80x28xbf16>, vector<28x336xbf16>, vector<80x336xf32> -> vector<80x336xf32>
    %54 = arith.addf %48, %53 : vector<80x336xf32>
    %55 = vector.extract_strided_slice %11 {offsets = [1, 0, 0], sizes = [5, 16, 28], strides = [1, 1, 1]} : vector<7x16x28xbf16> to vector<5x16x28xbf16>
    %56 = vector.shape_cast %55 : vector<5x16x28xbf16> to vector<80x28xbf16>
    %c7 = arith.constant 7 : index
    %c0_37 = arith.constant 0 : index
    %c0_38 = arith.constant 0 : index
    %57 = vector.load %arg2[%c7, %c0_37, %c0_38] : memref<8x28x336xbf16, #tpu.memory_space<vmem>>, vector<1x28x336xbf16>
    %58 = vector.shape_cast %57 : vector<1x28x336xbf16> to vector<28x336xbf16>
    %cst_39 = arith.constant dense<0.000000e+00> : vector<80x336xf32>
    %59 = tpu.matmul %56, %58, %cst_39 {dimension_numbers = #tpu.dot_dimension_numbers<[1], [0], [0], [1], [0, 0, 1, 1], [], []>} : vector<80x28xbf16>, vector<28x336xbf16>, vector<80x336xf32> -> vector<80x336xf32>
    %60 = arith.addf %54, %59 : vector<80x336xf32>
    %c0_40 = arith.constant 0 : index
    %c0_41 = arith.constant 0 : index
    %61 = vector.load %arg3[%c0_40, %c0_41] : memref<1x336xf32, #tpu.memory_space<vmem>>, vector<1x336xf32>
    %62 = vector.broadcast %61 : vector<1x336xf32> to vector<80x336xf32>
    %63 = arith.addf %60, %62 : vector<80x336xf32>
    %cst_42 = arith.constant 0.000000e+00 : f32
    %64 = vector.broadcast %cst_42 : f32 to vector<80x336xf32>
    %65 = arith.maximumf %63, %64 : vector<80x336xf32>
    %cst_43 = arith.constant 0.000000e+00 : f32
    %66 = vector.broadcast %cst_43 : f32 to vector<80x336xf32>
    %67 = vector.extract_strided_slice %5 {offsets = [0, 0, 0], sizes = [5, 16, 28], strides = [1, 1, 1]} : vector<7x16x28xbf16> to vector<5x16x28xbf16>
    %68 = vector.shape_cast %67 : vector<5x16x28xbf16> to vector<80x28xbf16>
    %c0_44 = arith.constant 0 : index
    %c0_45 = arith.constant 0 : index
    %c0_46 = arith.constant 0 : index
    %69 = vector.load %arg2[%c0_44, %c0_45, %c0_46] : memref<8x28x336xbf16, #tpu.memory_space<vmem>>, vector<1x28x336xbf16>
    %70 = vector.shape_cast %69 : vector<1x28x336xbf16> to vector<28x336xbf16>
    %cst_47 = arith.constant dense<0.000000e+00> : vector<80x336xf32>
    %71 = tpu.matmul %68, %70, %cst_47 {dimension_numbers = #tpu.dot_dimension_numbers<[1], [0], [0], [1], [0, 0, 1, 1], [], []>} : vector<80x28xbf16>, vector<28x336xbf16>, vector<80x336xf32> -> vector<80x336xf32>
    %72 = arith.addf %66, %71 : vector<80x336xf32>
    %73 = vector.extract_strided_slice %8 {offsets = [0, 0, 0], sizes = [5, 16, 28], strides = [1, 1, 1]} : vector<7x16x28xbf16> to vector<5x16x28xbf16>
    %74 = vector.shape_cast %73 : vector<5x16x28xbf16> to vector<80x28xbf16>
    %c1_48 = arith.constant 1 : index
    %c0_49 = arith.constant 0 : index
    %c0_50 = arith.constant 0 : index
    %75 = vector.load %arg2[%c1_48, %c0_49, %c0_50] : memref<8x28x336xbf16, #tpu.memory_space<vmem>>, vector<1x28x336xbf16>
    %76 = vector.shape_cast %75 : vector<1x28x336xbf16> to vector<28x336xbf16>
    %cst_51 = arith.constant dense<0.000000e+00> : vector<80x336xf32>
    %77 = tpu.matmul %74, %76, %cst_51 {dimension_numbers = #tpu.dot_dimension_numbers<[1], [0], [0], [1], [0, 0, 1, 1], [], []>} : vector<80x28xbf16>, vector<28x336xbf16>, vector<80x336xf32> -> vector<80x336xf32>
    %78 = arith.addf %72, %77 : vector<80x336xf32>
    %79 = vector.extract_strided_slice %11 {offsets = [0, 0, 0], sizes = [5, 16, 28], strides = [1, 1, 1]} : vector<7x16x28xbf16> to vector<5x16x28xbf16>
    %80 = vector.shape_cast %79 : vector<5x16x28xbf16> to vector<80x28xbf16>
    %c2_52 = arith.constant 2 : index
    %c0_53 = arith.constant 0 : index
    %c0_54 = arith.constant 0 : index
    %81 = vector.load %arg2[%c2_52, %c0_53, %c0_54] : memref<8x28x336xbf16, #tpu.memory_space<vmem>>, vector<1x28x336xbf16>
    %82 = vector.shape_cast %81 : vector<1x28x336xbf16> to vector<28x336xbf16>
    %cst_55 = arith.constant dense<0.000000e+00> : vector<80x336xf32>
    %83 = tpu.matmul %80, %82, %cst_55 {dimension_numbers = #tpu.dot_dimension_numbers<[1], [0], [0], [1], [0, 0, 1, 1], [], []>} : vector<80x28xbf16>, vector<28x336xbf16>, vector<80x336xf32> -> vector<80x336xf32>
    %84 = arith.addf %78, %83 : vector<80x336xf32>
    %85 = vector.extract_strided_slice %2 {offsets = [1, 0, 0], sizes = [5, 16, 28], strides = [1, 1, 1]} : vector<7x16x28xbf16> to vector<5x16x28xbf16>
    %86 = vector.shape_cast %85 : vector<5x16x28xbf16> to vector<80x28xbf16>
    %c3_56 = arith.constant 3 : index
    %c0_57 = arith.constant 0 : index
    %c0_58 = arith.constant 0 : index
    %87 = vector.load %arg2[%c3_56, %c0_57, %c0_58] : memref<8x28x336xbf16, #tpu.memory_space<vmem>>, vector<1x28x336xbf16>
    %88 = vector.shape_cast %87 : vector<1x28x336xbf16> to vector<28x336xbf16>
    %cst_59 = arith.constant dense<0.000000e+00> : vector<80x336xf32>
    %89 = tpu.matmul %86, %88, %cst_59 {dimension_numbers = #tpu.dot_dimension_numbers<[1], [0], [0], [1], [0, 0, 1, 1], [], []>} : vector<80x28xbf16>, vector<28x336xbf16>, vector<80x336xf32> -> vector<80x336xf32>
    %90 = arith.addf %84, %89 : vector<80x336xf32>
    %91 = vector.extract_strided_slice %5 {offsets = [1, 0, 0], sizes = [5, 16, 28], strides = [1, 1, 1]} : vector<7x16x28xbf16> to vector<5x16x28xbf16>
    %92 = vector.shape_cast %91 : vector<5x16x28xbf16> to vector<80x28xbf16>
    %c4_60 = arith.constant 4 : index
    %c0_61 = arith.constant 0 : index
    %c0_62 = arith.constant 0 : index
    %93 = vector.load %arg2[%c4_60, %c0_61, %c0_62] : memref<8x28x336xbf16, #tpu.memory_space<vmem>>, vector<1x28x336xbf16>
    %94 = vector.shape_cast %93 : vector<1x28x336xbf16> to vector<28x336xbf16>
    %cst_63 = arith.constant dense<0.000000e+00> : vector<80x336xf32>
    %95 = tpu.matmul %92, %94, %cst_63 {dimension_numbers = #tpu.dot_dimension_numbers<[1], [0], [0], [1], [0, 0, 1, 1], [], []>} : vector<80x28xbf16>, vector<28x336xbf16>, vector<80x336xf32> -> vector<80x336xf32>
    %96 = arith.addf %90, %95 : vector<80x336xf32>
    %97 = vector.extract_strided_slice %8 {offsets = [1, 0, 0], sizes = [5, 16, 28], strides = [1, 1, 1]} : vector<7x16x28xbf16> to vector<5x16x28xbf16>
    %98 = vector.shape_cast %97 : vector<5x16x28xbf16> to vector<80x28xbf16>
    %c5_64 = arith.constant 5 : index
    %c0_65 = arith.constant 0 : index
    %c0_66 = arith.constant 0 : index
    %99 = vector.load %arg2[%c5_64, %c0_65, %c0_66] : memref<8x28x336xbf16, #tpu.memory_space<vmem>>, vector<1x28x336xbf16>
    %100 = vector.shape_cast %99 : vector<1x28x336xbf16> to vector<28x336xbf16>
    %cst_67 = arith.constant dense<0.000000e+00> : vector<80x336xf32>
    %101 = tpu.matmul %98, %100, %cst_67 {dimension_numbers = #tpu.dot_dimension_numbers<[1], [0], [0], [1], [0, 0, 1, 1], [], []>} : vector<80x28xbf16>, vector<28x336xbf16>, vector<80x336xf32> -> vector<80x336xf32>
    %102 = arith.addf %96, %101 : vector<80x336xf32>
    %103 = vector.extract_strided_slice %11 {offsets = [1, 0, 0], sizes = [5, 16, 28], strides = [1, 1, 1]} : vector<7x16x28xbf16> to vector<5x16x28xbf16>
    %104 = vector.shape_cast %103 : vector<5x16x28xbf16> to vector<80x28xbf16>
    %c6_68 = arith.constant 6 : index
    %c0_69 = arith.constant 0 : index
    %c0_70 = arith.constant 0 : index
    %105 = vector.load %arg2[%c6_68, %c0_69, %c0_70] : memref<8x28x336xbf16, #tpu.memory_space<vmem>>, vector<1x28x336xbf16>
    %106 = vector.shape_cast %105 : vector<1x28x336xbf16> to vector<28x336xbf16>
    %cst_71 = arith.constant dense<0.000000e+00> : vector<80x336xf32>
    %107 = tpu.matmul %104, %106, %cst_71 {dimension_numbers = #tpu.dot_dimension_numbers<[1], [0], [0], [1], [0, 0, 1, 1], [], []>} : vector<80x28xbf16>, vector<28x336xbf16>, vector<80x336xf32> -> vector<80x336xf32>
    %108 = arith.addf %102, %107 : vector<80x336xf32>
    %109 = vector.extract_strided_slice %2 {offsets = [2, 0, 0], sizes = [5, 16, 28], strides = [1, 1, 1]} : vector<7x16x28xbf16> to vector<5x16x28xbf16>
    %110 = vector.shape_cast %109 : vector<5x16x28xbf16> to vector<80x28xbf16>
    %c7_72 = arith.constant 7 : index
    %c0_73 = arith.constant 0 : index
    %c0_74 = arith.constant 0 : index
    %111 = vector.load %arg2[%c7_72, %c0_73, %c0_74] : memref<8x28x336xbf16, #tpu.memory_space<vmem>>, vector<1x28x336xbf16>
    %112 = vector.shape_cast %111 : vector<1x28x336xbf16> to vector<28x336xbf16>
    %cst_75 = arith.constant dense<0.000000e+00> : vector<80x336xf32>
    %113 = tpu.matmul %110, %112, %cst_75 {dimension_numbers = #tpu.dot_dimension_numbers<[1], [0], [0], [1], [0, 0, 1, 1], [], []>} : vector<80x28xbf16>, vector<28x336xbf16>, vector<80x336xf32> -> vector<80x336xf32>
    %114 = arith.addf %108, %113 : vector<80x336xf32>
    %c0_76 = arith.constant 0 : index
    %c0_77 = arith.constant 0 : index
    %115 = vector.load %arg3[%c0_76, %c0_77] : memref<1x336xf32, #tpu.memory_space<vmem>>, vector<1x336xf32>
    %116 = vector.broadcast %115 : vector<1x336xf32> to vector<80x336xf32>
    %117 = arith.addf %114, %116 : vector<80x336xf32>
    %cst_78 = arith.constant 0.000000e+00 : f32
    %118 = vector.broadcast %cst_78 : f32 to vector<80x336xf32>
    %119 = arith.maximumf %117, %118 : vector<80x336xf32>
    %120 = arith.maximumf %65, %119 : vector<80x336xf32>
    %121 = vector.extract_strided_slice %120 {offsets = [0, 0], sizes = [80, 320], strides = [1, 1]} : vector<80x336xf32> to vector<80x320xf32>
    %122 = vector.extract_strided_slice %120 {offsets = [0, 16], sizes = [80, 320], strides = [1, 1]} : vector<80x336xf32> to vector<80x320xf32>
    %123 = arith.maximumf %121, %122 : vector<80x320xf32>
    %124 = arith.truncf %123 : vector<80x320xf32> to vector<80x320xbf16>
    %125 = vector.shape_cast %124 : vector<80x320xbf16> to vector<5x16x320xbf16>
    %cst_79 = arith.constant 0.000000e+00 : f32
    %126 = vector.broadcast %cst_79 : f32 to vector<80x336xf32>
    %127 = vector.extract_strided_slice %8 {offsets = [0, 0, 0], sizes = [5, 16, 28], strides = [1, 1, 1]} : vector<7x16x28xbf16> to vector<5x16x28xbf16>
    %128 = vector.shape_cast %127 : vector<5x16x28xbf16> to vector<80x28xbf16>
    %c0_80 = arith.constant 0 : index
    %c0_81 = arith.constant 0 : index
    %c0_82 = arith.constant 0 : index
    %129 = vector.load %arg2[%c0_80, %c0_81, %c0_82] : memref<8x28x336xbf16, #tpu.memory_space<vmem>>, vector<1x28x336xbf16>
    %130 = vector.shape_cast %129 : vector<1x28x336xbf16> to vector<28x336xbf16>
    %cst_83 = arith.constant dense<0.000000e+00> : vector<80x336xf32>
    %131 = tpu.matmul %128, %130, %cst_83 {dimension_numbers = #tpu.dot_dimension_numbers<[1], [0], [0], [1], [0, 0, 1, 1], [], []>} : vector<80x28xbf16>, vector<28x336xbf16>, vector<80x336xf32> -> vector<80x336xf32>
    %132 = arith.addf %126, %131 : vector<80x336xf32>
    %133 = vector.extract_strided_slice %11 {offsets = [0, 0, 0], sizes = [5, 16, 28], strides = [1, 1, 1]} : vector<7x16x28xbf16> to vector<5x16x28xbf16>
    %134 = vector.shape_cast %133 : vector<5x16x28xbf16> to vector<80x28xbf16>
    %c1_84 = arith.constant 1 : index
    %c0_85 = arith.constant 0 : index
    %c0_86 = arith.constant 0 : index
    %135 = vector.load %arg2[%c1_84, %c0_85, %c0_86] : memref<8x28x336xbf16, #tpu.memory_space<vmem>>, vector<1x28x336xbf16>
    %136 = vector.shape_cast %135 : vector<1x28x336xbf16> to vector<28x336xbf16>
    %cst_87 = arith.constant dense<0.000000e+00> : vector<80x336xf32>
    %137 = tpu.matmul %134, %136, %cst_87 {dimension_numbers = #tpu.dot_dimension_numbers<[1], [0], [0], [1], [0, 0, 1, 1], [], []>} : vector<80x28xbf16>, vector<28x336xbf16>, vector<80x336xf32> -> vector<80x336xf32>
    %138 = arith.addf %132, %137 : vector<80x336xf32>
    %139 = vector.extract_strided_slice %2 {offsets = [1, 0, 0], sizes = [5, 16, 28], strides = [1, 1, 1]} : vector<7x16x28xbf16> to vector<5x16x28xbf16>
    %140 = vector.shape_cast %139 : vector<5x16x28xbf16> to vector<80x28xbf16>
    %c2_88 = arith.constant 2 : index
    %c0_89 = arith.constant 0 : index
    %c0_90 = arith.constant 0 : index
    %141 = vector.load %arg2[%c2_88, %c0_89, %c0_90] : memref<8x28x336xbf16, #tpu.memory_space<vmem>>, vector<1x28x336xbf16>
    %142 = vector.shape_cast %141 : vector<1x28x336xbf16> to vector<28x336xbf16>
    %cst_91 = arith.constant dense<0.000000e+00> : vector<80x336xf32>
    %143 = tpu.matmul %140, %142, %cst_91 {dimension_numbers = #tpu.dot_dimension_numbers<[1], [0], [0], [1], [0, 0, 1, 1], [], []>} : vector<80x28xbf16>, vector<28x336xbf16>, vector<80x336xf32> -> vector<80x336xf32>
    %144 = arith.addf %138, %143 : vector<80x336xf32>
    %145 = vector.extract_strided_slice %5 {offsets = [1, 0, 0], sizes = [5, 16, 28], strides = [1, 1, 1]} : vector<7x16x28xbf16> to vector<5x16x28xbf16>
    %146 = vector.shape_cast %145 : vector<5x16x28xbf16> to vector<80x28xbf16>
    %c3_92 = arith.constant 3 : index
    %c0_93 = arith.constant 0 : index
    %c0_94 = arith.constant 0 : index
    %147 = vector.load %arg2[%c3_92, %c0_93, %c0_94] : memref<8x28x336xbf16, #tpu.memory_space<vmem>>, vector<1x28x336xbf16>
    %148 = vector.shape_cast %147 : vector<1x28x336xbf16> to vector<28x336xbf16>
    %cst_95 = arith.constant dense<0.000000e+00> : vector<80x336xf32>
    %149 = tpu.matmul %146, %148, %cst_95 {dimension_numbers = #tpu.dot_dimension_numbers<[1], [0], [0], [1], [0, 0, 1, 1], [], []>} : vector<80x28xbf16>, vector<28x336xbf16>, vector<80x336xf32> -> vector<80x336xf32>
    %150 = arith.addf %144, %149 : vector<80x336xf32>
    %151 = vector.extract_strided_slice %8 {offsets = [1, 0, 0], sizes = [5, 16, 28], strides = [1, 1, 1]} : vector<7x16x28xbf16> to vector<5x16x28xbf16>
    %152 = vector.shape_cast %151 : vector<5x16x28xbf16> to vector<80x28xbf16>
    %c4_96 = arith.constant 4 : index
    %c0_97 = arith.constant 0 : index
    %c0_98 = arith.constant 0 : index
    %153 = vector.load %arg2[%c4_96, %c0_97, %c0_98] : memref<8x28x336xbf16, #tpu.memory_space<vmem>>, vector<1x28x336xbf16>
    %154 = vector.shape_cast %153 : vector<1x28x336xbf16> to vector<28x336xbf16>
    %cst_99 = arith.constant dense<0.000000e+00> : vector<80x336xf32>
    %155 = tpu.matmul %152, %154, %cst_99 {dimension_numbers = #tpu.dot_dimension_numbers<[1], [0], [0], [1], [0, 0, 1, 1], [], []>} : vector<80x28xbf16>, vector<28x336xbf16>, vector<80x336xf32> -> vector<80x336xf32>
    %156 = arith.addf %150, %155 : vector<80x336xf32>
    %157 = vector.extract_strided_slice %11 {offsets = [1, 0, 0], sizes = [5, 16, 28], strides = [1, 1, 1]} : vector<7x16x28xbf16> to vector<5x16x28xbf16>
    %158 = vector.shape_cast %157 : vector<5x16x28xbf16> to vector<80x28xbf16>
    %c5_100 = arith.constant 5 : index
    %c0_101 = arith.constant 0 : index
    %c0_102 = arith.constant 0 : index
    %159 = vector.load %arg2[%c5_100, %c0_101, %c0_102] : memref<8x28x336xbf16, #tpu.memory_space<vmem>>, vector<1x28x336xbf16>
    %160 = vector.shape_cast %159 : vector<1x28x336xbf16> to vector<28x336xbf16>
    %cst_103 = arith.constant dense<0.000000e+00> : vector<80x336xf32>
    %161 = tpu.matmul %158, %160, %cst_103 {dimension_numbers = #tpu.dot_dimension_numbers<[1], [0], [0], [1], [0, 0, 1, 1], [], []>} : vector<80x28xbf16>, vector<28x336xbf16>, vector<80x336xf32> -> vector<80x336xf32>
    %162 = arith.addf %156, %161 : vector<80x336xf32>
    %163 = vector.extract_strided_slice %2 {offsets = [2, 0, 0], sizes = [5, 16, 28], strides = [1, 1, 1]} : vector<7x16x28xbf16> to vector<5x16x28xbf16>
    %164 = vector.shape_cast %163 : vector<5x16x28xbf16> to vector<80x28xbf16>
    %c6_104 = arith.constant 6 : index
    %c0_105 = arith.constant 0 : index
    %c0_106 = arith.constant 0 : index
    %165 = vector.load %arg2[%c6_104, %c0_105, %c0_106] : memref<8x28x336xbf16, #tpu.memory_space<vmem>>, vector<1x28x336xbf16>
    %166 = vector.shape_cast %165 : vector<1x28x336xbf16> to vector<28x336xbf16>
    %cst_107 = arith.constant dense<0.000000e+00> : vector<80x336xf32>
    %167 = tpu.matmul %164, %166, %cst_107 {dimension_numbers = #tpu.dot_dimension_numbers<[1], [0], [0], [1], [0, 0, 1, 1], [], []>} : vector<80x28xbf16>, vector<28x336xbf16>, vector<80x336xf32> -> vector<80x336xf32>
    %168 = arith.addf %162, %167 : vector<80x336xf32>
    %169 = vector.extract_strided_slice %5 {offsets = [2, 0, 0], sizes = [5, 16, 28], strides = [1, 1, 1]} : vector<7x16x28xbf16> to vector<5x16x28xbf16>
    %170 = vector.shape_cast %169 : vector<5x16x28xbf16> to vector<80x28xbf16>
    %c7_108 = arith.constant 7 : index
    %c0_109 = arith.constant 0 : index
    %c0_110 = arith.constant 0 : index
    %171 = vector.load %arg2[%c7_108, %c0_109, %c0_110] : memref<8x28x336xbf16, #tpu.memory_space<vmem>>, vector<1x28x336xbf16>
    %172 = vector.shape_cast %171 : vector<1x28x336xbf16> to vector<28x336xbf16>
    %cst_111 = arith.constant dense<0.000000e+00> : vector<80x336xf32>
    %173 = tpu.matmul %170, %172, %cst_111 {dimension_numbers = #tpu.dot_dimension_numbers<[1], [0], [0], [1], [0, 0, 1, 1], [], []>} : vector<80x28xbf16>, vector<28x336xbf16>, vector<80x336xf32> -> vector<80x336xf32>
    %174 = arith.addf %168, %173 : vector<80x336xf32>
    %c0_112 = arith.constant 0 : index
    %c0_113 = arith.constant 0 : index
    %175 = vector.load %arg3[%c0_112, %c0_113] : memref<1x336xf32, #tpu.memory_space<vmem>>, vector<1x336xf32>
    %176 = vector.broadcast %175 : vector<1x336xf32> to vector<80x336xf32>
    %177 = arith.addf %174, %176 : vector<80x336xf32>
    %cst_114 = arith.constant 0.000000e+00 : f32
    %178 = vector.broadcast %cst_114 : f32 to vector<80x336xf32>
    %179 = arith.maximumf %177, %178 : vector<80x336xf32>
    %cst_115 = arith.constant 0.000000e+00 : f32
    %180 = vector.broadcast %cst_115 : f32 to vector<80x336xf32>
    %181 = vector.extract_strided_slice %11 {offsets = [0, 0, 0], sizes = [5, 16, 28], strides = [1, 1, 1]} : vector<7x16x28xbf16> to vector<5x16x28xbf16>
    %182 = vector.shape_cast %181 : vector<5x16x28xbf16> to vector<80x28xbf16>
    %c0_116 = arith.constant 0 : index
    %c0_117 = arith.constant 0 : index
    %c0_118 = arith.constant 0 : index
    %183 = vector.load %arg2[%c0_116, %c0_117, %c0_118] : memref<8x28x336xbf16, #tpu.memory_space<vmem>>, vector<1x28x336xbf16>
    %184 = vector.shape_cast %183 : vector<1x28x336xbf16> to vector<28x336xbf16>
    %cst_119 = arith.constant dense<0.000000e+00> : vector<80x336xf32>
    %185 = tpu.matmul %182, %184, %cst_119 {dimension_numbers = #tpu.dot_dimension_numbers<[1], [0], [0], [1], [0, 0, 1, 1], [], []>} : vector<80x28xbf16>, vector<28x336xbf16>, vector<80x336xf32> -> vector<80x336xf32>
    %186 = arith.addf %180, %185 : vector<80x336xf32>
    %187 = vector.extract_strided_slice %2 {offsets = [1, 0, 0], sizes = [5, 16, 28], strides = [1, 1, 1]} : vector<7x16x28xbf16> to vector<5x16x28xbf16>
    %188 = vector.shape_cast %187 : vector<5x16x28xbf16> to vector<80x28xbf16>
    %c1_120 = arith.constant 1 : index
    %c0_121 = arith.constant 0 : index
    %c0_122 = arith.constant 0 : index
    %189 = vector.load %arg2[%c1_120, %c0_121, %c0_122] : memref<8x28x336xbf16, #tpu.memory_space<vmem>>, vector<1x28x336xbf16>
    %190 = vector.shape_cast %189 : vector<1x28x336xbf16> to vector<28x336xbf16>
    %cst_123 = arith.constant dense<0.000000e+00> : vector<80x336xf32>
    %191 = tpu.matmul %188, %190, %cst_123 {dimension_numbers = #tpu.dot_dimension_numbers<[1], [0], [0], [1], [0, 0, 1, 1], [], []>} : vector<80x28xbf16>, vector<28x336xbf16>, vector<80x336xf32> -> vector<80x336xf32>
    %192 = arith.addf %186, %191 : vector<80x336xf32>
    %193 = vector.extract_strided_slice %5 {offsets = [1, 0, 0], sizes = [5, 16, 28], strides = [1, 1, 1]} : vector<7x16x28xbf16> to vector<5x16x28xbf16>
    %194 = vector.shape_cast %193 : vector<5x16x28xbf16> to vector<80x28xbf16>
    %c2_124 = arith.constant 2 : index
    %c0_125 = arith.constant 0 : index
    %c0_126 = arith.constant 0 : index
    %195 = vector.load %arg2[%c2_124, %c0_125, %c0_126] : memref<8x28x336xbf16, #tpu.memory_space<vmem>>, vector<1x28x336xbf16>
    %196 = vector.shape_cast %195 : vector<1x28x336xbf16> to vector<28x336xbf16>
    %cst_127 = arith.constant dense<0.000000e+00> : vector<80x336xf32>
    %197 = tpu.matmul %194, %196, %cst_127 {dimension_numbers = #tpu.dot_dimension_numbers<[1], [0], [0], [1], [0, 0, 1, 1], [], []>} : vector<80x28xbf16>, vector<28x336xbf16>, vector<80x336xf32> -> vector<80x336xf32>
    %198 = arith.addf %192, %197 : vector<80x336xf32>
    %199 = vector.extract_strided_slice %8 {offsets = [1, 0, 0], sizes = [5, 16, 28], strides = [1, 1, 1]} : vector<7x16x28xbf16> to vector<5x16x28xbf16>
    %200 = vector.shape_cast %199 : vector<5x16x28xbf16> to vector<80x28xbf16>
    %c3_128 = arith.constant 3 : index
    %c0_129 = arith.constant 0 : index
    %c0_130 = arith.constant 0 : index
    %201 = vector.load %arg2[%c3_128, %c0_129, %c0_130] : memref<8x28x336xbf16, #tpu.memory_space<vmem>>, vector<1x28x336xbf16>
    %202 = vector.shape_cast %201 : vector<1x28x336xbf16> to vector<28x336xbf16>
    %cst_131 = arith.constant dense<0.000000e+00> : vector<80x336xf32>
    %203 = tpu.matmul %200, %202, %cst_131 {dimension_numbers = #tpu.dot_dimension_numbers<[1], [0], [0], [1], [0, 0, 1, 1], [], []>} : vector<80x28xbf16>, vector<28x336xbf16>, vector<80x336xf32> -> vector<80x336xf32>
    %204 = arith.addf %198, %203 : vector<80x336xf32>
    %205 = vector.extract_strided_slice %11 {offsets = [1, 0, 0], sizes = [5, 16, 28], strides = [1, 1, 1]} : vector<7x16x28xbf16> to vector<5x16x28xbf16>
    %206 = vector.shape_cast %205 : vector<5x16x28xbf16> to vector<80x28xbf16>
    %c4_132 = arith.constant 4 : index
    %c0_133 = arith.constant 0 : index
    %c0_134 = arith.constant 0 : index
    %207 = vector.load %arg2[%c4_132, %c0_133, %c0_134] : memref<8x28x336xbf16, #tpu.memory_space<vmem>>, vector<1x28x336xbf16>
    %208 = vector.shape_cast %207 : vector<1x28x336xbf16> to vector<28x336xbf16>
    %cst_135 = arith.constant dense<0.000000e+00> : vector<80x336xf32>
    %209 = tpu.matmul %206, %208, %cst_135 {dimension_numbers = #tpu.dot_dimension_numbers<[1], [0], [0], [1], [0, 0, 1, 1], [], []>} : vector<80x28xbf16>, vector<28x336xbf16>, vector<80x336xf32> -> vector<80x336xf32>
    %210 = arith.addf %204, %209 : vector<80x336xf32>
    %211 = vector.extract_strided_slice %2 {offsets = [2, 0, 0], sizes = [5, 16, 28], strides = [1, 1, 1]} : vector<7x16x28xbf16> to vector<5x16x28xbf16>
    %212 = vector.shape_cast %211 : vector<5x16x28xbf16> to vector<80x28xbf16>
    %c5_136 = arith.constant 5 : index
    %c0_137 = arith.constant 0 : index
    %c0_138 = arith.constant 0 : index
    %213 = vector.load %arg2[%c5_136, %c0_137, %c0_138] : memref<8x28x336xbf16, #tpu.memory_space<vmem>>, vector<1x28x336xbf16>
    %214 = vector.shape_cast %213 : vector<1x28x336xbf16> to vector<28x336xbf16>
    %cst_139 = arith.constant dense<0.000000e+00> : vector<80x336xf32>
    %215 = tpu.matmul %212, %214, %cst_139 {dimension_numbers = #tpu.dot_dimension_numbers<[1], [0], [0], [1], [0, 0, 1, 1], [], []>} : vector<80x28xbf16>, vector<28x336xbf16>, vector<80x336xf32> -> vector<80x336xf32>
    %216 = arith.addf %210, %215 : vector<80x336xf32>
    %217 = vector.extract_strided_slice %5 {offsets = [2, 0, 0], sizes = [5, 16, 28], strides = [1, 1, 1]} : vector<7x16x28xbf16> to vector<5x16x28xbf16>
    %218 = vector.shape_cast %217 : vector<5x16x28xbf16> to vector<80x28xbf16>
    %c6_140 = arith.constant 6 : index
    %c0_141 = arith.constant 0 : index
    %c0_142 = arith.constant 0 : index
    %219 = vector.load %arg2[%c6_140, %c0_141, %c0_142] : memref<8x28x336xbf16, #tpu.memory_space<vmem>>, vector<1x28x336xbf16>
    %220 = vector.shape_cast %219 : vector<1x28x336xbf16> to vector<28x336xbf16>
    %cst_143 = arith.constant dense<0.000000e+00> : vector<80x336xf32>
    %221 = tpu.matmul %218, %220, %cst_143 {dimension_numbers = #tpu.dot_dimension_numbers<[1], [0], [0], [1], [0, 0, 1, 1], [], []>} : vector<80x28xbf16>, vector<28x336xbf16>, vector<80x336xf32> -> vector<80x336xf32>
    %222 = arith.addf %216, %221 : vector<80x336xf32>
    %223 = vector.extract_strided_slice %8 {offsets = [2, 0, 0], sizes = [5, 16, 28], strides = [1, 1, 1]} : vector<7x16x28xbf16> to vector<5x16x28xbf16>
    %224 = vector.shape_cast %223 : vector<5x16x28xbf16> to vector<80x28xbf16>
    %c7_144 = arith.constant 7 : index
    %c0_145 = arith.constant 0 : index
    %c0_146 = arith.constant 0 : index
    %225 = vector.load %arg2[%c7_144, %c0_145, %c0_146] : memref<8x28x336xbf16, #tpu.memory_space<vmem>>, vector<1x28x336xbf16>
    %226 = vector.shape_cast %225 : vector<1x28x336xbf16> to vector<28x336xbf16>
    %cst_147 = arith.constant dense<0.000000e+00> : vector<80x336xf32>
    %227 = tpu.matmul %224, %226, %cst_147 {dimension_numbers = #tpu.dot_dimension_numbers<[1], [0], [0], [1], [0, 0, 1, 1], [], []>} : vector<80x28xbf16>, vector<28x336xbf16>, vector<80x336xf32> -> vector<80x336xf32>
    %228 = arith.addf %222, %227 : vector<80x336xf32>
    %c0_148 = arith.constant 0 : index
    %c0_149 = arith.constant 0 : index
    %229 = vector.load %arg3[%c0_148, %c0_149] : memref<1x336xf32, #tpu.memory_space<vmem>>, vector<1x336xf32>
    %230 = vector.broadcast %229 : vector<1x336xf32> to vector<80x336xf32>
    %231 = arith.addf %228, %230 : vector<80x336xf32>
    %cst_150 = arith.constant 0.000000e+00 : f32
    %232 = vector.broadcast %cst_150 : f32 to vector<80x336xf32>
    %233 = arith.maximumf %231, %232 : vector<80x336xf32>
    %234 = arith.maximumf %179, %233 : vector<80x336xf32>
    %235 = vector.extract_strided_slice %234 {offsets = [0, 0], sizes = [80, 320], strides = [1, 1]} : vector<80x336xf32> to vector<80x320xf32>
    %236 = vector.extract_strided_slice %234 {offsets = [0, 16], sizes = [80, 320], strides = [1, 1]} : vector<80x336xf32> to vector<80x320xf32>
    %237 = arith.maximumf %235, %236 : vector<80x320xf32>
    %238 = arith.truncf %237 : vector<80x320xf32> to vector<80x320xbf16>
    %239 = vector.shape_cast %238 : vector<80x320xbf16> to vector<5x16x320xbf16>
    %cst_151 = arith.constant 0.000000e+00 : f32
    %240 = vector.broadcast %cst_151 : f32 to vector<48x224xf32>
    %cst_152 = arith.constant 0.000000e+00 : f32
    %241 = vector.broadcast %cst_152 : f32 to vector<48x224xf32>
    %c0_153 = arith.constant 0 : index
    %c0_154 = arith.constant 0 : index
    %c0_155 = arith.constant 0 : index
    %242 = vector.load %arg4[%c0_153, %c0_154, %c0_155] : memref<4x320x224xbf16, #tpu.memory_space<vmem>>, vector<1x320x224xbf16>
    %243 = vector.shape_cast %242 : vector<1x320x224xbf16> to vector<320x224xbf16>
    %244 = vector.extract_strided_slice %125 {offsets = [0, 0, 0], sizes = [3, 16, 320], strides = [1, 1, 1]} : vector<5x16x320xbf16> to vector<3x16x320xbf16>
    %245 = vector.extract_strided_slice %239 {offsets = [0, 0, 0], sizes = [3, 16, 320], strides = [1, 1, 1]} : vector<5x16x320xbf16> to vector<3x16x320xbf16>
    %246 = vector.shape_cast %244 : vector<3x16x320xbf16> to vector<48x320xbf16>
    %cst_156 = arith.constant dense<0.000000e+00> : vector<48x224xf32>
    %247 = tpu.matmul %246, %243, %cst_156 {dimension_numbers = #tpu.dot_dimension_numbers<[1], [0], [0], [1], [0, 0, 1, 1], [], []>} : vector<48x320xbf16>, vector<320x224xbf16>, vector<48x224xf32> -> vector<48x224xf32>
    %248 = arith.addf %240, %247 : vector<48x224xf32>
    %249 = vector.shape_cast %245 : vector<3x16x320xbf16> to vector<48x320xbf16>
    %cst_157 = arith.constant dense<0.000000e+00> : vector<48x224xf32>
    %250 = tpu.matmul %249, %243, %cst_157 {dimension_numbers = #tpu.dot_dimension_numbers<[1], [0], [0], [1], [0, 0, 1, 1], [], []>} : vector<48x320xbf16>, vector<320x224xbf16>, vector<48x224xf32> -> vector<48x224xf32>
    %251 = arith.addf %241, %250 : vector<48x224xf32>
    %c1_158 = arith.constant 1 : index
    %c0_159 = arith.constant 0 : index
    %c0_160 = arith.constant 0 : index
    %252 = vector.load %arg4[%c1_158, %c0_159, %c0_160] : memref<4x320x224xbf16, #tpu.memory_space<vmem>>, vector<1x320x224xbf16>
    %253 = vector.shape_cast %252 : vector<1x320x224xbf16> to vector<320x224xbf16>
    %254 = vector.extract_strided_slice %239 {offsets = [0, 0, 0], sizes = [3, 16, 320], strides = [1, 1, 1]} : vector<5x16x320xbf16> to vector<3x16x320xbf16>
    %255 = vector.extract_strided_slice %125 {offsets = [1, 0, 0], sizes = [3, 16, 320], strides = [1, 1, 1]} : vector<5x16x320xbf16> to vector<3x16x320xbf16>
    %256 = vector.shape_cast %254 : vector<3x16x320xbf16> to vector<48x320xbf16>
    %cst_161 = arith.constant dense<0.000000e+00> : vector<48x224xf32>
    %257 = tpu.matmul %256, %253, %cst_161 {dimension_numbers = #tpu.dot_dimension_numbers<[1], [0], [0], [1], [0, 0, 1, 1], [], []>} : vector<48x320xbf16>, vector<320x224xbf16>, vector<48x224xf32> -> vector<48x224xf32>
    %258 = arith.addf %248, %257 : vector<48x224xf32>
    %259 = vector.shape_cast %255 : vector<3x16x320xbf16> to vector<48x320xbf16>
    %cst_162 = arith.constant dense<0.000000e+00> : vector<48x224xf32>
    %260 = tpu.matmul %259, %253, %cst_162 {dimension_numbers = #tpu.dot_dimension_numbers<[1], [0], [0], [1], [0, 0, 1, 1], [], []>} : vector<48x320xbf16>, vector<320x224xbf16>, vector<48x224xf32> -> vector<48x224xf32>
    %261 = arith.addf %251, %260 : vector<48x224xf32>
    %c2_163 = arith.constant 2 : index
    %c0_164 = arith.constant 0 : index
    %c0_165 = arith.constant 0 : index
    %262 = vector.load %arg4[%c2_163, %c0_164, %c0_165] : memref<4x320x224xbf16, #tpu.memory_space<vmem>>, vector<1x320x224xbf16>
    %263 = vector.shape_cast %262 : vector<1x320x224xbf16> to vector<320x224xbf16>
    %264 = vector.extract_strided_slice %125 {offsets = [1, 0, 0], sizes = [3, 16, 320], strides = [1, 1, 1]} : vector<5x16x320xbf16> to vector<3x16x320xbf16>
    %265 = vector.extract_strided_slice %239 {offsets = [1, 0, 0], sizes = [3, 16, 320], strides = [1, 1, 1]} : vector<5x16x320xbf16> to vector<3x16x320xbf16>
    %266 = vector.shape_cast %264 : vector<3x16x320xbf16> to vector<48x320xbf16>
    %cst_166 = arith.constant dense<0.000000e+00> : vector<48x224xf32>
    %267 = tpu.matmul %266, %263, %cst_166 {dimension_numbers = #tpu.dot_dimension_numbers<[1], [0], [0], [1], [0, 0, 1, 1], [], []>} : vector<48x320xbf16>, vector<320x224xbf16>, vector<48x224xf32> -> vector<48x224xf32>
    %268 = arith.addf %258, %267 : vector<48x224xf32>
    %269 = vector.shape_cast %265 : vector<3x16x320xbf16> to vector<48x320xbf16>
    %cst_167 = arith.constant dense<0.000000e+00> : vector<48x224xf32>
    %270 = tpu.matmul %269, %263, %cst_167 {dimension_numbers = #tpu.dot_dimension_numbers<[1], [0], [0], [1], [0, 0, 1, 1], [], []>} : vector<48x320xbf16>, vector<320x224xbf16>, vector<48x224xf32> -> vector<48x224xf32>
    %271 = arith.addf %261, %270 : vector<48x224xf32>
    %c3_168 = arith.constant 3 : index
    %c0_169 = arith.constant 0 : index
    %c0_170 = arith.constant 0 : index
    %272 = vector.load %arg4[%c3_168, %c0_169, %c0_170] : memref<4x320x224xbf16, #tpu.memory_space<vmem>>, vector<1x320x224xbf16>
    %273 = vector.shape_cast %272 : vector<1x320x224xbf16> to vector<320x224xbf16>
    %274 = vector.extract_strided_slice %239 {offsets = [1, 0, 0], sizes = [3, 16, 320], strides = [1, 1, 1]} : vector<5x16x320xbf16> to vector<3x16x320xbf16>
    %275 = vector.extract_strided_slice %125 {offsets = [2, 0, 0], sizes = [3, 16, 320], strides = [1, 1, 1]} : vector<5x16x320xbf16> to vector<3x16x320xbf16>
    %276 = vector.shape_cast %274 : vector<3x16x320xbf16> to vector<48x320xbf16>
    %cst_171 = arith.constant dense<0.000000e+00> : vector<48x224xf32>
    %277 = tpu.matmul %276, %273, %cst_171 {dimension_numbers = #tpu.dot_dimension_numbers<[1], [0], [0], [1], [0, 0, 1, 1], [], []>} : vector<48x320xbf16>, vector<320x224xbf16>, vector<48x224xf32> -> vector<48x224xf32>
    %278 = arith.addf %268, %277 : vector<48x224xf32>
    %279 = vector.shape_cast %275 : vector<3x16x320xbf16> to vector<48x320xbf16>
    %cst_172 = arith.constant dense<0.000000e+00> : vector<48x224xf32>
    %280 = tpu.matmul %279, %273, %cst_172 {dimension_numbers = #tpu.dot_dimension_numbers<[1], [0], [0], [1], [0, 0, 1, 1], [], []>} : vector<48x320xbf16>, vector<320x224xbf16>, vector<48x224xf32> -> vector<48x224xf32>
    %281 = arith.addf %271, %280 : vector<48x224xf32>
    %c0_173 = arith.constant 0 : index
    %c0_174 = arith.constant 0 : index
    %282 = vector.load %arg5[%c0_173, %c0_174] : memref<1x224xf32, #tpu.memory_space<vmem>>, vector<1x224xf32>
    %283 = vector.broadcast %282 : vector<1x224xf32> to vector<48x224xf32>
    %284 = arith.addf %278, %283 : vector<48x224xf32>
    %cst_175 = arith.constant 0.000000e+00 : f32
    %285 = vector.broadcast %cst_175 : f32 to vector<48x224xf32>
    %286 = arith.maximumf %284, %285 : vector<48x224xf32>
    %c0_176 = arith.constant 0 : index
    %c0_177 = arith.constant 0 : index
    %287 = vector.load %arg5[%c0_176, %c0_177] : memref<1x224xf32, #tpu.memory_space<vmem>>, vector<1x224xf32>
    %288 = vector.broadcast %287 : vector<1x224xf32> to vector<48x224xf32>
    %289 = arith.addf %281, %288 : vector<48x224xf32>
    %cst_178 = arith.constant 0.000000e+00 : f32
    %290 = vector.broadcast %cst_178 : f32 to vector<48x224xf32>
    %291 = arith.maximumf %289, %290 : vector<48x224xf32>
    %292 = arith.maximumf %286, %291 : vector<48x224xf32>
    %293 = vector.extract_strided_slice %292 {offsets = [0, 0], sizes = [48, 192], strides = [1, 1]} : vector<48x224xf32> to vector<48x192xf32>
    %294 = vector.extract_strided_slice %292 {offsets = [0, 32], sizes = [48, 192], strides = [1, 1]} : vector<48x224xf32> to vector<48x192xf32>
    %295 = arith.maximumf %293, %294 : vector<48x192xf32>
    %296 = arith.truncf %295 : vector<48x192xf32> to vector<48x192xbf16>
    %297 = vector.shape_cast %296 : vector<48x192xbf16> to vector<3x16x192xbf16>
    %cst_179 = arith.constant 0.000000e+00 : f32
    %298 = vector.broadcast %cst_179 : f32 to vector<16x50xf32>
    %299 = vector.extract_strided_slice %297 {offsets = [0, 0, 0], sizes = [1, 16, 192], strides = [1, 1, 1]} : vector<3x16x192xbf16> to vector<1x16x192xbf16>
    %300 = vector.shape_cast %299 : vector<1x16x192xbf16> to vector<16x192xbf16>
    %c0_180 = arith.constant 0 : index
    %c0_181 = arith.constant 0 : index
    %c0_182 = arith.constant 0 : index
    %301 = vector.load %arg6[%c0_180, %c0_181, %c0_182] : memref<3x192x50xbf16, #tpu.memory_space<vmem>>, vector<1x192x50xbf16>
    %302 = vector.shape_cast %301 : vector<1x192x50xbf16> to vector<192x50xbf16>
    %cst_183 = arith.constant dense<0.000000e+00> : vector<16x50xf32>
    %303 = tpu.matmul %300, %302, %cst_183 {dimension_numbers = #tpu.dot_dimension_numbers<[1], [0], [0], [1], [0, 0, 1, 1], [], []>} : vector<16x192xbf16>, vector<192x50xbf16>, vector<16x50xf32> -> vector<16x50xf32>
    %304 = arith.addf %298, %303 : vector<16x50xf32>
    %305 = vector.extract_strided_slice %297 {offsets = [1, 0, 0], sizes = [1, 16, 192], strides = [1, 1, 1]} : vector<3x16x192xbf16> to vector<1x16x192xbf16>
    %306 = vector.shape_cast %305 : vector<1x16x192xbf16> to vector<16x192xbf16>
    %c1_184 = arith.constant 1 : index
    %c0_185 = arith.constant 0 : index
    %c0_186 = arith.constant 0 : index
    %307 = vector.load %arg6[%c1_184, %c0_185, %c0_186] : memref<3x192x50xbf16, #tpu.memory_space<vmem>>, vector<1x192x50xbf16>
    %308 = vector.shape_cast %307 : vector<1x192x50xbf16> to vector<192x50xbf16>
    %cst_187 = arith.constant dense<0.000000e+00> : vector<16x50xf32>
    %309 = tpu.matmul %306, %308, %cst_187 {dimension_numbers = #tpu.dot_dimension_numbers<[1], [0], [0], [1], [0, 0, 1, 1], [], []>} : vector<16x192xbf16>, vector<192x50xbf16>, vector<16x50xf32> -> vector<16x50xf32>
    %310 = arith.addf %304, %309 : vector<16x50xf32>
    %311 = vector.extract_strided_slice %297 {offsets = [2, 0, 0], sizes = [1, 16, 192], strides = [1, 1, 1]} : vector<3x16x192xbf16> to vector<1x16x192xbf16>
    %312 = vector.shape_cast %311 : vector<1x16x192xbf16> to vector<16x192xbf16>
    %c2_188 = arith.constant 2 : index
    %c0_189 = arith.constant 0 : index
    %c0_190 = arith.constant 0 : index
    %313 = vector.load %arg6[%c2_188, %c0_189, %c0_190] : memref<3x192x50xbf16, #tpu.memory_space<vmem>>, vector<1x192x50xbf16>
    %314 = vector.shape_cast %313 : vector<1x192x50xbf16> to vector<192x50xbf16>
    %cst_191 = arith.constant dense<0.000000e+00> : vector<16x50xf32>
    %315 = tpu.matmul %312, %314, %cst_191 {dimension_numbers = #tpu.dot_dimension_numbers<[1], [0], [0], [1], [0, 0, 1, 1], [], []>} : vector<16x192xbf16>, vector<192x50xbf16>, vector<16x50xf32> -> vector<16x50xf32>
    %316 = arith.addf %310, %315 : vector<16x50xf32>
    %c0_192 = arith.constant 0 : index
    %c0_193 = arith.constant 0 : index
    %317 = vector.load %arg7[%c0_192, %c0_193] : memref<1x50xf32, #tpu.memory_space<vmem>>, vector<1x50xf32>
    %318 = vector.broadcast %317 : vector<1x50xf32> to vector<16x50xf32>
    %319 = arith.addf %316, %318 : vector<16x50xf32>
    %cst_194 = arith.constant 0.000000e+00 : f32
    %320 = vector.broadcast %cst_194 : f32 to vector<16x50xf32>
    %321 = arith.maximumf %319, %320 : vector<16x50xf32>
    %322 = arith.truncf %321 : vector<16x50xf32> to vector<16x50xbf16>
    %c0_195 = arith.constant 0 : index
    %c0_196 = arith.constant 0 : index
    %323 = vector.load %arg8[%c0_195, %c0_196] : memref<50x128xbf16, #tpu.memory_space<vmem>>, vector<50x128xbf16>
    %cst_197 = arith.constant dense<0.000000e+00> : vector<16x128xf32>
    %324 = tpu.matmul %322, %323, %cst_197 {dimension_numbers = #tpu.dot_dimension_numbers<[1], [0], [0], [1], [0, 0, 1, 1], [], []>} : vector<16x50xbf16>, vector<50x128xbf16>, vector<16x128xf32> -> vector<16x128xf32>
    %c0_198 = arith.constant 0 : index
    %c0_199 = arith.constant 0 : index
    %325 = vector.load %arg9[%c0_198, %c0_199] : memref<1x128xf32, #tpu.memory_space<vmem>>, vector<1x128xf32>
    %326 = vector.broadcast %325 : vector<1x128xf32> to vector<16x128xf32>
    %327 = arith.addf %324, %326 : vector<16x128xf32>
    %cst_200 = arith.constant dense<0xFF800000> : vector<16xf32>
    %328 = vector.multi_reduction <maximumf>, %327, %cst_200 [1] : vector<16x128xf32> to vector<16xf32>
    %329 = vector.shape_cast %328 : vector<16xf32> to vector<16x1xf32>
    %330 = vector.broadcast %329 : vector<16x1xf32> to vector<16x128xf32>
    %331 = arith.subf %327, %330 : vector<16x128xf32>
    %332 = math.exp %331 : vector<16x128xf32>
    %cst_201 = arith.constant dense<0.000000e+00> : vector<16xf32>
    %333 = vector.multi_reduction <add>, %332, %cst_201 [1] : vector<16x128xf32> to vector<16xf32>
    %334 = vector.shape_cast %333 : vector<16xf32> to vector<16x1xf32>
    %335 = math.log %334 : vector<16x1xf32>
    %336 = vector.broadcast %335 : vector<16x1xf32> to vector<16x128xf32>
    %337 = arith.subf %331, %336 : vector<16x128xf32>
    %c0_202 = arith.constant 0 : index
    %c0_203 = arith.constant 0 : index
    %338 = vector.load %arg10[%c0_202, %c0_203] : memref<16x128xf32, #tpu.memory_space<vmem>>, vector<16x128xf32>
    tpu.vector_store %arg10[%c0_202, %c0_203], %337 {strides = array<i32>} : memref<16x128xf32, #tpu.memory_space<vmem>>, vector<16x128xf32>,
    return
  }
  func.func @transform_0(%arg0: i32) -> (i32, i32, i32, i32) {
    %c0_i32 = arith.constant 0 : i32
    %c0_i32_0 = arith.constant 0 : i32
    %c0_i32_1 = arith.constant 0 : i32
    %c0_i32_2 = arith.constant 0 : i32
    return %c0_i32, %c0_i32_0, %arg0, %c0_i32_1 : i32, i32, i32, i32
  }
  func.func @transform_1(%arg0: i32) -> (i32, i32, i32) {
    %c0_i32 = arith.constant 0 : i32
    %c0_i32_0 = arith.constant 0 : i32
    %c0_i32_1 = arith.constant 0 : i32
    %c0_i32_2 = arith.constant 0 : i32
    return %c0_i32, %c0_i32_0, %c0_i32_1 : i32, i32, i32
  }
  func.func @transform_2(%arg0: i32) -> (i32, i32) {
    %c0_i32 = arith.constant 0 : i32
    %c0_i32_0 = arith.constant 0 : i32
    %c0_i32_1 = arith.constant 0 : i32
    return %c0_i32, %c0_i32_0 : i32, i32
  }
  func.func @transform_3(%arg0: i32) -> (i32, i32, i32) {
    %c0_i32 = arith.constant 0 : i32
    %c0_i32_0 = arith.constant 0 : i32
    %c0_i32_1 = arith.constant 0 : i32
    %c0_i32_2 = arith.constant 0 : i32
    return %c0_i32, %c0_i32_0, %c0_i32_1 : i32, i32, i32
  }
  func.func @transform_4(%arg0: i32) -> (i32, i32) {
    %c0_i32 = arith.constant 0 : i32
    %c0_i32_0 = arith.constant 0 : i32
    %c0_i32_1 = arith.constant 0 : i32
    return %c0_i32, %c0_i32_0 : i32, i32
  }
  func.func @transform_5(%arg0: i32) -> (i32, i32, i32) {
    %c0_i32 = arith.constant 0 : i32
    %c0_i32_0 = arith.constant 0 : i32
    %c0_i32_1 = arith.constant 0 : i32
    %c0_i32_2 = arith.constant 0 : i32
    return %c0_i32, %c0_i32_0, %c0_i32_1 : i32, i32, i32
  }
  func.func @transform_6(%arg0: i32) -> (i32, i32) {
    %c0_i32 = arith.constant 0 : i32
    %c0_i32_0 = arith.constant 0 : i32
    %c0_i32_1 = arith.constant 0 : i32
    return %c0_i32, %c0_i32_0 : i32, i32
  }
  func.func @transform_7(%arg0: i32) -> (i32, i32) {
    %c0_i32 = arith.constant 0 : i32
    %c0_i32_0 = arith.constant 0 : i32
    %c0_i32_1 = arith.constant 0 : i32
    return %c0_i32, %c0_i32_0 : i32, i32
  }
  func.func @transform_8(%arg0: i32) -> (i32, i32) {
    %c0_i32 = arith.constant 0 : i32
    %c0_i32_0 = arith.constant 0 : i32
    %c0_i32_1 = arith.constant 0 : i32
    return %c0_i32, %c0_i32_0 : i32, i32
  }
  func.func @transform_9(%arg0: i32) -> (i32, i32) {
    %c0_i32 = arith.constant 0 : i32
    %c0_i32_0 = arith.constant 0 : i32
    return %arg0, %c0_i32 : i32, i32
  }
}

</mosaic_0001>

<llo_original>
// kernel: net_forward.1
$region0: #{net_forward.1}
  #allocation0 [shape = 'u32[]', space=smem, size = 0x4, offset = 0x4, fixed_abs, tag = 'smem constant byte address 0x4 - core index']
  #allocation1 [shape = 'u32[144,128]{1,0:T(1,128)}', space=vmem, size = 0x12000, scoped, tag = 'internal scratch']
  %s0 = inlined_call_operand.vmem [shape: f32[4,7,32,28], index: 0, kind: input, shape index: {}]
  %s1 = inlined_call_operand.vmem [shape: bf16[8,28,336], index: 1, kind: input, shape index: {}]
  %s2 = inlined_call_operand.vmem [shape: f32[1,336], index: 2, kind: input, shape index: {}]
  %s3 = inlined_call_operand.vmem [shape: bf16[4,320,224], index: 3, kind: input, shape index: {}]
  %s4 = inlined_call_operand.vmem [shape: f32[1,224], index: 4, kind: input, shape index: {}]
  %s5 = inlined_call_operand.vmem [shape: bf16[3,192,50], index: 5, kind: input, shape index: {}]
  %s6 = inlined_call_operand.vmem [shape: f32[1,50], index: 6, kind: input, shape index: {}]
  %s7 = inlined_call_operand.vmem [shape: bf16[50,128], index: 7, kind: input, shape index: {}]
  %s8 = inlined_call_operand.vmem [shape: f32[1,128], index: 8, kind: input, shape index: {}]
  %s9 = inlined_call_operand.vmem [shape: f32[32,128], index: 9, kind: output, shape index: {}]
  %s10 = sld [smem:[#allocation0]]
  $region107: #{net_forward.1} parent=0
    _
  %s12 = ssub.s32 1, %s10
  %s13 = scalar_select 0, %s12, %s10
  $region1: #{net_forward.1} parent=0
    #allocation2 [shape = 'u8[458752]{0}', space=vmem, size = 0x70000, scoped, tag = 'input window, operand 0']
    loop: start=0, step=1, limit=4
    $region2: #{net_forward.1} parent=1 // loop_pre_header
      _
    $region3: #{net_forward.1} parent=1 // loop_header
      %s15 = sphi 0, %s19
      %p16 = scmp.ge.s32.totalorder %s15, 4
      %s25 = sphi 0, %s27
      %s28 = sphi 0, %s25
      %s29 = sphi 0, %s28
      %s45 = sphi 0, %s29
      %s49 = sphi 0, %s49
      %s51 = sphi 0, %s49
      %s52 = sphi 0, %s51
      %s66 = sphi 0, %s52
      %s70 = sphi 0, %s70
      %s72 = sphi 0, %s70
      %s73 = sphi 0, %s72
      %s87 = sphi 0, %s73
      %s91 = sphi 0, %s91
      %s93 = sphi 0, %s91
      %s94 = sphi 0, %s93
      %s108 = sphi 0, %s94
      %s112 = sphi 0, %s112
      %s114 = sphi 0, %s112
      %s115 = sphi 0, %s114
      %s129 = sphi 0, %s115
      %s133 = sphi 0, %s133
      %s135 = sphi 0, %s133
      %s136 = sphi 0, %s135
      %s150 = sphi 0, %s136
      %s154 = sphi 0, %s154
      %s156 = sphi 0, %s154
      %s157 = sphi 0, %s156
      %s171 = sphi 0, %s157
      %s175 = sphi 0, %s175
      %s177 = sphi 0, %s175
      %s178 = sphi 0, %s177
      %s192 = sphi 0, %s178
      %s196 = sphi 0, %s196
      %s198 = sphi 0, %s196
      %s199 = sphi 0, %s198
      %s213 = sphi 0, %s199
      %s219 = sphi 0, %s221
      %s222 = sphi 0, %s219
      %s223 = sphi 0, %s222
      %s239 = sphi 0, %s223
    $region4: #{net_forward.1} parent=1 // loop_header_branch
      %18 = sbr.rel (%p16) target = $region8
    $region5: #{net_forward.1} parent=1 // loop_body
      %s20 = ssub.s32 %s15, 1
      %s21 = ssub.s32 %s15, 2
      %s22 = sadd.s32 %s15, 1
      %s23 = ssub.s32 %s15, %s22
      %p24 = scmp.eq.s32.totalorder %s23, 0
      %s26 = sadd.s32 %s25, 1
      %s27 = scalar_select %p24, %s25, %s26
      %p30 = pneg %p24
      %p31 = scmp.eq.s32.totalorder %s15, 1
      %p32 = por %p30, %p31
      %p33 = scmp.ne.s32.totalorder %s25, %s28
      %p34 = scmp.eq.s32.totalorder %s15, 0
      %p35 = por %p33, %p34
      %p36 = scmp.ne.s32.totalorder %s25, %s28
      %p37 = scmp.eq.s32.totalorder %s20, 1
      %p38 = por %p36, %p37
      %p39 = scmp.ne.s32.totalorder %s28, %s29
      %p40 = scmp.eq.s32.totalorder %s20, 0
      %p41 = por %p39, %p40
      %p42 = scmp.ne.s32.totalorder %s28, %s29
      %p43 = scmp.eq.s32.totalorder %s21, 1
      %p44 = por %p42, %p43
      %p46 = scmp.ne.s32.totalorder %s29, %s45
      %p47 = scmp.eq.s32.totalorder %s21, 0
      %p48 = por %p46, %p47
      %s50 = sadd.s32 %s49, 1
      %p53 = scmp.eq.s32.totalorder %s15, 1
      %p54 = scmp.ne.s32.totalorder %s49, %s51
      %p55 = scmp.eq.s32.totalorder %s15, 0
      %p56 = por %p54, %p55
      %p57 = scmp.ne.s32.totalorder %s49, %s51
      %p58 = scmp.eq.s32.totalorder %s20, 1
      %p59 = por %p57, %p58
      %p60 = scmp.ne.s32.totalorder %s51, %s52
      %p61 = scmp.eq.s32.totalorder %s20, 0
      %p62 = por %p60, %p61
      %p63 = scmp.ne.s32.totalorder %s51, %s52
      %p64 = scmp.eq.s32.totalorder %s21, 1
      %p65 = por %p63, %p64
      %p67 = scmp.ne.s32.totalorder %s52, %s66
      %p68 = scmp.eq.s32.totalorder %s21, 0
      %p69 = por %p67, %p68
      %s71 = sadd.s32 %s70, 1
      %p74 = scmp.eq.s32.totalorder %s15, 1
      %p75 = scmp.ne.s32.totalorder %s70, %s72
      %p76 = scmp.eq.s32.totalorder %s15, 0
      %p77 = por %p75, %p76
      %p78 = scmp.ne.s32.totalorder %s70, %s72
      %p79 = scmp.eq.s32.totalorder %s20, 1
      %p80 = por %p78, %p79
      %p81 = scmp.ne.s32.totalorder %s72, %s73
      %p82 = scmp.eq.s32.totalorder %s20, 0
      %p83 = por %p81, %p82
      %p84 = scmp.ne.s32.totalorder %s72, %s73
      %p85 = scmp.eq.s32.totalorder %s21, 1
      %p86 = por %p84, %p85
      %p88 = scmp.ne.s32.totalorder %s73, %s87
      %p89 = scmp.eq.s32.totalorder %s21, 0
      %p90 = por %p88, %p89
      %s92 = sadd.s32 %s91, 1
      %p95 = scmp.eq.s32.totalorder %s15, 1
      %p96 = scmp.ne.s32.totalorder %s91, %s93
      %p97 = scmp.eq.s32.totalorder %s15, 0
      %p98 = por %p96, %p97
      %p99 = scmp.ne.s32.totalorder %s91, %s93
      %p100 = scmp.eq.s32.totalorder %s20, 1
      %p101 = por %p99, %p100
      %p102 = scmp.ne.s32.totalorder %s93, %s94
      %p103 = scmp.eq.s32.totalorder %s20, 0
      %p104 = por %p102, %p103
      %p105 = scmp.ne.s32.totalorder %s93, %s94
      %p106 = scmp.eq.s32.totalorder %s21, 1
      %p107 = por %p105, %p106
      %p109 = scmp.ne.s32.totalorder %s94, %s108
      %p110 = scmp.eq.s32.totalorder %s21, 0
      %p111 = por %p109, %p110
      %s113 = sadd.s32 %s112, 1
      %p116 = scmp.eq.s32.totalorder %s15, 1
      %p117 = scmp.ne.s32.totalorder %s112, %s114
      %p118 = scmp.eq.s32.totalorder %s15, 0
      %p119 = por %p117, %p118
      %p120 = scmp.ne.s32.totalorder %s112, %s114
      %p121 = scmp.eq.s32.totalorder %s20, 1
      %p122 = por %p120, %p121
      %p123 = scmp.ne.s32.totalorder %s114, %s115
      %p124 = scmp.eq.s32.totalorder %s20, 0
      %p125 = por %p123, %p124
      %p126 = scmp.ne.s32.totalorder %s114, %s115
      %p127 = scmp.eq.s32.totalorder %s21, 1
      %p128 = por %p126, %p127
      %p130 = scmp.ne.s32.totalorder %s115, %s129
      %p131 = scmp.eq.s32.totalorder %s21, 0
      %p132 = por %p130, %p131
      %s134 = sadd.s32 %s133, 1
      %p137 = scmp.eq.s32.totalorder %s15, 1
      %p138 = scmp.ne.s32.totalorder %s133, %s135
      %p139 = scmp.eq.s32.totalorder %s15, 0
      %p140 = por %p138, %p139
      %p141 = scmp.ne.s32.totalorder %s133, %s135
      %p142 = scmp.eq.s32.totalorder %s20, 1
      %p143 = por %p141, %p142
      %p144 = scmp.ne.s32.totalorder %s135, %s136
      %p145 = scmp.eq.s32.totalorder %s20, 0
      %p146 = por %p144, %p145
      %p147 = scmp.ne.s32.totalorder %s135, %s136
      %p148 = scmp.eq.s32.totalorder %s21, 1
      %p149 = por %p147, %p148
      %p151 = scmp.ne.s32.totalorder %s136, %s150
      %p152 = scmp.eq.s32.totalorder %s21, 0
      %p153 = por %p151, %p152
      %s155 = sadd.s32 %s154, 1
      %p158 = scmp.eq.s32.totalorder %s15, 1
      %p159 = scmp.ne.s32.totalorder %s154, %s156
      %p160 = scmp.eq.s32.totalorder %s15, 0
      %p161 = por %p159, %p160
      %p162 = scmp.ne.s32.totalorder %s154, %s156
      %p163 = scmp.eq.s32.totalorder %s20, 1
      %p164 = por %p162, %p163
      %p165 = scmp.ne.s32.totalorder %s156, %s157
      %p166 = scmp.eq.s32.totalorder %s20, 0
      %p167 = por %p165, %p166
      %p168 = scmp.ne.s32.totalorder %s156, %s157
      %p169 = scmp.eq.s32.totalorder %s21, 1
      %p170 = por %p168, %p169
      %p172 = scmp.ne.s32.totalorder %s157, %s171
      %p173 = scmp.eq.s32.totalorder %s21, 0
      %p174 = por %p172, %p173
      %s176 = sadd.s32 %s175, 1
      %p179 = scmp.eq.s32.totalorder %s15, 1
      %p180 = scmp.ne.s32.totalorder %s175, %s177
      %p181 = scmp.eq.s32.totalorder %s15, 0
      %p182 = por %p180, %p181
      %p183 = scmp.ne.s32.totalorder %s175, %s177
      %p184 = scmp.eq.s32.totalorder %s20, 1
      %p185 = por %p183, %p184
      %p186 = scmp.ne.s32.totalorder %s177, %s178
      %p187 = scmp.eq.s32.totalorder %s20, 0
      %p188 = por %p186, %p187
      %p189 = scmp.ne.s32.totalorder %s177, %s178
      %p190 = scmp.eq.s32.totalorder %s21, 1
      %p191 = por %p189, %p190
      %p193 = scmp.ne.s32.totalorder %s178, %s192
      %p194 = scmp.eq.s32.totalorder %s21, 0
      %p195 = por %p193, %p194
      %s197 = sadd.s32 %s196, 1
      %p200 = scmp.eq.s32.totalorder %s15, 1
      %p201 = scmp.ne.s32.totalorder %s196, %s198
      %p202 = scmp.eq.s32.totalorder %s15, 0
      %p203 = por %p201, %p202
      %p204 = scmp.ne.s32.totalorder %s196, %s198
      %p205 = scmp.eq.s32.totalorder %s20, 1
      %p206 = por %p204, %p205
      %p207 = scmp.ne.s32.totalorder %s198, %s199
      %p208 = scmp.eq.s32.totalorder %s20, 0
      %p209 = por %p207, %p208
      %p210 = scmp.ne.s32.totalorder %s198, %s199
      %p211 = scmp.eq.s32.totalorder %s21, 1
      %p212 = por %p210, %p211
      %p214 = scmp.ne.s32.totalorder %s199, %s213
      %p215 = scmp.eq.s32.totalorder %s21, 0
      %p216 = por %p214, %p215
      %s217 = ssub.s32 %s15, %s22
      %p218 = scmp.eq.s32.totalorder %s217, 0
      %s220 = sadd.s32 %s219, 1
      %s221 = scalar_select %p218, %s219, %s220
      %p224 = pneg %p218
      %p225 = scmp.eq.s32.totalorder %s15, 1
      %p226 = por %p224, %p225
      %p227 = scmp.ne.s32.totalorder %s219, %s222
      %p228 = scmp.eq.s32.totalorder %s15, 0
      %p229 = por %p227, %p228
      %p230 = scmp.ne.s32.totalorder %s219, %s222
      %p231 = scmp.eq.s32.totalorder %s20, 1
      %p232 = por %p230, %p231
      %p233 = scmp.ne.s32.totalorder %s222, %s223
      %p234 = scmp.eq.s32.totalorder %s20, 0
      %p235 = por %p233, %p234
      %p236 = scmp.ne.s32.totalorder %s222, %s223
      %p237 = scmp.eq.s32.totalorder %s21, 1
      %p238 = por %p236, %p237
      %p240 = scmp.ne.s32.totalorder %s223, %s239
      %p241 = scmp.eq.s32.totalorder %s21, 0
      %p242 = por %p240, %p241
      %p243 = scmp.le.s32.totalorder 1, %s15
      %p244 = scmp.lt.s32.totalorder %s15, 3
      %p245 = pnand %p243, %p244
      %p246 = pneg %p245
      // Predicated region
      $region9: #{net_forward.1} parent=5 // pred_check
        _
      $region10: #{net_forward.1} parent=5 // pred_check_branch
        %248 = sbr.rel (%p245) target = $region12
      $region11: #{net_forward.1} parent=5 // pred_region
        %s249 = ssub.s32 %s15, 1
        // Predicated region
        $region13: #{net_forward.1} parent=11 // pred_check
          %p250 = pneg %p62
        $region14: #{net_forward.1} parent=11 // pred_check_branch
          %252 = sbr.rel (%p250) target = $region16
        $region15: #{net_forward.1} parent=11 // pred_region
          _
        $region16: #{net_forward.1} parent=11 // pred_fallthru
          _
        // Predicated region
        $region17: #{net_forward.1} parent=11 // pred_check
          %p253 = pneg %p83
        $region18: #{net_forward.1} parent=11 // pred_check_branch
          %255 = sbr.rel (%p253) target = $region20
        $region19: #{net_forward.1} parent=11 // pred_region
          _
        $region20: #{net_forward.1} parent=11 // pred_fallthru
          _
        // Predicated region
        $region21: #{net_forward.1} parent=11 // pred_check
          %p256 = pneg %p104
        $region22: #{net_forward.1} parent=11 // pred_check_branch
          %258 = sbr.rel (%p256) target = $region24
        $region23: #{net_forward.1} parent=11 // pred_region
          _
        $region24: #{net_forward.1} parent=11 // pred_fallthru
          _
        // Predicated region
        $region25: #{net_forward.1} parent=11 // pred_check
          %p259 = pneg %p125
        $region26: #{net_forward.1} parent=11 // pred_check_branch
          %261 = sbr.rel (%p259) target = $region28
        $region27: #{net_forward.1} parent=11 // pred_region
          _
        $region28: #{net_forward.1} parent=11 // pred_fallthru
          _
        // Predicated region
        $region29: #{net_forward.1} parent=11 // pred_check
          %p262 = pneg %p146
        $region30: #{net_forward.1} parent=11 // pred_check_branch
          %264 = sbr.rel (%p262) target = $region32
        $region31: #{net_forward.1} parent=11 // pred_region
          _
        $region32: #{net_forward.1} parent=11 // pred_fallthru
          _
        // Predicated region
        $region33: #{net_forward.1} parent=11 // pred_check
          %p265 = pneg %p167
        $region34: #{net_forward.1} parent=11 // pred_check_branch
          %267 = sbr.rel (%p265) target = $region36
        $region35: #{net_forward.1} parent=11 // pred_region
          _
        $region36: #{net_forward.1} parent=11 // pred_fallthru
          _
        // Predicated region
        $region37: #{net_forward.1} parent=11 // pred_check
          %p268 = pneg %p188
        $region38: #{net_forward.1} parent=11 // pred_check_branch
          %270 = sbr.rel (%p268) target = $region40
        $region39: #{net_forward.1} parent=11 // pred_region
          _
        $region40: #{net_forward.1} parent=11 // pred_fallthru
          _
        // Predicated region
        $region41: #{net_forward.1} parent=11 // pred_check
          %p271 = pneg %p209
        $region42: #{net_forward.1} parent=11 // pred_check_branch
          %273 = sbr.rel (%p271) target = $region44
        $region43: #{net_forward.1} parent=11 // pred_region
          _
        $region44: #{net_forward.1} parent=11 // pred_fallthru
          _
      $region12: #{net_forward.1} parent=5 // pred_fallthru
        _
      %p274 = scmp.lt.s32.totalorder %s15, 2
      // Predicated region
      $region45: #{net_forward.1} parent=5 // pred_check
        %p275 = pneg %p274
      $region46: #{net_forward.1} parent=5 // pred_check_branch
        %277 = sbr.rel (%p275) target = $region48
      $region47: #{net_forward.1} parent=5 // pred_region
        // Predicated region
        $region49: #{net_forward.1} parent=47 // pred_check
          %p278 = pneg %p35
        $region50: #{net_forward.1} parent=47 // pred_check_branch
          %280 = sbr.rel (%p278) target = $region52
        $region51: #{net_forward.1} parent=47 // pred_region
          %s281 = sand.u32 %s25, 1
          %s282 = sand.u32 %s25, 1
          %s283 = smul.addr %s282, 448
          %s284 = scalar_lea.vmem [#allocation2], %s283
          %s285 = smul.u32 2, %s15
          %s286 = smul.addr %s285, 8
          %s287 = scalar_lea.vmem %s0, %s286
          // Predicated region
          $region53: #{net_forward.1} parent=51 // pred_check
            _
          $region54: #{net_forward.1} parent=51 // pred_check_branch
            %289 = sbr.rel (0) target = $region56
          $region55: #{net_forward.1} parent=51 // pred_region
            // Predicated region
            $region57: #{net_forward.1} parent=55 // pred_check
              _
            $region58: #{net_forward.1} parent=55 // pred_check_branch
              %291 = sbr.rel (0) target = $region60
            $region59: #{net_forward.1} parent=55 // pred_region
              // Predicated region
              $region72: #{net_forward.1} parent=59 // pred_check
                _
              $region73: #{net_forward.1} parent=59 // pred_check_branch
                %417 = sbr.rel (0) target = $region75
              $region74: #{net_forward.1} parent=59 // pred_region
                loop: start=0, step=1, limit=1
                $region76: #{net_forward.1} parent=74 // loop_pre_header
                  _
                $region77: #{net_forward.1} parent=74 // loop_header
                  %s419 = sphi 0, %s423
                  %p420 = scmp.ge.s32.totalorder %s419, 1
                  %s424 = sphi %s287, %s287
                  %s425 = sphi %s284, %s284
                $region78: #{net_forward.1} parent=74 // loop_header_branch
                  %422 = sbr.rel (%p420) target = $region82
                $region79: #{net_forward.1} parent=74 // loop_body
                  %v426 = vld [vmem:[%s424] sm:$0xff]
                  %427 = vst [vmem:[%s425] sm:$0xff] %v426
                  %v428 = vld [vmem:[%s424 + $0x8] sm:$0xff]
                  %429 = vst [vmem:[%s425 + $0x8] sm:$0xff] %v428
                  %v430 = vld [vmem:[%s424 + $0x20] sm:$0xff]
                  %431 = vst [vmem:[%s425 + $0x10] sm:$0xff] %v430
                  %v432 = vld [vmem:[%s424 + $0x28] sm:$0xff]
                  %433 = vst [vmem:[%s425 + $0x18] sm:$0xff] %v432
                  %v434 = vld [vmem:[%s424 + $0x40] sm:$0xff]
                  %435 = vst [vmem:[%s425 + $0x20] sm:$0xff] %v434
                  %v436 = vld [vmem:[%s424 + $0x48] sm:$0xff]
                  %437 = vst [vmem:[%s425 + $0x28] sm:$0xff] %v436
                  %v438 = vld [vmem:[%s424 + $0x60] sm:$0xff]
                  %439 = vst [vmem:[%s425 + $0x30] sm:$0xff] %v438
                  %v440 = vld [vmem:[%s424 + $0x68] sm:$0xff]
                  %441 = vst [vmem:[%s425 + $0x38] sm:$0xff] %v440
                  %v442 = vld [vmem:[%s424 + $0x80] sm:$0xff]
                  %443 = vst [vmem:[%s425 + $0x40] sm:$0xff] %v442
                  %v444 = vld [vmem:[%s424 + $0x88] sm:$0xff]
                  %445 = vst [vmem:[%s425 + $0x48] sm:$0xff] %v444
                  %v446 = vld [vmem:[%s424 + $0xa0] sm:$0xff]
                  %447 = vst [vmem:[%s425 + $0x50] sm:$0xff] %v446
                  %v448 = vld [vmem:[%s424 + $0xa8] sm:$0xff]
                  %449 = vst [vmem:[%s425 + $0x58] sm:$0xff] %v448
                  %v450 = vld [vmem:[%s424 + $0xc0] sm:$0xff]
                  %451 = vst [vmem:[%s425 + $0x60] sm:$0xff] %v450
                  %v452 = vld [vmem:[%s424 + $0xc8] sm:$0xff]
                  %453 = vst [vmem:[%s425 + $0x68] sm:$0xff] %v452
                  %v454 = vld [vmem:[%s424 + $0xe0] sm:$0xff]
                  %455 = vst [vmem:[%s425 + $0x70] sm:$0xff] %v454
                  %v456 = vld [vmem:[%s424 + $0xe8] sm:$0xff]
                  %457 = vst [vmem:[%s425 + $0x78] sm:$0xff] %v456
                  %v458 = vld [vmem:[%s424 + $0x100] sm:$0xff]
                  %459 = vst [vmem:[%s425 + $0x80] sm:$0xff] %v458
                  %v460 = vld [vmem:[%s424 + $0x108] sm:$0xff]
                  %461 = vst [vmem:[%s425 + $0x88] sm:$0xff] %v460
                  %v462 = vld [vmem:[%s424 + $0x120] sm:$0xff]
                  %463 = vst [vmem:[%s425 + $0x90] sm:$0xff] %v462
                  %v464 = vld [vmem:[%s424 + $0x128] sm:$0xff]
                  %465 = vst [vmem:[%s425 + $0x98] sm:$0xff] %v464
                  %v466 = vld [vmem:[%s424 + $0x140] sm:$0xff]
                  %467 = vst [vmem:[%s425 + $0xa0] sm:$0xff] %v466
                  %v468 = vld [vmem:[%s424 + $0x148] sm:$0xff]
                  %469 = vst [vmem:[%s425 + $0xa8] sm:$0xff] %v468
                  %v470 = vld [vmem:[%s424 + $0x160] sm:$0xff]
                  %471 = vst [vmem:[%s425 + $0xb0] sm:$0xff] %v470
                  %v472 = vld [vmem:[%s424 + $0x168] sm:$0xff]
                  %473 = vst [vmem:[%s425 + $0xb8] sm:$0xff] %v472
                  %v474 = vld [vmem:[%s424 + $0x180] sm:$0xff]
                  %475 = vst [vmem:[%s425 + $0xc0] sm:$0xff] %v474
                  %v476 = vld [vmem:[%s424 + $0x188] sm:$0xff]
                  %477 = vst [vmem:[%s425 + $0xc8] sm:$0xff] %v476
                  %v478 = vld [vmem:[%s424 + $0x1a0] sm:$0xff]
                  %479 = vst [vmem:[%s425 + $0xd0] sm:$0xff] %v478
                  %v480 = vld [vmem:[%s424 + $0x1a8] sm:$0xff]
                  %481 = vst [vmem:[%s425 + $0xd8] sm:$0xff] %v480
                  %v482 = vld [vmem:[%s424 + $0x1c0] sm:$0xff]
                  %483 = vst [vmem:[%s425 + $0xe0] sm:$0xff] %v482
                  %v484 = vld [vmem:[%s424 + $0x1c8] sm:$0xff]
                  %485 = vst [vmem:[%s425 + $0xe8] sm:$0xff] %v484
                  %v486 = vld [vmem:[%s424 + $0x1e0] sm:$0xff]
                  %487 = vst [vmem:[%s425 + $0xf0] sm:$0xff] %v486
                  %v488 = vld [vmem:[%s424 + $0x1e8] sm:$0xff]
                  %489 = vst [vmem:[%s425 + $0xf8] sm:$0xff] %v488
                  %v490 = vld [vmem:[%s424 + $0x200] sm:$0xff]
                  %491 = vst [vmem:[%s425 + $0x100] sm:$0xff] %v490
                  %v492 = vld [vmem:[%s424 + $0x208] sm:$0xff]
                  %493 = vst [vmem:[%s425 + $0x108] sm:$0xff] %v492
                  %v494 = vld [vmem:[%s424 + $0x220] sm:$0xff]
                  %495 = vst [vmem:[%s425 + $0x110] sm:$0xff] %v494
                  %v496 = vld [vmem:[%s424 + $0x228] sm:$0xff]
                  %497 = vst [vmem:[%s425 + $0x118] sm:$0xff] %v496
                  %v498 = vld [vmem:[%s424 + $0x240] sm:$0xff]
                  %499 = vst [vmem:[%s425 + $0x120] sm:$0xff] %v498
                  %v500 = vld [vmem:[%s424 + $0x248] sm:$0xff]
                  %501 = vst [vmem:[%s425 + $0x128] sm:$0xff] %v500
                  %v502 = vld [vmem:[%s424 + $0x260] sm:$0xff]
                  %503 = vst [vmem:[%s425 + $0x130] sm:$0xff] %v502
                  %v504 = vld [vmem:[%s424 + $0x268] sm:$0xff]
                  %505 = vst [vmem:[%s425 + $0x138] sm:$0xff] %v504
                  %v506 = vld [vmem:[%s424 + $0x280] sm:$0xff]
                  %507 = vst [vmem:[%s425 + $0x140] sm:$0xff] %v506
                  %v508 = vld [vmem:[%s424 + $0x288] sm:$0xff]
                  %509 = vst [vmem:[%s425 + $0x148] sm:$0xff] %v508
                  %v510 = vld [vmem:[%s424 + $0x2a0] sm:$0xff]
                  %511 = vst [vmem:[%s425 + $0x150] sm:$0xff] %v510
                  %v512 = vld [vmem:[%s424 + $0x2a8] sm:$0xff]
                  %513 = vst [vmem:[%s425 + $0x158] sm:$0xff] %v512
                  %v514 = vld [vmem:[%s424 + $0x2c0] sm:$0xff]
                  %515 = vst [vmem:[%s425 + $0x160] sm:$0xff] %v514
                  %v516 = vld [vmem:[%s424 + $0x2c8] sm:$0xff]
                  %517 = vst [vmem:[%s425 + $0x168] sm:$0xff] %v516
                  %v518 = vld [vmem:[%s424 + $0x2e0] sm:$0xff]
                  %519 = vst [vmem:[%s425 + $0x170] sm:$0xff] %v518
                  %v520 = vld [vmem:[%s424 + $0x2e8] sm:$0xff]
                  %521 = vst [vmem:[%s425 + $0x178] sm:$0xff] %v520
                  %v522 = vld [vmem:[%s424 + $0x300] sm:$0xff]
                  %523 = vst [vmem:[%s425 + $0x180] sm:$0xff] %v522
                  %v524 = vld [vmem:[%s424 + $0x308] sm:$0xff]
                  %525 = vst [vmem:[%s425 + $0x188] sm:$0xff] %v524
                  %v526 = vld [vmem:[%s424 + $0x320] sm:$0xff]
                  %527 = vst [vmem:[%s425 + $0x190] sm:$0xff] %v526
                  %v528 = vld [vmem:[%s424 + $0x328] sm:$0xff]
                  %529 = vst [vmem:[%s425 + $0x198] sm:$0xff] %v528
                  %v530 = vld [vmem:[%s424 + $0x340] sm:$0xff]
                  %531 = vst [vmem:[%s425 + $0x1a0] sm:$0xff] %v530
                  %v532 = vld [vmem:[%s424 + $0x348] sm:$0xff]
                  %533 = vst [vmem:[%s425 + $0x1a8] sm:$0xff] %v532
                  %v534 = vld [vmem:[%s424 + $0x360] sm:$0xff]
                  %535 = vst [vmem:[%s425 + $0x1b0] sm:$0xff] %v534
                  %v536 = vld [vmem:[%s424 + $0x368] sm:$0xff]
                  %537 = vst [vmem:[%s425 + $0x1b8] sm:$0xff] %v536
                $region80: #{net_forward.1} parent=74 // loop_footer
                  %s423 = sadd.s32 1, %s419
                $region81: #{net_forward.1} parent=74 // loop_footer_branch
                  %418 = sbr.rel target = $region77
                $region82: #{net_forward.1} parent=74 // loop_exit
                  _
              $region75: #{net_forward.1} parent=59 // pred_fallthru
                _
              // Predicated region
              $region83: #{net_forward.1} parent=59 // pred_check
                _
              $region84: #{net_forward.1} parent=59 // pred_check_branch
                %539 = sbr.rel target = $region86
              $region85: #{net_forward.1} parent=59 // pred_region
                _
              $region86: #{net_forward.1} parent=59 // pred_fallthru
                _
            $region60: #{net_forward.1} parent=55 // pred_fallthru
              _
            // Predicated region
            $region61: #{net_forward.1} parent=55 // pred_check
              _
            $region62: #{net_forward.1} parent=55 // pred_check_branch
              %293 = sbr.rel target = $region64
            $region63: #{net_forward.1} parent=55 // pred_region
              %s295 = ssub.s32 256, 1
              loop: start=0, step=1, limit=1
              $region65: #{net_forward.1} parent=63 // loop_pre_header
                _
              $region66: #{net_forward.1} parent=63 // loop_header
                %s297 = sphi 0, %s301
                %p298 = scmp.ge.s32.totalorder %s297, 1
                %s302 = sphi %s287, %s287
                %s303 = sphi %s284, %s284
              $region67: #{net_forward.1} parent=63 // loop_header_branch
                %300 = sbr.rel (%p298) target = $region71
              $region68: #{net_forward.1} parent=63 // loop_body
                %v304 = vld [vmem:[%s302] sm:%s295]
                %305 = vst [vmem:[%s303] sm:%s295] %v304
                %v306 = vld [vmem:[%s302 + $0x8] sm:%s295]
                %307 = vst [vmem:[%s303 + $0x8] sm:%s295] %v306
                %v308 = vld [vmem:[%s302 + $0x20] sm:%s295]
                %309 = vst [vmem:[%s303 + $0x10] sm:%s295] %v308
                %v310 = vld [vmem:[%s302 + $0x28] sm:%s295]
                %311 = vst [vmem:[%s303 + $0x18] sm:%s295] %v310
                %v312 = vld [vmem:[%s302 + $0x40] sm:%s295]
                %313 = vst [vmem:[%s303 + $0x20] sm:%s295] %v312
                %v314 = vld [vmem:[%s302 + $0x48] sm:%s295]
                %315 = vst [vmem:[%s303 + $0x28] sm:%s295] %v314
                %v316 = vld [vmem:[%s302 + $0x60] sm:%s295]
                %317 = vst [vmem:[%s303 + $0x30] sm:%s295] %v316
                %v318 = vld [vmem:[%s302 + $0x68] sm:%s295]
                %319 = vst [vmem:[%s303 + $0x38] sm:%s295] %v318
                %v320 = vld [vmem:[%s302 + $0x80] sm:%s295]
                %321 = vst [vmem:[%s303 + $0x40] sm:%s295] %v320
                %v322 = vld [vmem:[%s302 + $0x88] sm:%s295]
                %323 = vst [vmem:[%s303 + $0x48] sm:%s295] %v322
                %v324 = vld [vmem:[%s302 + $0xa0] sm:%s295]
                %325 = vst [vmem:[%s303 + $0x50] sm:%s295] %v324
                %v326 = vld [vmem:[%s302 + $0xa8] sm:%s295]
                %327 = vst [vmem:[%s303 + $0x58] sm:%s295] %v326
                %v328 = vld [vmem:[%s302 + $0xc0] sm:%s295]
                %329 = vst [vmem:[%s303 + $0x60] sm:%s295] %v328
                %v330 = vld [vmem:[%s302 + $0xc8] sm:%s295]
                %331 = vst [vmem:[%s303 + $0x68] sm:%s295] %v330
                %v332 = vld [vmem:[%s302 + $0xe0] sm:%s295]
                %333 = vst [vmem:[%s303 + $0x70] sm:%s295] %v332
                %v334 = vld [vmem:[%s302 + $0xe8] sm:%s295]
                %335 = vst [vmem:[%s303 + $0x78] sm:%s295] %v334
                %v336 = vld [vmem:[%s302 + $0x100] sm:%s295]
                %337 = vst [vmem:[%s303 + $0x80] sm:%s295] %v336
                %v338 = vld [vmem:[%s302 + $0x108] sm:%s295]
                %339 = vst [vmem:[%s303 + $0x88] sm:%s295] %v338
                %v340 = vld [vmem:[%s302 + $0x120] sm:%s295]
                %341 = vst [vmem:[%s303 + $0x90] sm:%s295] %v340
                %v342 = vld [vmem:[%s302 + $0x128] sm:%s295]
                %343 = vst [vmem:[%s303 + $0x98] sm:%s295] %v342
                %v344 = vld [vmem:[%s302 + $0x140] sm:%s295]
                %345 = vst [vmem:[%s303 + $0xa0] sm:%s295] %v344
                %v346 = vld [vmem:[%s302 + $0x148] sm:%s295]
                %347 = vst [vmem:[%s303 + $0xa8] sm:%s295] %v346
                %v348 = vld [vmem:[%s302 + $0x160] sm:%s295]
                %349 = vst [vmem:[%s303 + $0xb0] sm:%s295] %v348
                %v350 = vld [vmem:[%s302 + $0x168] sm:%s295]
                %351 = vst [vmem:[%s303 + $0xb8] sm:%s295] %v350
                %v352 = vld [vmem:[%s302 + $0x180] sm:%s295]
                %353 = vst [vmem:[%s303 + $0xc0] sm:%s295] %v352
                %v354 = vld [vmem:[%s302 + $0x188] sm:%s295]
                %355 = vst [vmem:[%s303 + $0xc8] sm:%s295] %v354
                %v356 = vld [vmem:[%s302 + $0x1a0] sm:%s295]
                %357 = vst [vmem:[%s303 + $0xd0] sm:%s295] %v356
                %v358 = vld [vmem:[%s302 + $0x1a8] sm:%s295]
                %359 = vst [vmem:[%s303 + $0xd8] sm:%s295] %v358
                %v360 = vld [vmem:[%s302 + $0x1c0] sm:%s295]
                %361 = vst [vmem:[%s303 + $0xe0] sm:%s295] %v360
                %v362 = vld [vmem:[%s302 + $0x1c8] sm:%s295]
                %363 = vst [vmem:[%s303 + $0xe8] sm:%s295] %v362
                %v364 = vld [vmem:[%s302 + $0x1e0] sm:%s295]
                %365 = vst [vmem:[%s303 + $0xf0] sm:%s295] %v364
                %v366 = vld [vmem:[%s302 + $0x1e8] sm:%s295]
                %367 = vst [vmem:[%s303 + $0xf8] sm:%s295] %v366
                %v368 = vld [vmem:[%s302 + $0x200] sm:%s295]
                %369 = vst [vmem:[%s303 + $0x100] sm:%s295] %v368
                %v370 = vld [vmem:[%s302 + $0x208] sm:%s295]
                %371 = vst [vmem:[%s303 + $0x108] sm:%s295] %v370
                %v372 = vld [vmem:[%s302 + $0x220] sm:%s295]
                %373 = vst [vmem:[%s303 + $0x110] sm:%s295] %v372
                %v374 = vld [vmem:[%s302 + $0x228] sm:%s295]
                %375 = vst [vmem:[%s303 + $0x118] sm:%s295] %v374
                %v376 = vld [vmem:[%s302 + $0x240] sm:%s295]
                %377 = vst [vmem:[%s303 + $0x120] sm:%s295] %v376
                %v378 = vld [vmem:[%s302 + $0x248] sm:%s295]
                %379 = vst [vmem:[%s303 + $0x128] sm:%s295] %v378
                %v380 = vld [vmem:[%s302 + $0x260] sm:%s295]
                %381 = vst [vmem:[%s303 + $0x130] sm:%s295] %v380
                %v382 = vld [vmem:[%s302 + $0x268] sm:%s295]
                %383 = vst [vmem:[%s303 + $0x138] sm:%s295] %v382
                %v384 = vld [vmem:[%s302 + $0x280] sm:%s295]
                %385 = vst [vmem:[%s303 + $0x140] sm:%s295] %v384
                %v386 = vld [vmem:[%s302 + $0x288] sm:%s295]
                %387 = vst [vmem:[%s303 + $0x148] sm:%s295] %v386
                %v388 = vld [vmem:[%s302 + $0x2a0] sm:%s295]
                %389 = vst [vmem:[%s303 + $0x150] sm:%s295] %v388
                %v390 = vld [vmem:[%s302 + $0x2a8] sm:%s295]
                %391 = vst [vmem:[%s303 + $0x158] sm:%s295] %v390
                %v392 = vld [vmem:[%s302 + $0x2c0] sm:%s295]
                %393 = vst [vmem:[%s303 + $0x160] sm:%s295] %v392
                %v394 = vld [vmem:[%s302 + $0x2c8] sm:%s295]
                %395 = vst [vmem:[%s303 + $0x168] sm:%s295] %v394
                %v396 = vld [vmem:[%s302 + $0x2e0] sm:%s295]
                %397 = vst [vmem:[%s303 + $0x170] sm:%s295] %v396
                %v398 = vld [vmem:[%s302 + $0x2e8] sm:%s295]
                %399 = vst [vmem:[%s303 + $0x178] sm:%s295] %v398
                %v400 = vld [vmem:[%s302 + $0x300] sm:%s295]
                %401 = vst [vmem:[%s303 + $0x180] sm:%s295] %v400
                %v402 = vld [vmem:[%s302 + $0x308] sm:%s295]
                %403 = vst [vmem:[%s303 + $0x188] sm:%s295] %v402
                %v404 = vld [vmem:[%s302 + $0x320] sm:%s295]
                %405 = vst [vmem:[%s303 + $0x190] sm:%s295] %v404
                %v406 = vld [vmem:[%s302 + $0x328] sm:%s295]
                %407 = vst [vmem:[%s303 + $0x198] sm:%s295] %v406
                %v408 = vld [vmem:[%s302 + $0x340] sm:%s295]
                %409 = vst [vmem:[%s303 + $0x1a0] sm:%s295] %v408
                %v410 = vld [vmem:[%s302 + $0x348] sm:%s295]
                %411 = vst [vmem:[%s303 + $0x1a8] sm:%s295] %v410
                %v412 = vld [vmem:[%s302 + $0x360] sm:%s295]
                %413 = vst [vmem:[%s303 + $0x1b0] sm:%s295] %v412
                %v414 = vld [vmem:[%s302 + $0x368] sm:%s295]
                %415 = vst [vmem:[%s303 + $0x1b8] sm:%s295] %v414
              $region69: #{net_forward.1} parent=63 // loop_footer
                %s301 = sadd.s32 1, %s297
              $region70: #{net_forward.1} parent=63 // loop_footer_branch
                %296 = sbr.rel target = $region66
              $region71: #{net_forward.1} parent=63 // loop_exit
                _
            $region64: #{net_forward.1} parent=55 // pred_fallthru
              _
          $region56: #{net_forward.1} parent=51 // pred_fallthru
            _
          %540 = vnop
        $region52: #{net_forward.1} parent=47 // pred_fallthru
          _
      $region48: #{net_forward.1} parent=5 // pred_fallthru
        _
      %p541 = scmp.le.s32.totalorder 1, %s15
      %p542 = scmp.lt.s32.totalorder %s15, 3
      %p543 = pnand %p541, %p542
      %p544 = pneg %p543
      // Predicated region
      $region87: #{net_forward.1} parent=5 // pred_check
        _
      $region88: #{net_forward.1} parent=5 // pred_check_branch
        %546 = sbr.rel (%p543) target = $region90
      $region89: #{net_forward.1} parent=5 // pred_region
        %s547 = ssub.s32 %s15, 1
        %s548 = sand.u32 %s28, 1
        %s549 = sand.u32 %s28, 1
        %s550 = smul.addr %s549, 448
        %s551 = scalar_lea.vmem [#allocation2], %s550
        // Predicated region
        $region91: #{net_forward.1} parent=89 // pred_check
          %p552 = pneg %p41
        $region92: #{net_forward.1} parent=89 // pred_check_branch
          %554 = sbr.rel (%p552) target = $region94
        $region93: #{net_forward.1} parent=89 // pred_region
          _
        $region94: #{net_forward.1} parent=89 // pred_fallthru
          _
        %s555 = sand.u32 %s28, 1
        %s556 = sand.u32 %s28, 1
        %s557 = smul.addr %s556, 448
        %s558 = scalar_lea.vmem [#allocation2], %s557
        %p559 = pneg %p41
        %p560 = pneg %p38
        %p561 = pneg %p62
        %p562 = pneg %p59
        %p563 = pneg %p83
        %p564 = pneg %p80
        %p565 = pneg %p104
        %p566 = pneg %p101
        %p567 = pneg %p125
        %p568 = pneg %p122
        %p569 = pneg %p146
        %p570 = pneg %p143
        %p571 = pneg %p167
        %p572 = pneg %p164
        %p573 = pneg %p188
        %p574 = pneg %p185
        %p575 = pneg %p209
        %p576 = pneg %p206
        %p577 = pneg %p235
        %p578 = pneg %p232
        %s579 = smul.u32 2, %s20
        %p580 = scmp.lt.s32.totalorder %s579, 3
        %s581 = scalar_select %p580, %s579, 3
        %s582 = smul.addr %s581, 8
        %s583 = scalar_lea.vmem %s9, %s582
        %s584 = smul.u32 2, %s20
        %s585 = smul.u32 2, %s20
        %p586 = scmp.lt.s32.totalorder %s585, 3
        %s587 = scalar_select %p586, %s585, 3
        %s588 = smul.addr %s587, 8
        %s589 = scalar_lea.vmem %s9, %s588
        %s590 = smul.u32 2, %s20
        %v592 = vld [vmem:[%s551] sm:$0xff]
        %v593 = vld [vmem:[%s551 + $0x8] sm:$0xff]
        %v594 = vld [vmem:[%s551 + $0x10] sm:$0xff]
        %v595 = vld [vmem:[%s551 + $0x18] sm:$0xff]
        %v596 = vld [vmem:[%s551 + $0x20] sm:$0xff]
        %v597 = vld [vmem:[%s551 + $0x28] sm:$0xff]
        %v598 = vld [vmem:[%s551 + $0x30] sm:$0xff]
        %v599 = vld [vmem:[%s551 + $0x38] sm:$0xff]
        %v600 = vld [vmem:[%s551 + $0x40] sm:$0xff]
        %v601 = vld [vmem:[%s551 + $0x48] sm:$0xff]
        %v602 = vld [vmem:[%s551 + $0x50] sm:$0xff]
        %v603 = vld [vmem:[%s551 + $0x58] sm:$0xff]
        %v604 = vld [vmem:[%s551 + $0x60] sm:$0xff]
        %v605 = vld [vmem:[%s551 + $0x68] sm:$0xff]
        %v606 = vpack.c.bf16 %v593, %v592
        %v607 = vpack.c.bf16 %v595, %v594
        %v608 = vpack.c.bf16 %v597, %v596
        %v609 = vpack.c.bf16 %v599, %v598
        %v610 = vpack.c.bf16 %v601, %v600
        %v611 = vpack.c.bf16 %v603, %v602
        %v612 = vpack.c.bf16 %v605, %v604
        %s613 = scalar_lea.vmem %s551, 112 [#allocation2]
        %v614 = vld [vmem:[%s613] sm:$0xff]
        %v615 = vld [vmem:[%s613 + $0x8] sm:$0xff]
        %v616 = vld [vmem:[%s613 + $0x10] sm:$0xff]
        %v617 = vld [vmem:[%s613 + $0x18] sm:$0xff]
        %v618 = vld [vmem:[%s613 + $0x20] sm:$0xff]
        %v619 = vld [vmem:[%s613 + $0x28] sm:$0xff]
        %v620 = vld [vmem:[%s613 + $0x30] sm:$0xff]
        %v621 = vld [vmem:[%s613 + $0x38] sm:$0xff]
        %v622 = vld [vmem:[%s613 + $0x40] sm:$0xff]
        %v623 = vld [vmem:[%s613 + $0x48] sm:$0xff]
        %v624 = vld [vmem:[%s613 + $0x50] sm:$0xff]
        %v625 = vld [vmem:[%s613 + $0x58] sm:$0xff]
        %v626 = vld [vmem:[%s613 + $0x60] sm:$0xff]
        %v627 = vld [vmem:[%s613 + $0x68] sm:$0xff]
        %v628 = vpack.c.bf16 %v615, %v614
        %v629 = vpack.c.bf16 %v617, %v616
        %v630 = vpack.c.bf16 %v619, %v618
        %v631 = vpack.c.bf16 %v621, %v620
        %v632 = vpack.c.bf16 %v623, %v622
        %v633 = vpack.c.bf16 %v625, %v624
        %v634 = vpack.c.bf16 %v627, %v626
        %s635 = scalar_lea.vmem %s551, 224 [#allocation2]
        %v636 = vld [vmem:[%s635] sm:$0xff]
        %v637 = vld [vmem:[%s635 + $0x8] sm:$0xff]
        %v638 = vld [vmem:[%s635 + $0x10] sm:$0xff]
        %v639 = vld [vmem:[%s635 + $0x18] sm:$0xff]
        %v640 = vld [vmem:[%s635 + $0x20] sm:$0xff]
        %v641 = vld [vmem:[%s635 + $0x28] sm:$0xff]
        %v642 = vld [vmem:[%s635 + $0x30] sm:$0xff]
        %v643 = vld [vmem:[%s635 + $0x38] sm:$0xff]
        %v644 = vld [vmem:[%s635 + $0x40] sm:$0xff]
        %v645 = vld [vmem:[%s635 + $0x48] sm:$0xff]
        %v646 = vld [vmem:[%s635 + $0x50] sm:$0xff]
        %v647 = vld [vmem:[%s635 + $0x58] sm:$0xff]
        %v648 = vld [vmem:[%s635 + $0x60] sm:$0xff]
        %v649 = vld [vmem:[%s635 + $0x68] sm:$0xff]
        %v650 = vpack.c.bf16 %v637, %v636
        %v651 = vpack.c.bf16 %v639, %v638
        %v652 = vpack.c.bf16 %v641, %v640
        %v653 = vpack.c.bf16 %v643, %v642
        %v654 = vpack.c.bf16 %v645, %v644
        %v655 = vpack.c.bf16 %v647, %v646
        %v656 = vpack.c.bf16 %v649, %v648
        %s657 = scalar_lea.vmem %s551, 336 [#allocation2]
        %v658 = vld [vmem:[%s657] sm:$0xff]
        %v659 = vld [vmem:[%s657 + $0x8] sm:$0xff]
        %v660 = vld [vmem:[%s657 + $0x10] sm:$0xff]
        %v661 = vld [vmem:[%s657 + $0x18] sm:$0xff]
        %v662 = vld [vmem:[%s657 + $0x20] sm:$0xff]
        %v663 = vld [vmem:[%s657 + $0x28] sm:$0xff]
        %v664 = vld [vmem:[%s657 + $0x30] sm:$0xff]
        %v665 = vld [vmem:[%s657 + $0x38] sm:$0xff]
        %v666 = vld [vmem:[%s657 + $0x40] sm:$0xff]
        %v667 = vld [vmem:[%s657 + $0x48] sm:$0xff]
        %v668 = vld [vmem:[%s657 + $0x50] sm:$0xff]
        %v669 = vld [vmem:[%s657 + $0x58] sm:$0xff]
        %v670 = vpack.c.bf16 %v659, %v658
        %v671 = vpack.c.bf16 %v661, %v660
        %v672 = vpack.c.bf16 %v663, %v662
        %v673 = vpack.c.bf16 %v665, %v664
        %v674 = vpack.c.bf16 %v667, %v666
        %v675 = vpack.c.bf16 %v669, %v668
        %v676 = vld [vmem:[%s1] sm:$0xff]
        %v677 = vld [vmem:[%s1 + $0x8] sm:$0xf]
        %v678 = vld [vmem:[%s1 + $0xc] sm:$0xff]
        %v679 = vld [vmem:[%s1 + $0x14] sm:$0xf]
        %v680 = vld [vmem:[%s1 + $0x18] sm:$0xff]
        %v681 = vld [vmem:[%s1 + $0x20] sm:$0xf]
        %v682 = vld [vmem:[%s1 + $0x24] sm:$0x33]
        %v683 = vld [vmem:[%s1 + $0x2c] sm:$0x3]
        %s684 = scalar_lea.vmem %s1, 48
        %v685 = vld [vmem:[%s684] sm:$0xff]
        %v686 = vld [vmem:[%s684 + $0x8] sm:$0xf]
        %v687 = vld [vmem:[%s684 + $0xc] sm:$0xff]
        %v688 = vld [vmem:[%s684 + $0x14] sm:$0xf]
        %v689 = vld [vmem:[%s684 + $0x18] sm:$0xff]
        %v690 = vld [vmem:[%s684 + $0x20] sm:$0xf]
        %v691 = vld [vmem:[%s684 + $0x24] sm:$0x33]
        %v692 = vld [vmem:[%s684 + $0x2c] sm:$0x3]
        %v701 = vunpack.c.l.b16 %v685
        %v702 = vunpack.c.h.b16 %v685
        %v703 = vunpack.c.l.b16 %v686
        %v704 = vunpack.c.l.b16 %v687
        %v705 = vunpack.c.h.b16 %v687
        %v706 = vunpack.c.l.b16 %v688
        %v707 = vunpack.c.l.b16 %v689
        %v708 = vunpack.c.h.b16 %v689
        %v709 = vunpack.c.l.b16 %v690
        %v710 = vunpack.c.l.b16 %v691
        %v711 = vunpack.c.h.b16 %v691
        %v712 = vunpack.c.l.b16 %v692
        %v713 = vpack.c.b16 %v704, %v701
        %v714 = vpack.c.b16 %v705, %v702
        %v715 = vpack.c.b16 %v706, %v703
        %v716 = vpack.c.b16 %v710, %v707
        %v717 = vpack.c.b16 %v711, %v708
        %v718 = vpack.c.b16 %v712, %v709
        %vm722 = vcmask 228352
        %v724 = vsel %vm722, %v628, 0
        %v727 = vsel %vm722, %v629, 0
        %v730 = vsel %vm722, %v630, 0
        %v733 = vsel %vm722, %v631, 0
        %v736 = vsel %vm722, %v632, 0
        %vm738 = vcmask 1045504
        %v740 = vsel %vm738, %v716, 0
        %v743 = vsel %vm738, %v717, 0
        %v746 = vsel %vm738, %v718, 0
        %748 = vmatprep.subr.bf16.mxu0 0
        %749 = vmatpush1.bf16.msra.mxu0 0
        %750 = vmatprep.subr.bf16.mxu0 0
        %751 = vmatpush1.bf16.msra.mxu0 0
        %752 = vmatprep.subr.bf16.mxu0 0
        %753 = vmatpush1.bf16.msra.mxu0 0
        %754 = vmatprep.subr.bf16.mxu0 0
        %755 = vmatpush1.bf16.msra.mxu0 0
        %756 = vmatprep.subr.bf16.mxu0 0
        %757 = vmatpush1.bf16.msra.mxu0 0
        %758 = vmatprep.subr.bf16.mxu0 0
        %759 = vmatpush1.bf16.msra.mxu0 0
        %760 = vmatprep.subr.bf16.mxu0 %v743
        %761 = vmatpush1.bf16.msra.mxu0 %v740
        %762 = vmatprep.subr.bf16.mxu0 %v714
        %763 = vmatpush1.bf16.msra.mxu0 %v713
        %764 = vmatprep.subr.bf16.mxu0 0
        %765 = vmatpush2.bf16.msra.mxu0 0
        %766 = vmatprep.subr.bf16.mxu0 0
        %767 = vmatpush2.bf16.msra.mxu0 0
        %768 = vmatprep.subr.bf16.mxu0 0
        %769 = vmatpush2.bf16.msra.mxu0 0
        %770 = vmatprep.subr.bf16.mxu0 0
        %771 = vmatpush2.bf16.msra.mxu0 0
        %772 = vmatprep.subr.bf16.mxu0 0
        %773 = vmatpush2.bf16.msra.mxu0 0
        %774 = vmatprep.subr.bf16.mxu0 0
        %775 = vmatpush2.bf16.msra.mxu0 0
        %776 = vmatprep.subr.bf16.mxu0 0
        %777 = vmatpush2.bf16.msra.mxu0 0
        %778 = vmatprep.subr.bf16.mxu0 0
        %779 = vmatpush2.bf16.msra.mxu0 0
        %780 = vmatprep.mubr.bf16.mxu0 0
        %781 = vmatmul.mubr.bf16.gmra.mxu0 %v724
        %v782 = vpop.f32.mrf.mxu0
        %v783 = vadd.f32 0.0, %v782
        %v784 = vpop.f32.mrf.mxu0
        %v785 = vadd.f32 0.0, %v784
        %v786 = vpop.f32.mrf.mxu0
        %v787 = vadd.f32 0.0, %v786
        %v788 = vpop.f32.mrf.mxu0
        %v789 = vadd.f32 0.0, %v788
        %790 = vmatprep.mubr.bf16.mxu0 0
        %791 = vmatmul.mubr.bf16.gmra.mxu0 %v727
        %v792 = vpop.f32.mrf.mxu0
        %v793 = vadd.f32 0.0, %v792
        %v794 = vpop.f32.mrf.mxu0
        %v795 = vadd.f32 0.0, %v794
        %v796 = vpop.f32.mrf.mxu0
        %v797 = vadd.f32 0.0, %v796
        %v798 = vpop.f32.mrf.mxu0
        %v799 = vadd.f32 0.0, %v798
        %800 = vmatprep.mubr.bf16.mxu0 0
        %801 = vmatmul.mubr.bf16.gmra.mxu0 %v730
        %v802 = vpop.f32.mrf.mxu0
        %v803 = vadd.f32 0.0, %v802
        %v804 = vpop.f32.mrf.mxu0
        %v805 = vadd.f32 0.0, %v804
        %v806 = vpop.f32.mrf.mxu0
        %v807 = vadd.f32 0.0, %v806
        %v808 = vpop.f32.mrf.mxu0
        %v809 = vadd.f32 0.0, %v808
        %810 = vmatprep.mubr.bf16.mxu0 0
        %811 = vmatmul.mubr.bf16.gmra.mxu0 %v733
        %v812 = vpop.f32.mrf.mxu0
        %v813 = vadd.f32 0.0, %v812
        %v814 = vpop.f32.mrf.mxu0
        %v815 = vadd.f32 0.0, %v814
        %v816 = vpop.f32.mrf.mxu0
        %v817 = vadd.f32 0.0, %v816
        %v818 = vpop.f32.mrf.mxu0
        %v819 = vadd.f32 0.0, %v818
        %820 = vmatprep.mubr.bf16.mxu0 0
        %821 = vmatmul.mubr.bf16.gmra.mxu0 %v736
        %v822 = vpop.f32.mrf.mxu0
        %v823 = vadd.f32 0.0, %v822
        %v824 = vpop.f32.mrf.mxu0
        %v825 = vadd.f32 0.0, %v824
        %v826 = vpop.f32.mrf.mxu0
        %v827 = vadd.f32 0.0, %v826
        %v828 = vpop.f32.mrf.mxu0
        %v829 = vadd.f32 0.0, %v828
        %830 = vdwg.mxu0
        %831 = vmatprep.subr.bf16.mxu0 0
        %832 = vmatpush1.bf16.msra.mxu0 0
        %833 = vmatprep.subr.bf16.mxu0 0
        %834 = vmatpush1.bf16.msra.mxu0 0
        %835 = vmatprep.subr.bf16.mxu0 0
        %836 = vmatpush1.bf16.msra.mxu0 0
        %837 = vmatprep.subr.bf16.mxu0 0
        %838 = vmatpush1.bf16.msra.mxu0 0
        %839 = vmatprep.subr.bf16.mxu0 0
        %840 = vmatpush1.bf16.msra.mxu0 0
        %841 = vmatprep.subr.bf16.mxu0 0
        %842 = vmatpush1.bf16.msra.mxu0 0
        %843 = vmatprep.subr.bf16.mxu0 0
        %844 = vmatpush1.bf16.msra.mxu0 %v746
        %845 = vmatprep.subr.bf16.mxu0 0
        %846 = vmatpush1.bf16.msra.mxu0 %v715
        %847 = vmatprep.subr.bf16.mxu0 0
        %848 = vmatpush2.bf16.msra.mxu0 0
        %849 = vmatprep.subr.bf16.mxu0 0
        %850 = vmatpush2.bf16.msra.mxu0 0
        %851 = vmatprep.subr.bf16.mxu0 0
        %852 = vmatpush2.bf16.msra.mxu0 0
        %853 = vmatprep.subr.bf16.mxu0 0
        %854 = vmatpush2.bf16.msra.mxu0 0
        %855 = vmatprep.subr.bf16.mxu0 0
        %856 = vmatpush2.bf16.msra.mxu0 0
        %857 = vmatprep.subr.bf16.mxu0 0
        %858 = vmatpush2.bf16.msra.mxu0 0
        %859 = vmatprep.subr.bf16.mxu0 0
        %860 = vmatpush2.bf16.msra.mxu0 0
        %861 = vmatprep.subr.bf16.mxu0 0
        %862 = vmatpush2.bf16.msra.mxu0 0
        %863 = vmatprep.mubr.bf16.mxu0 0
        %864 = vmatmul.mubr.bf16.gmra.mxu0 %v724
        %v865 = vpop.f32.mrf.mxu0
        %v866 = vadd.f32 0.0, %v865
        %v867 = vpop.f32.mrf.mxu0
        %v868 = vpop.f32.mrf.mxu0
        %v869 = vadd.f32 0.0, %v868
        %v870 = vpop.f32.mrf.mxu0
        %871 = vmatprep.mubr.bf16.mxu0 0
        %872 = vmatmul.mubr.bf16.gmra.mxu0 %v727
        %v873 = vpop.f32.mrf.mxu0
        %v874 = vadd.f32 0.0, %v873
        %v875 = vpop.f32.mrf.mxu0
        %v876 = vpop.f32.mrf.mxu0
        %v877 = vadd.f32 0.0, %v876
        %v878 = vpop.f32.mrf.mxu0
        %879 = vmatprep.mubr.bf16.mxu0 0
        %880 = vmatmul.mubr.bf16.gmra.mxu0 %v730
        %v881 = vpop.f32.mrf.mxu0
        %v882 = vadd.f32 0.0, %v881
        %v883 = vpop.f32.mrf.mxu0
        %v884 = vpop.f32.mrf.mxu0
        %v885 = vadd.f32 0.0, %v884
        %v886 = vpop.f32.mrf.mxu0
        %887 = vmatprep.mubr.bf16.mxu0 0
        %888 = vmatmul.mubr.bf16.gmra.mxu0 %v733
        %v889 = vpop.f32.mrf.mxu0
        %v890 = vadd.f32 0.0, %v889
        %v891 = vpop.f32.mrf.mxu0
        %v892 = vpop.f32.mrf.mxu0
        %v893 = vadd.f32 0.0, %v892
        %v894 = vpop.f32.mrf.mxu0
        %895 = vmatprep.mubr.bf16.mxu0 0
        %896 = vmatmul.mubr.bf16.gmra.mxu0 %v736
        %v897 = vpop.f32.mrf.mxu0
        %v898 = vadd.f32 0.0, %v897
        %v899 = vpop.f32.mrf.mxu0
        %v900 = vpop.f32.mrf.mxu0
        %v901 = vadd.f32 0.0, %v900
        %v902 = vpop.f32.mrf.mxu0
        %903 = vdwg.mxu0
        %v912 = vunpack.c.l.b16 %v676
        %v913 = vunpack.c.h.b16 %v676
        %v914 = vunpack.c.l.b16 %v677
        %v915 = vunpack.c.l.b16 %v678
        %v916 = vunpack.c.h.b16 %v678
        %v917 = vunpack.c.l.b16 %v679
        %v918 = vunpack.c.l.b16 %v680
        %v919 = vunpack.c.h.b16 %v680
        %v920 = vunpack.c.l.b16 %v681
        %v921 = vunpack.c.l.b16 %v682
        %v922 = vunpack.c.h.b16 %v682
        %v923 = vunpack.c.l.b16 %v683
        %v924 = vpack.c.b16 %v915, %v912
        %v925 = vpack.c.b16 %v916, %v913
        %v926 = vpack.c.b16 %v917, %v914
        %v927 = vpack.c.b16 %v921, %v918
        %v928 = vpack.c.b16 %v922, %v919
        %v929 = vpack.c.b16 %v923, %v920
        %v934 = vsel %vm722, %v606, 0
        %v937 = vsel %vm722, %v607, 0
        %v940 = vsel %vm722, %v608, 0
        %v943 = vsel %vm722, %v609, 0
        %v946 = vsel %vm722, %v610, 0
        %v949 = vsel %vm738, %v927, 0
        %v952 = vsel %vm738, %v928, 0
        %v955 = vsel %vm738, %v929, 0
        %957 = vmatprep.subr.bf16.mxu0 0
        %958 = vmatpush1.bf16.msra.mxu0 0
        %959 = vmatprep.subr.bf16.mxu0 0
        %960 = vmatpush1.bf16.msra.mxu0 0
        %961 = vmatprep.subr.bf16.mxu0 0
        %962 = vmatpush1.bf16.msra.mxu0 0
        %963 = vmatprep.subr.bf16.mxu0 0
        %964 = vmatpush1.bf16.msra.mxu0 0
        %965 = vmatprep.subr.bf16.mxu0 0
        %966 = vmatpush1.bf16.msra.mxu0 0
        %967 = vmatprep.subr.bf16.mxu0 0
        %968 = vmatpush1.bf16.msra.mxu0 0
        %969 = vmatprep.subr.bf16.mxu0 %v952
        %970 = vmatpush1.bf16.msra.mxu0 %v949
        %971 = vmatprep.subr.bf16.mxu0 %v925
        %972 = vmatpush1.bf16.msra.mxu0 %v924
        %973 = vmatprep.subr.bf16.mxu0 0
        %974 = vmatpush2.bf16.msra.mxu0 0
        %975 = vmatprep.subr.bf16.mxu0 0
        %976 = vmatpush2.bf16.msra.mxu0 0
        %977 = vmatprep.subr.bf16.mxu0 0
        %978 = vmatpush2.bf16.msra.mxu0 0
        %979 = vmatprep.subr.bf16.mxu0 0
        %980 = vmatpush2.bf16.msra.mxu0 0
        %981 = vmatprep.subr.bf16.mxu0 0
        %982 = vmatpush2.bf16.msra.mxu0 0
        %983 = vmatprep.subr.bf16.mxu0 0
        %984 = vmatpush2.bf16.msra.mxu0 0
        %985 = vmatprep.subr.bf16.mxu0 0
        %986 = vmatpush2.bf16.msra.mxu0 0
        %987 = vmatprep.subr.bf16.mxu0 0
        %988 = vmatpush2.bf16.msra.mxu0 0
        %989 = vmatprep.mubr.bf16.mxu0 0
        %990 = vmatmul.mubr.bf16.gmra.mxu0 %v934
        %v991 = vpop.f32.mrf.mxu0
        %v992 = vadd.f32 %v783, %v991
        %v993 = vpop.f32.mrf.mxu0
        %v994 = vadd.f32 %v785, %v993
        %v995 = vpop.f32.mrf.mxu0
        %v996 = vadd.f32 %v787, %v995
        %v997 = vpop.f32.mrf.mxu0
        %v998 = vadd.f32 %v789, %v997
        %999 = vmatprep.mubr.bf16.mxu0 0
        %1000 = vmatmul.mubr.bf16.gmra.mxu0 %v937
        %v1001 = vpop.f32.mrf.mxu0
        %v1002 = vadd.f32 %v793, %v1001
        %v1003 = vpop.f32.mrf.mxu0
        %v1004 = vadd.f32 %v795, %v1003
        %v1005 = vpop.f32.mrf.mxu0
        %v1006 = vadd.f32 %v797, %v1005
        %v1007 = vpop.f32.mrf.mxu0
        %v1008 = vadd.f32 %v799, %v1007
        %1009 = vmatprep.mubr.bf16.mxu0 0
        %1010 = vmatmul.mubr.bf16.gmra.mxu0 %v940
        %v1011 = vpop.f32.mrf.mxu0
        %v1012 = vadd.f32 %v803, %v1011
        %v1013 = vpop.f32.mrf.mxu0
        %v1014 = vadd.f32 %v805, %v1013
        %v1015 = vpop.f32.mrf.mxu0
        %v1016 = vadd.f32 %v807, %v1015
        %v1017 = vpop.f32.mrf.mxu0
        %v1018 = vadd.f32 %v809, %v1017
        %1019 = vmatprep.mubr.bf16.mxu0 0
        %1020 = vmatmul.mubr.bf16.gmra.mxu0 %v943
        %v1021 = vpop.f32.mrf.mxu0
        %v1022 = vadd.f32 %v813, %v1021
        %v1023 = vpop.f32.mrf.mxu0
        %v1024 = vadd.f32 %v815, %v1023
        %v1025 = vpop.f32.mrf.mxu0
        %v1026 = vadd.f32 %v817, %v1025
        %v1027 = vpop.f32.mrf.mxu0
        %v1028 = vadd.f32 %v819, %v1027
        %1029 = vmatprep.mubr.bf16.mxu0 0
        %1030 = vmatmul.mubr.bf16.gmra.mxu0 %v946
        %v1031 = vpop.f32.mrf.mxu0
        %v1032 = vadd.f32 %v823, %v1031
        %v1033 = vpop.f32.mrf.mxu0
        %v1034 = vadd.f32 %v825, %v1033
        %v1035 = vpop.f32.mrf.mxu0
        %v1036 = vadd.f32 %v827, %v1035
        %v1037 = vpop.f32.mrf.mxu0
        %v1038 = vadd.f32 %v829, %v1037
        %1039 = vdwg.mxu0
        %1040 = vmatprep.subr.bf16.mxu0 0
        %1041 = vmatpush1.bf16.msra.mxu0 0
        %1042 = vmatprep.subr.bf16.mxu0 0
        %1043 = vmatpush1.bf16.msra.mxu0 0
        %1044 = vmatprep.subr.bf16.mxu0 0
        %1045 = vmatpush1.bf16.msra.mxu0 0
        %1046 = vmatprep.subr.bf16.mxu0 0
        %1047 = vmatpush1.bf16.msra.mxu0 0
        %1048 = vmatprep.subr.bf16.mxu0 0
        %1049 = vmatpush1.bf16.msra.mxu0 0
        %1050 = vmatprep.subr.bf16.mxu0 0
        %1051 = vmatpush1.bf16.msra.mxu0 0
        %1052 = vmatprep.subr.bf16.mxu0 0
        %1053 = vmatpush1.bf16.msra.mxu0 %v955
        %1054 = vmatprep.subr.bf16.mxu0 0
        %1055 = vmatpush1.bf16.msra.mxu0 %v926
        %1056 = vmatprep.subr.bf16.mxu0 0
        %1057 = vmatpush2.bf16.msra.mxu0 0
        %1058 = vmatprep.subr.bf16.mxu0 0
        %1059 = vmatpush2.bf16.msra.mxu0 0
        %1060 = vmatprep.subr.bf16.mxu0 0
        %1061 = vmatpush2.bf16.msra.mxu0 0
        %1062 = vmatprep.subr.bf16.mxu0 0
        %1063 = vmatpush2.bf16.msra.mxu0 0
        %1064 = vmatprep.subr.bf16.mxu0 0
        %1065 = vmatpush2.bf16.msra.mxu0 0
        %1066 = vmatprep.subr.bf16.mxu0 0
        %1067 = vmatpush2.bf16.msra.mxu0 0
        %1068 = vmatprep.subr.bf16.mxu0 0
        %1069 = vmatpush2.bf16.msra.mxu0 0
        %1070 = vmatprep.subr.bf16.mxu0 0
        %1071 = vmatpush2.bf16.msra.mxu0 0
        %1072 = vmatprep.mubr.bf16.mxu0 0
        %1073 = vmatmul.mubr.bf16.gmra.mxu0 %v934
        %v1074 = vpop.f32.mrf.mxu0
        %v1075 = vadd.f32 %v866, %v1074
        %v1076 = vpop.f32.mrf.mxu0
        %v1077 = vpop.f32.mrf.mxu0
        %v1078 = vadd.f32 %v869, %v1077
        %v1079 = vpop.f32.mrf.mxu0
        %1080 = vmatprep.mubr.bf16.mxu0 0
        %1081 = vmatmul.mubr.bf16.gmra.mxu0 %v937
        %v1082 = vpop.f32.mrf.mxu0
        %v1083 = vadd.f32 %v874, %v1082
        %v1084 = vpop.f32.mrf.mxu0
        %v1085 = vpop.f32.mrf.mxu0
        %v1086 = vadd.f32 %v877, %v1085
        %v1087 = vpop.f32.mrf.mxu0
        %1088 = vmatprep.mubr.bf16.mxu0 0
        %1089 = vmatmul.mubr.bf16.gmra.mxu0 %v940
        %v1090 = vpop.f32.mrf.mxu0
        %v1091 = vadd.f32 %v882, %v1090
        %v1092 = vpop.f32.mrf.mxu0
        %v1093 = vpop.f32.mrf.mxu0
        %v1094 = vadd.f32 %v885, %v1093
        %v1095 = vpop.f32.mrf.mxu0
        %1096 = vmatprep.mubr.bf16.mxu0 0
        %1097 = vmatmul.mubr.bf16.gmra.mxu0 %v943
        %v1098 = vpop.f32.mrf.mxu0
        %v1099 = vadd.f32 %v890, %v1098
        %v1100 = vpop.f32.mrf.mxu0
        %v1101 = vpop.f32.mrf.mxu0
        %v1102 = vadd.f32 %v893, %v1101
        %v1103 = vpop.f32.mrf.mxu0
        %1104 = vmatprep.mubr.bf16.mxu0 0
        %1105 = vmatmul.mubr.bf16.gmra.mxu0 %v946
        %v1106 = vpop.f32.mrf.mxu0
        %v1107 = vadd.f32 %v898, %v1106
        %v1108 = vpop.f32.mrf.mxu0
        %v1109 = vpop.f32.mrf.mxu0
        %v1110 = vadd.f32 %v901, %v1109
        %v1111 = vpop.f32.mrf.mxu0
        %1112 = vdwg.mxu0
        %s1113 = scalar_lea.vmem %s1, 96
        %v1114 = vld [vmem:[%s1113] sm:$0xff]
        %v1115 = vld [vmem:[%s1113 + $0x8] sm:$0xf]
        %v1116 = vld [vmem:[%s1113 + $0xc] sm:$0xff]
        %v1117 = vld [vmem:[%s1113 + $0x14] sm:$0xf]
        %v1118 = vld [vmem:[%s1113 + $0x18] sm:$0xff]
        %v1119 = vld [vmem:[%s1113 + $0x20] sm:$0xf]
        %v1120 = vld [vmem:[%s1113 + $0x24] sm:$0x33]
        %v1121 = vld [vmem:[%s1113 + $0x2c] sm:$0x3]
        %v1130 = vunpack.c.l.b16 %v1114
        %v1131 = vunpack.c.h.b16 %v1114
        %v1132 = vunpack.c.l.b16 %v1115
        %v1133 = vunpack.c.l.b16 %v1116
        %v1134 = vunpack.c.h.b16 %v1116
        %v1135 = vunpack.c.l.b16 %v1117
        %v1136 = vunpack.c.l.b16 %v1118
        %v1137 = vunpack.c.h.b16 %v1118
        %v1138 = vunpack.c.l.b16 %v1119
        %v1139 = vunpack.c.l.b16 %v1120
        %v1140 = vunpack.c.h.b16 %v1120
        %v1141 = vunpack.c.l.b16 %v1121
        %v1142 = vpack.c.b16 %v1133, %v1130
        %v1143 = vpack.c.b16 %v1134, %v1131
        %v1144 = vpack.c.b16 %v1135, %v1132
        %v1145 = vpack.c.b16 %v1139, %v1136
        %v1146 = vpack.c.b16 %v1140, %v1137
        %v1147 = vpack.c.b16 %v1141, %v1138
        %v1152 = vsel %vm722, %v650, 0
        %v1155 = vsel %vm722, %v651, 0
        %v1158 = vsel %vm722, %v652, 0
        %v1161 = vsel %vm722, %v653, 0
        %v1164 = vsel %vm722, %v654, 0
        %v1167 = vsel %vm738, %v1145, 0
        %v1170 = vsel %vm738, %v1146, 0
        %v1173 = vsel %vm738, %v1147, 0
        %1175 = vmatprep.subr.bf16.mxu0 0
        %1176 = vmatpush1.bf16.msra.mxu0 0
        %1177 = vmatprep.subr.bf16.mxu0 0
        %1178 = vmatpush1.bf16.msra.mxu0 0
        %1179 = vmatprep.subr.bf16.mxu0 0
        %1180 = vmatpush1.bf16.msra.mxu0 0
        %1181 = vmatprep.subr.bf16.mxu0 0
        %1182 = vmatpush1.bf16.msra.mxu0 0
        %1183 = vmatprep.subr.bf16.mxu0 0
        %1184 = vmatpush1.bf16.msra.mxu0 0
        %1185 = vmatprep.subr.bf16.mxu0 0
        %1186 = vmatpush1.bf16.msra.mxu0 0
        %1187 = vmatprep.subr.bf16.mxu0 %v1170
        %1188 = vmatpush1.bf16.msra.mxu0 %v1167
        %1189 = vmatprep.subr.bf16.mxu0 %v1143
        %1190 = vmatpush1.bf16.msra.mxu0 %v1142
        %1191 = vmatprep.subr.bf16.mxu0 0
        %1192 = vmatpush2.bf16.msra.mxu0 0
        %1193 = vmatprep.subr.bf16.mxu0 0
        %1194 = vmatpush2.bf16.msra.mxu0 0
        %1195 = vmatprep.subr.bf16.mxu0 0
        %1196 = vmatpush2.bf16.msra.mxu0 0
        %1197 = vmatprep.subr.bf16.mxu0 0
        %1198 = vmatpush2.bf16.msra.mxu0 0
        %1199 = vmatprep.subr.bf16.mxu0 0
        %1200 = vmatpush2.bf16.msra.mxu0 0
        %1201 = vmatprep.subr.bf16.mxu0 0
        %1202 = vmatpush2.bf16.msra.mxu0 0
        %1203 = vmatprep.subr.bf16.mxu0 0
        %1204 = vmatpush2.bf16.msra.mxu0 0
        %1205 = vmatprep.subr.bf16.mxu0 0
        %1206 = vmatpush2.bf16.msra.mxu0 0
        %1207 = vmatprep.mubr.bf16.mxu0 0
        %1208 = vmatmul.mubr.bf16.gmra.mxu0 %v1152
        %v1209 = vpop.f32.mrf.mxu0
        %v1210 = vadd.f32 0.0, %v1209
        %v1211 = vpop.f32.mrf.mxu0
        %v1212 = vadd.f32 0.0, %v1211
        %v1213 = vpop.f32.mrf.mxu0
        %v1214 = vadd.f32 0.0, %v1213
        %v1215 = vpop.f32.mrf.mxu0
        %v1216 = vadd.f32 0.0, %v1215
        %1217 = vmatprep.mubr.bf16.mxu0 0
        %1218 = vmatmul.mubr.bf16.gmra.mxu0 %v1155
        %v1219 = vpop.f32.mrf.mxu0
        %v1220 = vadd.f32 0.0, %v1219
        %v1221 = vpop.f32.mrf.mxu0
        %v1222 = vadd.f32 0.0, %v1221
        %v1223 = vpop.f32.mrf.mxu0
        %v1224 = vadd.f32 0.0, %v1223
        %v1225 = vpop.f32.mrf.mxu0
        %v1226 = vadd.f32 0.0, %v1225
        %1227 = vmatprep.mubr.bf16.mxu0 0
        %1228 = vmatmul.mubr.bf16.gmra.mxu0 %v1158
        %v1229 = vpop.f32.mrf.mxu0
        %v1230 = vadd.f32 0.0, %v1229
        %v1231 = vpop.f32.mrf.mxu0
        %v1232 = vadd.f32 0.0, %v1231
        %v1233 = vpop.f32.mrf.mxu0
        %v1234 = vadd.f32 0.0, %v1233
        %v1235 = vpop.f32.mrf.mxu0
        %v1236 = vadd.f32 0.0, %v1235
        %1237 = vmatprep.mubr.bf16.mxu0 0
        %1238 = vmatmul.mubr.bf16.gmra.mxu0 %v1161
        %v1239 = vpop.f32.mrf.mxu0
        %v1240 = vadd.f32 0.0, %v1239
        %v1241 = vpop.f32.mrf.mxu0
        %v1242 = vadd.f32 0.0, %v1241
        %v1243 = vpop.f32.mrf.mxu0
        %v1244 = vadd.f32 0.0, %v1243
        %v1245 = vpop.f32.mrf.mxu0
        %v1246 = vadd.f32 0.0, %v1245
        %1247 = vmatprep.mubr.bf16.mxu0 0
        %1248 = vmatmul.mubr.bf16.gmra.mxu0 %v1164
        %v1249 = vpop.f32.mrf.mxu0
        %v1250 = vadd.f32 0.0, %v1249
        %v1251 = vpop.f32.mrf.mxu0
        %v1252 = vadd.f32 0.0, %v1251
        %v1253 = vpop.f32.mrf.mxu0
        %v1254 = vadd.f32 0.0, %v1253
        %v1255 = vpop.f32.mrf.mxu0
        %v1256 = vadd.f32 0.0, %v1255
        %1257 = vdwg.mxu0
        %1258 = vmatprep.subr.bf16.mxu0 0
        %1259 = vmatpush1.bf16.msra.mxu0 0
        %1260 = vmatprep.subr.bf16.mxu0 0
        %1261 = vmatpush1.bf16.msra.mxu0 0
        %1262 = vmatprep.subr.bf16.mxu0 0
        %1263 = vmatpush1.bf16.msra.mxu0 0
        %1264 = vmatprep.subr.bf16.mxu0 0
        %1265 = vmatpush1.bf16.msra.mxu0 0
        %1266 = vmatprep.subr.bf16.mxu0 0
        %1267 = vmatpush1.bf16.msra.mxu0 0
        %1268 = vmatprep.subr.bf16.mxu0 0
        %1269 = vmatpush1.bf16.msra.mxu0 0
        %1270 = vmatprep.subr.bf16.mxu0 0
        %1271 = vmatpush1.bf16.msra.mxu0 %v1173
        %1272 = vmatprep.subr.bf16.mxu0 0
        %1273 = vmatpush1.bf16.msra.mxu0 %v1144
        %1274 = vmatprep.subr.bf16.mxu0 0
        %1275 = vmatpush2.bf16.msra.mxu0 0
        %1276 = vmatprep.subr.bf16.mxu0 0
        %1277 = vmatpush2.bf16.msra.mxu0 0
        %1278 = vmatprep.subr.bf16.mxu0 0
        %1279 = vmatpush2.bf16.msra.mxu0 0
        %1280 = vmatprep.subr.bf16.mxu0 0
        %1281 = vmatpush2.bf16.msra.mxu0 0
        %1282 = vmatprep.subr.bf16.mxu0 0
        %1283 = vmatpush2.bf16.msra.mxu0 0
        %1284 = vmatprep.subr.bf16.mxu0 0
        %1285 = vmatpush2.bf16.msra.mxu0 0
        %1286 = vmatprep.subr.bf16.mxu0 0
        %1287 = vmatpush2.bf16.msra.mxu0 0
        %1288 = vmatprep.subr.bf16.mxu0 0
        %1289 = vmatpush2.bf16.msra.mxu0 0
        %1290 = vmatprep.mubr.bf16.mxu0 0
        %1291 = vmatmul.mubr.bf16.gmra.mxu0 %v1152
        %v1292 = vpop.f32.mrf.mxu0
        %v1293 = vadd.f32 0.0, %v1292
        %v1294 = vpop.f32.mrf.mxu0
        %v1295 = vpop.f32.mrf.mxu0
        %v1296 = vadd.f32 0.0, %v1295
        %v1297 = vpop.f32.mrf.mxu0
        %1298 = vmatprep.mubr.bf16.mxu0 0
        %1299 = vmatmul.mubr.bf16.gmra.mxu0 %v1155
        %v1300 = vpop.f32.mrf.mxu0
        %v1301 = vadd.f32 0.0, %v1300
        %v1302 = vpop.f32.mrf.mxu0
        %v1303 = vpop.f32.mrf.mxu0
        %v1304 = vadd.f32 0.0, %v1303
        %v1305 = vpop.f32.mrf.mxu0
        %1306 = vmatprep.mubr.bf16.mxu0 0
        %1307 = vmatmul.mubr.bf16.gmra.mxu0 %v1158
        %v1308 = vpop.f32.mrf.mxu0
        %v1309 = vadd.f32 0.0, %v1308
        %v1310 = vpop.f32.mrf.mxu0
        %v1311 = vpop.f32.mrf.mxu0
        %v1312 = vadd.f32 0.0, %v1311
        %v1313 = vpop.f32.mrf.mxu0
        %1314 = vmatprep.mubr.bf16.mxu0 0
        %1315 = vmatmul.mubr.bf16.gmra.mxu0 %v1161
        %v1316 = vpop.f32.mrf.mxu0
        %v1317 = vadd.f32 0.0, %v1316
        %v1318 = vpop.f32.mrf.mxu0
        %v1319 = vpop.f32.mrf.mxu0
        %v1320 = vadd.f32 0.0, %v1319
        %v1321 = vpop.f32.mrf.mxu0
        %1322 = vmatprep.mubr.bf16.mxu0 0
        %1323 = vmatmul.mubr.bf16.gmra.mxu0 %v1164
        %v1324 = vpop.f32.mrf.mxu0
        %v1325 = vadd.f32 0.0, %v1324
        %v1326 = vpop.f32.mrf.mxu0
        %v1327 = vpop.f32.mrf.mxu0
        %v1328 = vadd.f32 0.0, %v1327
        %v1329 = vpop.f32.mrf.mxu0
        %1330 = vdwg.mxu0
        %v1331 = vadd.f32 %v992, %v1210
        %v1332 = vadd.f32 %v994, %v1212
        %v1333 = vadd.f32 %v1075, %v1293
        %v1334 = vadd.f32 %v996, %v1214
        %v1335 = vadd.f32 %v998, %v1216
        %v1336 = vadd.f32 %v1078, %v1296
        %v1337 = vadd.f32 %v1002, %v1220
        %v1338 = vadd.f32 %v1004, %v1222
        %v1339 = vadd.f32 %v1083, %v1301
        %v1340 = vadd.f32 %v1006, %v1224
        %v1341 = vadd.f32 %v1008, %v1226
        %v1342 = vadd.f32 %v1086, %v1304
        %v1343 = vadd.f32 %v1012, %v1230
        %v1344 = vadd.f32 %v1014, %v1232
        %v1345 = vadd.f32 %v1091, %v1309
        %v1346 = vadd.f32 %v1016, %v1234
        %v1347 = vadd.f32 %v1018, %v1236
        %v1348 = vadd.f32 %v1094, %v1312
        %v1349 = vadd.f32 %v1022, %v1240
        %v1350 = vadd.f32 %v1024, %v1242
        %v1351 = vadd.f32 %v1099, %v1317
        %v1352 = vadd.f32 %v1026, %v1244
        %v1353 = vadd.f32 %v1028, %v1246
        %v1354 = vadd.f32 %v1102, %v1320
        %v1355 = vadd.f32 %v1032, %v1250
        %v1356 = vadd.f32 %v1034, %v1252
        %v1357 = vadd.f32 %v1107, %v1325
        %v1358 = vadd.f32 %v1036, %v1254
        %v1359 = vadd.f32 %v1038, %v1256
        %v1360 = vadd.f32 %v1110, %v1328
        %s1361 = scalar_lea.vmem %s1, 144
        %v1362 = vld [vmem:[%s1361] sm:$0xff]
        %v1363 = vld [vmem:[%s1361 + $0x8] sm:$0xf]
        %v1364 = vld [vmem:[%s1361 + $0xc] sm:$0xff]
        %v1365 = vld [vmem:[%s1361 + $0x14] sm:$0xf]
        %v1366 = vld [vmem:[%s1361 + $0x18] sm:$0xff]
        %v1367 = vld [vmem:[%s1361 + $0x20] sm:$0xf]
        %v1368 = vld [vmem:[%s1361 + $0x24] sm:$0x33]
        %v1369 = vld [vmem:[%s1361 + $0x2c] sm:$0x3]
        %v1378 = vunpack.c.l.b16 %v1362
        %v1379 = vunpack.c.h.b16 %v1362
        %v1380 = vunpack.c.l.b16 %v1363
        %v1381 = vunpack.c.l.b16 %v1364
        %v1382 = vunpack.c.h.b16 %v1364
        %v1383 = vunpack.c.l.b16 %v1365
        %v1384 = vunpack.c.l.b16 %v1366
        %v1385 = vunpack.c.h.b16 %v1366
        %v1386 = vunpack.c.l.b16 %v1367
        %v1387 = vunpack.c.l.b16 %v1368
        %v1388 = vunpack.c.h.b16 %v1368
        %v1389 = vunpack.c.l.b16 %v1369
        %v1390 = vpack.c.b16 %v1381, %v1378
        %v1391 = vpack.c.b16 %v1382, %v1379
        %v1392 = vpack.c.b16 %v1383, %v1380
        %v1393 = vpack.c.b16 %v1387, %v1384
        %v1394 = vpack.c.b16 %v1388, %v1385
        %v1395 = vpack.c.b16 %v1389, %v1386
        %v1400 = vsel %vm722, %v670, 0
        %v1403 = vsel %vm722, %v671, 0
        %v1406 = vsel %vm722, %v672, 0
        %v1409 = vsel %vm722, %v673, 0
        %v1412 = vsel %vm722, %v674, 0
        %v1415 = vsel %vm738, %v1393, 0
        %v1418 = vsel %vm738, %v1394, 0
        %v1421 = vsel %vm738, %v1395, 0
        %1423 = vmatprep.subr.bf16.mxu0 0
        %1424 = vmatpush1.bf16.msra.mxu0 0
        %1425 = vmatprep.subr.bf16.mxu0 0
        %1426 = vmatpush1.bf16.msra.mxu0 0
        %1427 = vmatprep.subr.bf16.mxu0 0
        %1428 = vmatpush1.bf16.msra.mxu0 0
        %1429 = vmatprep.subr.bf16.mxu0 0
        %1430 = vmatpush1.bf16.msra.mxu0 0
        %1431 = vmatprep.subr.bf16.mxu0 0
        %1432 = vmatpush1.bf16.msra.mxu0 0
        %1433 = vmatprep.subr.bf16.mxu0 0
        %1434 = vmatpush1.bf16.msra.mxu0 0
        %1435 = vmatprep.subr.bf16.mxu0 %v1418
        %1436 = vmatpush1.bf16.msra.mxu0 %v1415
        %1437 = vmatprep.subr.bf16.mxu0 %v1391
        %1438 = vmatpush1.bf16.msra.mxu0 %v1390
        %1439 = vmatprep.subr.bf16.mxu0 0
        %1440 = vmatpush2.bf16.msra.mxu0 0
        %1441 = vmatprep.subr.bf16.mxu0 0
        %1442 = vmatpush2.bf16.msra.mxu0 0
        %1443 = vmatprep.subr.bf16.mxu0 0
        %1444 = vmatpush2.bf16.msra.mxu0 0
        %1445 = vmatprep.subr.bf16.mxu0 0
        %1446 = vmatpush2.bf16.msra.mxu0 0
        %1447 = vmatprep.subr.bf16.mxu0 0
        %1448 = vmatpush2.bf16.msra.mxu0 0
        %1449 = vmatprep.subr.bf16.mxu0 0
        %1450 = vmatpush2.bf16.msra.mxu0 0
        %1451 = vmatprep.subr.bf16.mxu0 0
        %1452 = vmatpush2.bf16.msra.mxu0 0
        %1453 = vmatprep.subr.bf16.mxu0 0
        %1454 = vmatpush2.bf16.msra.mxu0 0
        %1455 = vmatprep.mubr.bf16.mxu0 0
        %1456 = vmatmul.mubr.bf16.gmra.mxu0 %v1400
        %v1457 = vpop.f32.mrf.mxu0
        %v1458 = vadd.f32 0.0, %v1457
        %v1459 = vpop.f32.mrf.mxu0
        %v1460 = vadd.f32 0.0, %v1459
        %v1461 = vpop.f32.mrf.mxu0
        %v1462 = vadd.f32 0.0, %v1461
        %v1463 = vpop.f32.mrf.mxu0
        %v1464 = vadd.f32 0.0, %v1463
        %1465 = vmatprep.mubr.bf16.mxu0 0
        %1466 = vmatmul.mubr.bf16.gmra.mxu0 %v1403
        %v1467 = vpop.f32.mrf.mxu0
        %v1468 = vadd.f32 0.0, %v1467
        %v1469 = vpop.f32.mrf.mxu0
        %v1470 = vadd.f32 0.0, %v1469
        %v1471 = vpop.f32.mrf.mxu0
        %v1472 = vadd.f32 0.0, %v1471
        %v1473 = vpop.f32.mrf.mxu0
        %v1474 = vadd.f32 0.0, %v1473
        %1475 = vmatprep.mubr.bf16.mxu0 0
        %1476 = vmatmul.mubr.bf16.gmra.mxu0 %v1406
        %v1477 = vpop.f32.mrf.mxu0
        %v1478 = vadd.f32 0.0, %v1477
        %v1479 = vpop.f32.mrf.mxu0
        %v1480 = vadd.f32 0.0, %v1479
        %v1481 = vpop.f32.mrf.mxu0
        %v1482 = vadd.f32 0.0, %v1481
        %v1483 = vpop.f32.mrf.mxu0
        %v1484 = vadd.f32 0.0, %v1483
        %1485 = vmatprep.mubr.bf16.mxu0 0
        %1486 = vmatmul.mubr.bf16.gmra.mxu0 %v1409
        %v1487 = vpop.f32.mrf.mxu0
        %v1488 = vadd.f32 0.0, %v1487
        %v1489 = vpop.f32.mrf.mxu0
        %v1490 = vadd.f32 0.0, %v1489
        %v1491 = vpop.f32.mrf.mxu0
        %v1492 = vadd.f32 0.0, %v1491
        %v1493 = vpop.f32.mrf.mxu0
        %v1494 = vadd.f32 0.0, %v1493
        %1495 = vmatprep.mubr.bf16.mxu0 0
        %1496 = vmatmul.mubr.bf16.gmra.mxu0 %v1412
        %v1497 = vpop.f32.mrf.mxu0
        %v1498 = vadd.f32 0.0, %v1497
        %v1499 = vpop.f32.mrf.mxu0
        %v1500 = vadd.f32 0.0, %v1499
        %v1501 = vpop.f32.mrf.mxu0
        %v1502 = vadd.f32 0.0, %v1501
        %v1503 = vpop.f32.mrf.mxu0
        %v1504 = vadd.f32 0.0, %v1503
        %1505 = vdwg.mxu0
        %1506 = vmatprep.subr.bf16.mxu0 0
        %1507 = vmatpush1.bf16.msra.mxu0 0
        %1508 = vmatprep.subr.bf16.mxu0 0
        %1509 = vmatpush1.bf16.msra.mxu0 0
        %1510 = vmatprep.subr.bf16.mxu0 0
        %1511 = vmatpush1.bf16.msra.mxu0 0
        %1512 = vmatprep.subr.bf16.mxu0 0
        %1513 = vmatpush1.bf16.msra.mxu0 0
        %1514 = vmatprep.subr.bf16.mxu0 0
        %1515 = vmatpush1.bf16.msra.mxu0 0
        %1516 = vmatprep.subr.bf16.mxu0 0
        %1517 = vmatpush1.bf16.msra.mxu0 0
        %1518 = vmatprep.subr.bf16.mxu0 0
        %1519 = vmatpush1.bf16.msra.mxu0 %v1421
        %1520 = vmatprep.subr.bf16.mxu0 0
        %1521 = vmatpush1.bf16.msra.mxu0 %v1392
        %1522 = vmatprep.subr.bf16.mxu0 0
        %1523 = vmatpush2.bf16.msra.mxu0 0
        %1524 = vmatprep.subr.bf16.mxu0 0
        %1525 = vmatpush2.bf16.msra.mxu0 0
        %1526 = vmatprep.subr.bf16.mxu0 0
        %1527 = vmatpush2.bf16.msra.mxu0 0
        %1528 = vmatprep.subr.bf16.mxu0 0
        %1529 = vmatpush2.bf16.msra.mxu0 0
        %1530 = vmatprep.subr.bf16.mxu0 0
        %1531 = vmatpush2.bf16.msra.mxu0 0
        %1532 = vmatprep.subr.bf16.mxu0 0
        %1533 = vmatpush2.bf16.msra.mxu0 0
        %1534 = vmatprep.subr.bf16.mxu0 0
        %1535 = vmatpush2.bf16.msra.mxu0 0
        %1536 = vmatprep.subr.bf16.mxu0 0
        %1537 = vmatpush2.bf16.msra.mxu0 0
        %1538 = vmatprep.mubr.bf16.mxu0 0
        %1539 = vmatmul.mubr.bf16.gmra.mxu0 %v1400
        %v1540 = vpop.f32.mrf.mxu0
        %v1541 = vadd.f32 0.0, %v1540
        %v1542 = vpop.f32.mrf.mxu0
        %v1543 = vpop.f32.mrf.mxu0
        %v1544 = vadd.f32 0.0, %v1543
        %v1545 = vpop.f32.mrf.mxu0
        %1546 = vmatprep.mubr.bf16.mxu0 0
        %1547 = vmatmul.mubr.bf16.gmra.mxu0 %v1403
        %v1548 = vpop.f32.mrf.mxu0
        %v1549 = vadd.f32 0.0, %v1548
        %v1550 = vpop.f32.mrf.mxu0
        %v1551 = vpop.f32.mrf.mxu0
        %v1552 = vadd.f32 0.0, %v1551
        %v1553 = vpop.f32.mrf.mxu0
        %1554 = vmatprep.mubr.bf16.mxu0 0
        %1555 = vmatmul.mubr.bf16.gmra.mxu0 %v1406
        %v1556 = vpop.f32.mrf.mxu0
        %v1557 = vadd.f32 0.0, %v1556
        %v1558 = vpop.f32.mrf.mxu0
        %v1559 = vpop.f32.mrf.mxu0
        %v1560 = vadd.f32 0.0, %v1559
        %v1561 = vpop.f32.mrf.mxu0
        %1562 = vmatprep.mubr.bf16.mxu0 0
        %1563 = vmatmul.mubr.bf16.gmra.mxu0 %v1409
        %v1564 = vpop.f32.mrf.mxu0
        %v1565 = vadd.f32 0.0, %v1564
        %v1566 = vpop.f32.mrf.mxu0
        %v1567 = vpop.f32.mrf.mxu0
        %v1568 = vadd.f32 0.0, %v1567
        %v1569 = vpop.f32.mrf.mxu0
        %1570 = vmatprep.mubr.bf16.mxu0 0
        %1571 = vmatmul.mubr.bf16.gmra.mxu0 %v1412
        %v1572 = vpop.f32.mrf.mxu0
        %v1573 = vadd.f32 0.0, %v1572
        %v1574 = vpop.f32.mrf.mxu0
        %v1575 = vpop.f32.mrf.mxu0
        %v1576 = vadd.f32 0.0, %v1575
        %v1577 = vpop.f32.mrf.mxu0
        %1578 = vdwg.mxu0
        %v1579 = vadd.f32 %v1331, %v1458
        %v1580 = vadd.f32 %v1332, %v1460
        %v1581 = vadd.f32 %v1333, %v1541
        %v1582 = vadd.f32 %v1334, %v1462
        %v1583 = vadd.f32 %v1335, %v1464
        %v1584 = vadd.f32 %v1336, %v1544
        %v1585 = vadd.f32 %v1337, %v1468
        %v1586 = vadd.f32 %v1338, %v1470
        %v1587 = vadd.f32 %v1339, %v1549
        %v1588 = vadd.f32 %v1340, %v1472
        %v1589 = vadd.f32 %v1341, %v1474
        %v1590 = vadd.f32 %v1342, %v1552
        %v1591 = vadd.f32 %v1343, %v1478
        %v1592 = vadd.f32 %v1344, %v1480
        %v1593 = vadd.f32 %v1345, %v1557
        %v1594 = vadd.f32 %v1346, %v1482
        %v1595 = vadd.f32 %v1347, %v1484
        %v1596 = vadd.f32 %v1348, %v1560
        %v1597 = vadd.f32 %v1349, %v1488
        %v1598 = vadd.f32 %v1350, %v1490
        %v1599 = vadd.f32 %v1351, %v1565
        %v1600 = vadd.f32 %v1352, %v1492
        %v1601 = vadd.f32 %v1353, %v1494
        %v1602 = vadd.f32 %v1354, %v1568
        %v1603 = vadd.f32 %v1355, %v1498
        %v1604 = vadd.f32 %v1356, %v1500
        %v1605 = vadd.f32 %v1357, %v1573
        %v1606 = vadd.f32 %v1358, %v1502
        %v1607 = vadd.f32 %v1359, %v1504
        %v1608 = vadd.f32 %v1360, %v1576
        %s1609 = scalar_lea.vmem %s1, 192
        %v1610 = vld [vmem:[%s1609] sm:$0xff]
        %v1611 = vld [vmem:[%s1609 + $0x8] sm:$0xf]
        %v1612 = vld [vmem:[%s1609 + $0xc] sm:$0xff]
        %v1613 = vld [vmem:[%s1609 + $0x14] sm:$0xf]
        %v1614 = vld [vmem:[%s1609 + $0x18] sm:$0xff]
        %v1615 = vld [vmem:[%s1609 + $0x20] sm:$0xf]
        %v1616 = vld [vmem:[%s1609 + $0x24] sm:$0x33]
        %v1617 = vld [vmem:[%s1609 + $0x2c] sm:$0x3]
        %v1626 = vunpack.c.l.b16 %v1610
        %v1627 = vunpack.c.h.b16 %v1610
        %v1628 = vunpack.c.l.b16 %v1611
        %v1629 = vunpack.c.l.b16 %v1612
        %v1630 = vunpack.c.h.b16 %v1612
        %v1631 = vunpack.c.l.b16 %v1613
        %v1632 = vunpack.c.l.b16 %v1614
        %v1633 = vunpack.c.h.b16 %v1614
        %v1634 = vunpack.c.l.b16 %v1615
        %v1635 = vunpack.c.l.b16 %v1616
        %v1636 = vunpack.c.h.b16 %v1616
        %v1637 = vunpack.c.l.b16 %v1617
        %v1638 = vpack.c.b16 %v1629, %v1626
        %v1639 = vpack.c.b16 %v1630, %v1627
        %v1640 = vpack.c.b16 %v1631, %v1628
        %v1641 = vpack.c.b16 %v1635, %v1632
        %v1642 = vpack.c.b16 %v1636, %v1633
        %v1643 = vpack.c.b16 %v1637, %v1634
        %v1648 = vsel %vm722, %v611, 0
        %v1651 = vsel %vm738, %v1641, 0
        %v1654 = vsel %vm738, %v1642, 0
        %v1657 = vsel %vm738, %v1643, 0
        %1659 = vmatprep.subr.bf16.mxu0 0
        %1660 = vmatpush1.bf16.msra.mxu0 0
        %1661 = vmatprep.subr.bf16.mxu0 0
        %1662 = vmatpush1.bf16.msra.mxu0 0
        %1663 = vmatprep.subr.bf16.mxu0 0
        %1664 = vmatpush1.bf16.msra.mxu0 0
        %1665 = vmatprep.subr.bf16.mxu0 0
        %1666 = vmatpush1.bf16.msra.mxu0 0
        %1667 = vmatprep.subr.bf16.mxu0 0
        %1668 = vmatpush1.bf16.msra.mxu0 0
        %1669 = vmatprep.subr.bf16.mxu0 0
        %1670 = vmatpush1.bf16.msra.mxu0 0
        %1671 = vmatprep.subr.bf16.mxu0 %v1654
        %1672 = vmatpush1.bf16.msra.mxu0 %v1651
        %1673 = vmatprep.subr.bf16.mxu0 %v1639
        %1674 = vmatpush1.bf16.msra.mxu0 %v1638
        %1675 = vmatprep.subr.bf16.mxu0 0
        %1676 = vmatpush2.bf16.msra.mxu0 0
        %1677 = vmatprep.subr.bf16.mxu0 0
        %1678 = vmatpush2.bf16.msra.mxu0 0
        %1679 = vmatprep.subr.bf16.mxu0 0
        %1680 = vmatpush2.bf16.msra.mxu0 0
        %1681 = vmatprep.subr.bf16.mxu0 0
        %1682 = vmatpush2.bf16.msra.mxu0 0
        %1683 = vmatprep.subr.bf16.mxu0 0
        %1684 = vmatpush2.bf16.msra.mxu0 0
        %1685 = vmatprep.subr.bf16.mxu0 0
        %1686 = vmatpush2.bf16.msra.mxu0 0
        %1687 = vmatprep.subr.bf16.mxu0 0
        %1688 = vmatpush2.bf16.msra.mxu0 0
        %1689 = vmatprep.subr.bf16.mxu0 0
        %1690 = vmatpush2.bf16.msra.mxu0 0
        %1691 = vmatprep.mubr.bf16.mxu0 0
        %1692 = vmatmul.mubr.bf16.gmra.mxu0 %v937
        %v1693 = vpop.f32.mrf.mxu0
        %v1694 = vadd.f32 0.0, %v1693
        %v1695 = vpop.f32.mrf.mxu0
        %v1696 = vadd.f32 0.0, %v1695
        %v1697 = vpop.f32.mrf.mxu0
        %v1698 = vadd.f32 0.0, %v1697
        %v1699 = vpop.f32.mrf.mxu0
        %v1700 = vadd.f32 0.0, %v1699
        %1701 = vmatprep.mubr.bf16.mxu0 0
        %1702 = vmatmul.mubr.bf16.gmra.mxu0 %v940
        %v1703 = vpop.f32.mrf.mxu0
        %v1704 = vadd.f32 0.0, %v1703
        %v1705 = vpop.f32.mrf.mxu0
        %v1706 = vadd.f32 0.0, %v1705
        %v1707 = vpop.f32.mrf.mxu0
        %v1708 = vadd.f32 0.0, %v1707
        %v1709 = vpop.f32.mrf.mxu0
        %v1710 = vadd.f32 0.0, %v1709
        %1711 = vmatprep.mubr.bf16.mxu0 0
        %1712 = vmatmul.mubr.bf16.gmra.mxu0 %v943
        %v1713 = vpop.f32.mrf.mxu0
        %v1714 = vadd.f32 0.0, %v1713
        %v1715 = vpop.f32.mrf.mxu0
        %v1716 = vadd.f32 0.0, %v1715
        %v1717 = vpop.f32.mrf.mxu0
        %v1718 = vadd.f32 0.0, %v1717
        %v1719 = vpop.f32.mrf.mxu0
        %v1720 = vadd.f32 0.0, %v1719
        %1721 = vmatprep.mubr.bf16.mxu0 0
        %1722 = vmatmul.mubr.bf16.gmra.mxu0 %v946
        %v1723 = vpop.f32.mrf.mxu0
        %v1724 = vadd.f32 0.0, %v1723
        %v1725 = vpop.f32.mrf.mxu0
        %v1726 = vadd.f32 0.0, %v1725
        %v1727 = vpop.f32.mrf.mxu0
        %v1728 = vadd.f32 0.0, %v1727
        %v1729 = vpop.f32.mrf.mxu0
        %v1730 = vadd.f32 0.0, %v1729
        %1731 = vmatprep.mubr.bf16.mxu0 0
        %1732 = vmatmul.mubr.bf16.gmra.mxu0 %v1648
        %v1733 = vpop.f32.mrf.mxu0
        %v1734 = vadd.f32 0.0, %v1733
        %v1735 = vpop.f32.mrf.mxu0
        %v1736 = vadd.f32 0.0, %v1735
        %v1737 = vpop.f32.mrf.mxu0
        %v1738 = vadd.f32 0.0, %v1737
        %v1739 = vpop.f32.mrf.mxu0
        %v1740 = vadd.f32 0.0, %v1739
        %1741 = vdwg.mxu0
        %1742 = vmatprep.subr.bf16.mxu0 0
        %1743 = vmatpush1.bf16.msra.mxu0 0
        %1744 = vmatprep.subr.bf16.mxu0 0
        %1745 = vmatpush1.bf16.msra.mxu0 0
        %1746 = vmatprep.subr.bf16.mxu0 0
        %1747 = vmatpush1.bf16.msra.mxu0 0
        %1748 = vmatprep.subr.bf16.mxu0 0
        %1749 = vmatpush1.bf16.msra.mxu0 0
        %1750 = vmatprep.subr.bf16.mxu0 0
        %1751 = vmatpush1.bf16.msra.mxu0 0
        %1752 = vmatprep.subr.bf16.mxu0 0
        %1753 = vmatpush1.bf16.msra.mxu0 0
        %1754 = vmatprep.subr.bf16.mxu0 0
        %1755 = vmatpush1.bf16.msra.mxu0 %v1657
        %1756 = vmatprep.subr.bf16.mxu0 0
        %1757 = vmatpush1.bf16.msra.mxu0 %v1640
        %1758 = vmatprep.subr.bf16.mxu0 0
        %1759 = vmatpush2.bf16.msra.mxu0 0
        %1760 = vmatprep.subr.bf16.mxu0 0
        %1761 = vmatpush2.bf16.msra.mxu0 0
        %1762 = vmatprep.subr.bf16.mxu0 0
        %1763 = vmatpush2.bf16.msra.mxu0 0
        %1764 = vmatprep.subr.bf16.mxu0 0
        %1765 = vmatpush2.bf16.msra.mxu0 0
        %1766 = vmatprep.subr.bf16.mxu0 0
        %1767 = vmatpush2.bf16.msra.mxu0 0
        %1768 = vmatprep.subr.bf16.mxu0 0
        %1769 = vmatpush2.bf16.msra.mxu0 0
        %1770 = vmatprep.subr.bf16.mxu0 0
        %1771 = vmatpush2.bf16.msra.mxu0 0
        %1772 = vmatprep.subr.bf16.mxu0 0
        %1773 = vmatpush2.bf16.msra.mxu0 0
        %1774 = vmatprep.mubr.bf16.mxu0 0
        %1775 = vmatmul.mubr.bf16.gmra.mxu0 %v937
        %v1776 = vpop.f32.mrf.mxu0
        %v1777 = vadd.f32 0.0, %v1776
        %v1778 = vpop.f32.mrf.mxu0
        %v1779 = vpop.f32.mrf.mxu0
        %v1780 = vadd.f32 0.0, %v1779
        %v1781 = vpop.f32.mrf.mxu0
        %1782 = vmatprep.mubr.bf16.mxu0 0
        %1783 = vmatmul.mubr.bf16.gmra.mxu0 %v940
        %v1784 = vpop.f32.mrf.mxu0
        %v1785 = vadd.f32 0.0, %v1784
        %v1786 = vpop.f32.mrf.mxu0
        %v1787 = vpop.f32.mrf.mxu0
        %v1788 = vadd.f32 0.0, %v1787
        %v1789 = vpop.f32.mrf.mxu0
        %1790 = vmatprep.mubr.bf16.mxu0 0
        %1791 = vmatmul.mubr.bf16.gmra.mxu0 %v943
        %v1792 = vpop.f32.mrf.mxu0
        %v1793 = vadd.f32 0.0, %v1792
        %v1794 = vpop.f32.mrf.mxu0
        %v1795 = vpop.f32.mrf.mxu0
        %v1796 = vadd.f32 0.0, %v1795
        %v1797 = vpop.f32.mrf.mxu0
        %1798 = vmatprep.mubr.bf16.mxu0 0
        %1799 = vmatmul.mubr.bf16.gmra.mxu0 %v946
        %v1800 = vpop.f32.mrf.mxu0
        %v1801 = vadd.f32 0.0, %v1800
        %v1802 = vpop.f32.mrf.mxu0
        %v1803 = vpop.f32.mrf.mxu0
        %v1804 = vadd.f32 0.0, %v1803
        %v1805 = vpop.f32.mrf.mxu0
        %1806 = vmatprep.mubr.bf16.mxu0 0
        %1807 = vmatmul.mubr.bf16.gmra.mxu0 %v1648
        %v1808 = vpop.f32.mrf.mxu0
        %v1809 = vadd.f32 0.0, %v1808
        %v1810 = vpop.f32.mrf.mxu0
        %v1811 = vpop.f32.mrf.mxu0
        %v1812 = vadd.f32 0.0, %v1811
        %v1813 = vpop.f32.mrf.mxu0
        %1814 = vdwg.mxu0
        %v1815 = vadd.f32 %v1579, %v1694
        %v1816 = vadd.f32 %v1580, %v1696
        %v1817 = vadd.f32 %v1581, %v1777
        %v1818 = vadd.f32 %v1582, %v1698
        %v1819 = vadd.f32 %v1583, %v1700
        %v1820 = vadd.f32 %v1584, %v1780
        %v1821 = vadd.f32 %v1585, %v1704
        %v1822 = vadd.f32 %v1586, %v1706
        %v1823 = vadd.f32 %v1587, %v1785
        %v1824 = vadd.f32 %v1588, %v1708
        %v1825 = vadd.f32 %v1589, %v1710
        %v1826 = vadd.f32 %v1590, %v1788
        %v1827 = vadd.f32 %v1591, %v1714
        %v1828 = vadd.f32 %v1592, %v1716
        %v1829 = vadd.f32 %v1593, %v1793
        %v1830 = vadd.f32 %v1594, %v1718
        %v1831 = vadd.f32 %v1595, %v1720
        %v1832 = vadd.f32 %v1596, %v1796
        %v1833 = vadd.f32 %v1597, %v1724
        %v1834 = vadd.f32 %v1598, %v1726
        %v1835 = vadd.f32 %v1599, %v1801
        %v1836 = vadd.f32 %v1600, %v1728
        %v1837 = vadd.f32 %v1601, %v1730
        %v1838 = vadd.f32 %v1602, %v1804
        %v1839 = vadd.f32 %v1603, %v1734
        %v1840 = vadd.f32 %v1604, %v1736
        %v1841 = vadd.f32 %v1605, %v1809
        %v1842 = vadd.f32 %v1606, %v1738
        %v1843 = vadd.f32 %v1607, %v1740
        %v1844 = vadd.f32 %v1608, %v1812
        %s1845 = scalar_lea.vmem %s1, 240
        %v1846 = vld [vmem:[%s1845] sm:$0xff]
        %v1847 = vld [vmem:[%s1845 + $0x8] sm:$0xf]
        %v1848 = vld [vmem:[%s1845 + $0xc] sm:$0xff]
        %v1849 = vld [vmem:[%s1845 + $0x14] sm:$0xf]
        %v1850 = vld [vmem:[%s1845 + $0x18] sm:$0xff]
        %v1851 = vld [vmem:[%s1845 + $0x20] sm:$0xf]
        %v1852 = vld [vmem:[%s1845 + $0x24] sm:$0x33]
        %v1853 = vld [vmem:[%s1845 + $0x2c] sm:$0x3]
        %v1862 = vunpack.c.l.b16 %v1846
        %v1863 = vunpack.c.h.b16 %v1846
        %v1864 = vunpack.c.l.b16 %v1847
        %v1865 = vunpack.c.l.b16 %v1848
        %v1866 = vunpack.c.h.b16 %v1848
        %v1867 = vunpack.c.l.b16 %v1849
        %v1868 = vunpack.c.l.b16 %v1850
        %v1869 = vunpack.c.h.b16 %v1850
        %v1870 = vunpack.c.l.b16 %v1851
        %v1871 = vunpack.c.l.b16 %v1852
        %v1872 = vunpack.c.h.b16 %v1852
        %v1873 = vunpack.c.l.b16 %v1853
        %v1874 = vpack.c.b16 %v1865, %v1862
        %v1875 = vpack.c.b16 %v1866, %v1863
        %v1876 = vpack.c.b16 %v1867, %v1864
        %v1877 = vpack.c.b16 %v1871, %v1868
        %v1878 = vpack.c.b16 %v1872, %v1869
        %v1879 = vpack.c.b16 %v1873, %v1870
        %v1884 = vsel %vm722, %v633, 0
        %v1887 = vsel %vm738, %v1877, 0
        %v1890 = vsel %vm738, %v1878, 0
        %v1893 = vsel %vm738, %v1879, 0
        %1895 = vmatprep.subr.bf16.mxu0 0
        %1896 = vmatpush1.bf16.msra.mxu0 0
        %1897 = vmatprep.subr.bf16.mxu0 0
        %1898 = vmatpush1.bf16.msra.mxu0 0
        %1899 = vmatprep.subr.bf16.mxu0 0
        %1900 = vmatpush1.bf16.msra.mxu0 0
        %1901 = vmatprep.subr.bf16.mxu0 0
        %1902 = vmatpush1.bf16.msra.mxu0 0
        %1903 = vmatprep.subr.bf16.mxu0 0
        %1904 = vmatpush1.bf16.msra.mxu0 0
        %1905 = vmatprep.subr.bf16.mxu0 0
        %1906 = vmatpush1.bf16.msra.mxu0 0
        %1907 = vmatprep.subr.bf16.mxu0 %v1890
        %1908 = vmatpush1.bf16.msra.mxu0 %v1887
        %1909 = vmatprep.subr.bf16.mxu0 %v1875
        %1910 = vmatpush1.bf16.msra.mxu0 %v1874
        %1911 = vmatprep.subr.bf16.mxu0 0
        %1912 = vmatpush2.bf16.msra.mxu0 0
        %1913 = vmatprep.subr.bf16.mxu0 0
        %1914 = vmatpush2.bf16.msra.mxu0 0
        %1915 = vmatprep.subr.bf16.mxu0 0
        %1916 = vmatpush2.bf16.msra.mxu0 0
        %1917 = vmatprep.subr.bf16.mxu0 0
        %1918 = vmatpush2.bf16.msra.mxu0 0
        %1919 = vmatprep.subr.bf16.mxu0 0
        %1920 = vmatpush2.bf16.msra.mxu0 0
        %1921 = vmatprep.subr.bf16.mxu0 0
        %1922 = vmatpush2.bf16.msra.mxu0 0
        %1923 = vmatprep.subr.bf16.mxu0 0
        %1924 = vmatpush2.bf16.msra.mxu0 0
        %1925 = vmatprep.subr.bf16.mxu0 0
        %1926 = vmatpush2.bf16.msra.mxu0 0
        %1927 = vmatprep.mubr.bf16.mxu0 0
        %1928 = vmatmul.mubr.bf16.gmra.mxu0 %v727
        %v1929 = vpop.f32.mrf.mxu0
        %v1930 = vadd.f32 0.0, %v1929
        %v1931 = vpop.f32.mrf.mxu0
        %v1932 = vadd.f32 0.0, %v1931
        %v1933 = vpop.f32.mrf.mxu0
        %v1934 = vadd.f32 0.0, %v1933
        %v1935 = vpop.f32.mrf.mxu0
        %v1936 = vadd.f32 0.0, %v1935
        %1937 = vmatprep.mubr.bf16.mxu0 0
        %1938 = vmatmul.mubr.bf16.gmra.mxu0 %v730
        %v1939 = vpop.f32.mrf.mxu0
        %v1940 = vadd.f32 0.0, %v1939
        %v1941 = vpop.f32.mrf.mxu0
        %v1942 = vadd.f32 0.0, %v1941
        %v1943 = vpop.f32.mrf.mxu0
        %v1944 = vadd.f32 0.0, %v1943
        %v1945 = vpop.f32.mrf.mxu0
        %v1946 = vadd.f32 0.0, %v1945
        %1947 = vmatprep.mubr.bf16.mxu0 0
        %1948 = vmatmul.mubr.bf16.gmra.mxu0 %v733
        %v1949 = vpop.f32.mrf.mxu0
        %v1950 = vadd.f32 0.0, %v1949
        %v1951 = vpop.f32.mrf.mxu0
        %v1952 = vadd.f32 0.0, %v1951
        %v1953 = vpop.f32.mrf.mxu0
        %v1954 = vadd.f32 0.0, %v1953
        %v1955 = vpop.f32.mrf.mxu0
        %v1956 = vadd.f32 0.0, %v1955
        %1957 = vmatprep.mubr.bf16.mxu0 0
        %1958 = vmatmul.mubr.bf16.gmra.mxu0 %v736
        %v1959 = vpop.f32.mrf.mxu0
        %v1960 = vadd.f32 0.0, %v1959
        %v1961 = vpop.f32.mrf.mxu0
        %v1962 = vadd.f32 0.0, %v1961
        %v1963 = vpop.f32.mrf.mxu0
        %v1964 = vadd.f32 0.0, %v1963
        %v1965 = vpop.f32.mrf.mxu0
        %v1966 = vadd.f32 0.0, %v1965
        %1967 = vmatprep.mubr.bf16.mxu0 0
        %1968 = vmatmul.mubr.bf16.gmra.mxu0 %v1884
        %v1969 = vpop.f32.mrf.mxu0
        %v1970 = vadd.f32 0.0, %v1969
        %v1971 = vpop.f32.mrf.mxu0
        %v1972 = vadd.f32 0.0, %v1971
        %v1973 = vpop.f32.mrf.mxu0
        %v1974 = vadd.f32 0.0, %v1973
        %v1975 = vpop.f32.mrf.mxu0
        %v1976 = vadd.f32 0.0, %v1975
        %1977 = vdwg.mxu0
        %1978 = vmatprep.subr.bf16.mxu0 0
        %1979 = vmatpush1.bf16.msra.mxu0 0
        %1980 = vmatprep.subr.bf16.mxu0 0
        %1981 = vmatpush1.bf16.msra.mxu0 0
        %1982 = vmatprep.subr.bf16.mxu0 0
        %1983 = vmatpush1.bf16.msra.mxu0 0
        %1984 = vmatprep.subr.bf16.mxu0 0
        %1985 = vmatpush1.bf16.msra.mxu0 0
        %1986 = vmatprep.subr.bf16.mxu0 0
        %1987 = vmatpush1.bf16.msra.mxu0 0
        %1988 = vmatprep.subr.bf16.mxu0 0
        %1989 = vmatpush1.bf16.msra.mxu0 0
        %1990 = vmatprep.subr.bf16.mxu0 0
        %1991 = vmatpush1.bf16.msra.mxu0 %v1893
        %1992 = vmatprep.subr.bf16.mxu0 0
        %1993 = vmatpush1.bf16.msra.mxu0 %v1876
        %1994 = vmatprep.subr.bf16.mxu0 0
        %1995 = vmatpush2.bf16.msra.mxu0 0
        %1996 = vmatprep.subr.bf16.mxu0 0
        %1997 = vmatpush2.bf16.msra.mxu0 0
        %1998 = vmatprep.subr.bf16.mxu0 0
        %1999 = vmatpush2.bf16.msra.mxu0 0
        %2000 = vmatprep.subr.bf16.mxu0 0
        %2001 = vmatpush2.bf16.msra.mxu0 0
        %2002 = vmatprep.subr.bf16.mxu0 0
        %2003 = vmatpush2.bf16.msra.mxu0 0
        %2004 = vmatprep.subr.bf16.mxu0 0
        %2005 = vmatpush2.bf16.msra.mxu0 0
        %2006 = vmatprep.subr.bf16.mxu0 0
        %2007 = vmatpush2.bf16.msra.mxu0 0
        %2008 = vmatprep.subr.bf16.mxu0 0
        %2009 = vmatpush2.bf16.msra.mxu0 0
        %2010 = vmatprep.mubr.bf16.mxu0 0
        %2011 = vmatmul.mubr.bf16.gmra.mxu0 %v727
        %v2012 = vpop.f32.mrf.mxu0
        %v2013 = vadd.f32 0.0, %v2012
        %v2014 = vpop.f32.mrf.mxu0
        %v2015 = vpop.f32.mrf.mxu0
        %v2016 = vadd.f32 0.0, %v2015
        %v2017 = vpop.f32.mrf.mxu0
        %2018 = vmatprep.mubr.bf16.mxu0 0
        %2019 = vmatmul.mubr.bf16.gmra.mxu0 %v730
        %v2020 = vpop.f32.mrf.mxu0
        %v2021 = vadd.f32 0.0, %v2020
        %v2022 = vpop.f32.mrf.mxu0
        %v2023 = vpop.f32.mrf.mxu0
        %v2024 = vadd.f32 0.0, %v2023
        %v2025 = vpop.f32.mrf.mxu0
        %2026 = vmatprep.mubr.bf16.mxu0 0
        %2027 = vmatmul.mubr.bf16.gmra.mxu0 %v733
        %v2028 = vpop.f32.mrf.mxu0
        %v2029 = vadd.f32 0.0, %v2028
        %v2030 = vpop.f32.mrf.mxu0
        %v2031 = vpop.f32.mrf.mxu0
        %v2032 = vadd.f32 0.0, %v2031
        %v2033 = vpop.f32.mrf.mxu0
        %2034 = vmatprep.mubr.bf16.mxu0 0
        %2035 = vmatmul.mubr.bf16.gmra.mxu0 %v736
        %v2036 = vpop.f32.mrf.mxu0
        %v2037 = vadd.f32 0.0, %v2036
        %v2038 = vpop.f32.mrf.mxu0
        %v2039 = vpop.f32.mrf.mxu0
        %v2040 = vadd.f32 0.0, %v2039
        %v2041 = vpop.f32.mrf.mxu0
        %2042 = vmatprep.mubr.bf16.mxu0 0
        %2043 = vmatmul.mubr.bf16.gmra.mxu0 %v1884
        %v2044 = vpop.f32.mrf.mxu0
        %v2045 = vadd.f32 0.0, %v2044
        %v2046 = vpop.f32.mrf.mxu0
        %v2047 = vpop.f32.mrf.mxu0
        %v2048 = vadd.f32 0.0, %v2047
        %v2049 = vpop.f32.mrf.mxu0
        %2050 = vdwg.mxu0
        %v2051 = vadd.f32 %v1815, %v1930
        %v2052 = vadd.f32 %v1816, %v1932
        %v2053 = vadd.f32 %v1817, %v2013
        %v2054 = vadd.f32 %v1818, %v1934
        %v2055 = vadd.f32 %v1819, %v1936
        %v2056 = vadd.f32 %v1820, %v2016
        %v2057 = vadd.f32 %v1821, %v1940
        %v2058 = vadd.f32 %v1822, %v1942
        %v2059 = vadd.f32 %v1823, %v2021
        %v2060 = vadd.f32 %v1824, %v1944
        %v2061 = vadd.f32 %v1825, %v1946
        %v2062 = vadd.f32 %v1826, %v2024
        %v2063 = vadd.f32 %v1827, %v1950
        %v2064 = vadd.f32 %v1828, %v1952
        %v2065 = vadd.f32 %v1829, %v2029
        %v2066 = vadd.f32 %v1830, %v1954
        %v2067 = vadd.f32 %v1831, %v1956
        %v2068 = vadd.f32 %v1832, %v2032
        %v2069 = vadd.f32 %v1833, %v1960
        %v2070 = vadd.f32 %v1834, %v1962
        %v2071 = vadd.f32 %v1835, %v2037
        %v2072 = vadd.f32 %v1836, %v1964
        %v2073 = vadd.f32 %v1837, %v1966
        %v2074 = vadd.f32 %v1838, %v2040
        %v2075 = vadd.f32 %v1839, %v1970
        %v2076 = vadd.f32 %v1840, %v1972
        %v2077 = vadd.f32 %v1841, %v2045
        %v2078 = vadd.f32 %v1842, %v1974
        %v2079 = vadd.f32 %v1843, %v1976
        %v2080 = vadd.f32 %v1844, %v2048
        %s2081 = scalar_lea.vmem %s1, 288
        %v2082 = vld [vmem:[%s2081] sm:$0xff]
        %v2083 = vld [vmem:[%s2081 + $0x8] sm:$0xf]
        %v2084 = vld [vmem:[%s2081 + $0xc] sm:$0xff]
        %v2085 = vld [vmem:[%s2081 + $0x14] sm:$0xf]
        %v2086 = vld [vmem:[%s2081 + $0x18] sm:$0xff]
        %v2087 = vld [vmem:[%s2081 + $0x20] sm:$0xf]
        %v2088 = vld [vmem:[%s2081 + $0x24] sm:$0x33]
        %v2089 = vld [vmem:[%s2081 + $0x2c] sm:$0x3]
        %v2098 = vunpack.c.l.b16 %v2082
        %v2099 = vunpack.c.h.b16 %v2082
        %v2100 = vunpack.c.l.b16 %v2083
        %v2101 = vunpack.c.l.b16 %v2084
        %v2102 = vunpack.c.h.b16 %v2084
        %v2103 = vunpack.c.l.b16 %v2085
        %v2104 = vunpack.c.l.b16 %v2086
        %v2105 = vunpack.c.h.b16 %v2086
        %v2106 = vunpack.c.l.b16 %v2087
        %v2107 = vunpack.c.l.b16 %v2088
        %v2108 = vunpack.c.h.b16 %v2088
        %v2109 = vunpack.c.l.b16 %v2089
        %v2110 = vpack.c.b16 %v2101, %v2098
        %v2111 = vpack.c.b16 %v2102, %v2099
        %v2112 = vpack.c.b16 %v2103, %v2100
        %v2113 = vpack.c.b16 %v2107, %v2104
        %v2114 = vpack.c.b16 %v2108, %v2105
        %v2115 = vpack.c.b16 %v2109, %v2106
        %v2120 = vsel %vm722, %v655, 0
        %v2123 = vsel %vm738, %v2113, 0
        %v2126 = vsel %vm738, %v2114, 0
        %v2129 = vsel %vm738, %v2115, 0
        %2131 = vmatprep.subr.bf16.mxu0 0
        %2132 = vmatpush1.bf16.msra.mxu0 0
        %2133 = vmatprep.subr.bf16.mxu0 0
        %2134 = vmatpush1.bf16.msra.mxu0 0
        %2135 = vmatprep.subr.bf16.mxu0 0
        %2136 = vmatpush1.bf16.msra.mxu0 0
        %2137 = vmatprep.subr.bf16.mxu0 0
        %2138 = vmatpush1.bf16.msra.mxu0 0
        %2139 = vmatprep.subr.bf16.mxu0 0
        %2140 = vmatpush1.bf16.msra.mxu0 0
        %2141 = vmatprep.subr.bf16.mxu0 0
        %2142 = vmatpush1.bf16.msra.mxu0 0
        %2143 = vmatprep.subr.bf16.mxu0 %v2126
        %2144 = vmatpush1.bf16.msra.mxu0 %v2123
        %2145 = vmatprep.subr.bf16.mxu0 %v2111
        %2146 = vmatpush1.bf16.msra.mxu0 %v2110
        %2147 = vmatprep.subr.bf16.mxu0 0
        %2148 = vmatpush2.bf16.msra.mxu0 0
        %2149 = vmatprep.subr.bf16.mxu0 0
        %2150 = vmatpush2.bf16.msra.mxu0 0
        %2151 = vmatprep.subr.bf16.mxu0 0
        %2152 = vmatpush2.bf16.msra.mxu0 0
        %2153 = vmatprep.subr.bf16.mxu0 0
        %2154 = vmatpush2.bf16.msra.mxu0 0
        %2155 = vmatprep.subr.bf16.mxu0 0
        %2156 = vmatpush2.bf16.msra.mxu0 0
        %2157 = vmatprep.subr.bf16.mxu0 0
        %2158 = vmatpush2.bf16.msra.mxu0 0
        %2159 = vmatprep.subr.bf16.mxu0 0
        %2160 = vmatpush2.bf16.msra.mxu0 0
        %2161 = vmatprep.subr.bf16.mxu0 0
        %2162 = vmatpush2.bf16.msra.mxu0 0
        %2163 = vmatprep.mubr.bf16.mxu0 0
        %2164 = vmatmul.mubr.bf16.gmra.mxu0 %v1155
        %v2165 = vpop.f32.mrf.mxu0
        %v2166 = vadd.f32 0.0, %v2165
        %v2167 = vpop.f32.mrf.mxu0
        %v2168 = vadd.f32 0.0, %v2167
        %v2169 = vpop.f32.mrf.mxu0
        %v2170 = vadd.f32 0.0, %v2169
        %v2171 = vpop.f32.mrf.mxu0
        %v2172 = vadd.f32 0.0, %v2171
        %2173 = vmatprep.mubr.bf16.mxu0 0
        %2174 = vmatmul.mubr.bf16.gmra.mxu0 %v1158
        %v2175 = vpop.f32.mrf.mxu0
        %v2176 = vadd.f32 0.0, %v2175
        %v2177 = vpop.f32.mrf.mxu0
        %v2178 = vadd.f32 0.0, %v2177
        %v2179 = vpop.f32.mrf.mxu0
        %v2180 = vadd.f32 0.0, %v2179
        %v2181 = vpop.f32.mrf.mxu0
        %v2182 = vadd.f32 0.0, %v2181
        %2183 = vmatprep.mubr.bf16.mxu0 0
        %2184 = vmatmul.mubr.bf16.gmra.mxu0 %v1161
        %v2185 = vpop.f32.mrf.mxu0
        %v2186 = vadd.f32 0.0, %v2185
        %v2187 = vpop.f32.mrf.mxu0
        %v2188 = vadd.f32 0.0, %v2187
        %v2189 = vpop.f32.mrf.mxu0
        %v2190 = vadd.f32 0.0, %v2189
        %v2191 = vpop.f32.mrf.mxu0
        %v2192 = vadd.f32 0.0, %v2191
        %2193 = vmatprep.mubr.bf16.mxu0 0
        %2194 = vmatmul.mubr.bf16.gmra.mxu0 %v1164
        %v2195 = vpop.f32.mrf.mxu0
        %v2196 = vadd.f32 0.0, %v2195
        %v2197 = vpop.f32.mrf.mxu0
        %v2198 = vadd.f32 0.0, %v2197
        %v2199 = vpop.f32.mrf.mxu0
        %v2200 = vadd.f32 0.0, %v2199
        %v2201 = vpop.f32.mrf.mxu0
        %v2202 = vadd.f32 0.0, %v2201
        %2203 = vmatprep.mubr.bf16.mxu0 0
        %2204 = vmatmul.mubr.bf16.gmra.mxu0 %v2120
        %v2205 = vpop.f32.mrf.mxu0
        %v2206 = vadd.f32 0.0, %v2205
        %v2207 = vpop.f32.mrf.mxu0
        %v2208 = vadd.f32 0.0, %v2207
        %v2209 = vpop.f32.mrf.mxu0
        %v2210 = vadd.f32 0.0, %v2209
        %v2211 = vpop.f32.mrf.mxu0
        %v2212 = vadd.f32 0.0, %v2211
        %2213 = vdwg.mxu0
        %2214 = vmatprep.subr.bf16.mxu0 0
        %2215 = vmatpush1.bf16.msra.mxu0 0
        %2216 = vmatprep.subr.bf16.mxu0 0
        %2217 = vmatpush1.bf16.msra.mxu0 0
        %2218 = vmatprep.subr.bf16.mxu0 0
        %2219 = vmatpush1.bf16.msra.mxu0 0
        %2220 = vmatprep.subr.bf16.mxu0 0
        %2221 = vmatpush1.bf16.msra.mxu0 0
        %2222 = vmatprep.subr.bf16.mxu0 0
        %2223 = vmatpush1.bf16.msra.mxu0 0
        %2224 = vmatprep.subr.bf16.mxu0 0
        %2225 = vmatpush1.bf16.msra.mxu0 0
        %2226 = vmatprep.subr.bf16.mxu0 0
        %2227 = vmatpush1.bf16.msra.mxu0 %v2129
        %2228 = vmatprep.subr.bf16.mxu0 0
        %2229 = vmatpush1.bf16.msra.mxu0 %v2112
        %2230 = vmatprep.subr.bf16.mxu0 0
        %2231 = vmatpush2.bf16.msra.mxu0 0
        %2232 = vmatprep.subr.bf16.mxu0 0
        %2233 = vmatpush2.bf16.msra.mxu0 0
        %2234 = vmatprep.subr.bf16.mxu0 0
        %2235 = vmatpush2.bf16.msra.mxu0 0
        %2236 = vmatprep.subr.bf16.mxu0 0
        %2237 = vmatpush2.bf16.msra.mxu0 0
        %2238 = vmatprep.subr.bf16.mxu0 0
        %2239 = vmatpush2.bf16.msra.mxu0 0
        %2240 = vmatprep.subr.bf16.mxu0 0
        %2241 = vmatpush2.bf16.msra.mxu0 0
        %2242 = vmatprep.subr.bf16.mxu0 0
        %2243 = vmatpush2.bf16.msra.mxu0 0
        %2244 = vmatprep.subr.bf16.mxu0 0
        %2245 = vmatpush2.bf16.msra.mxu0 0
        %2246 = vmatprep.mubr.bf16.mxu0 0
        %2247 = vmatmul.mubr.bf16.gmra.mxu0 %v1155
        %v2248 = vpop.f32.mrf.mxu0
        %v2249 = vadd.f32 0.0, %v2248
        %v2250 = vpop.f32.mrf.mxu0
        %v2251 = vpop.f32.mrf.mxu0
        %v2252 = vadd.f32 0.0, %v2251
        %v2253 = vpop.f32.mrf.mxu0
        %2254 = vmatprep.mubr.bf16.mxu0 0
        %2255 = vmatmul.mubr.bf16.gmra.mxu0 %v1158
        %v2256 = vpop.f32.mrf.mxu0
        %v2257 = vadd.f32 0.0, %v2256
        %v2258 = vpop.f32.mrf.mxu0
        %v2259 = vpop.f32.mrf.mxu0
        %v2260 = vadd.f32 0.0, %v2259
        %v2261 = vpop.f32.mrf.mxu0
        %2262 = vmatprep.mubr.bf16.mxu0 0
        %2263 = vmatmul.mubr.bf16.gmra.mxu0 %v1161
        %v2264 = vpop.f32.mrf.mxu0
        %v2265 = vadd.f32 0.0, %v2264
        %v2266 = vpop.f32.mrf.mxu0
        %v2267 = vpop.f32.mrf.mxu0
        %v2268 = vadd.f32 0.0, %v2267
        %v2269 = vpop.f32.mrf.mxu0
        %2270 = vmatprep.mubr.bf16.mxu0 0
        %2271 = vmatmul.mubr.bf16.gmra.mxu0 %v1164
        %v2272 = vpop.f32.mrf.mxu0
        %v2273 = vadd.f32 0.0, %v2272
        %v2274 = vpop.f32.mrf.mxu0
        %v2275 = vpop.f32.mrf.mxu0
        %v2276 = vadd.f32 0.0, %v2275
        %v2277 = vpop.f32.mrf.mxu0
        %2278 = vmatprep.mubr.bf16.mxu0 0
        %2279 = vmatmul.mubr.bf16.gmra.mxu0 %v2120
        %v2280 = vpop.f32.mrf.mxu0
        %v2281 = vadd.f32 0.0, %v2280
        %v2282 = vpop.f32.mrf.mxu0
        %v2283 = vpop.f32.mrf.mxu0
        %v2284 = vadd.f32 0.0, %v2283
        %v2285 = vpop.f32.mrf.mxu0
        %2286 = vdwg.mxu0
        %v2287 = vadd.f32 %v2051, %v2166
        %v2288 = vadd.f32 %v2052, %v2168
        %v2289 = vadd.f32 %v2053, %v2249
        %v2290 = vadd.f32 %v2054, %v2170
        %v2291 = vadd.f32 %v2055, %v2172
        %v2292 = vadd.f32 %v2056, %v2252
        %v2293 = vadd.f32 %v2057, %v2176
        %v2294 = vadd.f32 %v2058, %v2178
        %v2295 = vadd.f32 %v2059, %v2257
        %v2296 = vadd.f32 %v2060, %v2180
        %v2297 = vadd.f32 %v2061, %v2182
        %v2298 = vadd.f32 %v2062, %v2260
        %v2299 = vadd.f32 %v2063, %v2186
        %v2300 = vadd.f32 %v2064, %v2188
        %v2301 = vadd.f32 %v2065, %v2265
        %v2302 = vadd.f32 %v2066, %v2190
        %v2303 = vadd.f32 %v2067, %v2192
        %v2304 = vadd.f32 %v2068, %v2268
        %v2305 = vadd.f32 %v2069, %v2196
        %v2306 = vadd.f32 %v2070, %v2198
        %v2307 = vadd.f32 %v2071, %v2273
        %v2308 = vadd.f32 %v2072, %v2200
        %v2309 = vadd.f32 %v2073, %v2202
        %v2310 = vadd.f32 %v2074, %v2276
        %v2311 = vadd.f32 %v2075, %v2206
        %v2312 = vadd.f32 %v2076, %v2208
        %v2313 = vadd.f32 %v2077, %v2281
        %v2314 = vadd.f32 %v2078, %v2210
        %v2315 = vadd.f32 %v2079, %v2212
        %v2316 = vadd.f32 %v2080, %v2284
        %s2317 = scalar_lea.vmem %s1, 336
        %v2318 = vld [vmem:[%s2317] sm:$0xff]
        %v2319 = vld [vmem:[%s2317 + $0x8] sm:$0xf]
        %v2320 = vld [vmem:[%s2317 + $0xc] sm:$0xff]
        %v2321 = vld [vmem:[%s2317 + $0x14] sm:$0xf]
        %v2322 = vld [vmem:[%s2317 + $0x18] sm:$0xff]
        %v2323 = vld [vmem:[%s2317 + $0x20] sm:$0xf]
        %v2324 = vld [vmem:[%s2317 + $0x24] sm:$0x33]
        %v2325 = vld [vmem:[%s2317 + $0x2c] sm:$0x3]
        %v2334 = vunpack.c.l.b16 %v2318
        %v2335 = vunpack.c.h.b16 %v2318
        %v2336 = vunpack.c.l.b16 %v2319
        %v2337 = vunpack.c.l.b16 %v2320
        %v2338 = vunpack.c.h.b16 %v2320
        %v2339 = vunpack.c.l.b16 %v2321
        %v2340 = vunpack.c.l.b16 %v2322
        %v2341 = vunpack.c.h.b16 %v2322
        %v2342 = vunpack.c.l.b16 %v2323
        %v2343 = vunpack.c.l.b16 %v2324
        %v2344 = vunpack.c.h.b16 %v2324
        %v2345 = vunpack.c.l.b16 %v2325
        %v2346 = vpack.c.b16 %v2337, %v2334
        %v2347 = vpack.c.b16 %v2338, %v2335
        %v2348 = vpack.c.b16 %v2339, %v2336
        %v2349 = vpack.c.b16 %v2343, %v2340
        %v2350 = vpack.c.b16 %v2344, %v2341
        %v2351 = vpack.c.b16 %v2345, %v2342
        %v2356 = vsel %vm722, %v675, 0
        %v2359 = vsel %vm738, %v2349, 0
        %v2362 = vsel %vm738, %v2350, 0
        %v2365 = vsel %vm738, %v2351, 0
        %2367 = vmatprep.subr.bf16.mxu0 0
        %2368 = vmatpush1.bf16.msra.mxu0 0
        %2369 = vmatprep.subr.bf16.mxu0 0
        %2370 = vmatpush1.bf16.msra.mxu0 0
        %2371 = vmatprep.subr.bf16.mxu0 0
        %2372 = vmatpush1.bf16.msra.mxu0 0
        %2373 = vmatprep.subr.bf16.mxu0 0
        %2374 = vmatpush1.bf16.msra.mxu0 0
        %2375 = vmatprep.subr.bf16.mxu0 0
        %2376 = vmatpush1.bf16.msra.mxu0 0
        %2377 = vmatprep.subr.bf16.mxu0 0
        %2378 = vmatpush1.bf16.msra.mxu0 0
        %2379 = vmatprep.subr.bf16.mxu0 %v2362
        %2380 = vmatpush1.bf16.msra.mxu0 %v2359
        %2381 = vmatprep.subr.bf16.mxu0 %v2347
        %2382 = vmatpush1.bf16.msra.mxu0 %v2346
        %2383 = vmatprep.subr.bf16.mxu0 0
        %2384 = vmatpush2.bf16.msra.mxu0 0
        %2385 = vmatprep.subr.bf16.mxu0 0
        %2386 = vmatpush2.bf16.msra.mxu0 0
        %2387 = vmatprep.subr.bf16.mxu0 0
        %2388 = vmatpush2.bf16.msra.mxu0 0
        %2389 = vmatprep.subr.bf16.mxu0 0
        %2390 = vmatpush2.bf16.msra.mxu0 0
        %2391 = vmatprep.subr.bf16.mxu0 0
        %2392 = vmatpush2.bf16.msra.mxu0 0
        %2393 = vmatprep.subr.bf16.mxu0 0
        %2394 = vmatpush2.bf16.msra.mxu0 0
        %2395 = vmatprep.subr.bf16.mxu0 0
        %2396 = vmatpush2.bf16.msra.mxu0 0
        %2397 = vmatprep.subr.bf16.mxu0 0
        %2398 = vmatpush2.bf16.msra.mxu0 0
        %2399 = vmatprep.mubr.bf16.mxu0 0
        %2400 = vmatmul.mubr.bf16.gmra.mxu0 %v1403
        %v2401 = vpop.f32.mrf.mxu0
        %v2402 = vadd.f32 0.0, %v2401
        %v2403 = vpop.f32.mrf.mxu0
        %v2404 = vadd.f32 0.0, %v2403
        %v2405 = vpop.f32.mrf.mxu0
        %v2406 = vadd.f32 0.0, %v2405
        %v2407 = vpop.f32.mrf.mxu0
        %v2408 = vadd.f32 0.0, %v2407
        %2409 = vmatprep.mubr.bf16.mxu0 0
        %2410 = vmatmul.mubr.bf16.gmra.mxu0 %v1406
        %v2411 = vpop.f32.mrf.mxu0
        %v2412 = vadd.f32 0.0, %v2411
        %v2413 = vpop.f32.mrf.mxu0
        %v2414 = vadd.f32 0.0, %v2413
        %v2415 = vpop.f32.mrf.mxu0
        %v2416 = vadd.f32 0.0, %v2415
        %v2417 = vpop.f32.mrf.mxu0
        %v2418 = vadd.f32 0.0, %v2417
        %2419 = vmatprep.mubr.bf16.mxu0 0
        %2420 = vmatmul.mubr.bf16.gmra.mxu0 %v1409
        %v2421 = vpop.f32.mrf.mxu0
        %v2422 = vadd.f32 0.0, %v2421
        %v2423 = vpop.f32.mrf.mxu0
        %v2424 = vadd.f32 0.0, %v2423
        %v2425 = vpop.f32.mrf.mxu0
        %v2426 = vadd.f32 0.0, %v2425
        %v2427 = vpop.f32.mrf.mxu0
        %v2428 = vadd.f32 0.0, %v2427
        %2429 = vmatprep.mubr.bf16.mxu0 0
        %2430 = vmatmul.mubr.bf16.gmra.mxu0 %v1412
        %v2431 = vpop.f32.mrf.mxu0
        %v2432 = vadd.f32 0.0, %v2431
        %v2433 = vpop.f32.mrf.mxu0
        %v2434 = vadd.f32 0.0, %v2433
        %v2435 = vpop.f32.mrf.mxu0
        %v2436 = vadd.f32 0.0, %v2435
        %v2437 = vpop.f32.mrf.mxu0
        %v2438 = vadd.f32 0.0, %v2437
        %2439 = vmatprep.mubr.bf16.mxu0 0
        %2440 = vmatmul.mubr.bf16.gmra.mxu0 %v2356
        %v2441 = vpop.f32.mrf.mxu0
        %v2442 = vadd.f32 0.0, %v2441
        %v2443 = vpop.f32.mrf.mxu0
        %v2444 = vadd.f32 0.0, %v2443
        %v2445 = vpop.f32.mrf.mxu0
        %v2446 = vadd.f32 0.0, %v2445
        %v2447 = vpop.f32.mrf.mxu0
        %v2448 = vadd.f32 0.0, %v2447
        %2449 = vdwg.mxu0
        %2450 = vmatprep.subr.bf16.mxu0 0
        %2451 = vmatpush1.bf16.msra.mxu0 0
        %2452 = vmatprep.subr.bf16.mxu0 0
        %2453 = vmatpush1.bf16.msra.mxu0 0
        %2454 = vmatprep.subr.bf16.mxu0 0
        %2455 = vmatpush1.bf16.msra.mxu0 0
        %2456 = vmatprep.subr.bf16.mxu0 0
        %2457 = vmatpush1.bf16.msra.mxu0 0
        %2458 = vmatprep.subr.bf16.mxu0 0
        %2459 = vmatpush1.bf16.msra.mxu0 0
        %2460 = vmatprep.subr.bf16.mxu0 0
        %2461 = vmatpush1.bf16.msra.mxu0 0
        %2462 = vmatprep.subr.bf16.mxu0 0
        %2463 = vmatpush1.bf16.msra.mxu0 %v2365
        %2464 = vmatprep.subr.bf16.mxu0 0
        %2465 = vmatpush1.bf16.msra.mxu0 %v2348
        %2466 = vmatprep.subr.bf16.mxu0 0
        %2467 = vmatpush2.bf16.msra.mxu0 0
        %2468 = vmatprep.subr.bf16.mxu0 0
        %2469 = vmatpush2.bf16.msra.mxu0 0
        %2470 = vmatprep.subr.bf16.mxu0 0
        %2471 = vmatpush2.bf16.msra.mxu0 0
        %2472 = vmatprep.subr.bf16.mxu0 0
        %2473 = vmatpush2.bf16.msra.mxu0 0
        %2474 = vmatprep.subr.bf16.mxu0 0
        %2475 = vmatpush2.bf16.msra.mxu0 0
        %2476 = vmatprep.subr.bf16.mxu0 0
        %2477 = vmatpush2.bf16.msra.mxu0 0
        %2478 = vmatprep.subr.bf16.mxu0 0
        %2479 = vmatpush2.bf16.msra.mxu0 0
        %2480 = vmatprep.subr.bf16.mxu0 0
        %2481 = vmatpush2.bf16.msra.mxu0 0
        %2482 = vmatprep.mubr.bf16.mxu0 0
        %2483 = vmatmul.mubr.bf16.gmra.mxu0 %v1403
        %v2484 = vpop.f32.mrf.mxu0
        %v2485 = vadd.f32 0.0, %v2484
        %v2486 = vpop.f32.mrf.mxu0
        %v2487 = vpop.f32.mrf.mxu0
        %v2488 = vadd.f32 0.0, %v2487
        %v2489 = vpop.f32.mrf.mxu0
        %2490 = vmatprep.mubr.bf16.mxu0 0
        %2491 = vmatmul.mubr.bf16.gmra.mxu0 %v1406
        %v2492 = vpop.f32.mrf.mxu0
        %v2493 = vadd.f32 0.0, %v2492
        %v2494 = vpop.f32.mrf.mxu0
        %v2495 = vpop.f32.mrf.mxu0
        %v2496 = vadd.f32 0.0, %v2495
        %v2497 = vpop.f32.mrf.mxu0
        %2498 = vmatprep.mubr.bf16.mxu0 0
        %2499 = vmatmul.mubr.bf16.gmra.mxu0 %v1409
        %v2500 = vpop.f32.mrf.mxu0
        %v2501 = vadd.f32 0.0, %v2500
        %v2502 = vpop.f32.mrf.mxu0
        %v2503 = vpop.f32.mrf.mxu0
        %v2504 = vadd.f32 0.0, %v2503
        %v2505 = vpop.f32.mrf.mxu0
        %2506 = vmatprep.mubr.bf16.mxu0 0
        %2507 = vmatmul.mubr.bf16.gmra.mxu0 %v1412
        %v2508 = vpop.f32.mrf.mxu0
        %v2509 = vadd.f32 0.0, %v2508
        %v2510 = vpop.f32.mrf.mxu0
        %v2511 = vpop.f32.mrf.mxu0
        %v2512 = vadd.f32 0.0, %v2511
        %v2513 = vpop.f32.mrf.mxu0
        %2514 = vmatprep.mubr.bf16.mxu0 0
        %2515 = vmatmul.mubr.bf16.gmra.mxu0 %v2356
        %v2516 = vpop.f32.mrf.mxu0
        %v2517 = vadd.f32 0.0, %v2516
        %v2518 = vpop.f32.mrf.mxu0
        %v2519 = vpop.f32.mrf.mxu0
        %v2520 = vadd.f32 0.0, %v2519
        %v2521 = vpop.f32.mrf.mxu0
        %2522 = vdwg.mxu0
        %v2523 = vadd.f32 %v2287, %v2402
        %v2524 = vadd.f32 %v2288, %v2404
        %v2525 = vadd.f32 %v2289, %v2485
        %v2526 = vadd.f32 %v2290, %v2406
        %v2527 = vadd.f32 %v2291, %v2408
        %v2528 = vadd.f32 %v2292, %v2488
        %v2529 = vadd.f32 %v2293, %v2412
        %v2530 = vadd.f32 %v2294, %v2414
        %v2531 = vadd.f32 %v2295, %v2493
        %v2532 = vadd.f32 %v2296, %v2416
        %v2533 = vadd.f32 %v2297, %v2418
        %v2534 = vadd.f32 %v2298, %v2496
        %v2535 = vadd.f32 %v2299, %v2422
        %v2536 = vadd.f32 %v2300, %v2424
        %v2537 = vadd.f32 %v2301, %v2501
        %v2538 = vadd.f32 %v2302, %v2426
        %v2539 = vadd.f32 %v2303, %v2428
        %v2540 = vadd.f32 %v2304, %v2504
        %v2541 = vadd.f32 %v2305, %v2432
        %v2542 = vadd.f32 %v2306, %v2434
        %v2543 = vadd.f32 %v2307, %v2509
        %v2544 = vadd.f32 %v2308, %v2436
        %v2545 = vadd.f32 %v2309, %v2438
        %v2546 = vadd.f32 %v2310, %v2512
        %v2547 = vadd.f32 %v2311, %v2442
        %v2548 = vadd.f32 %v2312, %v2444
        %v2549 = vadd.f32 %v2313, %v2517
        %v2550 = vadd.f32 %v2314, %v2446
        %v2551 = vadd.f32 %v2315, %v2448
        %v2552 = vadd.f32 %v2316, %v2520
        %v2553 = vld [vmem:[%s2] sm:$0x7]
        %v2555 = vlaneseq
        %v2556 = vshrl.u32 %v2555, 7
        %v2557 = vsub.s32 0, %v2556
        %v2558 = vrot.slane %v2553, %v2557
        %v2559 = vlaneseq
        %v2560 = vshrl.u32 %v2559, 7
        %v2561 = vsub.s32 1, %v2560
        %v2562 = vrot.slane %v2553, %v2561
        %v2563 = vlaneseq
        %v2564 = vshrl.u32 %v2563, 7
        %v2565 = vsub.s32 2, %v2564
        %v2566 = vrot.slane %v2553, %v2565
        %v2570 = vadd.f32 %v2523, %v2558
        %v2571 = vadd.f32 %v2524, %v2562
        %v2572 = vadd.f32 %v2525, %v2566
        %v2573 = vadd.f32 %v2526, %v2558
        %v2574 = vadd.f32 %v2527, %v2562
        %v2575 = vadd.f32 %v2528, %v2566
        %v2576 = vadd.f32 %v2529, %v2558
        %v2577 = vadd.f32 %v2530, %v2562
        %v2578 = vadd.f32 %v2531, %v2566
        %v2579 = vadd.f32 %v2532, %v2558
        %v2580 = vadd.f32 %v2533, %v2562
        %v2581 = vadd.f32 %v2534, %v2566
        %v2582 = vadd.f32 %v2535, %v2558
        %v2583 = vadd.f32 %v2536, %v2562
        %v2584 = vadd.f32 %v2537, %v2566
        %v2585 = vadd.f32 %v2538, %v2558
        %v2586 = vadd.f32 %v2539, %v2562
        %v2587 = vadd.f32 %v2540, %v2566
        %v2588 = vadd.f32 %v2541, %v2558
        %v2589 = vadd.f32 %v2542, %v2562
        %v2590 = vadd.f32 %v2543, %v2566
        %v2591 = vadd.f32 %v2544, %v2558
        %v2592 = vadd.f32 %v2545, %v2562
        %v2593 = vadd.f32 %v2546, %v2566
        %v2594 = vadd.f32 %v2547, %v2558
        %v2595 = vadd.f32 %v2548, %v2562
        %v2596 = vadd.f32 %v2549, %v2566
        %v2597 = vadd.f32 %v2550, %v2558
        %v2598 = vadd.f32 %v2551, %v2562
        %v2599 = vadd.f32 %v2552, %v2566
        %v2600 = vmax.f32 %v2570, 0.0
        %v2601 = vmax.f32 %v2571, 0.0
        %v2602 = vmax.f32 %v2572, 0.0
        %v2603 = vmax.f32 %v2573, 0.0
        %v2604 = vmax.f32 %v2574, 0.0
        %v2605 = vmax.f32 %v2575, 0.0
        %v2606 = vmax.f32 %v2576, 0.0
        %v2607 = vmax.f32 %v2577, 0.0
        %v2608 = vmax.f32 %v2578, 0.0
        %v2609 = vmax.f32 %v2579, 0.0
        %v2610 = vmax.f32 %v2580, 0.0
        %v2611 = vmax.f32 %v2581, 0.0
        %v2612 = vmax.f32 %v2582, 0.0
        %v2613 = vmax.f32 %v2583, 0.0
        %v2614 = vmax.f32 %v2584, 0.0
        %v2615 = vmax.f32 %v2585, 0.0
        %v2616 = vmax.f32 %v2586, 0.0
        %v2617 = vmax.f32 %v2587, 0.0
        %v2618 = vmax.f32 %v2588, 0.0
        %v2619 = vmax.f32 %v2589, 0.0
        %v2620 = vmax.f32 %v2590, 0.0
        %v2621 = vmax.f32 %v2591, 0.0
        %v2622 = vmax.f32 %v2592, 0.0
        %v2623 = vmax.f32 %v2593, 0.0
        %v2624 = vmax.f32 %v2594, 0.0
        %v2625 = vmax.f32 %v2595, 0.0
        %v2626 = vmax.f32 %v2596, 0.0
        %v2627 = vmax.f32 %v2597, 0.0
        %v2628 = vmax.f32 %v2598, 0.0
        %v2629 = vmax.f32 %v2599, 0.0
        %2630 = vmatprep.subr.bf16.mxu0 0
        %2631 = vmatpush1.bf16.msra.mxu0 0
        %2632 = vmatprep.subr.bf16.mxu0 0
        %2633 = vmatpush1.bf16.msra.mxu0 0
        %2634 = vmatprep.subr.bf16.mxu0 0
        %2635 = vmatpush1.bf16.msra.mxu0 0
        %2636 = vmatprep.subr.bf16.mxu0 0
        %2637 = vmatpush1.bf16.msra.mxu0 0
        %2638 = vmatprep.subr.bf16.mxu0 0
        %2639 = vmatpush1.bf16.msra.mxu0 0
        %2640 = vmatprep.subr.bf16.mxu0 0
        %2641 = vmatpush1.bf16.msra.mxu0 0
        %2642 = vmatprep.subr.bf16.mxu0 %v743
        %2643 = vmatpush1.bf16.msra.mxu0 %v740
        %2644 = vmatprep.subr.bf16.mxu0 %v714
        %2645 = vmatpush1.bf16.msra.mxu0 %v713
        %2646 = vmatprep.subr.bf16.mxu0 0
        %2647 = vmatpush2.bf16.msra.mxu0 0
        %2648 = vmatprep.subr.bf16.mxu0 0
        %2649 = vmatpush2.bf16.msra.mxu0 0
        %2650 = vmatprep.subr.bf16.mxu0 0
        %2651 = vmatpush2.bf16.msra.mxu0 0
        %2652 = vmatprep.subr.bf16.mxu0 0
        %2653 = vmatpush2.bf16.msra.mxu0 0
        %2654 = vmatprep.subr.bf16.mxu0 0
        %2655 = vmatpush2.bf16.msra.mxu0 0
        %2656 = vmatprep.subr.bf16.mxu0 0
        %2657 = vmatpush2.bf16.msra.mxu0 0
        %2658 = vmatprep.subr.bf16.mxu0 0
        %2659 = vmatpush2.bf16.msra.mxu0 0
        %2660 = vmatprep.subr.bf16.mxu0 0
        %2661 = vmatpush2.bf16.msra.mxu0 0
        %2662 = vmatprep.mubr.bf16.mxu0 0
        %2663 = vmatmul.mubr.bf16.gmra.mxu0 %v1152
        %v2664 = vpop.f32.mrf.mxu0
        %v2665 = vadd.f32 0.0, %v2664
        %v2666 = vpop.f32.mrf.mxu0
        %v2667 = vadd.f32 0.0, %v2666
        %v2668 = vpop.f32.mrf.mxu0
        %v2669 = vadd.f32 0.0, %v2668
        %v2670 = vpop.f32.mrf.mxu0
        %v2671 = vadd.f32 0.0, %v2670
        %2672 = vmatprep.mubr.bf16.mxu0 0
        %2673 = vmatmul.mubr.bf16.gmra.mxu0 %v1155
        %v2674 = vpop.f32.mrf.mxu0
        %v2675 = vadd.f32 0.0, %v2674
        %v2676 = vpop.f32.mrf.mxu0
        %v2677 = vadd.f32 0.0, %v2676
        %v2678 = vpop.f32.mrf.mxu0
        %v2679 = vadd.f32 0.0, %v2678
        %v2680 = vpop.f32.mrf.mxu0
        %v2681 = vadd.f32 0.0, %v2680
        %2682 = vmatprep.mubr.bf16.mxu0 0
        %2683 = vmatmul.mubr.bf16.gmra.mxu0 %v1158
        %v2684 = vpop.f32.mrf.mxu0
        %v2685 = vadd.f32 0.0, %v2684
        %v2686 = vpop.f32.mrf.mxu0
        %v2687 = vadd.f32 0.0, %v2686
        %v2688 = vpop.f32.mrf.mxu0
        %v2689 = vadd.f32 0.0, %v2688
        %v2690 = vpop.f32.mrf.mxu0
        %v2691 = vadd.f32 0.0, %v2690
        %2692 = vmatprep.mubr.bf16.mxu0 0
        %2693 = vmatmul.mubr.bf16.gmra.mxu0 %v1161
        %v2694 = vpop.f32.mrf.mxu0
        %v2695 = vadd.f32 0.0, %v2694
        %v2696 = vpop.f32.mrf.mxu0
        %v2697 = vadd.f32 0.0, %v2696
        %v2698 = vpop.f32.mrf.mxu0
        %v2699 = vadd.f32 0.0, %v2698
        %v2700 = vpop.f32.mrf.mxu0
        %v2701 = vadd.f32 0.0, %v2700
        %2702 = vmatprep.mubr.bf16.mxu0 0
        %2703 = vmatmul.mubr.bf16.gmra.mxu0 %v1164
        %v2704 = vpop.f32.mrf.mxu0
        %v2705 = vadd.f32 0.0, %v2704
        %v2706 = vpop.f32.mrf.mxu0
        %v2707 = vadd.f32 0.0, %v2706
        %v2708 = vpop.f32.mrf.mxu0
        %v2709 = vadd.f32 0.0, %v2708
        %v2710 = vpop.f32.mrf.mxu0
        %v2711 = vadd.f32 0.0, %v2710
        %2712 = vdwg.mxu0
        %2713 = vmatprep.subr.bf16.mxu0 0
        %2714 = vmatpush1.bf16.msra.mxu0 0
        %2715 = vmatprep.subr.bf16.mxu0 0
        %2716 = vmatpush1.bf16.msra.mxu0 0
        %2717 = vmatprep.subr.bf16.mxu0 0
        %2718 = vmatpush1.bf16.msra.mxu0 0
        %2719 = vmatprep.subr.bf16.mxu0 0
        %2720 = vmatpush1.bf16.msra.mxu0 0
        %2721 = vmatprep.subr.bf16.mxu0 0
        %2722 = vmatpush1.bf16.msra.mxu0 0
        %2723 = vmatprep.subr.bf16.mxu0 0
        %2724 = vmatpush1.bf16.msra.mxu0 0
        %2725 = vmatprep.subr.bf16.mxu0 0
        %2726 = vmatpush1.bf16.msra.mxu0 %v746
        %2727 = vmatprep.subr.bf16.mxu0 0
        %2728 = vmatpush1.bf16.msra.mxu0 %v715
        %2729 = vmatprep.subr.bf16.mxu0 0
        %2730 = vmatpush2.bf16.msra.mxu0 0
        %2731 = vmatprep.subr.bf16.mxu0 0
        %2732 = vmatpush2.bf16.msra.mxu0 0
        %2733 = vmatprep.subr.bf16.mxu0 0
        %2734 = vmatpush2.bf16.msra.mxu0 0
        %2735 = vmatprep.subr.bf16.mxu0 0
        %2736 = vmatpush2.bf16.msra.mxu0 0
        %2737 = vmatprep.subr.bf16.mxu0 0
        %2738 = vmatpush2.bf16.msra.mxu0 0
        %2739 = vmatprep.subr.bf16.mxu0 0
        %2740 = vmatpush2.bf16.msra.mxu0 0
        %2741 = vmatprep.subr.bf16.mxu0 0
        %2742 = vmatpush2.bf16.msra.mxu0 0
        %2743 = vmatprep.subr.bf16.mxu0 0
        %2744 = vmatpush2.bf16.msra.mxu0 0
        %2745 = vmatprep.mubr.bf16.mxu0 0
        %2746 = vmatmul.mubr.bf16.gmra.mxu0 %v1152
        %v2747 = vpop.f32.mrf.mxu0
        %v2748 = vadd.f32 0.0, %v2747
        %v2749 = vpop.f32.mrf.mxu0
        %v2750 = vpop.f32.mrf.mxu0
        %v2751 = vadd.f32 0.0, %v2750
        %v2752 = vpop.f32.mrf.mxu0
        %2753 = vmatprep.mubr.bf16.mxu0 0
        %2754 = vmatmul.mubr.bf16.gmra.mxu0 %v1155
        %v2755 = vpop.f32.mrf.mxu0
        %v2756 = vadd.f32 0.0, %v2755
        %v2757 = vpop.f32.mrf.mxu0
        %v2758 = vpop.f32.mrf.mxu0
        %v2759 = vadd.f32 0.0, %v2758
        %v2760 = vpop.f32.mrf.mxu0
        %2761 = vmatprep.mubr.bf16.mxu0 0
        %2762 = vmatmul.mubr.bf16.gmra.mxu0 %v1158
        %v2763 = vpop.f32.mrf.mxu0
        %v2764 = vadd.f32 0.0, %v2763
        %v2765 = vpop.f32.mrf.mxu0
        %v2766 = vpop.f32.mrf.mxu0
        %v2767 = vadd.f32 0.0, %v2766
        %v2768 = vpop.f32.mrf.mxu0
        %2769 = vmatprep.mubr.bf16.mxu0 0
        %2770 = vmatmul.mubr.bf16.gmra.mxu0 %v1161
        %v2771 = vpop.f32.mrf.mxu0
        %v2772 = vadd.f32 0.0, %v2771
        %v2773 = vpop.f32.mrf.mxu0
        %v2774 = vpop.f32.mrf.mxu0
        %v2775 = vadd.f32 0.0, %v2774
        %v2776 = vpop.f32.mrf.mxu0
        %2777 = vmatprep.mubr.bf16.mxu0 0
        %2778 = vmatmul.mubr.bf16.gmra.mxu0 %v1164
        %v2779 = vpop.f32.mrf.mxu0
        %v2780 = vadd.f32 0.0, %v2779
        %v2781 = vpop.f32.mrf.mxu0
        %v2782 = vpop.f32.mrf.mxu0
        %v2783 = vadd.f32 0.0, %v2782
        %v2784 = vpop.f32.mrf.mxu0
        %2785 = vdwg.mxu0
        %2786 = vmatprep.subr.bf16.mxu0 0
        %2787 = vmatpush1.bf16.msra.mxu0 0
        %2788 = vmatprep.subr.bf16.mxu0 0
        %2789 = vmatpush1.bf16.msra.mxu0 0
        %2790 = vmatprep.subr.bf16.mxu0 0
        %2791 = vmatpush1.bf16.msra.mxu0 0
        %2792 = vmatprep.subr.bf16.mxu0 0
        %2793 = vmatpush1.bf16.msra.mxu0 0
        %2794 = vmatprep.subr.bf16.mxu0 0
        %2795 = vmatpush1.bf16.msra.mxu0 0
        %2796 = vmatprep.subr.bf16.mxu0 0
        %2797 = vmatpush1.bf16.msra.mxu0 0
        %2798 = vmatprep.subr.bf16.mxu0 %v952
        %2799 = vmatpush1.bf16.msra.mxu0 %v949
        %2800 = vmatprep.subr.bf16.mxu0 %v925
        %2801 = vmatpush1.bf16.msra.mxu0 %v924
        %2802 = vmatprep.subr.bf16.mxu0 0
        %2803 = vmatpush2.bf16.msra.mxu0 0
        %2804 = vmatprep.subr.bf16.mxu0 0
        %2805 = vmatpush2.bf16.msra.mxu0 0
        %2806 = vmatprep.subr.bf16.mxu0 0
        %2807 = vmatpush2.bf16.msra.mxu0 0
        %2808 = vmatprep.subr.bf16.mxu0 0
        %2809 = vmatpush2.bf16.msra.mxu0 0
        %2810 = vmatprep.subr.bf16.mxu0 0
        %2811 = vmatpush2.bf16.msra.mxu0 0
        %2812 = vmatprep.subr.bf16.mxu0 0
        %2813 = vmatpush2.bf16.msra.mxu0 0
        %2814 = vmatprep.subr.bf16.mxu0 0
        %2815 = vmatpush2.bf16.msra.mxu0 0
        %2816 = vmatprep.subr.bf16.mxu0 0
        %2817 = vmatpush2.bf16.msra.mxu0 0
        %2818 = vmatprep.mubr.bf16.mxu0 0
        %2819 = vmatmul.mubr.bf16.gmra.mxu0 %v724
        %v2820 = vpop.f32.mrf.mxu0
        %v2821 = vadd.f32 %v2665, %v2820
        %v2822 = vpop.f32.mrf.mxu0
        %v2823 = vadd.f32 %v2667, %v2822
        %v2824 = vpop.f32.mrf.mxu0
        %v2825 = vadd.f32 %v2669, %v2824
        %v2826 = vpop.f32.mrf.mxu0
        %v2827 = vadd.f32 %v2671, %v2826
        %2828 = vmatprep.mubr.bf16.mxu0 0
        %2829 = vmatmul.mubr.bf16.gmra.mxu0 %v727
        %v2830 = vpop.f32.mrf.mxu0
        %v2831 = vadd.f32 %v2675, %v2830
        %v2832 = vpop.f32.mrf.mxu0
        %v2833 = vadd.f32 %v2677, %v2832
        %v2834 = vpop.f32.mrf.mxu0
        %v2835 = vadd.f32 %v2679, %v2834
        %v2836 = vpop.f32.mrf.mxu0
        %v2837 = vadd.f32 %v2681, %v2836
        %2838 = vmatprep.mubr.bf16.mxu0 0
        %2839 = vmatmul.mubr.bf16.gmra.mxu0 %v730
        %v2840 = vpop.f32.mrf.mxu0
        %v2841 = vadd.f32 %v2685, %v2840
        %v2842 = vpop.f32.mrf.mxu0
        %v2843 = vadd.f32 %v2687, %v2842
        %v2844 = vpop.f32.mrf.mxu0
        %v2845 = vadd.f32 %v2689, %v2844
        %v2846 = vpop.f32.mrf.mxu0
        %v2847 = vadd.f32 %v2691, %v2846
        %2848 = vmatprep.mubr.bf16.mxu0 0
        %2849 = vmatmul.mubr.bf16.gmra.mxu0 %v733
        %v2850 = vpop.f32.mrf.mxu0
        %v2851 = vadd.f32 %v2695, %v2850
        %v2852 = vpop.f32.mrf.mxu0
        %v2853 = vadd.f32 %v2697, %v2852
        %v2854 = vpop.f32.mrf.mxu0
        %v2855 = vadd.f32 %v2699, %v2854
        %v2856 = vpop.f32.mrf.mxu0
        %v2857 = vadd.f32 %v2701, %v2856
        %2858 = vmatprep.mubr.bf16.mxu0 0
        %2859 = vmatmul.mubr.bf16.gmra.mxu0 %v736
        %v2860 = vpop.f32.mrf.mxu0
        %v2861 = vadd.f32 %v2705, %v2860
        %v2862 = vpop.f32.mrf.mxu0
        %v2863 = vadd.f32 %v2707, %v2862
        %v2864 = vpop.f32.mrf.mxu0
        %v2865 = vadd.f32 %v2709, %v2864
        %v2866 = vpop.f32.mrf.mxu0
        %v2867 = vadd.f32 %v2711, %v2866
        %2868 = vdwg.mxu0
        %2869 = vmatprep.subr.bf16.mxu0 0
        %2870 = vmatpush1.bf16.msra.mxu0 0
        %2871 = vmatprep.subr.bf16.mxu0 0
        %2872 = vmatpush1.bf16.msra.mxu0 0
        %2873 = vmatprep.subr.bf16.mxu0 0
        %2874 = vmatpush1.bf16.msra.mxu0 0
        %2875 = vmatprep.subr.bf16.mxu0 0
        %2876 = vmatpush1.bf16.msra.mxu0 0
        %2877 = vmatprep.subr.bf16.mxu0 0
        %2878 = vmatpush1.bf16.msra.mxu0 0
        %2879 = vmatprep.subr.bf16.mxu0 0
        %2880 = vmatpush1.bf16.msra.mxu0 0
        %2881 = vmatprep.subr.bf16.mxu0 0
        %2882 = vmatpush1.bf16.msra.mxu0 %v955
        %2883 = vmatprep.subr.bf16.mxu0 0
        %2884 = vmatpush1.bf16.msra.mxu0 %v926
        %2885 = vmatprep.subr.bf16.mxu0 0
        %2886 = vmatpush2.bf16.msra.mxu0 0
        %2887 = vmatprep.subr.bf16.mxu0 0
        %2888 = vmatpush2.bf16.msra.mxu0 0
        %2889 = vmatprep.subr.bf16.mxu0 0
        %2890 = vmatpush2.bf16.msra.mxu0 0
        %2891 = vmatprep.subr.bf16.mxu0 0
        %2892 = vmatpush2.bf16.msra.mxu0 0
        %2893 = vmatprep.subr.bf16.mxu0 0
        %2894 = vmatpush2.bf16.msra.mxu0 0
        %2895 = vmatprep.subr.bf16.mxu0 0
        %2896 = vmatpush2.bf16.msra.mxu0 0
        %2897 = vmatprep.subr.bf16.mxu0 0
        %2898 = vmatpush2.bf16.msra.mxu0 0
        %2899 = vmatprep.subr.bf16.mxu0 0
        %2900 = vmatpush2.bf16.msra.mxu0 0
        %2901 = vmatprep.mubr.bf16.mxu0 0
        %2902 = vmatmul.mubr.bf16.gmra.mxu0 %v724
        %v2903 = vpop.f32.mrf.mxu0
        %v2904 = vadd.f32 %v2748, %v2903
        %v2905 = vpop.f32.mrf.mxu0
        %v2906 = vpop.f32.mrf.mxu0
        %v2907 = vadd.f32 %v2751, %v2906
        %v2908 = vpop.f32.mrf.mxu0
        %2909 = vmatprep.mubr.bf16.mxu0 0
        %2910 = vmatmul.mubr.bf16.gmra.mxu0 %v727
        %v2911 = vpop.f32.mrf.mxu0
        %v2912 = vadd.f32 %v2756, %v2911
        %v2913 = vpop.f32.mrf.mxu0
        %v2914 = vpop.f32.mrf.mxu0
        %v2915 = vadd.f32 %v2759, %v2914
        %v2916 = vpop.f32.mrf.mxu0
        %2917 = vmatprep.mubr.bf16.mxu0 0
        %2918 = vmatmul.mubr.bf16.gmra.mxu0 %v730
        %v2919 = vpop.f32.mrf.mxu0
        %v2920 = vadd.f32 %v2764, %v2919
        %v2921 = vpop.f32.mrf.mxu0
        %v2922 = vpop.f32.mrf.mxu0
        %v2923 = vadd.f32 %v2767, %v2922
        %v2924 = vpop.f32.mrf.mxu0
        %2925 = vmatprep.mubr.bf16.mxu0 0
        %2926 = vmatmul.mubr.bf16.gmra.mxu0 %v733
        %v2927 = vpop.f32.mrf.mxu0
        %v2928 = vadd.f32 %v2772, %v2927
        %v2929 = vpop.f32.mrf.mxu0
        %v2930 = vpop.f32.mrf.mxu0
        %v2931 = vadd.f32 %v2775, %v2930
        %v2932 = vpop.f32.mrf.mxu0
        %2933 = vmatprep.mubr.bf16.mxu0 0
        %2934 = vmatmul.mubr.bf16.gmra.mxu0 %v736
        %v2935 = vpop.f32.mrf.mxu0
        %v2936 = vadd.f32 %v2780, %v2935
        %v2937 = vpop.f32.mrf.mxu0
        %v2938 = vpop.f32.mrf.mxu0
        %v2939 = vadd.f32 %v2783, %v2938
        %v2940 = vpop.f32.mrf.mxu0
        %2941 = vdwg.mxu0
        %2942 = vmatprep.subr.bf16.mxu0 0
        %2943 = vmatpush1.bf16.msra.mxu0 0
        %2944 = vmatprep.subr.bf16.mxu0 0
        %2945 = vmatpush1.bf16.msra.mxu0 0
        %2946 = vmatprep.subr.bf16.mxu0 0
        %2947 = vmatpush1.bf16.msra.mxu0 0
        %2948 = vmatprep.subr.bf16.mxu0 0
        %2949 = vmatpush1.bf16.msra.mxu0 0
        %2950 = vmatprep.subr.bf16.mxu0 0
        %2951 = vmatpush1.bf16.msra.mxu0 0
        %2952 = vmatprep.subr.bf16.mxu0 0
        %2953 = vmatpush1.bf16.msra.mxu0 0
        %2954 = vmatprep.subr.bf16.mxu0 %v1170
        %2955 = vmatpush1.bf16.msra.mxu0 %v1167
        %2956 = vmatprep.subr.bf16.mxu0 %v1143
        %2957 = vmatpush1.bf16.msra.mxu0 %v1142
        %2958 = vmatprep.subr.bf16.mxu0 0
        %2959 = vmatpush2.bf16.msra.mxu0 0
        %2960 = vmatprep.subr.bf16.mxu0 0
        %2961 = vmatpush2.bf16.msra.mxu0 0
        %2962 = vmatprep.subr.bf16.mxu0 0
        %2963 = vmatpush2.bf16.msra.mxu0 0
        %2964 = vmatprep.subr.bf16.mxu0 0
        %2965 = vmatpush2.bf16.msra.mxu0 0
        %2966 = vmatprep.subr.bf16.mxu0 0
        %2967 = vmatpush2.bf16.msra.mxu0 0
        %2968 = vmatprep.subr.bf16.mxu0 0
        %2969 = vmatpush2.bf16.msra.mxu0 0
        %2970 = vmatprep.subr.bf16.mxu0 0
        %2971 = vmatpush2.bf16.msra.mxu0 0
        %2972 = vmatprep.subr.bf16.mxu0 0
        %2973 = vmatpush2.bf16.msra.mxu0 0
        %2974 = vmatprep.mubr.bf16.mxu0 0
        %2975 = vmatmul.mubr.bf16.gmra.mxu0 %v1400
        %v2976 = vpop.f32.mrf.mxu0
        %v2977 = vadd.f32 0.0, %v2976
        %v2978 = vpop.f32.mrf.mxu0
        %v2979 = vadd.f32 0.0, %v2978
        %v2980 = vpop.f32.mrf.mxu0
        %v2981 = vadd.f32 0.0, %v2980
        %v2982 = vpop.f32.mrf.mxu0
        %v2983 = vadd.f32 0.0, %v2982
        %2984 = vmatprep.mubr.bf16.mxu0 0
        %2985 = vmatmul.mubr.bf16.gmra.mxu0 %v1403
        %v2986 = vpop.f32.mrf.mxu0
        %v2987 = vadd.f32 0.0, %v2986
        %v2988 = vpop.f32.mrf.mxu0
        %v2989 = vadd.f32 0.0, %v2988
        %v2990 = vpop.f32.mrf.mxu0
        %v2991 = vadd.f32 0.0, %v2990
        %v2992 = vpop.f32.mrf.mxu0
        %v2993 = vadd.f32 0.0, %v2992
        %2994 = vmatprep.mubr.bf16.mxu0 0
        %2995 = vmatmul.mubr.bf16.gmra.mxu0 %v1406
        %v2996 = vpop.f32.mrf.mxu0
        %v2997 = vadd.f32 0.0, %v2996
        %v2998 = vpop.f32.mrf.mxu0
        %v2999 = vadd.f32 0.0, %v2998
        %v3000 = vpop.f32.mrf.mxu0
        %v3001 = vadd.f32 0.0, %v3000
        %v3002 = vpop.f32.mrf.mxu0
        %v3003 = vadd.f32 0.0, %v3002
        %3004 = vmatprep.mubr.bf16.mxu0 0
        %3005 = vmatmul.mubr.bf16.gmra.mxu0 %v1409
        %v3006 = vpop.f32.mrf.mxu0
        %v3007 = vadd.f32 0.0, %v3006
        %v3008 = vpop.f32.mrf.mxu0
        %v3009 = vadd.f32 0.0, %v3008
        %v3010 = vpop.f32.mrf.mxu0
        %v3011 = vadd.f32 0.0, %v3010
        %v3012 = vpop.f32.mrf.mxu0
        %v3013 = vadd.f32 0.0, %v3012
        %3014 = vmatprep.mubr.bf16.mxu0 0
        %3015 = vmatmul.mubr.bf16.gmra.mxu0 %v1412
        %v3016 = vpop.f32.mrf.mxu0
        %v3017 = vadd.f32 0.0, %v3016
        %v3018 = vpop.f32.mrf.mxu0
        %v3019 = vadd.f32 0.0, %v3018
        %v3020 = vpop.f32.mrf.mxu0
        %v3021 = vadd.f32 0.0, %v3020
        %v3022 = vpop.f32.mrf.mxu0
        %v3023 = vadd.f32 0.0, %v3022
        %3024 = vdwg.mxu0
        %3025 = vmatprep.subr.bf16.mxu0 0
        %3026 = vmatpush1.bf16.msra.mxu0 0
        %3027 = vmatprep.subr.bf16.mxu0 0
        %3028 = vmatpush1.bf16.msra.mxu0 0
        %3029 = vmatprep.subr.bf16.mxu0 0
        %3030 = vmatpush1.bf16.msra.mxu0 0
        %3031 = vmatprep.subr.bf16.mxu0 0
        %3032 = vmatpush1.bf16.msra.mxu0 0
        %3033 = vmatprep.subr.bf16.mxu0 0
        %3034 = vmatpush1.bf16.msra.mxu0 0
        %3035 = vmatprep.subr.bf16.mxu0 0
        %3036 = vmatpush1.bf16.msra.mxu0 0
        %3037 = vmatprep.subr.bf16.mxu0 0
        %3038 = vmatpush1.bf16.msra.mxu0 %v1173
        %3039 = vmatprep.subr.bf16.mxu0 0
        %3040 = vmatpush1.bf16.msra.mxu0 %v1144
        %3041 = vmatprep.subr.bf16.mxu0 0
        %3042 = vmatpush2.bf16.msra.mxu0 0
        %3043 = vmatprep.subr.bf16.mxu0 0
        %3044 = vmatpush2.bf16.msra.mxu0 0
        %3045 = vmatprep.subr.bf16.mxu0 0
        %3046 = vmatpush2.bf16.msra.mxu0 0
        %3047 = vmatprep.subr.bf16.mxu0 0
        %3048 = vmatpush2.bf16.msra.mxu0 0
        %3049 = vmatprep.subr.bf16.mxu0 0
        %3050 = vmatpush2.bf16.msra.mxu0 0
        %3051 = vmatprep.subr.bf16.mxu0 0
        %3052 = vmatpush2.bf16.msra.mxu0 0
        %3053 = vmatprep.subr.bf16.mxu0 0
        %3054 = vmatpush2.bf16.msra.mxu0 0
        %3055 = vmatprep.subr.bf16.mxu0 0
        %3056 = vmatpush2.bf16.msra.mxu0 0
        %3057 = vmatprep.mubr.bf16.mxu0 0
        %3058 = vmatmul.mubr.bf16.gmra.mxu0 %v1400
        %v3059 = vpop.f32.mrf.mxu0
        %v3060 = vadd.f32 0.0, %v3059
        %v3061 = vpop.f32.mrf.mxu0
        %v3062 = vpop.f32.mrf.mxu0
        %v3063 = vadd.f32 0.0, %v3062
        %v3064 = vpop.f32.mrf.mxu0
        %3065 = vmatprep.mubr.bf16.mxu0 0
        %3066 = vmatmul.mubr.bf16.gmra.mxu0 %v1403
        %v3067 = vpop.f32.mrf.mxu0
        %v3068 = vadd.f32 0.0, %v3067
        %v3069 = vpop.f32.mrf.mxu0
        %v3070 = vpop.f32.mrf.mxu0
        %v3071 = vadd.f32 0.0, %v3070
        %v3072 = vpop.f32.mrf.mxu0
        %3073 = vmatprep.mubr.bf16.mxu0 0
        %3074 = vmatmul.mubr.bf16.gmra.mxu0 %v1406
        %v3075 = vpop.f32.mrf.mxu0
        %v3076 = vadd.f32 0.0, %v3075
        %v3077 = vpop.f32.mrf.mxu0
        %v3078 = vpop.f32.mrf.mxu0
        %v3079 = vadd.f32 0.0, %v3078
        %v3080 = vpop.f32.mrf.mxu0
        %3081 = vmatprep.mubr.bf16.mxu0 0
        %3082 = vmatmul.mubr.bf16.gmra.mxu0 %v1409
        %v3083 = vpop.f32.mrf.mxu0
        %v3084 = vadd.f32 0.0, %v3083
        %v3085 = vpop.f32.mrf.mxu0
        %v3086 = vpop.f32.mrf.mxu0
        %v3087 = vadd.f32 0.0, %v3086
        %v3088 = vpop.f32.mrf.mxu0
        %3089 = vmatprep.mubr.bf16.mxu0 0
        %3090 = vmatmul.mubr.bf16.gmra.mxu0 %v1412
        %v3091 = vpop.f32.mrf.mxu0
        %v3092 = vadd.f32 0.0, %v3091
        %v3093 = vpop.f32.mrf.mxu0
        %v3094 = vpop.f32.mrf.mxu0
        %v3095 = vadd.f32 0.0, %v3094
        %v3096 = vpop.f32.mrf.mxu0
        %3097 = vdwg.mxu0
        %v3098 = vadd.f32 %v2821, %v2977
        %v3099 = vadd.f32 %v2823, %v2979
        %v3100 = vadd.f32 %v2904, %v3060
        %v3101 = vadd.f32 %v2825, %v2981
        %v3102 = vadd.f32 %v2827, %v2983
        %v3103 = vadd.f32 %v2907, %v3063
        %v3104 = vadd.f32 %v2831, %v2987
        %v3105 = vadd.f32 %v2833, %v2989
        %v3106 = vadd.f32 %v2912, %v3068
        %v3107 = vadd.f32 %v2835, %v2991
        %v3108 = vadd.f32 %v2837, %v2993
        %v3109 = vadd.f32 %v2915, %v3071
        %v3110 = vadd.f32 %v2841, %v2997
        %v3111 = vadd.f32 %v2843, %v2999
        %v3112 = vadd.f32 %v2920, %v3076
        %v3113 = vadd.f32 %v2845, %v3001
        %v3114 = vadd.f32 %v2847, %v3003
        %v3115 = vadd.f32 %v2923, %v3079
        %v3116 = vadd.f32 %v2851, %v3007
        %v3117 = vadd.f32 %v2853, %v3009
        %v3118 = vadd.f32 %v2928, %v3084
        %v3119 = vadd.f32 %v2855, %v3011
        %v3120 = vadd.f32 %v2857, %v3013
        %v3121 = vadd.f32 %v2931, %v3087
        %v3122 = vadd.f32 %v2861, %v3017
        %v3123 = vadd.f32 %v2863, %v3019
        %v3124 = vadd.f32 %v2936, %v3092
        %v3125 = vadd.f32 %v2865, %v3021
        %v3126 = vadd.f32 %v2867, %v3023
        %v3127 = vadd.f32 %v2939, %v3095
        %3128 = vmatprep.subr.bf16.mxu0 0
        %3129 = vmatpush1.bf16.msra.mxu0 0
        %3130 = vmatprep.subr.bf16.mxu0 0
        %3131 = vmatpush1.bf16.msra.mxu0 0
        %3132 = vmatprep.subr.bf16.mxu0 0
        %3133 = vmatpush1.bf16.msra.mxu0 0
        %3134 = vmatprep.subr.bf16.mxu0 0
        %3135 = vmatpush1.bf16.msra.mxu0 0
        %3136 = vmatprep.subr.bf16.mxu0 0
        %3137 = vmatpush1.bf16.msra.mxu0 0
        %3138 = vmatprep.subr.bf16.mxu0 0
        %3139 = vmatpush1.bf16.msra.mxu0 0
        %3140 = vmatprep.subr.bf16.mxu0 %v1418
        %3141 = vmatpush1.bf16.msra.mxu0 %v1415
        %3142 = vmatprep.subr.bf16.mxu0 %v1391
        %3143 = vmatpush1.bf16.msra.mxu0 %v1390
        %3144 = vmatprep.subr.bf16.mxu0 0
        %3145 = vmatpush2.bf16.msra.mxu0 0
        %3146 = vmatprep.subr.bf16.mxu0 0
        %3147 = vmatpush2.bf16.msra.mxu0 0
        %3148 = vmatprep.subr.bf16.mxu0 0
        %3149 = vmatpush2.bf16.msra.mxu0 0
        %3150 = vmatprep.subr.bf16.mxu0 0
        %3151 = vmatpush2.bf16.msra.mxu0 0
        %3152 = vmatprep.subr.bf16.mxu0 0
        %3153 = vmatpush2.bf16.msra.mxu0 0
        %3154 = vmatprep.subr.bf16.mxu0 0
        %3155 = vmatpush2.bf16.msra.mxu0 0
        %3156 = vmatprep.subr.bf16.mxu0 0
        %3157 = vmatpush2.bf16.msra.mxu0 0
        %3158 = vmatprep.subr.bf16.mxu0 0
        %3159 = vmatpush2.bf16.msra.mxu0 0
        %3160 = vmatprep.mubr.bf16.mxu0 0
        %3161 = vmatmul.mubr.bf16.gmra.mxu0 %v937
        %v3162 = vpop.f32.mrf.mxu0
        %v3163 = vadd.f32 0.0, %v3162
        %v3164 = vpop.f32.mrf.mxu0
        %v3165 = vadd.f32 0.0, %v3164
        %v3166 = vpop.f32.mrf.mxu0
        %v3167 = vadd.f32 0.0, %v3166
        %v3168 = vpop.f32.mrf.mxu0
        %v3169 = vadd.f32 0.0, %v3168
        %3170 = vmatprep.mubr.bf16.mxu0 0
        %3171 = vmatmul.mubr.bf16.gmra.mxu0 %v940
        %v3172 = vpop.f32.mrf.mxu0
        %v3173 = vadd.f32 0.0, %v3172
        %v3174 = vpop.f32.mrf.mxu0
        %v3175 = vadd.f32 0.0, %v3174
        %v3176 = vpop.f32.mrf.mxu0
        %v3177 = vadd.f32 0.0, %v3176
        %v3178 = vpop.f32.mrf.mxu0
        %v3179 = vadd.f32 0.0, %v3178
        %3180 = vmatprep.mubr.bf16.mxu0 0
        %3181 = vmatmul.mubr.bf16.gmra.mxu0 %v943
        %v3182 = vpop.f32.mrf.mxu0
        %v3183 = vadd.f32 0.0, %v3182
        %v3184 = vpop.f32.mrf.mxu0
        %v3185 = vadd.f32 0.0, %v3184
        %v3186 = vpop.f32.mrf.mxu0
        %v3187 = vadd.f32 0.0, %v3186
        %v3188 = vpop.f32.mrf.mxu0
        %v3189 = vadd.f32 0.0, %v3188
        %3190 = vmatprep.mubr.bf16.mxu0 0
        %3191 = vmatmul.mubr.bf16.gmra.mxu0 %v946
        %v3192 = vpop.f32.mrf.mxu0
        %v3193 = vadd.f32 0.0, %v3192
        %v3194 = vpop.f32.mrf.mxu0
        %v3195 = vadd.f32 0.0, %v3194
        %v3196 = vpop.f32.mrf.mxu0
        %v3197 = vadd.f32 0.0, %v3196
        %v3198 = vpop.f32.mrf.mxu0
        %v3199 = vadd.f32 0.0, %v3198
        %3200 = vmatprep.mubr.bf16.mxu0 0
        %3201 = vmatmul.mubr.bf16.gmra.mxu0 %v1648
        %v3202 = vpop.f32.mrf.mxu0
        %v3203 = vadd.f32 0.0, %v3202
        %v3204 = vpop.f32.mrf.mxu0
        %v3205 = vadd.f32 0.0, %v3204
        %v3206 = vpop.f32.mrf.mxu0
        %v3207 = vadd.f32 0.0, %v3206
        %v3208 = vpop.f32.mrf.mxu0
        %v3209 = vadd.f32 0.0, %v3208
        %3210 = vdwg.mxu0
        %3211 = vmatprep.subr.bf16.mxu0 0
        %3212 = vmatpush1.bf16.msra.mxu0 0
        %3213 = vmatprep.subr.bf16.mxu0 0
        %3214 = vmatpush1.bf16.msra.mxu0 0
        %3215 = vmatprep.subr.bf16.mxu0 0
        %3216 = vmatpush1.bf16.msra.mxu0 0
        %3217 = vmatprep.subr.bf16.mxu0 0
        %3218 = vmatpush1.bf16.msra.mxu0 0
        %3219 = vmatprep.subr.bf16.mxu0 0
        %3220 = vmatpush1.bf16.msra.mxu0 0
        %3221 = vmatprep.subr.bf16.mxu0 0
        %3222 = vmatpush1.bf16.msra.mxu0 0
        %3223 = vmatprep.subr.bf16.mxu0 0
        %3224 = vmatpush1.bf16.msra.mxu0 %v1421
        %3225 = vmatprep.subr.bf16.mxu0 0
        %3226 = vmatpush1.bf16.msra.mxu0 %v1392
        %3227 = vmatprep.subr.bf16.mxu0 0
        %3228 = vmatpush2.bf16.msra.mxu0 0
        %3229 = vmatprep.subr.bf16.mxu0 0
        %3230 = vmatpush2.bf16.msra.mxu0 0
        %3231 = vmatprep.subr.bf16.mxu0 0
        %3232 = vmatpush2.bf16.msra.mxu0 0
        %3233 = vmatprep.subr.bf16.mxu0 0
        %3234 = vmatpush2.bf16.msra.mxu0 0
        %3235 = vmatprep.subr.bf16.mxu0 0
        %3236 = vmatpush2.bf16.msra.mxu0 0
        %3237 = vmatprep.subr.bf16.mxu0 0
        %3238 = vmatpush2.bf16.msra.mxu0 0
        %3239 = vmatprep.subr.bf16.mxu0 0
        %3240 = vmatpush2.bf16.msra.mxu0 0
        %3241 = vmatprep.subr.bf16.mxu0 0
        %3242 = vmatpush2.bf16.msra.mxu0 0
        %3243 = vmatprep.mubr.bf16.mxu0 0
        %3244 = vmatmul.mubr.bf16.gmra.mxu0 %v937
        %v3245 = vpop.f32.mrf.mxu0
        %v3246 = vadd.f32 0.0, %v3245
        %v3247 = vpop.f32.mrf.mxu0
        %v3248 = vpop.f32.mrf.mxu0
        %v3249 = vadd.f32 0.0, %v3248
        %v3250 = vpop.f32.mrf.mxu0
        %3251 = vmatprep.mubr.bf16.mxu0 0
        %3252 = vmatmul.mubr.bf16.gmra.mxu0 %v940
        %v3253 = vpop.f32.mrf.mxu0
        %v3254 = vadd.f32 0.0, %v3253
        %v3255 = vpop.f32.mrf.mxu0
        %v3256 = vpop.f32.mrf.mxu0
        %v3257 = vadd.f32 0.0, %v3256
        %v3258 = vpop.f32.mrf.mxu0
        %3259 = vmatprep.mubr.bf16.mxu0 0
        %3260 = vmatmul.mubr.bf16.gmra.mxu0 %v943
        %v3261 = vpop.f32.mrf.mxu0
        %v3262 = vadd.f32 0.0, %v3261
        %v3263 = vpop.f32.mrf.mxu0
        %v3264 = vpop.f32.mrf.mxu0
        %v3265 = vadd.f32 0.0, %v3264
        %v3266 = vpop.f32.mrf.mxu0
        %3267 = vmatprep.mubr.bf16.mxu0 0
        %3268 = vmatmul.mubr.bf16.gmra.mxu0 %v946
        %v3269 = vpop.f32.mrf.mxu0
        %v3270 = vadd.f32 0.0, %v3269
        %v3271 = vpop.f32.mrf.mxu0
        %v3272 = vpop.f32.mrf.mxu0
        %v3273 = vadd.f32 0.0, %v3272
        %v3274 = vpop.f32.mrf.mxu0
        %3275 = vmatprep.mubr.bf16.mxu0 0
        %3276 = vmatmul.mubr.bf16.gmra.mxu0 %v1648
        %v3277 = vpop.f32.mrf.mxu0
        %v3278 = vadd.f32 0.0, %v3277
        %v3279 = vpop.f32.mrf.mxu0
        %v3280 = vpop.f32.mrf.mxu0
        %v3281 = vadd.f32 0.0, %v3280
        %v3282 = vpop.f32.mrf.mxu0
        %3283 = vdwg.mxu0
        %v3284 = vadd.f32 %v3098, %v3163
        %v3285 = vadd.f32 %v3099, %v3165
        %v3286 = vadd.f32 %v3100, %v3246
        %v3287 = vadd.f32 %v3101, %v3167
        %v3288 = vadd.f32 %v3102, %v3169
        %v3289 = vadd.f32 %v3103, %v3249
        %v3290 = vadd.f32 %v3104, %v3173
        %v3291 = vadd.f32 %v3105, %v3175
        %v3292 = vadd.f32 %v3106, %v3254
        %v3293 = vadd.f32 %v3107, %v3177
        %v3294 = vadd.f32 %v3108, %v3179
        %v3295 = vadd.f32 %v3109, %v3257
        %v3296 = vadd.f32 %v3110, %v3183
        %v3297 = vadd.f32 %v3111, %v3185
        %v3298 = vadd.f32 %v3112, %v3262
        %v3299 = vadd.f32 %v3113, %v3187
        %v3300 = vadd.f32 %v3114, %v3189
        %v3301 = vadd.f32 %v3115, %v3265
        %v3302 = vadd.f32 %v3116, %v3193
        %v3303 = vadd.f32 %v3117, %v3195
        %v3304 = vadd.f32 %v3118, %v3270
        %v3305 = vadd.f32 %v3119, %v3197
        %v3306 = vadd.f32 %v3120, %v3199
        %v3307 = vadd.f32 %v3121, %v3273
        %v3308 = vadd.f32 %v3122, %v3203
        %v3309 = vadd.f32 %v3123, %v3205
        %v3310 = vadd.f32 %v3124, %v3278
        %v3311 = vadd.f32 %v3125, %v3207
        %v3312 = vadd.f32 %v3126, %v3209
        %v3313 = vadd.f32 %v3127, %v3281
        %3314 = vmatprep.subr.bf16.mxu0 0
        %3315 = vmatpush1.bf16.msra.mxu0 0
        %3316 = vmatprep.subr.bf16.mxu0 0
        %3317 = vmatpush1.bf16.msra.mxu0 0
        %3318 = vmatprep.subr.bf16.mxu0 0
        %3319 = vmatpush1.bf16.msra.mxu0 0
        %3320 = vmatprep.subr.bf16.mxu0 0
        %3321 = vmatpush1.bf16.msra.mxu0 0
        %3322 = vmatprep.subr.bf16.mxu0 0
        %3323 = vmatpush1.bf16.msra.mxu0 0
        %3324 = vmatprep.subr.bf16.mxu0 0
        %3325 = vmatpush1.bf16.msra.mxu0 0
        %3326 = vmatprep.subr.bf16.mxu0 %v1654
        %3327 = vmatpush1.bf16.msra.mxu0 %v1651
        %3328 = vmatprep.subr.bf16.mxu0 %v1639
        %3329 = vmatpush1.bf16.msra.mxu0 %v1638
        %3330 = vmatprep.subr.bf16.mxu0 0
        %3331 = vmatpush2.bf16.msra.mxu0 0
        %3332 = vmatprep.subr.bf16.mxu0 0
        %3333 = vmatpush2.bf16.msra.mxu0 0
        %3334 = vmatprep.subr.bf16.mxu0 0
        %3335 = vmatpush2.bf16.msra.mxu0 0
        %3336 = vmatprep.subr.bf16.mxu0 0
        %3337 = vmatpush2.bf16.msra.mxu0 0
        %3338 = vmatprep.subr.bf16.mxu0 0
        %3339 = vmatpush2.bf16.msra.mxu0 0
        %3340 = vmatprep.subr.bf16.mxu0 0
        %3341 = vmatpush2.bf16.msra.mxu0 0
        %3342 = vmatprep.subr.bf16.mxu0 0
        %3343 = vmatpush2.bf16.msra.mxu0 0
        %3344 = vmatprep.subr.bf16.mxu0 0
        %3345 = vmatpush2.bf16.msra.mxu0 0
        %3346 = vmatprep.mubr.bf16.mxu0 0
        %3347 = vmatmul.mubr.bf16.gmra.mxu0 %v727
        %v3348 = vpop.f32.mrf.mxu0
        %v3349 = vadd.f32 0.0, %v3348
        %v3350 = vpop.f32.mrf.mxu0
        %v3351 = vadd.f32 0.0, %v3350
        %v3352 = vpop.f32.mrf.mxu0
        %v3353 = vadd.f32 0.0, %v3352
        %v3354 = vpop.f32.mrf.mxu0
        %v3355 = vadd.f32 0.0, %v3354
        %3356 = vmatprep.mubr.bf16.mxu0 0
        %3357 = vmatmul.mubr.bf16.gmra.mxu0 %v730
        %v3358 = vpop.f32.mrf.mxu0
        %v3359 = vadd.f32 0.0, %v3358
        %v3360 = vpop.f32.mrf.mxu0
        %v3361 = vadd.f32 0.0, %v3360
        %v3362 = vpop.f32.mrf.mxu0
        %v3363 = vadd.f32 0.0, %v3362
        %v3364 = vpop.f32.mrf.mxu0
        %v3365 = vadd.f32 0.0, %v3364
        %3366 = vmatprep.mubr.bf16.mxu0 0
        %3367 = vmatmul.mubr.bf16.gmra.mxu0 %v733
        %v3368 = vpop.f32.mrf.mxu0
        %v3369 = vadd.f32 0.0, %v3368
        %v3370 = vpop.f32.mrf.mxu0
        %v3371 = vadd.f32 0.0, %v3370
        %v3372 = vpop.f32.mrf.mxu0
        %v3373 = vadd.f32 0.0, %v3372
        %v3374 = vpop.f32.mrf.mxu0
        %v3375 = vadd.f32 0.0, %v3374
        %3376 = vmatprep.mubr.bf16.mxu0 0
        %3377 = vmatmul.mubr.bf16.gmra.mxu0 %v736
        %v3378 = vpop.f32.mrf.mxu0
        %v3379 = vadd.f32 0.0, %v3378
        %v3380 = vpop.f32.mrf.mxu0
        %v3381 = vadd.f32 0.0, %v3380
        %v3382 = vpop.f32.mrf.mxu0
        %v3383 = vadd.f32 0.0, %v3382
        %v3384 = vpop.f32.mrf.mxu0
        %v3385 = vadd.f32 0.0, %v3384
        %3386 = vmatprep.mubr.bf16.mxu0 0
        %3387 = vmatmul.mubr.bf16.gmra.mxu0 %v1884
        %v3388 = vpop.f32.mrf.mxu0
        %v3389 = vadd.f32 0.0, %v3388
        %v3390 = vpop.f32.mrf.mxu0
        %v3391 = vadd.f32 0.0, %v3390
        %v3392 = vpop.f32.mrf.mxu0
        %v3393 = vadd.f32 0.0, %v3392
        %v3394 = vpop.f32.mrf.mxu0
        %v3395 = vadd.f32 0.0, %v3394
        %3396 = vdwg.mxu0
        %3397 = vmatprep.subr.bf16.mxu0 0
        %3398 = vmatpush1.bf16.msra.mxu0 0
        %3399 = vmatprep.subr.bf16.mxu0 0
        %3400 = vmatpush1.bf16.msra.mxu0 0
        %3401 = vmatprep.subr.bf16.mxu0 0
        %3402 = vmatpush1.bf16.msra.mxu0 0
        %3403 = vmatprep.subr.bf16.mxu0 0
        %3404 = vmatpush1.bf16.msra.mxu0 0
        %3405 = vmatprep.subr.bf16.mxu0 0
        %3406 = vmatpush1.bf16.msra.mxu0 0
        %3407 = vmatprep.subr.bf16.mxu0 0
        %3408 = vmatpush1.bf16.msra.mxu0 0
        %3409 = vmatprep.subr.bf16.mxu0 0
        %3410 = vmatpush1.bf16.msra.mxu0 %v1657
        %3411 = vmatprep.subr.bf16.mxu0 0
        %3412 = vmatpush1.bf16.msra.mxu0 %v1640
        %3413 = vmatprep.subr.bf16.mxu0 0
        %3414 = vmatpush2.bf16.msra.mxu0 0
        %3415 = vmatprep.subr.bf16.mxu0 0
        %3416 = vmatpush2.bf16.msra.mxu0 0
        %3417 = vmatprep.subr.bf16.mxu0 0
        %3418 = vmatpush2.bf16.msra.mxu0 0
        %3419 = vmatprep.subr.bf16.mxu0 0
        %3420 = vmatpush2.bf16.msra.mxu0 0
        %3421 = vmatprep.subr.bf16.mxu0 0
        %3422 = vmatpush2.bf16.msra.mxu0 0
        %3423 = vmatprep.subr.bf16.mxu0 0
        %3424 = vmatpush2.bf16.msra.mxu0 0
        %3425 = vmatprep.subr.bf16.mxu0 0
        %3426 = vmatpush2.bf16.msra.mxu0 0
        %3427 = vmatprep.subr.bf16.mxu0 0
        %3428 = vmatpush2.bf16.msra.mxu0 0
        %3429 = vmatprep.mubr.bf16.mxu0 0
        %3430 = vmatmul.mubr.bf16.gmra.mxu0 %v727
        %v3431 = vpop.f32.mrf.mxu0
        %v3432 = vadd.f32 0.0, %v3431
        %v3433 = vpop.f32.mrf.mxu0
        %v3434 = vpop.f32.mrf.mxu0
        %v3435 = vadd.f32 0.0, %v3434
        %v3436 = vpop.f32.mrf.mxu0
        %3437 = vmatprep.mubr.bf16.mxu0 0
        %3438 = vmatmul.mubr.bf16.gmra.mxu0 %v730
        %v3439 = vpop.f32.mrf.mxu0
        %v3440 = vadd.f32 0.0, %v3439
        %v3441 = vpop.f32.mrf.mxu0
        %v3442 = vpop.f32.mrf.mxu0
        %v3443 = vadd.f32 0.0, %v3442
        %v3444 = vpop.f32.mrf.mxu0
        %3445 = vmatprep.mubr.bf16.mxu0 0
        %3446 = vmatmul.mubr.bf16.gmra.mxu0 %v733
        %v3447 = vpop.f32.mrf.mxu0
        %v3448 = vadd.f32 0.0, %v3447
        %v3449 = vpop.f32.mrf.mxu0
        %v3450 = vpop.f32.mrf.mxu0
        %v3451 = vadd.f32 0.0, %v3450
        %v3452 = vpop.f32.mrf.mxu0
        %3453 = vmatprep.mubr.bf16.mxu0 0
        %3454 = vmatmul.mubr.bf16.gmra.mxu0 %v736
        %v3455 = vpop.f32.mrf.mxu0
        %v3456 = vadd.f32 0.0, %v3455
        %v3457 = vpop.f32.mrf.mxu0
        %v3458 = vpop.f32.mrf.mxu0
        %v3459 = vadd.f32 0.0, %v3458
        %v3460 = vpop.f32.mrf.mxu0
        %3461 = vmatprep.mubr.bf16.mxu0 0
        %3462 = vmatmul.mubr.bf16.gmra.mxu0 %v1884
        %v3463 = vpop.f32.mrf.mxu0
        %v3464 = vadd.f32 0.0, %v3463
        %v3465 = vpop.f32.mrf.mxu0
        %v3466 = vpop.f32.mrf.mxu0
        %v3467 = vadd.f32 0.0, %v3466
        %v3468 = vpop.f32.mrf.mxu0
        %3469 = vdwg.mxu0
        %v3470 = vadd.f32 %v3284, %v3349
        %v3471 = vadd.f32 %v3285, %v3351
        %v3472 = vadd.f32 %v3286, %v3432
        %v3473 = vadd.f32 %v3287, %v3353
        %v3474 = vadd.f32 %v3288, %v3355
        %v3475 = vadd.f32 %v3289, %v3435
        %v3476 = vadd.f32 %v3290, %v3359
        %v3477 = vadd.f32 %v3291, %v3361
        %v3478 = vadd.f32 %v3292, %v3440
        %v3479 = vadd.f32 %v3293, %v3363
        %v3480 = vadd.f32 %v3294, %v3365
        %v3481 = vadd.f32 %v3295, %v3443
        %v3482 = vadd.f32 %v3296, %v3369
        %v3483 = vadd.f32 %v3297, %v3371
        %v3484 = vadd.f32 %v3298, %v3448
        %v3485 = vadd.f32 %v3299, %v3373
        %v3486 = vadd.f32 %v3300, %v3375
        %v3487 = vadd.f32 %v3301, %v3451
        %v3488 = vadd.f32 %v3302, %v3379
        %v3489 = vadd.f32 %v3303, %v3381
        %v3490 = vadd.f32 %v3304, %v3456
        %v3491 = vadd.f32 %v3305, %v3383
        %v3492 = vadd.f32 %v3306, %v3385
        %v3493 = vadd.f32 %v3307, %v3459
        %v3494 = vadd.f32 %v3308, %v3389
        %v3495 = vadd.f32 %v3309, %v3391
        %v3496 = vadd.f32 %v3310, %v3464
        %v3497 = vadd.f32 %v3311, %v3393
        %v3498 = vadd.f32 %v3312, %v3395
        %v3499 = vadd.f32 %v3313, %v3467
        %3500 = vmatprep.subr.bf16.mxu0 0
        %3501 = vmatpush1.bf16.msra.mxu0 0
        %3502 = vmatprep.subr.bf16.mxu0 0
        %3503 = vmatpush1.bf16.msra.mxu0 0
        %3504 = vmatprep.subr.bf16.mxu0 0
        %3505 = vmatpush1.bf16.msra.mxu0 0
        %3506 = vmatprep.subr.bf16.mxu0 0
        %3507 = vmatpush1.bf16.msra.mxu0 0
        %3508 = vmatprep.subr.bf16.mxu0 0
        %3509 = vmatpush1.bf16.msra.mxu0 0
        %3510 = vmatprep.subr.bf16.mxu0 0
        %3511 = vmatpush1.bf16.msra.mxu0 0
        %3512 = vmatprep.subr.bf16.mxu0 %v1890
        %3513 = vmatpush1.bf16.msra.mxu0 %v1887
        %3514 = vmatprep.subr.bf16.mxu0 %v1875
        %3515 = vmatpush1.bf16.msra.mxu0 %v1874
        %3516 = vmatprep.subr.bf16.mxu0 0
        %3517 = vmatpush2.bf16.msra.mxu0 0
        %3518 = vmatprep.subr.bf16.mxu0 0
        %3519 = vmatpush2.bf16.msra.mxu0 0
        %3520 = vmatprep.subr.bf16.mxu0 0
        %3521 = vmatpush2.bf16.msra.mxu0 0
        %3522 = vmatprep.subr.bf16.mxu0 0
        %3523 = vmatpush2.bf16.msra.mxu0 0
        %3524 = vmatprep.subr.bf16.mxu0 0
        %3525 = vmatpush2.bf16.msra.mxu0 0
        %3526 = vmatprep.subr.bf16.mxu0 0
        %3527 = vmatpush2.bf16.msra.mxu0 0
        %3528 = vmatprep.subr.bf16.mxu0 0
        %3529 = vmatpush2.bf16.msra.mxu0 0
        %3530 = vmatprep.subr.bf16.mxu0 0
        %3531 = vmatpush2.bf16.msra.mxu0 0
        %3532 = vmatprep.mubr.bf16.mxu0 0
        %3533 = vmatmul.mubr.bf16.gmra.mxu0 %v1155
        %v3534 = vpop.f32.mrf.mxu0
        %v3535 = vadd.f32 0.0, %v3534
        %v3536 = vpop.f32.mrf.mxu0
        %v3537 = vadd.f32 0.0, %v3536
        %v3538 = vpop.f32.mrf.mxu0
        %v3539 = vadd.f32 0.0, %v3538
        %v3540 = vpop.f32.mrf.mxu0
        %v3541 = vadd.f32 0.0, %v3540
        %3542 = vmatprep.mubr.bf16.mxu0 0
        %3543 = vmatmul.mubr.bf16.gmra.mxu0 %v1158
        %v3544 = vpop.f32.mrf.mxu0
        %v3545 = vadd.f32 0.0, %v3544
        %v3546 = vpop.f32.mrf.mxu0
        %v3547 = vadd.f32 0.0, %v3546
        %v3548 = vpop.f32.mrf.mxu0
        %v3549 = vadd.f32 0.0, %v3548
        %v3550 = vpop.f32.mrf.mxu0
        %v3551 = vadd.f32 0.0, %v3550
        %3552 = vmatprep.mubr.bf16.mxu0 0
        %3553 = vmatmul.mubr.bf16.gmra.mxu0 %v1161
        %v3554 = vpop.f32.mrf.mxu0
        %v3555 = vadd.f32 0.0, %v3554
        %v3556 = vpop.f32.mrf.mxu0
        %v3557 = vadd.f32 0.0, %v3556
        %v3558 = vpop.f32.mrf.mxu0
        %v3559 = vadd.f32 0.0, %v3558
        %v3560 = vpop.f32.mrf.mxu0
        %v3561 = vadd.f32 0.0, %v3560
        %3562 = vmatprep.mubr.bf16.mxu0 0
        %3563 = vmatmul.mubr.bf16.gmra.mxu0 %v1164
        %v3564 = vpop.f32.mrf.mxu0
        %v3565 = vadd.f32 0.0, %v3564
        %v3566 = vpop.f32.mrf.mxu0
        %v3567 = vadd.f32 0.0, %v3566
        %v3568 = vpop.f32.mrf.mxu0
        %v3569 = vadd.f32 0.0, %v3568
        %v3570 = vpop.f32.mrf.mxu0
        %v3571 = vadd.f32 0.0, %v3570
        %3572 = vmatprep.mubr.bf16.mxu0 0
        %3573 = vmatmul.mubr.bf16.gmra.mxu0 %v2120
        %v3574 = vpop.f32.mrf.mxu0
        %v3575 = vadd.f32 0.0, %v3574
        %v3576 = vpop.f32.mrf.mxu0
        %v3577 = vadd.f32 0.0, %v3576
        %v3578 = vpop.f32.mrf.mxu0
        %v3579 = vadd.f32 0.0, %v3578
        %v3580 = vpop.f32.mrf.mxu0
        %v3581 = vadd.f32 0.0, %v3580
        %3582 = vdwg.mxu0
        %3583 = vmatprep.subr.bf16.mxu0 0
        %3584 = vmatpush1.bf16.msra.mxu0 0
        %3585 = vmatprep.subr.bf16.mxu0 0
        %3586 = vmatpush1.bf16.msra.mxu0 0
        %3587 = vmatprep.subr.bf16.mxu0 0
        %3588 = vmatpush1.bf16.msra.mxu0 0
        %3589 = vmatprep.subr.bf16.mxu0 0
        %3590 = vmatpush1.bf16.msra.mxu0 0
        %3591 = vmatprep.subr.bf16.mxu0 0
        %3592 = vmatpush1.bf16.msra.mxu0 0
        %3593 = vmatprep.subr.bf16.mxu0 0
        %3594 = vmatpush1.bf16.msra.mxu0 0
        %3595 = vmatprep.subr.bf16.mxu0 0
        %3596 = vmatpush1.bf16.msra.mxu0 %v1893
        %3597 = vmatprep.subr.bf16.mxu0 0
        %3598 = vmatpush1.bf16.msra.mxu0 %v1876
        %3599 = vmatprep.subr.bf16.mxu0 0
        %3600 = vmatpush2.bf16.msra.mxu0 0
        %3601 = vmatprep.subr.bf16.mxu0 0
        %3602 = vmatpush2.bf16.msra.mxu0 0
        %3603 = vmatprep.subr.bf16.mxu0 0
        %3604 = vmatpush2.bf16.msra.mxu0 0
        %3605 = vmatprep.subr.bf16.mxu0 0
        %3606 = vmatpush2.bf16.msra.mxu0 0
        %3607 = vmatprep.subr.bf16.mxu0 0
        %3608 = vmatpush2.bf16.msra.mxu0 0
        %3609 = vmatprep.subr.bf16.mxu0 0
        %3610 = vmatpush2.bf16.msra.mxu0 0
        %3611 = vmatprep.subr.bf16.mxu0 0
        %3612 = vmatpush2.bf16.msra.mxu0 0
        %3613 = vmatprep.subr.bf16.mxu0 0
        %3614 = vmatpush2.bf16.msra.mxu0 0
        %3615 = vmatprep.mubr.bf16.mxu0 0
        %3616 = vmatmul.mubr.bf16.gmra.mxu0 %v1155
        %v3617 = vpop.f32.mrf.mxu0
        %v3618 = vadd.f32 0.0, %v3617
        %v3619 = vpop.f32.mrf.mxu0
        %v3620 = vpop.f32.mrf.mxu0
        %v3621 = vadd.f32 0.0, %v3620
        %v3622 = vpop.f32.mrf.mxu0
        %3623 = vmatprep.mubr.bf16.mxu0 0
        %3624 = vmatmul.mubr.bf16.gmra.mxu0 %v1158
        %v3625 = vpop.f32.mrf.mxu0
        %v3626 = vadd.f32 0.0, %v3625
        %v3627 = vpop.f32.mrf.mxu0
        %v3628 = vpop.f32.mrf.mxu0
        %v3629 = vadd.f32 0.0, %v3628
        %v3630 = vpop.f32.mrf.mxu0
        %3631 = vmatprep.mubr.bf16.mxu0 0
        %3632 = vmatmul.mubr.bf16.gmra.mxu0 %v1161
        %v3633 = vpop.f32.mrf.mxu0
        %v3634 = vadd.f32 0.0, %v3633
        %v3635 = vpop.f32.mrf.mxu0
        %v3636 = vpop.f32.mrf.mxu0
        %v3637 = vadd.f32 0.0, %v3636
        %v3638 = vpop.f32.mrf.mxu0
        %3639 = vmatprep.mubr.bf16.mxu0 0
        %3640 = vmatmul.mubr.bf16.gmra.mxu0 %v1164
        %v3641 = vpop.f32.mrf.mxu0
        %v3642 = vadd.f32 0.0, %v3641
        %v3643 = vpop.f32.mrf.mxu0
        %v3644 = vpop.f32.mrf.mxu0
        %v3645 = vadd.f32 0.0, %v3644
        %v3646 = vpop.f32.mrf.mxu0
        %3647 = vmatprep.mubr.bf16.mxu0 0
        %3648 = vmatmul.mubr.bf16.gmra.mxu0 %v2120
        %v3649 = vpop.f32.mrf.mxu0
        %v3650 = vadd.f32 0.0, %v3649
        %v3651 = vpop.f32.mrf.mxu0
        %v3652 = vpop.f32.mrf.mxu0
        %v3653 = vadd.f32 0.0, %v3652
        %v3654 = vpop.f32.mrf.mxu0
        %3655 = vdwg.mxu0
        %v3656 = vadd.f32 %v3470, %v3535
        %v3657 = vadd.f32 %v3471, %v3537
        %v3658 = vadd.f32 %v3472, %v3618
        %v3659 = vadd.f32 %v3473, %v3539
        %v3660 = vadd.f32 %v3474, %v3541
        %v3661 = vadd.f32 %v3475, %v3621
        %v3662 = vadd.f32 %v3476, %v3545
        %v3663 = vadd.f32 %v3477, %v3547
        %v3664 = vadd.f32 %v3478, %v3626
        %v3665 = vadd.f32 %v3479, %v3549
        %v3666 = vadd.f32 %v3480, %v3551
        %v3667 = vadd.f32 %v3481, %v3629
        %v3668 = vadd.f32 %v3482, %v3555
        %v3669 = vadd.f32 %v3483, %v3557
        %v3670 = vadd.f32 %v3484, %v3634
        %v3671 = vadd.f32 %v3485, %v3559
        %v3672 = vadd.f32 %v3486, %v3561
        %v3673 = vadd.f32 %v3487, %v3637
        %v3674 = vadd.f32 %v3488, %v3565
        %v3675 = vadd.f32 %v3489, %v3567
        %v3676 = vadd.f32 %v3490, %v3642
        %v3677 = vadd.f32 %v3491, %v3569
        %v3678 = vadd.f32 %v3492, %v3571
        %v3679 = vadd.f32 %v3493, %v3645
        %v3680 = vadd.f32 %v3494, %v3575
        %v3681 = vadd.f32 %v3495, %v3577
        %v3682 = vadd.f32 %v3496, %v3650
        %v3683 = vadd.f32 %v3497, %v3579
        %v3684 = vadd.f32 %v3498, %v3581
        %v3685 = vadd.f32 %v3499, %v3653
        %3686 = vmatprep.subr.bf16.mxu0 0
        %3687 = vmatpush1.bf16.msra.mxu0 0
        %3688 = vmatprep.subr.bf16.mxu0 0
        %3689 = vmatpush1.bf16.msra.mxu0 0
        %3690 = vmatprep.subr.bf16.mxu0 0
        %3691 = vmatpush1.bf16.msra.mxu0 0
        %3692 = vmatprep.subr.bf16.mxu0 0
        %3693 = vmatpush1.bf16.msra.mxu0 0
        %3694 = vmatprep.subr.bf16.mxu0 0
        %3695 = vmatpush1.bf16.msra.mxu0 0
        %3696 = vmatprep.subr.bf16.mxu0 0
        %3697 = vmatpush1.bf16.msra.mxu0 0
        %3698 = vmatprep.subr.bf16.mxu0 %v2126
        %3699 = vmatpush1.bf16.msra.mxu0 %v2123
        %3700 = vmatprep.subr.bf16.mxu0 %v2111
        %3701 = vmatpush1.bf16.msra.mxu0 %v2110
        %3702 = vmatprep.subr.bf16.mxu0 0
        %3703 = vmatpush2.bf16.msra.mxu0 0
        %3704 = vmatprep.subr.bf16.mxu0 0
        %3705 = vmatpush2.bf16.msra.mxu0 0
        %3706 = vmatprep.subr.bf16.mxu0 0
        %3707 = vmatpush2.bf16.msra.mxu0 0
        %3708 = vmatprep.subr.bf16.mxu0 0
        %3709 = vmatpush2.bf16.msra.mxu0 0
        %3710 = vmatprep.subr.bf16.mxu0 0
        %3711 = vmatpush2.bf16.msra.mxu0 0
        %3712 = vmatprep.subr.bf16.mxu0 0
        %3713 = vmatpush2.bf16.msra.mxu0 0
        %3714 = vmatprep.subr.bf16.mxu0 0
        %3715 = vmatpush2.bf16.msra.mxu0 0
        %3716 = vmatprep.subr.bf16.mxu0 0
        %3717 = vmatpush2.bf16.msra.mxu0 0
        %3718 = vmatprep.mubr.bf16.mxu0 0
        %3719 = vmatmul.mubr.bf16.gmra.mxu0 %v1403
        %v3720 = vpop.f32.mrf.mxu0
        %v3721 = vadd.f32 0.0, %v3720
        %v3722 = vpop.f32.mrf.mxu0
        %v3723 = vadd.f32 0.0, %v3722
        %v3724 = vpop.f32.mrf.mxu0
        %v3725 = vadd.f32 0.0, %v3724
        %v3726 = vpop.f32.mrf.mxu0
        %v3727 = vadd.f32 0.0, %v3726
        %3728 = vmatprep.mubr.bf16.mxu0 0
        %3729 = vmatmul.mubr.bf16.gmra.mxu0 %v1406
        %v3730 = vpop.f32.mrf.mxu0
        %v3731 = vadd.f32 0.0, %v3730
        %v3732 = vpop.f32.mrf.mxu0
        %v3733 = vadd.f32 0.0, %v3732
        %v3734 = vpop.f32.mrf.mxu0
        %v3735 = vadd.f32 0.0, %v3734
        %v3736 = vpop.f32.mrf.mxu0
        %v3737 = vadd.f32 0.0, %v3736
        %3738 = vmatprep.mubr.bf16.mxu0 0
        %3739 = vmatmul.mubr.bf16.gmra.mxu0 %v1409
        %v3740 = vpop.f32.mrf.mxu0
        %v3741 = vadd.f32 0.0, %v3740
        %v3742 = vpop.f32.mrf.mxu0
        %v3743 = vadd.f32 0.0, %v3742
        %v3744 = vpop.f32.mrf.mxu0
        %v3745 = vadd.f32 0.0, %v3744
        %v3746 = vpop.f32.mrf.mxu0
        %v3747 = vadd.f32 0.0, %v3746
        %3748 = vmatprep.mubr.bf16.mxu0 0
        %3749 = vmatmul.mubr.bf16.gmra.mxu0 %v1412
        %v3750 = vpop.f32.mrf.mxu0
        %v3751 = vadd.f32 0.0, %v3750
        %v3752 = vpop.f32.mrf.mxu0
        %v3753 = vadd.f32 0.0, %v3752
        %v3754 = vpop.f32.mrf.mxu0
        %v3755 = vadd.f32 0.0, %v3754
        %v3756 = vpop.f32.mrf.mxu0
        %v3757 = vadd.f32 0.0, %v3756
        %3758 = vmatprep.mubr.bf16.mxu0 0
        %3759 = vmatmul.mubr.bf16.gmra.mxu0 %v2356
        %v3760 = vpop.f32.mrf.mxu0
        %v3761 = vadd.f32 0.0, %v3760
        %v3762 = vpop.f32.mrf.mxu0
        %v3763 = vadd.f32 0.0, %v3762
        %v3764 = vpop.f32.mrf.mxu0
        %v3765 = vadd.f32 0.0, %v3764
        %v3766 = vpop.f32.mrf.mxu0
        %v3767 = vadd.f32 0.0, %v3766
        %3768 = vdwg.mxu0
        %3769 = vmatprep.subr.bf16.mxu0 0
        %3770 = vmatpush1.bf16.msra.mxu0 0
        %3771 = vmatprep.subr.bf16.mxu0 0
        %3772 = vmatpush1.bf16.msra.mxu0 0
        %3773 = vmatprep.subr.bf16.mxu0 0
        %3774 = vmatpush1.bf16.msra.mxu0 0
        %3775 = vmatprep.subr.bf16.mxu0 0
        %3776 = vmatpush1.bf16.msra.mxu0 0
        %3777 = vmatprep.subr.bf16.mxu0 0
        %3778 = vmatpush1.bf16.msra.mxu0 0
        %3779 = vmatprep.subr.bf16.mxu0 0
        %3780 = vmatpush1.bf16.msra.mxu0 0
        %3781 = vmatprep.subr.bf16.mxu0 0
        %3782 = vmatpush1.bf16.msra.mxu0 %v2129
        %3783 = vmatprep.subr.bf16.mxu0 0
        %3784 = vmatpush1.bf16.msra.mxu0 %v2112
        %3785 = vmatprep.subr.bf16.mxu0 0
        %3786 = vmatpush2.bf16.msra.mxu0 0
        %3787 = vmatprep.subr.bf16.mxu0 0
        %3788 = vmatpush2.bf16.msra.mxu0 0
        %3789 = vmatprep.subr.bf16.mxu0 0
        %3790 = vmatpush2.bf16.msra.mxu0 0
        %3791 = vmatprep.subr.bf16.mxu0 0
        %3792 = vmatpush2.bf16.msra.mxu0 0
        %3793 = vmatprep.subr.bf16.mxu0 0
        %3794 = vmatpush2.bf16.msra.mxu0 0
        %3795 = vmatprep.subr.bf16.mxu0 0
        %3796 = vmatpush2.bf16.msra.mxu0 0
        %3797 = vmatprep.subr.bf16.mxu0 0
        %3798 = vmatpush2.bf16.msra.mxu0 0
        %3799 = vmatprep.subr.bf16.mxu0 0
        %3800 = vmatpush2.bf16.msra.mxu0 0
        %3801 = vmatprep.mubr.bf16.mxu0 0
        %3802 = vmatmul.mubr.bf16.gmra.mxu0 %v1403
        %v3803 = vpop.f32.mrf.mxu0
        %v3804 = vadd.f32 0.0, %v3803
        %v3805 = vpop.f32.mrf.mxu0
        %v3806 = vpop.f32.mrf.mxu0
        %v3807 = vadd.f32 0.0, %v3806
        %v3808 = vpop.f32.mrf.mxu0
        %3809 = vmatprep.mubr.bf16.mxu0 0
        %3810 = vmatmul.mubr.bf16.gmra.mxu0 %v1406
        %v3811 = vpop.f32.mrf.mxu0
        %v3812 = vadd.f32 0.0, %v3811
        %v3813 = vpop.f32.mrf.mxu0
        %v3814 = vpop.f32.mrf.mxu0
        %v3815 = vadd.f32 0.0, %v3814
        %v3816 = vpop.f32.mrf.mxu0
        %3817 = vmatprep.mubr.bf16.mxu0 0
        %3818 = vmatmul.mubr.bf16.gmra.mxu0 %v1409
        %v3819 = vpop.f32.mrf.mxu0
        %v3820 = vadd.f32 0.0, %v3819
        %v3821 = vpop.f32.mrf.mxu0
        %v3822 = vpop.f32.mrf.mxu0
        %v3823 = vadd.f32 0.0, %v3822
        %v3824 = vpop.f32.mrf.mxu0
        %3825 = vmatprep.mubr.bf16.mxu0 0
        %3826 = vmatmul.mubr.bf16.gmra.mxu0 %v1412
        %v3827 = vpop.f32.mrf.mxu0
        %v3828 = vadd.f32 0.0, %v3827
        %v3829 = vpop.f32.mrf.mxu0
        %v3830 = vpop.f32.mrf.mxu0
        %v3831 = vadd.f32 0.0, %v3830
        %v3832 = vpop.f32.mrf.mxu0
        %3833 = vmatprep.mubr.bf16.mxu0 0
        %3834 = vmatmul.mubr.bf16.gmra.mxu0 %v2356
        %v3835 = vpop.f32.mrf.mxu0
        %v3836 = vadd.f32 0.0, %v3835
        %v3837 = vpop.f32.mrf.mxu0
        %v3838 = vpop.f32.mrf.mxu0
        %v3839 = vadd.f32 0.0, %v3838
        %v3840 = vpop.f32.mrf.mxu0
        %3841 = vdwg.mxu0
        %v3842 = vadd.f32 %v3656, %v3721
        %v3843 = vadd.f32 %v3657, %v3723
        %v3844 = vadd.f32 %v3658, %v3804
        %v3845 = vadd.f32 %v3659, %v3725
        %v3846 = vadd.f32 %v3660, %v3727
        %v3847 = vadd.f32 %v3661, %v3807
        %v3848 = vadd.f32 %v3662, %v3731
        %v3849 = vadd.f32 %v3663, %v3733
        %v3850 = vadd.f32 %v3664, %v3812
        %v3851 = vadd.f32 %v3665, %v3735
        %v3852 = vadd.f32 %v3666, %v3737
        %v3853 = vadd.f32 %v3667, %v3815
        %v3854 = vadd.f32 %v3668, %v3741
        %v3855 = vadd.f32 %v3669, %v3743
        %v3856 = vadd.f32 %v3670, %v3820
        %v3857 = vadd.f32 %v3671, %v3745
        %v3858 = vadd.f32 %v3672, %v3747
        %v3859 = vadd.f32 %v3673, %v3823
        %v3860 = vadd.f32 %v3674, %v3751
        %v3861 = vadd.f32 %v3675, %v3753
        %v3862 = vadd.f32 %v3676, %v3828
        %v3863 = vadd.f32 %v3677, %v3755
        %v3864 = vadd.f32 %v3678, %v3757
        %v3865 = vadd.f32 %v3679, %v3831
        %v3866 = vadd.f32 %v3680, %v3761
        %v3867 = vadd.f32 %v3681, %v3763
        %v3868 = vadd.f32 %v3682, %v3836
        %v3869 = vadd.f32 %v3683, %v3765
        %v3870 = vadd.f32 %v3684, %v3767
        %v3871 = vadd.f32 %v3685, %v3839
        %v3873 = vsel %vm722, %v612, 0
        %3875 = vmatprep.subr.bf16.mxu0 0
        %3876 = vmatpush1.bf16.msra.mxu0 0
        %3877 = vmatprep.subr.bf16.mxu0 0
        %3878 = vmatpush1.bf16.msra.mxu0 0
        %3879 = vmatprep.subr.bf16.mxu0 0
        %3880 = vmatpush1.bf16.msra.mxu0 0
        %3881 = vmatprep.subr.bf16.mxu0 0
        %3882 = vmatpush1.bf16.msra.mxu0 0
        %3883 = vmatprep.subr.bf16.mxu0 0
        %3884 = vmatpush1.bf16.msra.mxu0 0
        %3885 = vmatprep.subr.bf16.mxu0 0
        %3886 = vmatpush1.bf16.msra.mxu0 0
        %3887 = vmatprep.subr.bf16.mxu0 %v2362
        %3888 = vmatpush1.bf16.msra.mxu0 %v2359
        %3889 = vmatprep.subr.bf16.mxu0 %v2347
        %3890 = vmatpush1.bf16.msra.mxu0 %v2346
        %3891 = vmatprep.subr.bf16.mxu0 0
        %3892 = vmatpush2.bf16.msra.mxu0 0
        %3893 = vmatprep.subr.bf16.mxu0 0
        %3894 = vmatpush2.bf16.msra.mxu0 0
        %3895 = vmatprep.subr.bf16.mxu0 0
        %3896 = vmatpush2.bf16.msra.mxu0 0
        %3897 = vmatprep.subr.bf16.mxu0 0
        %3898 = vmatpush2.bf16.msra.mxu0 0
        %3899 = vmatprep.subr.bf16.mxu0 0
        %3900 = vmatpush2.bf16.msra.mxu0 0
        %3901 = vmatprep.subr.bf16.mxu0 0
        %3902 = vmatpush2.bf16.msra.mxu0 0
        %3903 = vmatprep.subr.bf16.mxu0 0
        %3904 = vmatpush2.bf16.msra.mxu0 0
        %3905 = vmatprep.subr.bf16.mxu0 0
        %3906 = vmatpush2.bf16.msra.mxu0 0
        %3907 = vmatprep.mubr.bf16.mxu0 0
        %3908 = vmatmul.mubr.bf16.gmra.mxu0 %v940
        %v3909 = vpop.f32.mrf.mxu0
        %v3910 = vadd.f32 0.0, %v3909
        %v3911 = vpop.f32.mrf.mxu0
        %v3912 = vadd.f32 0.0, %v3911
        %v3913 = vpop.f32.mrf.mxu0
        %v3914 = vadd.f32 0.0, %v3913
        %v3915 = vpop.f32.mrf.mxu0
        %v3916 = vadd.f32 0.0, %v3915
        %3917 = vmatprep.mubr.bf16.mxu0 0
        %3918 = vmatmul.mubr.bf16.gmra.mxu0 %v943
        %v3919 = vpop.f32.mrf.mxu0
        %v3920 = vadd.f32 0.0, %v3919
        %v3921 = vpop.f32.mrf.mxu0
        %v3922 = vadd.f32 0.0, %v3921
        %v3923 = vpop.f32.mrf.mxu0
        %v3924 = vadd.f32 0.0, %v3923
        %v3925 = vpop.f32.mrf.mxu0
        %v3926 = vadd.f32 0.0, %v3925
        %3927 = vmatprep.mubr.bf16.mxu0 0
        %3928 = vmatmul.mubr.bf16.gmra.mxu0 %v946
        %v3929 = vpop.f32.mrf.mxu0
        %v3930 = vadd.f32 0.0, %v3929
        %v3931 = vpop.f32.mrf.mxu0
        %v3932 = vadd.f32 0.0, %v3931
        %v3933 = vpop.f32.mrf.mxu0
        %v3934 = vadd.f32 0.0, %v3933
        %v3935 = vpop.f32.mrf.mxu0
        %v3936 = vadd.f32 0.0, %v3935
        %3937 = vmatprep.mubr.bf16.mxu0 0
        %3938 = vmatmul.mubr.bf16.gmra.mxu0 %v1648
        %v3939 = vpop.f32.mrf.mxu0
        %v3940 = vadd.f32 0.0, %v3939
        %v3941 = vpop.f32.mrf.mxu0
        %v3942 = vadd.f32 0.0, %v3941
        %v3943 = vpop.f32.mrf.mxu0
        %v3944 = vadd.f32 0.0, %v3943
        %v3945 = vpop.f32.mrf.mxu0
        %v3946 = vadd.f32 0.0, %v3945
        %3947 = vmatprep.mubr.bf16.mxu0 0
        %3948 = vmatmul.mubr.bf16.gmra.mxu0 %v3873
        %v3949 = vpop.f32.mrf.mxu0
        %v3950 = vadd.f32 0.0, %v3949
        %v3951 = vpop.f32.mrf.mxu0
        %v3952 = vadd.f32 0.0, %v3951
        %v3953 = vpop.f32.mrf.mxu0
        %v3954 = vadd.f32 0.0, %v3953
        %v3955 = vpop.f32.mrf.mxu0
        %v3956 = vadd.f32 0.0, %v3955
        %3957 = vdwg.mxu0
        %3958 = vmatprep.subr.bf16.mxu0 0
        %3959 = vmatpush1.bf16.msra.mxu0 0
        %3960 = vmatprep.subr.bf16.mxu0 0
        %3961 = vmatpush1.bf16.msra.mxu0 0
        %3962 = vmatprep.subr.bf16.mxu0 0
        %3963 = vmatpush1.bf16.msra.mxu0 0
        %3964 = vmatprep.subr.bf16.mxu0 0
        %3965 = vmatpush1.bf16.msra.mxu0 0
        %3966 = vmatprep.subr.bf16.mxu0 0
        %3967 = vmatpush1.bf16.msra.mxu0 0
        %3968 = vmatprep.subr.bf16.mxu0 0
        %3969 = vmatpush1.bf16.msra.mxu0 0
        %3970 = vmatprep.subr.bf16.mxu0 0
        %3971 = vmatpush1.bf16.msra.mxu0 %v2365
        %3972 = vmatprep.subr.bf16.mxu0 0
        %3973 = vmatpush1.bf16.msra.mxu0 %v2348
        %3974 = vmatprep.subr.bf16.mxu0 0
        %3975 = vmatpush2.bf16.msra.mxu0 0
        %3976 = vmatprep.subr.bf16.mxu0 0
        %3977 = vmatpush2.bf16.msra.mxu0 0
        %3978 = vmatprep.subr.bf16.mxu0 0
        %3979 = vmatpush2.bf16.msra.mxu0 0
        %3980 = vmatprep.subr.bf16.mxu0 0
        %3981 = vmatpush2.bf16.msra.mxu0 0
        %3982 = vmatprep.subr.bf16.mxu0 0
        %3983 = vmatpush2.bf16.msra.mxu0 0
        %3984 = vmatprep.subr.bf16.mxu0 0
        %3985 = vmatpush2.bf16.msra.mxu0 0
        %3986 = vmatprep.subr.bf16.mxu0 0
        %3987 = vmatpush2.bf16.msra.mxu0 0
        %3988 = vmatprep.subr.bf16.mxu0 0
        %3989 = vmatpush2.bf16.msra.mxu0 0
        %3990 = vmatprep.mubr.bf16.mxu0 0
        %3991 = vmatmul.mubr.bf16.gmra.mxu0 %v940
        %v3992 = vpop.f32.mrf.mxu0
        %v3993 = vadd.f32 0.0, %v3992
        %v3994 = vpop.f32.mrf.mxu0
        %v3995 = vpop.f32.mrf.mxu0
        %v3996 = vadd.f32 0.0, %v3995
        %v3997 = vpop.f32.mrf.mxu0
        %3998 = vmatprep.mubr.bf16.mxu0 0
        %3999 = vmatmul.mubr.bf16.gmra.mxu0 %v943
        %v4000 = vpop.f32.mrf.mxu0
        %v4001 = vadd.f32 0.0, %v4000
        %v4002 = vpop.f32.mrf.mxu0
        %v4003 = vpop.f32.mrf.mxu0
        %v4004 = vadd.f32 0.0, %v4003
        %v4005 = vpop.f32.mrf.mxu0
        %4006 = vmatprep.mubr.bf16.mxu0 0
        %4007 = vmatmul.mubr.bf16.gmra.mxu0 %v946
        %v4008 = vpop.f32.mrf.mxu0
        %v4009 = vadd.f32 0.0, %v4008
        %v4010 = vpop.f32.mrf.mxu0
        %v4011 = vpop.f32.mrf.mxu0
        %v4012 = vadd.f32 0.0, %v4011
        %v4013 = vpop.f32.mrf.mxu0
        %4014 = vmatprep.mubr.bf16.mxu0 0
        %4015 = vmatmul.mubr.bf16.gmra.mxu0 %v1648
        %v4016 = vpop.f32.mrf.mxu0
        %v4017 = vadd.f32 0.0, %v4016
        %v4018 = vpop.f32.mrf.mxu0
        %v4019 = vpop.f32.mrf.mxu0
        %v4020 = vadd.f32 0.0, %v4019
        %v4021 = vpop.f32.mrf.mxu0
        %4022 = vmatprep.mubr.bf16.mxu0 0
        %4023 = vmatmul.mubr.bf16.gmra.mxu0 %v3873
        %v4024 = vpop.f32.mrf.mxu0
        %v4025 = vadd.f32 0.0, %v4024
        %v4026 = vpop.f32.mrf.mxu0
        %v4027 = vpop.f32.mrf.mxu0
        %v4028 = vadd.f32 0.0, %v4027
        %v4029 = vpop.f32.mrf.mxu0
        %4030 = vdwg.mxu0
        %v4031 = vadd.f32 %v3842, %v3910
        %v4032 = vadd.f32 %v3843, %v3912
        %v4033 = vadd.f32 %v3844, %v3993
        %v4034 = vadd.f32 %v3845, %v3914
        %v4035 = vadd.f32 %v3846, %v3916
        %v4036 = vadd.f32 %v3847, %v3996
        %v4037 = vadd.f32 %v3848, %v3920
        %v4038 = vadd.f32 %v3849, %v3922
        %v4039 = vadd.f32 %v3850, %v4001
        %v4040 = vadd.f32 %v3851, %v3924
        %v4041 = vadd.f32 %v3852, %v3926
        %v4042 = vadd.f32 %v3853, %v4004
        %v4043 = vadd.f32 %v3854, %v3930
        %v4044 = vadd.f32 %v3855, %v3932
        %v4045 = vadd.f32 %v3856, %v4009
        %v4046 = vadd.f32 %v3857, %v3934
        %v4047 = vadd.f32 %v3858, %v3936
        %v4048 = vadd.f32 %v3859, %v4012
        %v4049 = vadd.f32 %v3860, %v3940
        %v4050 = vadd.f32 %v3861, %v3942
        %v4051 = vadd.f32 %v3862, %v4017
        %v4052 = vadd.f32 %v3863, %v3944
        %v4053 = vadd.f32 %v3864, %v3946
        %v4054 = vadd.f32 %v3865, %v4020
        %v4055 = vadd.f32 %v3866, %v3950
        %v4056 = vadd.f32 %v3867, %v3952
        %v4057 = vadd.f32 %v3868, %v4025
        %v4058 = vadd.f32 %v3869, %v3954
        %v4059 = vadd.f32 %v3870, %v3956
        %v4060 = vadd.f32 %v3871, %v4028
        %v4061 = vadd.f32 %v4031, %v2558
        %v4062 = vadd.f32 %v4032, %v2562
        %v4063 = vadd.f32 %v4033, %v2566
        %v4064 = vadd.f32 %v4034, %v2558
        %v4065 = vadd.f32 %v4035, %v2562
        %v4066 = vadd.f32 %v4036, %v2566
        %v4067 = vadd.f32 %v4037, %v2558
        %v4068 = vadd.f32 %v4038, %v2562
        %v4069 = vadd.f32 %v4039, %v2566
        %v4070 = vadd.f32 %v4040, %v2558
        %v4071 = vadd.f32 %v4041, %v2562
        %v4072 = vadd.f32 %v4042, %v2566
        %v4073 = vadd.f32 %v4043, %v2558
        %v4074 = vadd.f32 %v4044, %v2562
        %v4075 = vadd.f32 %v4045, %v2566
        %v4076 = vadd.f32 %v4046, %v2558
        %v4077 = vadd.f32 %v4047, %v2562
        %v4078 = vadd.f32 %v4048, %v2566
        %v4079 = vadd.f32 %v4049, %v2558
        %v4080 = vadd.f32 %v4050, %v2562
        %v4081 = vadd.f32 %v4051, %v2566
        %v4082 = vadd.f32 %v4052, %v2558
        %v4083 = vadd.f32 %v4053, %v2562
        %v4084 = vadd.f32 %v4054, %v2566
        %v4085 = vadd.f32 %v4055, %v2558
        %v4086 = vadd.f32 %v4056, %v2562
        %v4087 = vadd.f32 %v4057, %v2566
        %v4088 = vadd.f32 %v4058, %v2558
        %v4089 = vadd.f32 %v4059, %v2562
        %v4090 = vadd.f32 %v4060, %v2566
        %v4091 = vmax.f32 %v4061, 0.0
        %v4092 = vmax.f32 %v4062, 0.0
        %v4093 = vmax.f32 %v4063, 0.0
        %v4094 = vmax.f32 %v4064, 0.0
        %v4095 = vmax.f32 %v4065, 0.0
        %v4096 = vmax.f32 %v4066, 0.0
        %v4097 = vmax.f32 %v4067, 0.0
        %v4098 = vmax.f32 %v4068, 0.0
        %v4099 = vmax.f32 %v4069, 0.0
        %v4100 = vmax.f32 %v4070, 0.0
        %v4101 = vmax.f32 %v4071, 0.0
        %v4102 = vmax.f32 %v4072, 0.0
        %v4103 = vmax.f32 %v4073, 0.0
        %v4104 = vmax.f32 %v4074, 0.0
        %v4105 = vmax.f32 %v4075, 0.0
        %v4106 = vmax.f32 %v4076, 0.0
        %v4107 = vmax.f32 %v4077, 0.0
        %v4108 = vmax.f32 %v4078, 0.0
        %v4109 = vmax.f32 %v4079, 0.0
        %v4110 = vmax.f32 %v4080, 0.0
        %v4111 = vmax.f32 %v4081, 0.0
        %v4112 = vmax.f32 %v4082, 0.0
        %v4113 = vmax.f32 %v4083, 0.0
        %v4114 = vmax.f32 %v4084, 0.0
        %v4115 = vmax.f32 %v4085, 0.0
        %v4116 = vmax.f32 %v4086, 0.0
        %v4117 = vmax.f32 %v4087, 0.0
        %v4118 = vmax.f32 %v4088, 0.0
        %v4119 = vmax.f32 %v4089, 0.0
        %v4120 = vmax.f32 %v4090, 0.0
        %v4121 = vmax.f32 %v2600, %v4091
        %v4122 = vmax.f32 %v2601, %v4092
        %v4123 = vmax.f32 %v2602, %v4093
        %v4124 = vmax.f32 %v2603, %v4094
        %v4125 = vmax.f32 %v2604, %v4095
        %v4126 = vmax.f32 %v2605, %v4096
        %v4127 = vmax.f32 %v2606, %v4097
        %v4128 = vmax.f32 %v2607, %v4098
        %v4129 = vmax.f32 %v2608, %v4099
        %v4130 = vmax.f32 %v2609, %v4100
        %v4131 = vmax.f32 %v2610, %v4101
        %v4132 = vmax.f32 %v2611, %v4102
        %v4133 = vmax.f32 %v2612, %v4103
        %v4134 = vmax.f32 %v2613, %v4104
        %v4135 = vmax.f32 %v2614, %v4105
        %v4136 = vmax.f32 %v2615, %v4106
        %v4137 = vmax.f32 %v2616, %v4107
        %v4138 = vmax.f32 %v2617, %v4108
        %v4139 = vmax.f32 %v2618, %v4109
        %v4140 = vmax.f32 %v2619, %v4110
        %v4141 = vmax.f32 %v2620, %v4111
        %v4142 = vmax.f32 %v2621, %v4112
        %v4143 = vmax.f32 %v2622, %v4113
        %v4144 = vmax.f32 %v2623, %v4114
        %v4145 = vmax.f32 %v2624, %v4115
        %v4146 = vmax.f32 %v2625, %v4116
        %v4147 = vmax.f32 %v2626, %v4117
        %v4148 = vmax.f32 %v2627, %v4118
        %v4149 = vmax.f32 %v2628, %v4119
        %v4150 = vmax.f32 %v2629, %v4120
        %4181 = vrot.lane.b32.xlu0 %v4121, 112
        %v4182 = vpop.permute.xlu0 %4181
        %4183 = vrot.lane.b32.xlu0 %v4122, 112
        %v4184 = vpop.permute.xlu0 %4183
        %4185 = vrot.lane.b32.xlu0 %v4123, 112
        %v4186 = vpop.permute.xlu0 %4185
        %4187 = vrot.lane.b32.xlu0 %v4124, 112
        %v4188 = vpop.permute.xlu0 %4187
        %4189 = vrot.lane.b32.xlu0 %v4125, 112
        %v4190 = vpop.permute.xlu0 %4189
        %4191 = vrot.lane.b32.xlu0 %v4126, 112
        %v4192 = vpop.permute.xlu0 %4191
        %4193 = vrot.lane.b32.xlu0 %v4127, 112
        %v4194 = vpop.permute.xlu0 %4193
        %4195 = vrot.lane.b32.xlu0 %v4128, 112
        %v4196 = vpop.permute.xlu0 %4195
        %4197 = vrot.lane.b32.xlu0 %v4129, 112
        %v4198 = vpop.permute.xlu0 %4197
        %4199 = vrot.lane.b32.xlu0 %v4130, 112
        %v4200 = vpop.permute.xlu0 %4199
        %4201 = vrot.lane.b32.xlu0 %v4131, 112
        %v4202 = vpop.permute.xlu0 %4201
        %4203 = vrot.lane.b32.xlu0 %v4132, 112
        %v4204 = vpop.permute.xlu0 %4203
        %4205 = vrot.lane.b32.xlu0 %v4133, 112
        %v4206 = vpop.permute.xlu0 %4205
        %4207 = vrot.lane.b32.xlu0 %v4134, 112
        %v4208 = vpop.permute.xlu0 %4207
        %4209 = vrot.lane.b32.xlu0 %v4135, 112
        %v4210 = vpop.permute.xlu0 %4209
        %4211 = vrot.lane.b32.xlu0 %v4136, 112
        %v4212 = vpop.permute.xlu0 %4211
        %4213 = vrot.lane.b32.xlu0 %v4137, 112
        %v4214 = vpop.permute.xlu0 %4213
        %4215 = vrot.lane.b32.xlu0 %v4138, 112
        %v4216 = vpop.permute.xlu0 %4215
        %4217 = vrot.lane.b32.xlu0 %v4139, 112
        %v4218 = vpop.permute.xlu0 %4217
        %4219 = vrot.lane.b32.xlu0 %v4140, 112
        %v4220 = vpop.permute.xlu0 %4219
        %4221 = vrot.lane.b32.xlu0 %v4141, 112
        %v4222 = vpop.permute.xlu0 %4221
        %4223 = vrot.lane.b32.xlu0 %v4142, 112
        %v4224 = vpop.permute.xlu0 %4223
        %4225 = vrot.lane.b32.xlu0 %v4143, 112
        %v4226 = vpop.permute.xlu0 %4225
        %4227 = vrot.lane.b32.xlu0 %v4144, 112
        %v4228 = vpop.permute.xlu0 %4227
        %4229 = vrot.lane.b32.xlu0 %v4145, 112
        %v4230 = vpop.permute.xlu0 %4229
        %4231 = vrot.lane.b32.xlu0 %v4146, 112
        %v4232 = vpop.permute.xlu0 %4231
        %4233 = vrot.lane.b32.xlu0 %v4147, 112
        %v4234 = vpop.permute.xlu0 %4233
        %4235 = vrot.lane.b32.xlu0 %v4148, 112
        %v4236 = vpop.permute.xlu0 %4235
        %4237 = vrot.lane.b32.xlu0 %v4149, 112
        %v4238 = vpop.permute.xlu0 %4237
        %4239 = vrot.lane.b32.xlu0 %v4150, 112
        %v4240 = vpop.permute.xlu0 %4239
        %vm4241 = vcmask 916480
        %v4242 = vsel %vm4241, %v4182, %v4184
        %v4243 = vsel %vm4241, %v4184, %v4186
        %v4244 = vsel %vm4241, %v4188, %v4190
        %v4245 = vsel %vm4241, %v4190, %v4192
        %v4246 = vsel %vm4241, %v4194, %v4196
        %v4247 = vsel %vm4241, %v4196, %v4198
        %v4248 = vsel %vm4241, %v4200, %v4202
        %v4249 = vsel %vm4241, %v4202, %v4204
        %v4250 = vsel %vm4241, %v4206, %v4208
        %v4251 = vsel %vm4241, %v4208, %v4210
        %v4252 = vsel %vm4241, %v4212, %v4214
        %v4253 = vsel %vm4241, %v4214, %v4216
        %v4254 = vsel %vm4241, %v4218, %v4220
        %v4255 = vsel %vm4241, %v4220, %v4222
        %v4256 = vsel %vm4241, %v4224, %v4226
        %v4257 = vsel %vm4241, %v4226, %v4228
        %v4258 = vsel %vm4241, %v4230, %v4232
        %v4259 = vsel %vm4241, %v4232, %v4234
        %v4260 = vsel %vm4241, %v4236, %v4238
        %v4261 = vsel %vm4241, %v4238, %v4240
        %v4292 = vmax.f32 %v4121, %v4242
        %v4293 = vmax.f32 %v4122, %v4243
        %v4294 = vmax.f32 %v4123, %v4186
        %v4295 = vmax.f32 %v4124, %v4244
        %v4296 = vmax.f32 %v4125, %v4245
        %v4297 = vmax.f32 %v4126, %v4192
        %v4298 = vmax.f32 %v4127, %v4246
        %v4299 = vmax.f32 %v4128, %v4247
        %v4300 = vmax.f32 %v4129, %v4198
        %v4301 = vmax.f32 %v4130, %v4248
        %v4302 = vmax.f32 %v4131, %v4249
        %v4303 = vmax.f32 %v4132, %v4204
        %v4304 = vmax.f32 %v4133, %v4250
        %v4305 = vmax.f32 %v4134, %v4251
        %v4306 = vmax.f32 %v4135, %v4210
        %v4307 = vmax.f32 %v4136, %v4252
        %v4308 = vmax.f32 %v4137, %v4253
        %v4309 = vmax.f32 %v4138, %v4216
        %v4310 = vmax.f32 %v4139, %v4254
        %v4311 = vmax.f32 %v4140, %v4255
        %v4312 = vmax.f32 %v4141, %v4222
        %v4313 = vmax.f32 %v4142, %v4256
        %v4314 = vmax.f32 %v4143, %v4257
        %v4315 = vmax.f32 %v4144, %v4228
        %v4316 = vmax.f32 %v4145, %v4258
        %v4317 = vmax.f32 %v4146, %v4259
        %v4318 = vmax.f32 %v4147, %v4234
        %v4319 = vmax.f32 %v4148, %v4260
        %v4320 = vmax.f32 %v4149, %v4261
        %v4321 = vmax.f32 %v4150, %v4240
        %v4322 = vpack.c.bf16 %v4295, %v4292
        %v4323 = vpack.c.bf16 %v4296, %v4293
        %v4324 = vpack.c.bf16 %v4297, %v4294
        %v4325 = vpack.c.bf16 %v4301, %v4298
        %v4326 = vpack.c.bf16 %v4302, %v4299
        %v4327 = vpack.c.bf16 %v4303, %v4300
        %v4328 = vpack.c.bf16 %v4307, %v4304
        %v4329 = vpack.c.bf16 %v4308, %v4305
        %v4330 = vpack.c.bf16 %v4309, %v4306
        %v4331 = vpack.c.bf16 %v4313, %v4310
        %v4332 = vpack.c.bf16 %v4314, %v4311
        %v4333 = vpack.c.bf16 %v4315, %v4312
        %v4334 = vpack.c.bf16 %v4319, %v4316
        %v4335 = vpack.c.bf16 %v4320, %v4317
        %v4336 = vpack.c.bf16 %v4321, %v4318
        %4337 = vmatprep.subr.bf16.mxu0 0
        %4338 = vmatpush1.bf16.msra.mxu0 0
        %4339 = vmatprep.subr.bf16.mxu0 0
        %4340 = vmatpush1.bf16.msra.mxu0 0
        %4341 = vmatprep.subr.bf16.mxu0 0
        %4342 = vmatpush1.bf16.msra.mxu0 0
        %4343 = vmatprep.subr.bf16.mxu0 0
        %4344 = vmatpush1.bf16.msra.mxu0 0
        %4345 = vmatprep.subr.bf16.mxu0 0
        %4346 = vmatpush1.bf16.msra.mxu0 0
        %4347 = vmatprep.subr.bf16.mxu0 0
        %4348 = vmatpush1.bf16.msra.mxu0 0
        %4349 = vmatprep.subr.bf16.mxu0 %v743
        %4350 = vmatpush1.bf16.msra.mxu0 %v740
        %4351 = vmatprep.subr.bf16.mxu0 %v714
        %4352 = vmatpush1.bf16.msra.mxu0 %v713
        %4353 = vmatprep.subr.bf16.mxu0 0
        %4354 = vmatpush2.bf16.msra.mxu0 0
        %4355 = vmatprep.subr.bf16.mxu0 0
        %4356 = vmatpush2.bf16.msra.mxu0 0
        %4357 = vmatprep.subr.bf16.mxu0 0
        %4358 = vmatpush2.bf16.msra.mxu0 0
        %4359 = vmatprep.subr.bf16.mxu0 0
        %4360 = vmatpush2.bf16.msra.mxu0 0
        %4361 = vmatprep.subr.bf16.mxu0 0
        %4362 = vmatpush2.bf16.msra.mxu0 0
        %4363 = vmatprep.subr.bf16.mxu0 0
        %4364 = vmatpush2.bf16.msra.mxu0 0
        %4365 = vmatprep.subr.bf16.mxu0 0
        %4366 = vmatpush2.bf16.msra.mxu0 0
        %4367 = vmatprep.subr.bf16.mxu0 0
        %4368 = vmatpush2.bf16.msra.mxu0 0
        %4369 = vmatprep.mubr.bf16.mxu0 0
        %4370 = vmatmul.mubr.bf16.gmra.mxu0 %v1400
        %v4371 = vpop.f32.mrf.mxu0
        %v4372 = vadd.f32 0.0, %v4371
        %v4373 = vpop.f32.mrf.mxu0
        %v4374 = vadd.f32 0.0, %v4373
        %v4375 = vpop.f32.mrf.mxu0
        %v4376 = vadd.f32 0.0, %v4375
        %v4377 = vpop.f32.mrf.mxu0
        %v4378 = vadd.f32 0.0, %v4377
        %4379 = vmatprep.mubr.bf16.mxu0 0
        %4380 = vmatmul.mubr.bf16.gmra.mxu0 %v1403
        %v4381 = vpop.f32.mrf.mxu0
        %v4382 = vadd.f32 0.0, %v4381
        %v4383 = vpop.f32.mrf.mxu0
        %v4384 = vadd.f32 0.0, %v4383
        %v4385 = vpop.f32.mrf.mxu0
        %v4386 = vadd.f32 0.0, %v4385
        %v4387 = vpop.f32.mrf.mxu0
        %v4388 = vadd.f32 0.0, %v4387
        %4389 = vmatprep.mubr.bf16.mxu0 0
        %4390 = vmatmul.mubr.bf16.gmra.mxu0 %v1406
        %v4391 = vpop.f32.mrf.mxu0
        %v4392 = vadd.f32 0.0, %v4391
        %v4393 = vpop.f32.mrf.mxu0
        %v4394 = vadd.f32 0.0, %v4393
        %v4395 = vpop.f32.mrf.mxu0
        %v4396 = vadd.f32 0.0, %v4395
        %v4397 = vpop.f32.mrf.mxu0
        %v4398 = vadd.f32 0.0, %v4397
        %4399 = vmatprep.mubr.bf16.mxu0 0
        %4400 = vmatmul.mubr.bf16.gmra.mxu0 %v1409
        %v4401 = vpop.f32.mrf.mxu0
        %v4402 = vadd.f32 0.0, %v4401
        %v4403 = vpop.f32.mrf.mxu0
        %v4404 = vadd.f32 0.0, %v4403
        %v4405 = vpop.f32.mrf.mxu0
        %v4406 = vadd.f32 0.0, %v4405
        %v4407 = vpop.f32.mrf.mxu0
        %v4408 = vadd.f32 0.0, %v4407
        %4409 = vmatprep.mubr.bf16.mxu0 0
        %4410 = vmatmul.mubr.bf16.gmra.mxu0 %v1412
        %v4411 = vpop.f32.mrf.mxu0
        %v4412 = vpop.f32.mrf.mxu0
        %v4413 = vpop.f32.mrf.mxu0
        %v4414 = vpop.f32.mrf.mxu0
        %4415 = vdwg.mxu0
        %4416 = vmatprep.subr.bf16.mxu0 0
        %4417 = vmatpush1.bf16.msra.mxu0 0
        %4418 = vmatprep.subr.bf16.mxu0 0
        %4419 = vmatpush1.bf16.msra.mxu0 0
        %4420 = vmatprep.subr.bf16.mxu0 0
        %4421 = vmatpush1.bf16.msra.mxu0 0
        %4422 = vmatprep.subr.bf16.mxu0 0
        %4423 = vmatpush1.bf16.msra.mxu0 0
        %4424 = vmatprep.subr.bf16.mxu0 0
        %4425 = vmatpush1.bf16.msra.mxu0 0
        %4426 = vmatprep.subr.bf16.mxu0 0
        %4427 = vmatpush1.bf16.msra.mxu0 0
        %4428 = vmatprep.subr.bf16.mxu0 0
        %4429 = vmatpush1.bf16.msra.mxu0 %v746
        %4430 = vmatprep.subr.bf16.mxu0 0
        %4431 = vmatpush1.bf16.msra.mxu0 %v715
        %4432 = vmatprep.subr.bf16.mxu0 0
        %4433 = vmatpush2.bf16.msra.mxu0 0
        %4434 = vmatprep.subr.bf16.mxu0 0
        %4435 = vmatpush2.bf16.msra.mxu0 0
        %4436 = vmatprep.subr.bf16.mxu0 0
        %4437 = vmatpush2.bf16.msra.mxu0 0
        %4438 = vmatprep.subr.bf16.mxu0 0
        %4439 = vmatpush2.bf16.msra.mxu0 0
        %4440 = vmatprep.subr.bf16.mxu0 0
        %4441 = vmatpush2.bf16.msra.mxu0 0
        %4442 = vmatprep.subr.bf16.mxu0 0
        %4443 = vmatpush2.bf16.msra.mxu0 0
        %4444 = vmatprep.subr.bf16.mxu0 0
        %4445 = vmatpush2.bf16.msra.mxu0 0
        %4446 = vmatprep.subr.bf16.mxu0 0
        %4447 = vmatpush2.bf16.msra.mxu0 0
        %4448 = vmatprep.mubr.bf16.mxu0 0
        %4449 = vmatmul.mubr.bf16.gmra.mxu0 %v1400
        %v4450 = vpop.f32.mrf.mxu0
        %v4451 = vadd.f32 0.0, %v4450
        %v4452 = vpop.f32.mrf.mxu0
        %v4453 = vpop.f32.mrf.mxu0
        %v4454 = vadd.f32 0.0, %v4453
        %v4455 = vpop.f32.mrf.mxu0
        %4456 = vmatprep.mubr.bf16.mxu0 0
        %4457 = vmatmul.mubr.bf16.gmra.mxu0 %v1403
        %v4458 = vpop.f32.mrf.mxu0
        %v4459 = vadd.f32 0.0, %v4458
        %v4460 = vpop.f32.mrf.mxu0
        %v4461 = vpop.f32.mrf.mxu0
        %v4462 = vadd.f32 0.0, %v4461
        %v4463 = vpop.f32.mrf.mxu0
        %4464 = vmatprep.mubr.bf16.mxu0 0
        %4465 = vmatmul.mubr.bf16.gmra.mxu0 %v1406
        %v4466 = vpop.f32.mrf.mxu0
        %v4467 = vadd.f32 0.0, %v4466
        %v4468 = vpop.f32.mrf.mxu0
        %v4469 = vpop.f32.mrf.mxu0
        %v4470 = vadd.f32 0.0, %v4469
        %v4471 = vpop.f32.mrf.mxu0
        %4472 = vmatprep.mubr.bf16.mxu0 0
        %4473 = vmatmul.mubr.bf16.gmra.mxu0 %v1409
        %v4474 = vpop.f32.mrf.mxu0
        %v4475 = vadd.f32 0.0, %v4474
        %v4476 = vpop.f32.mrf.mxu0
        %v4477 = vpop.f32.mrf.mxu0
        %v4478 = vadd.f32 0.0, %v4477
        %v4479 = vpop.f32.mrf.mxu0
        %4480 = vmatprep.mubr.bf16.mxu0 0
        %4481 = vmatmul.mubr.bf16.gmra.mxu0 %v1412
        %v4482 = vpop.f32.mrf.mxu0
        %v4483 = vpop.f32.mrf.mxu0
        %v4484 = vpop.f32.mrf.mxu0
        %v4485 = vpop.f32.mrf.mxu0
        %4486 = vdwg.mxu0
        %4487 = vmatprep.subr.bf16.mxu0 0
        %4488 = vmatpush1.bf16.msra.mxu0 0
        %4489 = vmatprep.subr.bf16.mxu0 0
        %4490 = vmatpush1.bf16.msra.mxu0 0
        %4491 = vmatprep.subr.bf16.mxu0 0
        %4492 = vmatpush1.bf16.msra.mxu0 0
        %4493 = vmatprep.subr.bf16.mxu0 0
        %4494 = vmatpush1.bf16.msra.mxu0 0
        %4495 = vmatprep.subr.bf16.mxu0 0
        %4496 = vmatpush1.bf16.msra.mxu0 0
        %4497 = vmatprep.subr.bf16.mxu0 0
        %4498 = vmatpush1.bf16.msra.mxu0 0
        %4499 = vmatprep.subr.bf16.mxu0 %v952
        %4500 = vmatpush1.bf16.msra.mxu0 %v949
        %4501 = vmatprep.subr.bf16.mxu0 %v925
        %4502 = vmatpush1.bf16.msra.mxu0 %v924
        %4503 = vmatprep.subr.bf16.mxu0 0
        %4504 = vmatpush2.bf16.msra.mxu0 0
        %4505 = vmatprep.subr.bf16.mxu0 0
        %4506 = vmatpush2.bf16.msra.mxu0 0
        %4507 = vmatprep.subr.bf16.mxu0 0
        %4508 = vmatpush2.bf16.msra.mxu0 0
        %4509 = vmatprep.subr.bf16.mxu0 0
        %4510 = vmatpush2.bf16.msra.mxu0 0
        %4511 = vmatprep.subr.bf16.mxu0 0
        %4512 = vmatpush2.bf16.msra.mxu0 0
        %4513 = vmatprep.subr.bf16.mxu0 0
        %4514 = vmatpush2.bf16.msra.mxu0 0
        %4515 = vmatprep.subr.bf16.mxu0 0
        %4516 = vmatpush2.bf16.msra.mxu0 0
        %4517 = vmatprep.subr.bf16.mxu0 0
        %4518 = vmatpush2.bf16.msra.mxu0 0
        %4519 = vmatprep.mubr.bf16.mxu0 0
        %4520 = vmatmul.mubr.bf16.gmra.mxu0 %v1152
        %v4521 = vpop.f32.mrf.mxu0
        %v4522 = vadd.f32 %v4372, %v4521
        %v4523 = vpop.f32.mrf.mxu0
        %v4524 = vadd.f32 %v4374, %v4523
        %v4525 = vpop.f32.mrf.mxu0
        %v4526 = vadd.f32 %v4376, %v4525
        %v4527 = vpop.f32.mrf.mxu0
        %v4528 = vadd.f32 %v4378, %v4527
        %4529 = vmatprep.mubr.bf16.mxu0 0
        %4530 = vmatmul.mubr.bf16.gmra.mxu0 %v1155
        %v4531 = vpop.f32.mrf.mxu0
        %v4532 = vadd.f32 %v4382, %v4531
        %v4533 = vpop.f32.mrf.mxu0
        %v4534 = vadd.f32 %v4384, %v4533
        %v4535 = vpop.f32.mrf.mxu0
        %v4536 = vadd.f32 %v4386, %v4535
        %v4537 = vpop.f32.mrf.mxu0
        %v4538 = vadd.f32 %v4388, %v4537
        %4539 = vmatprep.mubr.bf16.mxu0 0
        %4540 = vmatmul.mubr.bf16.gmra.mxu0 %v1158
        %v4541 = vpop.f32.mrf.mxu0
        %v4542 = vadd.f32 %v4392, %v4541
        %v4543 = vpop.f32.mrf.mxu0
        %v4544 = vadd.f32 %v4394, %v4543
        %v4545 = vpop.f32.mrf.mxu0
        %v4546 = vadd.f32 %v4396, %v4545
        %v4547 = vpop.f32.mrf.mxu0
        %v4548 = vadd.f32 %v4398, %v4547
        %4549 = vmatprep.mubr.bf16.mxu0 0
        %4550 = vmatmul.mubr.bf16.gmra.mxu0 %v1161
        %v4551 = vpop.f32.mrf.mxu0
        %v4552 = vadd.f32 %v4402, %v4551
        %v4553 = vpop.f32.mrf.mxu0
        %v4554 = vadd.f32 %v4404, %v4553
        %v4555 = vpop.f32.mrf.mxu0
        %v4556 = vadd.f32 %v4406, %v4555
        %v4557 = vpop.f32.mrf.mxu0
        %v4558 = vadd.f32 %v4408, %v4557
        %4559 = vmatprep.mubr.bf16.mxu0 0
        %4560 = vmatmul.mubr.bf16.gmra.mxu0 %v1164
        %v4561 = vpop.f32.mrf.mxu0
        %v4562 = vpop.f32.mrf.mxu0
        %v4563 = vpop.f32.mrf.mxu0
        %v4564 = vpop.f32.mrf.mxu0
        %4565 = vdwg.mxu0
        %4566 = vmatprep.subr.bf16.mxu0 0
        %4567 = vmatpush1.bf16.msra.mxu0 0
        %4568 = vmatprep.subr.bf16.mxu0 0
        %4569 = vmatpush1.bf16.msra.mxu0 0
        %4570 = vmatprep.subr.bf16.mxu0 0
        %4571 = vmatpush1.bf16.msra.mxu0 0
        %4572 = vmatprep.subr.bf16.mxu0 0
        %4573 = vmatpush1.bf16.msra.mxu0 0
        %4574 = vmatprep.subr.bf16.mxu0 0
        %4575 = vmatpush1.bf16.msra.mxu0 0
        %4576 = vmatprep.subr.bf16.mxu0 0
        %4577 = vmatpush1.bf16.msra.mxu0 0
        %4578 = vmatprep.subr.bf16.mxu0 0
        %4579 = vmatpush1.bf16.msra.mxu0 %v955
        %4580 = vmatprep.subr.bf16.mxu0 0
        %4581 = vmatpush1.bf16.msra.mxu0 %v926
        %4582 = vmatprep.subr.bf16.mxu0 0
        %4583 = vmatpush2.bf16.msra.mxu0 0
        %4584 = vmatprep.subr.bf16.mxu0 0
        %4585 = vmatpush2.bf16.msra.mxu0 0
        %4586 = vmatprep.subr.bf16.mxu0 0
        %4587 = vmatpush2.bf16.msra.mxu0 0
        %4588 = vmatprep.subr.bf16.mxu0 0
        %4589 = vmatpush2.bf16.msra.mxu0 0
        %4590 = vmatprep.subr.bf16.mxu0 0
        %4591 = vmatpush2.bf16.msra.mxu0 0
        %4592 = vmatprep.subr.bf16.mxu0 0
        %4593 = vmatpush2.bf16.msra.mxu0 0
        %4594 = vmatprep.subr.bf16.mxu0 0
        %4595 = vmatpush2.bf16.msra.mxu0 0
        %4596 = vmatprep.subr.bf16.mxu0 0
        %4597 = vmatpush2.bf16.msra.mxu0 0
        %4598 = vmatprep.mubr.bf16.mxu0 0
        %4599 = vmatmul.mubr.bf16.gmra.mxu0 %v1152
        %v4600 = vpop.f32.mrf.mxu0
        %v4601 = vadd.f32 %v4451, %v4600
        %v4602 = vpop.f32.mrf.mxu0
        %v4603 = vpop.f32.mrf.mxu0
        %v4604 = vadd.f32 %v4454, %v4603
        %v4605 = vpop.f32.mrf.mxu0
        %4606 = vmatprep.mubr.bf16.mxu0 0
        %4607 = vmatmul.mubr.bf16.gmra.mxu0 %v1155
        %v4608 = vpop.f32.mrf.mxu0
        %v4609 = vadd.f32 %v4459, %v4608
        %v4610 = vpop.f32.mrf.mxu0
        %v4611 = vpop.f32.mrf.mxu0
        %v4612 = vadd.f32 %v4462, %v4611
        %v4613 = vpop.f32.mrf.mxu0
        %4614 = vmatprep.mubr.bf16.mxu0 0
        %4615 = vmatmul.mubr.bf16.gmra.mxu0 %v1158
        %v4616 = vpop.f32.mrf.mxu0
        %v4617 = vadd.f32 %v4467, %v4616
        %v4618 = vpop.f32.mrf.mxu0
        %v4619 = vpop.f32.mrf.mxu0
        %v4620 = vadd.f32 %v4470, %v4619
        %v4621 = vpop.f32.mrf.mxu0
        %4622 = vmatprep.mubr.bf16.mxu0 0
        %4623 = vmatmul.mubr.bf16.gmra.mxu0 %v1161
        %v4624 = vpop.f32.mrf.mxu0
        %v4625 = vadd.f32 %v4475, %v4624
        %v4626 = vpop.f32.mrf.mxu0
        %v4627 = vpop.f32.mrf.mxu0
        %v4628 = vadd.f32 %v4478, %v4627
        %v4629 = vpop.f32.mrf.mxu0
        %4630 = vmatprep.mubr.bf16.mxu0 0
        %4631 = vmatmul.mubr.bf16.gmra.mxu0 %v1164
        %v4632 = vpop.f32.mrf.mxu0
        %v4633 = vpop.f32.mrf.mxu0
        %v4634 = vpop.f32.mrf.mxu0
        %v4635 = vpop.f32.mrf.mxu0
        %4636 = vdwg.mxu0
        %4637 = vmatprep.subr.bf16.mxu0 0
        %4638 = vmatpush1.bf16.msra.mxu0 0
        %4639 = vmatprep.subr.bf16.mxu0 0
        %4640 = vmatpush1.bf16.msra.mxu0 0
        %4641 = vmatprep.subr.bf16.mxu0 0
        %4642 = vmatpush1.bf16.msra.mxu0 0
        %4643 = vmatprep.subr.bf16.mxu0 0
        %4644 = vmatpush1.bf16.msra.mxu0 0
        %4645 = vmatprep.subr.bf16.mxu0 0
        %4646 = vmatpush1.bf16.msra.mxu0 0
        %4647 = vmatprep.subr.bf16.mxu0 0
        %4648 = vmatpush1.bf16.msra.mxu0 0
        %4649 = vmatprep.subr.bf16.mxu0 %v1170
        %4650 = vmatpush1.bf16.msra.mxu0 %v1167
        %4651 = vmatprep.subr.bf16.mxu0 %v1143
        %4652 = vmatpush1.bf16.msra.mxu0 %v1142
        %4653 = vmatprep.subr.bf16.mxu0 0
        %4654 = vmatpush2.bf16.msra.mxu0 0
        %4655 = vmatprep.subr.bf16.mxu0 0
        %4656 = vmatpush2.bf16.msra.mxu0 0
        %4657 = vmatprep.subr.bf16.mxu0 0
        %4658 = vmatpush2.bf16.msra.mxu0 0
        %4659 = vmatprep.subr.bf16.mxu0 0
        %4660 = vmatpush2.bf16.msra.mxu0 0
        %4661 = vmatprep.subr.bf16.mxu0 0
        %4662 = vmatpush2.bf16.msra.mxu0 0
        %4663 = vmatprep.subr.bf16.mxu0 0
        %4664 = vmatpush2.bf16.msra.mxu0 0
        %4665 = vmatprep.subr.bf16.mxu0 0
        %4666 = vmatpush2.bf16.msra.mxu0 0
        %4667 = vmatprep.subr.bf16.mxu0 0
        %4668 = vmatpush2.bf16.msra.mxu0 0
        %4669 = vmatprep.mubr.bf16.mxu0 0
        %4670 = vmatmul.mubr.bf16.gmra.mxu0 %v937
        %v4671 = vpop.f32.mrf.mxu0
        %v4672 = vadd.f32 0.0, %v4671
        %v4673 = vpop.f32.mrf.mxu0
        %v4674 = vadd.f32 0.0, %v4673
        %v4675 = vpop.f32.mrf.mxu0
        %v4676 = vadd.f32 0.0, %v4675
        %v4677 = vpop.f32.mrf.mxu0
        %v4678 = vadd.f32 0.0, %v4677
        %4679 = vmatprep.mubr.bf16.mxu0 0
        %4680 = vmatmul.mubr.bf16.gmra.mxu0 %v940
        %v4681 = vpop.f32.mrf.mxu0
        %v4682 = vadd.f32 0.0, %v4681
        %v4683 = vpop.f32.mrf.mxu0
        %v4684 = vadd.f32 0.0, %v4683
        %v4685 = vpop.f32.mrf.mxu0
        %v4686 = vadd.f32 0.0, %v4685
        %v4687 = vpop.f32.mrf.mxu0
        %v4688 = vadd.f32 0.0, %v4687
        %4689 = vmatprep.mubr.bf16.mxu0 0
        %4690 = vmatmul.mubr.bf16.gmra.mxu0 %v943
        %v4691 = vpop.f32.mrf.mxu0
        %v4692 = vadd.f32 0.0, %v4691
        %v4693 = vpop.f32.mrf.mxu0
        %v4694 = vadd.f32 0.0, %v4693
        %v4695 = vpop.f32.mrf.mxu0
        %v4696 = vadd.f32 0.0, %v4695
        %v4697 = vpop.f32.mrf.mxu0
        %v4698 = vadd.f32 0.0, %v4697
        %4699 = vmatprep.mubr.bf16.mxu0 0
        %4700 = vmatmul.mubr.bf16.gmra.mxu0 %v946
        %v4701 = vpop.f32.mrf.mxu0
        %v4702 = vadd.f32 0.0, %v4701
        %v4703 = vpop.f32.mrf.mxu0
        %v4704 = vadd.f32 0.0, %v4703
        %v4705 = vpop.f32.mrf.mxu0
        %v4706 = vadd.f32 0.0, %v4705
        %v4707 = vpop.f32.mrf.mxu0
        %v4708 = vadd.f32 0.0, %v4707
        %4709 = vmatprep.mubr.bf16.mxu0 0
        %4710 = vmatmul.mubr.bf16.gmra.mxu0 %v1648
        %v4711 = vpop.f32.mrf.mxu0
        %v4712 = vpop.f32.mrf.mxu0
        %v4713 = vpop.f32.mrf.mxu0
        %v4714 = vpop.f32.mrf.mxu0
        %4715 = vdwg.mxu0
        %4716 = vmatprep.subr.bf16.mxu0 0
        %4717 = vmatpush1.bf16.msra.mxu0 0
        %4718 = vmatprep.subr.bf16.mxu0 0
        %4719 = vmatpush1.bf16.msra.mxu0 0
        %4720 = vmatprep.subr.bf16.mxu0 0
        %4721 = vmatpush1.bf16.msra.mxu0 0
        %4722 = vmatprep.subr.bf16.mxu0 0
        %4723 = vmatpush1.bf16.msra.mxu0 0
        %4724 = vmatprep.subr.bf16.mxu0 0
        %4725 = vmatpush1.bf16.msra.mxu0 0
        %4726 = vmatprep.subr.bf16.mxu0 0
        %4727 = vmatpush1.bf16.msra.mxu0 0
        %4728 = vmatprep.subr.bf16.mxu0 0
        %4729 = vmatpush1.bf16.msra.mxu0 %v1173
        %4730 = vmatprep.subr.bf16.mxu0 0
        %4731 = vmatpush1.bf16.msra.mxu0 %v1144
        %4732 = vmatprep.subr.bf16.mxu0 0
        %4733 = vmatpush2.bf16.msra.mxu0 0
        %4734 = vmatprep.subr.bf16.mxu0 0
        %4735 = vmatpush2.bf16.msra.mxu0 0
        %4736 = vmatprep.subr.bf16.mxu0 0
        %4737 = vmatpush2.bf16.msra.mxu0 0
        %4738 = vmatprep.subr.bf16.mxu0 0
        %4739 = vmatpush2.bf16.msra.mxu0 0
        %4740 = vmatprep.subr.bf16.mxu0 0
        %4741 = vmatpush2.bf16.msra.mxu0 0
        %4742 = vmatprep.subr.bf16.mxu0 0
        %4743 = vmatpush2.bf16.msra.mxu0 0
        %4744 = vmatprep.subr.bf16.mxu0 0
        %4745 = vmatpush2.bf16.msra.mxu0 0
        %4746 = vmatprep.subr.bf16.mxu0 0
        %4747 = vmatpush2.bf16.msra.mxu0 0
        %4748 = vmatprep.mubr.bf16.mxu0 0
        %4749 = vmatmul.mubr.bf16.gmra.mxu0 %v937
        %v4750 = vpop.f32.mrf.mxu0
        %v4751 = vadd.f32 0.0, %v4750
        %v4752 = vpop.f32.mrf.mxu0
        %v4753 = vpop.f32.mrf.mxu0
        %v4754 = vadd.f32 0.0, %v4753
        %v4755 = vpop.f32.mrf.mxu0
        %4756 = vmatprep.mubr.bf16.mxu0 0
        %4757 = vmatmul.mubr.bf16.gmra.mxu0 %v940
        %v4758 = vpop.f32.mrf.mxu0
        %v4759 = vadd.f32 0.0, %v4758
        %v4760 = vpop.f32.mrf.mxu0
        %v4761 = vpop.f32.mrf.mxu0
        %v4762 = vadd.f32 0.0, %v4761
        %v4763 = vpop.f32.mrf.mxu0
        %4764 = vmatprep.mubr.bf16.mxu0 0
        %4765 = vmatmul.mubr.bf16.gmra.mxu0 %v943
        %v4766 = vpop.f32.mrf.mxu0
        %v4767 = vadd.f32 0.0, %v4766
        %v4768 = vpop.f32.mrf.mxu0
        %v4769 = vpop.f32.mrf.mxu0
        %v4770 = vadd.f32 0.0, %v4769
        %v4771 = vpop.f32.mrf.mxu0
        %4772 = vmatprep.mubr.bf16.mxu0 0
        %4773 = vmatmul.mubr.bf16.gmra.mxu0 %v946
        %v4774 = vpop.f32.mrf.mxu0
        %v4775 = vadd.f32 0.0, %v4774
        %v4776 = vpop.f32.mrf.mxu0
        %v4777 = vpop.f32.mrf.mxu0
        %v4778 = vadd.f32 0.0, %v4777
        %v4779 = vpop.f32.mrf.mxu0
        %4780 = vmatprep.mubr.bf16.mxu0 0
        %4781 = vmatmul.mubr.bf16.gmra.mxu0 %v1648
        %v4782 = vpop.f32.mrf.mxu0
        %v4783 = vpop.f32.mrf.mxu0
        %v4784 = vpop.f32.mrf.mxu0
        %v4785 = vpop.f32.mrf.mxu0
        %4786 = vdwg.mxu0
        %v4787 = vadd.f32 %v4522, %v4672
        %v4788 = vadd.f32 %v4524, %v4674
        %v4789 = vadd.f32 %v4601, %v4751
        %v4790 = vadd.f32 %v4526, %v4676
        %v4791 = vadd.f32 %v4528, %v4678
        %v4792 = vadd.f32 %v4604, %v4754
        %v4793 = vadd.f32 %v4532, %v4682
        %v4794 = vadd.f32 %v4534, %v4684
        %v4795 = vadd.f32 %v4609, %v4759
        %v4796 = vadd.f32 %v4536, %v4686
        %v4797 = vadd.f32 %v4538, %v4688
        %v4798 = vadd.f32 %v4612, %v4762
        %v4799 = vadd.f32 %v4542, %v4692
        %v4800 = vadd.f32 %v4544, %v4694
        %v4801 = vadd.f32 %v4617, %v4767
        %v4802 = vadd.f32 %v4546, %v4696
        %v4803 = vadd.f32 %v4548, %v4698
        %v4804 = vadd.f32 %v4620, %v4770
        %v4805 = vadd.f32 %v4552, %v4702
        %v4806 = vadd.f32 %v4554, %v4704
        %v4807 = vadd.f32 %v4625, %v4775
        %v4808 = vadd.f32 %v4556, %v4706
        %v4809 = vadd.f32 %v4558, %v4708
        %v4810 = vadd.f32 %v4628, %v4778
        %4811 = vmatprep.subr.bf16.mxu0 0
        %4812 = vmatpush1.bf16.msra.mxu0 0
        %4813 = vmatprep.subr.bf16.mxu0 0
        %4814 = vmatpush1.bf16.msra.mxu0 0
        %4815 = vmatprep.subr.bf16.mxu0 0
        %4816 = vmatpush1.bf16.msra.mxu0 0
        %4817 = vmatprep.subr.bf16.mxu0 0
        %4818 = vmatpush1.bf16.msra.mxu0 0
        %4819 = vmatprep.subr.bf16.mxu0 0
        %4820 = vmatpush1.bf16.msra.mxu0 0
        %4821 = vmatprep.subr.bf16.mxu0 0
        %4822 = vmatpush1.bf16.msra.mxu0 0
        %4823 = vmatprep.subr.bf16.mxu0 %v1418
        %4824 = vmatpush1.bf16.msra.mxu0 %v1415
        %4825 = vmatprep.subr.bf16.mxu0 %v1391
        %4826 = vmatpush1.bf16.msra.mxu0 %v1390
        %4827 = vmatprep.subr.bf16.mxu0 0
        %4828 = vmatpush2.bf16.msra.mxu0 0
        %4829 = vmatprep.subr.bf16.mxu0 0
        %4830 = vmatpush2.bf16.msra.mxu0 0
        %4831 = vmatprep.subr.bf16.mxu0 0
        %4832 = vmatpush2.bf16.msra.mxu0 0
        %4833 = vmatprep.subr.bf16.mxu0 0
        %4834 = vmatpush2.bf16.msra.mxu0 0
        %4835 = vmatprep.subr.bf16.mxu0 0
        %4836 = vmatpush2.bf16.msra.mxu0 0
        %4837 = vmatprep.subr.bf16.mxu0 0
        %4838 = vmatpush2.bf16.msra.mxu0 0
        %4839 = vmatprep.subr.bf16.mxu0 0
        %4840 = vmatpush2.bf16.msra.mxu0 0
        %4841 = vmatprep.subr.bf16.mxu0 0
        %4842 = vmatpush2.bf16.msra.mxu0 0
        %4843 = vmatprep.mubr.bf16.mxu0 0
        %4844 = vmatmul.mubr.bf16.gmra.mxu0 %v727
        %v4845 = vpop.f32.mrf.mxu0
        %v4846 = vadd.f32 0.0, %v4845
        %v4847 = vpop.f32.mrf.mxu0
        %v4848 = vadd.f32 0.0, %v4847
        %v4849 = vpop.f32.mrf.mxu0
        %v4850 = vadd.f32 0.0, %v4849
        %v4851 = vpop.f32.mrf.mxu0
        %v4852 = vadd.f32 0.0, %v4851
        %4853 = vmatprep.mubr.bf16.mxu0 0
        %4854 = vmatmul.mubr.bf16.gmra.mxu0 %v730
        %v4855 = vpop.f32.mrf.mxu0
        %v4856 = vadd.f32 0.0, %v4855
        %v4857 = vpop.f32.mrf.mxu0
        %v4858 = vadd.f32 0.0, %v4857
        %v4859 = vpop.f32.mrf.mxu0
        %v4860 = vadd.f32 0.0, %v4859
        %v4861 = vpop.f32.mrf.mxu0
        %v4862 = vadd.f32 0.0, %v4861
        %4863 = vmatprep.mubr.bf16.mxu0 0
        %4864 = vmatmul.mubr.bf16.gmra.mxu0 %v733
        %v4865 = vpop.f32.mrf.mxu0
        %v4866 = vadd.f32 0.0, %v4865
        %v4867 = vpop.f32.mrf.mxu0
        %v4868 = vadd.f32 0.0, %v4867
        %v4869 = vpop.f32.mrf.mxu0
        %v4870 = vadd.f32 0.0, %v4869
        %v4871 = vpop.f32.mrf.mxu0
        %v4872 = vadd.f32 0.0, %v4871
        %4873 = vmatprep.mubr.bf16.mxu0 0
        %4874 = vmatmul.mubr.bf16.gmra.mxu0 %v736
        %v4875 = vpop.f32.mrf.mxu0
        %v4876 = vadd.f32 0.0, %v4875
        %v4877 = vpop.f32.mrf.mxu0
        %v4878 = vadd.f32 0.0, %v4877
        %v4879 = vpop.f32.mrf.mxu0
        %v4880 = vadd.f32 0.0, %v4879
        %v4881 = vpop.f32.mrf.mxu0
        %v4882 = vadd.f32 0.0, %v4881
        %4883 = vmatprep.mubr.bf16.mxu0 0
        %4884 = vmatmul.mubr.bf16.gmra.mxu0 %v1884
        %v4885 = vpop.f32.mrf.mxu0
        %v4886 = vpop.f32.mrf.mxu0
        %v4887 = vpop.f32.mrf.mxu0
        %v4888 = vpop.f32.mrf.mxu0
        %4889 = vdwg.mxu0
        %4890 = vmatprep.subr.bf16.mxu0 0
        %4891 = vmatpush1.bf16.msra.mxu0 0
        %4892 = vmatprep.subr.bf16.mxu0 0
        %4893 = vmatpush1.bf16.msra.mxu0 0
        %4894 = vmatprep.subr.bf16.mxu0 0
        %4895 = vmatpush1.bf16.msra.mxu0 0
        %4896 = vmatprep.subr.bf16.mxu0 0
        %4897 = vmatpush1.bf16.msra.mxu0 0
        %4898 = vmatprep.subr.bf16.mxu0 0
        %4899 = vmatpush1.bf16.msra.mxu0 0
        %4900 = vmatprep.subr.bf16.mxu0 0
        %4901 = vmatpush1.bf16.msra.mxu0 0
        %4902 = vmatprep.subr.bf16.mxu0 0
        %4903 = vmatpush1.bf16.msra.mxu0 %v1421
        %4904 = vmatprep.subr.bf16.mxu0 0
        %4905 = vmatpush1.bf16.msra.mxu0 %v1392
        %4906 = vmatprep.subr.bf16.mxu0 0
        %4907 = vmatpush2.bf16.msra.mxu0 0
        %4908 = vmatprep.subr.bf16.mxu0 0
        %4909 = vmatpush2.bf16.msra.mxu0 0
        %4910 = vmatprep.subr.bf16.mxu0 0
        %4911 = vmatpush2.bf16.msra.mxu0 0
        %4912 = vmatprep.subr.bf16.mxu0 0
        %4913 = vmatpush2.bf16.msra.mxu0 0
        %4914 = vmatprep.subr.bf16.mxu0 0
        %4915 = vmatpush2.bf16.msra.mxu0 0
        %4916 = vmatprep.subr.bf16.mxu0 0
        %4917 = vmatpush2.bf16.msra.mxu0 0
        %4918 = vmatprep.subr.bf16.mxu0 0
        %4919 = vmatpush2.bf16.msra.mxu0 0
        %4920 = vmatprep.subr.bf16.mxu0 0
        %4921 = vmatpush2.bf16.msra.mxu0 0
        %4922 = vmatprep.mubr.bf16.mxu0 0
        %4923 = vmatmul.mubr.bf16.gmra.mxu0 %v727
        %v4924 = vpop.f32.mrf.mxu0
        %v4925 = vadd.f32 0.0, %v4924
        %v4926 = vpop.f32.mrf.mxu0
        %v4927 = vpop.f32.mrf.mxu0
        %v4928 = vadd.f32 0.0, %v4927
        %v4929 = vpop.f32.mrf.mxu0
        %4930 = vmatprep.mubr.bf16.mxu0 0
        %4931 = vmatmul.mubr.bf16.gmra.mxu0 %v730
        %v4932 = vpop.f32.mrf.mxu0
        %v4933 = vadd.f32 0.0, %v4932
        %v4934 = vpop.f32.mrf.mxu0
        %v4935 = vpop.f32.mrf.mxu0
        %v4936 = vadd.f32 0.0, %v4935
        %v4937 = vpop.f32.mrf.mxu0
        %4938 = vmatprep.mubr.bf16.mxu0 0
        %4939 = vmatmul.mubr.bf16.gmra.mxu0 %v733
        %v4940 = vpop.f32.mrf.mxu0
        %v4941 = vadd.f32 0.0, %v4940
        %v4942 = vpop.f32.mrf.mxu0
        %v4943 = vpop.f32.mrf.mxu0
        %v4944 = vadd.f32 0.0, %v4943
        %v4945 = vpop.f32.mrf.mxu0
        %4946 = vmatprep.mubr.bf16.mxu0 0
        %4947 = vmatmul.mubr.bf16.gmra.mxu0 %v736
        %v4948 = vpop.f32.mrf.mxu0
        %v4949 = vadd.f32 0.0, %v4948
        %v4950 = vpop.f32.mrf.mxu0
        %v4951 = vpop.f32.mrf.mxu0
        %v4952 = vadd.f32 0.0, %v4951
        %v4953 = vpop.f32.mrf.mxu0
        %4954 = vmatprep.mubr.bf16.mxu0 0
        %4955 = vmatmul.mubr.bf16.gmra.mxu0 %v1884
        %v4956 = vpop.f32.mrf.mxu0
        %v4957 = vpop.f32.mrf.mxu0
        %v4958 = vpop.f32.mrf.mxu0
        %v4959 = vpop.f32.mrf.mxu0
        %4960 = vdwg.mxu0
        %v4961 = vadd.f32 %v4787, %v4846
        %v4962 = vadd.f32 %v4788, %v4848
        %v4963 = vadd.f32 %v4789, %v4925
        %v4964 = vadd.f32 %v4790, %v4850
        %v4965 = vadd.f32 %v4791, %v4852
        %v4966 = vadd.f32 %v4792, %v4928
        %v4967 = vadd.f32 %v4793, %v4856
        %v4968 = vadd.f32 %v4794, %v4858
        %v4969 = vadd.f32 %v4795, %v4933
        %v4970 = vadd.f32 %v4796, %v4860
        %v4971 = vadd.f32 %v4797, %v4862
        %v4972 = vadd.f32 %v4798, %v4936
        %v4973 = vadd.f32 %v4799, %v4866
        %v4974 = vadd.f32 %v4800, %v4868
        %v4975 = vadd.f32 %v4801, %v4941
        %v4976 = vadd.f32 %v4802, %v4870
        %v4977 = vadd.f32 %v4803, %v4872
        %v4978 = vadd.f32 %v4804, %v4944
        %v4979 = vadd.f32 %v4805, %v4876
        %v4980 = vadd.f32 %v4806, %v4878
        %v4981 = vadd.f32 %v4807, %v4949
        %v4982 = vadd.f32 %v4808, %v4880
        %v4983 = vadd.f32 %v4809, %v4882
        %v4984 = vadd.f32 %v4810, %v4952
        %4985 = vmatprep.subr.bf16.mxu0 0
        %4986 = vmatpush1.bf16.msra.mxu0 0
        %4987 = vmatprep.subr.bf16.mxu0 0
        %4988 = vmatpush1.bf16.msra.mxu0 0
        %4989 = vmatprep.subr.bf16.mxu0 0
        %4990 = vmatpush1.bf16.msra.mxu0 0
        %4991 = vmatprep.subr.bf16.mxu0 0
        %4992 = vmatpush1.bf16.msra.mxu0 0
        %4993 = vmatprep.subr.bf16.mxu0 0
        %4994 = vmatpush1.bf16.msra.mxu0 0
        %4995 = vmatprep.subr.bf16.mxu0 0
        %4996 = vmatpush1.bf16.msra.mxu0 0
        %4997 = vmatprep.subr.bf16.mxu0 %v1654
        %4998 = vmatpush1.bf16.msra.mxu0 %v1651
        %4999 = vmatprep.subr.bf16.mxu0 %v1639
        %5000 = vmatpush1.bf16.msra.mxu0 %v1638
        %5001 = vmatprep.subr.bf16.mxu0 0
        %5002 = vmatpush2.bf16.msra.mxu0 0
        %5003 = vmatprep.subr.bf16.mxu0 0
        %5004 = vmatpush2.bf16.msra.mxu0 0
        %5005 = vmatprep.subr.bf16.mxu0 0
        %5006 = vmatpush2.bf16.msra.mxu0 0
        %5007 = vmatprep.subr.bf16.mxu0 0
        %5008 = vmatpush2.bf16.msra.mxu0 0
        %5009 = vmatprep.subr.bf16.mxu0 0
        %5010 = vmatpush2.bf16.msra.mxu0 0
        %5011 = vmatprep.subr.bf16.mxu0 0
        %5012 = vmatpush2.bf16.msra.mxu0 0
        %5013 = vmatprep.subr.bf16.mxu0 0
        %5014 = vmatpush2.bf16.msra.mxu0 0
        %5015 = vmatprep.subr.bf16.mxu0 0
        %5016 = vmatpush2.bf16.msra.mxu0 0
        %5017 = vmatprep.mubr.bf16.mxu0 0
        %5018 = vmatmul.mubr.bf16.gmra.mxu0 %v1155
        %v5019 = vpop.f32.mrf.mxu0
        %v5020 = vadd.f32 0.0, %v5019
        %v5021 = vpop.f32.mrf.mxu0
        %v5022 = vadd.f32 0.0, %v5021
        %v5023 = vpop.f32.mrf.mxu0
        %v5024 = vadd.f32 0.0, %v5023
        %v5025 = vpop.f32.mrf.mxu0
        %v5026 = vadd.f32 0.0, %v5025
        %5027 = vmatprep.mubr.bf16.mxu0 0
        %5028 = vmatmul.mubr.bf16.gmra.mxu0 %v1158
        %v5029 = vpop.f32.mrf.mxu0
        %v5030 = vadd.f32 0.0, %v5029
        %v5031 = vpop.f32.mrf.mxu0
        %v5032 = vadd.f32 0.0, %v5031
        %v5033 = vpop.f32.mrf.mxu0
        %v5034 = vadd.f32 0.0, %v5033
        %v5035 = vpop.f32.mrf.mxu0
        %v5036 = vadd.f32 0.0, %v5035
        %5037 = vmatprep.mubr.bf16.mxu0 0
        %5038 = vmatmul.mubr.bf16.gmra.mxu0 %v1161
        %v5039 = vpop.f32.mrf.mxu0
        %v5040 = vadd.f32 0.0, %v5039
        %v5041 = vpop.f32.mrf.mxu0
        %v5042 = vadd.f32 0.0, %v5041
        %v5043 = vpop.f32.mrf.mxu0
        %v5044 = vadd.f32 0.0, %v5043
        %v5045 = vpop.f32.mrf.mxu0
        %v5046 = vadd.f32 0.0, %v5045
        %5047 = vmatprep.mubr.bf16.mxu0 0
        %5048 = vmatmul.mubr.bf16.gmra.mxu0 %v1164
        %v5049 = vpop.f32.mrf.mxu0
        %v5050 = vadd.f32 0.0, %v5049
        %v5051 = vpop.f32.mrf.mxu0
        %v5052 = vadd.f32 0.0, %v5051
        %v5053 = vpop.f32.mrf.mxu0
        %v5054 = vadd.f32 0.0, %v5053
        %v5055 = vpop.f32.mrf.mxu0
        %v5056 = vadd.f32 0.0, %v5055
        %5057 = vmatprep.mubr.bf16.mxu0 0
        %5058 = vmatmul.mubr.bf16.gmra.mxu0 %v2120
        %v5059 = vpop.f32.mrf.mxu0
        %v5060 = vpop.f32.mrf.mxu0
        %v5061 = vpop.f32.mrf.mxu0
        %v5062 = vpop.f32.mrf.mxu0
        %5063 = vdwg.mxu0
        %5064 = vmatprep.subr.bf16.mxu0 0
        %5065 = vmatpush1.bf16.msra.mxu0 0
        %5066 = vmatprep.subr.bf16.mxu0 0
        %5067 = vmatpush1.bf16.msra.mxu0 0
        %5068 = vmatprep.subr.bf16.mxu0 0
        %5069 = vmatpush1.bf16.msra.mxu0 0
        %5070 = vmatprep.subr.bf16.mxu0 0
        %5071 = vmatpush1.bf16.msra.mxu0 0
        %5072 = vmatprep.subr.bf16.mxu0 0
        %5073 = vmatpush1.bf16.msra.mxu0 0
        %5074 = vmatprep.subr.bf16.mxu0 0
        %5075 = vmatpush1.bf16.msra.mxu0 0
        %5076 = vmatprep.subr.bf16.mxu0 0
        %5077 = vmatpush1.bf16.msra.mxu0 %v1657
        %5078 = vmatprep.subr.bf16.mxu0 0
        %5079 = vmatpush1.bf16.msra.mxu0 %v1640
        %5080 = vmatprep.subr.bf16.mxu0 0
        %5081 = vmatpush2.bf16.msra.mxu0 0
        %5082 = vmatprep.subr.bf16.mxu0 0
        %5083 = vmatpush2.bf16.msra.mxu0 0
        %5084 = vmatprep.subr.bf16.mxu0 0
        %5085 = vmatpush2.bf16.msra.mxu0 0
        %5086 = vmatprep.subr.bf16.mxu0 0
        %5087 = vmatpush2.bf16.msra.mxu0 0
        %5088 = vmatprep.subr.bf16.mxu0 0
        %5089 = vmatpush2.bf16.msra.mxu0 0
        %5090 = vmatprep.subr.bf16.mxu0 0
        %5091 = vmatpush2.bf16.msra.mxu0 0
        %5092 = vmatprep.subr.bf16.mxu0 0
        %5093 = vmatpush2.bf16.msra.mxu0 0
        %5094 = vmatprep.subr.bf16.mxu0 0
        %5095 = vmatpush2.bf16.msra.mxu0 0
        %5096 = vmatprep.mubr.bf16.mxu0 0
        %5097 = vmatmul.mubr.bf16.gmra.mxu0 %v1155
        %v5098 = vpop.f32.mrf.mxu0
        %v5099 = vadd.f32 0.0, %v5098
        %v5100 = vpop.f32.mrf.mxu0
        %v5101 = vpop.f32.mrf.mxu0
        %v5102 = vadd.f32 0.0, %v5101
        %v5103 = vpop.f32.mrf.mxu0
        %5104 = vmatprep.mubr.bf16.mxu0 0
        %5105 = vmatmul.mubr.bf16.gmra.mxu0 %v1158
        %v5106 = vpop.f32.mrf.mxu0
        %v5107 = vadd.f32 0.0, %v5106
        %v5108 = vpop.f32.mrf.mxu0
        %v5109 = vpop.f32.mrf.mxu0
        %v5110 = vadd.f32 0.0, %v5109
        %v5111 = vpop.f32.mrf.mxu0
        %5112 = vmatprep.mubr.bf16.mxu0 0
        %5113 = vmatmul.mubr.bf16.gmra.mxu0 %v1161
        %v5114 = vpop.f32.mrf.mxu0
        %v5115 = vadd.f32 0.0, %v5114
        %v5116 = vpop.f32.mrf.mxu0
        %v5117 = vpop.f32.mrf.mxu0
        %v5118 = vadd.f32 0.0, %v5117
        %v5119 = vpop.f32.mrf.mxu0
        %5120 = vmatprep.mubr.bf16.mxu0 0
        %5121 = vmatmul.mubr.bf16.gmra.mxu0 %v1164
        %v5122 = vpop.f32.mrf.mxu0
        %v5123 = vadd.f32 0.0, %v5122
        %v5124 = vpop.f32.mrf.mxu0
        %v5125 = vpop.f32.mrf.mxu0
        %v5126 = vadd.f32 0.0, %v5125
        %v5127 = vpop.f32.mrf.mxu0
        %5128 = vmatprep.mubr.bf16.mxu0 0
        %5129 = vmatmul.mubr.bf16.gmra.mxu0 %v2120
        %v5130 = vpop.f32.mrf.mxu0
        %v5131 = vpop.f32.mrf.mxu0
        %v5132 = vpop.f32.mrf.mxu0
        %v5133 = vpop.f32.mrf.mxu0
        %5134 = vdwg.mxu0
        %v5135 = vadd.f32 %v4961, %v5020
        %v5136 = vadd.f32 %v4962, %v5022
        %v5137 = vadd.f32 %v4963, %v5099
        %v5138 = vadd.f32 %v4964, %v5024
        %v5139 = vadd.f32 %v4965, %v5026
        %v5140 = vadd.f32 %v4966, %v5102
        %v5141 = vadd.f32 %v4967, %v5030
        %v5142 = vadd.f32 %v4968, %v5032
        %v5143 = vadd.f32 %v4969, %v5107
        %v5144 = vadd.f32 %v4970, %v5034
        %v5145 = vadd.f32 %v4971, %v5036
        %v5146 = vadd.f32 %v4972, %v5110
        %v5147 = vadd.f32 %v4973, %v5040
        %v5148 = vadd.f32 %v4974, %v5042
        %v5149 = vadd.f32 %v4975, %v5115
        %v5150 = vadd.f32 %v4976, %v5044
        %v5151 = vadd.f32 %v4977, %v5046
        %v5152 = vadd.f32 %v4978, %v5118
        %v5153 = vadd.f32 %v4979, %v5050
        %v5154 = vadd.f32 %v4980, %v5052
        %v5155 = vadd.f32 %v4981, %v5123
        %v5156 = vadd.f32 %v4982, %v5054
        %v5157 = vadd.f32 %v4983, %v5056
        %v5158 = vadd.f32 %v4984, %v5126
        %5159 = vmatprep.subr.bf16.mxu0 0
        %5160 = vmatpush1.bf16.msra.mxu0 0
        %5161 = vmatprep.subr.bf16.mxu0 0
        %5162 = vmatpush1.bf16.msra.mxu0 0
        %5163 = vmatprep.subr.bf16.mxu0 0
        %5164 = vmatpush1.bf16.msra.mxu0 0
        %5165 = vmatprep.subr.bf16.mxu0 0
        %5166 = vmatpush1.bf16.msra.mxu0 0
        %5167 = vmatprep.subr.bf16.mxu0 0
        %5168 = vmatpush1.bf16.msra.mxu0 0
        %5169 = vmatprep.subr.bf16.mxu0 0
        %5170 = vmatpush1.bf16.msra.mxu0 0
        %5171 = vmatprep.subr.bf16.mxu0 %v1890
        %5172 = vmatpush1.bf16.msra.mxu0 %v1887
        %5173 = vmatprep.subr.bf16.mxu0 %v1875
        %5174 = vmatpush1.bf16.msra.mxu0 %v1874
        %5175 = vmatprep.subr.bf16.mxu0 0
        %5176 = vmatpush2.bf16.msra.mxu0 0
        %5177 = vmatprep.subr.bf16.mxu0 0
        %5178 = vmatpush2.bf16.msra.mxu0 0
        %5179 = vmatprep.subr.bf16.mxu0 0
        %5180 = vmatpush2.bf16.msra.mxu0 0
        %5181 = vmatprep.subr.bf16.mxu0 0
        %5182 = vmatpush2.bf16.msra.mxu0 0
        %5183 = vmatprep.subr.bf16.mxu0 0
        %5184 = vmatpush2.bf16.msra.mxu0 0
        %5185 = vmatprep.subr.bf16.mxu0 0
        %5186 = vmatpush2.bf16.msra.mxu0 0
        %5187 = vmatprep.subr.bf16.mxu0 0
        %5188 = vmatpush2.bf16.msra.mxu0 0
        %5189 = vmatprep.subr.bf16.mxu0 0
        %5190 = vmatpush2.bf16.msra.mxu0 0
        %5191 = vmatprep.mubr.bf16.mxu0 0
        %5192 = vmatmul.mubr.bf16.gmra.mxu0 %v1403
        %v5193 = vpop.f32.mrf.mxu0
        %v5194 = vadd.f32 0.0, %v5193
        %v5195 = vpop.f32.mrf.mxu0
        %v5196 = vadd.f32 0.0, %v5195
        %v5197 = vpop.f32.mrf.mxu0
        %v5198 = vadd.f32 0.0, %v5197
        %v5199 = vpop.f32.mrf.mxu0
        %v5200 = vadd.f32 0.0, %v5199
        %5201 = vmatprep.mubr.bf16.mxu0 0
        %5202 = vmatmul.mubr.bf16.gmra.mxu0 %v1406
        %v5203 = vpop.f32.mrf.mxu0
        %v5204 = vadd.f32 0.0, %v5203
        %v5205 = vpop.f32.mrf.mxu0
        %v5206 = vadd.f32 0.0, %v5205
        %v5207 = vpop.f32.mrf.mxu0
        %v5208 = vadd.f32 0.0, %v5207
        %v5209 = vpop.f32.mrf.mxu0
        %v5210 = vadd.f32 0.0, %v5209
        %5211 = vmatprep.mubr.bf16.mxu0 0
        %5212 = vmatmul.mubr.bf16.gmra.mxu0 %v1409
        %v5213 = vpop.f32.mrf.mxu0
        %v5214 = vadd.f32 0.0, %v5213
        %v5215 = vpop.f32.mrf.mxu0
        %v5216 = vadd.f32 0.0, %v5215
        %v5217 = vpop.f32.mrf.mxu0
        %v5218 = vadd.f32 0.0, %v5217
        %v5219 = vpop.f32.mrf.mxu0
        %v5220 = vadd.f32 0.0, %v5219
        %5221 = vmatprep.mubr.bf16.mxu0 0
        %5222 = vmatmul.mubr.bf16.gmra.mxu0 %v1412
        %v5223 = vpop.f32.mrf.mxu0
        %v5224 = vadd.f32 0.0, %v5223
        %v5225 = vpop.f32.mrf.mxu0
        %v5226 = vadd.f32 0.0, %v5225
        %v5227 = vpop.f32.mrf.mxu0
        %v5228 = vadd.f32 0.0, %v5227
        %v5229 = vpop.f32.mrf.mxu0
        %v5230 = vadd.f32 0.0, %v5229
        %5231 = vmatprep.mubr.bf16.mxu0 0
        %5232 = vmatmul.mubr.bf16.gmra.mxu0 %v2356
        %v5233 = vpop.f32.mrf.mxu0
        %v5234 = vpop.f32.mrf.mxu0
        %v5235 = vpop.f32.mrf.mxu0
        %v5236 = vpop.f32.mrf.mxu0
        %5237 = vdwg.mxu0
        %5238 = vmatprep.subr.bf16.mxu0 0
        %5239 = vmatpush1.bf16.msra.mxu0 0
        %5240 = vmatprep.subr.bf16.mxu0 0
        %5241 = vmatpush1.bf16.msra.mxu0 0
        %5242 = vmatprep.subr.bf16.mxu0 0
        %5243 = vmatpush1.bf16.msra.mxu0 0
        %5244 = vmatprep.subr.bf16.mxu0 0
        %5245 = vmatpush1.bf16.msra.mxu0 0
        %5246 = vmatprep.subr.bf16.mxu0 0
        %5247 = vmatpush1.bf16.msra.mxu0 0
        %5248 = vmatprep.subr.bf16.mxu0 0
        %5249 = vmatpush1.bf16.msra.mxu0 0
        %5250 = vmatprep.subr.bf16.mxu0 0
        %5251 = vmatpush1.bf16.msra.mxu0 %v1893
        %5252 = vmatprep.subr.bf16.mxu0 0
        %5253 = vmatpush1.bf16.msra.mxu0 %v1876
        %5254 = vmatprep.subr.bf16.mxu0 0
        %5255 = vmatpush2.bf16.msra.mxu0 0
        %5256 = vmatprep.subr.bf16.mxu0 0
        %5257 = vmatpush2.bf16.msra.mxu0 0
        %5258 = vmatprep.subr.bf16.mxu0 0
        %5259 = vmatpush2.bf16.msra.mxu0 0
        %5260 = vmatprep.subr.bf16.mxu0 0
        %5261 = vmatpush2.bf16.msra.mxu0 0
        %5262 = vmatprep.subr.bf16.mxu0 0
        %5263 = vmatpush2.bf16.msra.mxu0 0
        %5264 = vmatprep.subr.bf16.mxu0 0
        %5265 = vmatpush2.bf16.msra.mxu0 0
        %5266 = vmatprep.subr.bf16.mxu0 0
        %5267 = vmatpush2.bf16.msra.mxu0 0
        %5268 = vmatprep.subr.bf16.mxu0 0
        %5269 = vmatpush2.bf16.msra.mxu0 0
        %5270 = vmatprep.mubr.bf16.mxu0 0
        %5271 = vmatmul.mubr.bf16.gmra.mxu0 %v1403
        %v5272 = vpop.f32.mrf.mxu0
        %v5273 = vadd.f32 0.0, %v5272
        %v5274 = vpop.f32.mrf.mxu0
        %v5275 = vpop.f32.mrf.mxu0
        %v5276 = vadd.f32 0.0, %v5275
        %v5277 = vpop.f32.mrf.mxu0
        %5278 = vmatprep.mubr.bf16.mxu0 0
        %5279 = vmatmul.mubr.bf16.gmra.mxu0 %v1406
        %v5280 = vpop.f32.mrf.mxu0
        %v5281 = vadd.f32 0.0, %v5280
        %v5282 = vpop.f32.mrf.mxu0
        %v5283 = vpop.f32.mrf.mxu0
        %v5284 = vadd.f32 0.0, %v5283
        %v5285 = vpop.f32.mrf.mxu0
        %5286 = vmatprep.mubr.bf16.mxu0 0
        %5287 = vmatmul.mubr.bf16.gmra.mxu0 %v1409
        %v5288 = vpop.f32.mrf.mxu0
        %v5289 = vadd.f32 0.0, %v5288
        %v5290 = vpop.f32.mrf.mxu0
        %v5291 = vpop.f32.mrf.mxu0
        %v5292 = vadd.f32 0.0, %v5291
        %v5293 = vpop.f32.mrf.mxu0
        %5294 = vmatprep.mubr.bf16.mxu0 0
        %5295 = vmatmul.mubr.bf16.gmra.mxu0 %v1412
        %v5296 = vpop.f32.mrf.mxu0
        %v5297 = vadd.f32 0.0, %v5296
        %v5298 = vpop.f32.mrf.mxu0
        %v5299 = vpop.f32.mrf.mxu0
        %v5300 = vadd.f32 0.0, %v5299
        %v5301 = vpop.f32.mrf.mxu0
        %5302 = vmatprep.mubr.bf16.mxu0 0
        %5303 = vmatmul.mubr.bf16.gmra.mxu0 %v2356
        %v5304 = vpop.f32.mrf.mxu0
        %v5305 = vpop.f32.mrf.mxu0
        %v5306 = vpop.f32.mrf.mxu0
        %v5307 = vpop.f32.mrf.mxu0
        %5308 = vdwg.mxu0
        %v5309 = vadd.f32 %v5135, %v5194
        %v5310 = vadd.f32 %v5136, %v5196
        %v5311 = vadd.f32 %v5137, %v5273
        %v5312 = vadd.f32 %v5138, %v5198
        %v5313 = vadd.f32 %v5139, %v5200
        %v5314 = vadd.f32 %v5140, %v5276
        %v5315 = vadd.f32 %v5141, %v5204
        %v5316 = vadd.f32 %v5142, %v5206
        %v5317 = vadd.f32 %v5143, %v5281
        %v5318 = vadd.f32 %v5144, %v5208
        %v5319 = vadd.f32 %v5145, %v5210
        %v5320 = vadd.f32 %v5146, %v5284
        %v5321 = vadd.f32 %v5147, %v5214
        %v5322 = vadd.f32 %v5148, %v5216
        %v5323 = vadd.f32 %v5149, %v5289
        %v5324 = vadd.f32 %v5150, %v5218
        %v5325 = vadd.f32 %v5151, %v5220
        %v5326 = vadd.f32 %v5152, %v5292
        %v5327 = vadd.f32 %v5153, %v5224
        %v5328 = vadd.f32 %v5154, %v5226
        %v5329 = vadd.f32 %v5155, %v5297
        %v5330 = vadd.f32 %v5156, %v5228
        %v5331 = vadd.f32 %v5157, %v5230
        %v5332 = vadd.f32 %v5158, %v5300
        %5333 = vmatprep.subr.bf16.mxu0 0
        %5334 = vmatpush1.bf16.msra.mxu0 0
        %5335 = vmatprep.subr.bf16.mxu0 0
        %5336 = vmatpush1.bf16.msra.mxu0 0
        %5337 = vmatprep.subr.bf16.mxu0 0
        %5338 = vmatpush1.bf16.msra.mxu0 0
        %5339 = vmatprep.subr.bf16.mxu0 0
        %5340 = vmatpush1.bf16.msra.mxu0 0
        %5341 = vmatprep.subr.bf16.mxu0 0
        %5342 = vmatpush1.bf16.msra.mxu0 0
        %5343 = vmatprep.subr.bf16.mxu0 0
        %5344 = vmatpush1.bf16.msra.mxu0 0
        %5345 = vmatprep.subr.bf16.mxu0 %v2126
        %5346 = vmatpush1.bf16.msra.mxu0 %v2123
        %5347 = vmatprep.subr.bf16.mxu0 %v2111
        %5348 = vmatpush1.bf16.msra.mxu0 %v2110
        %5349 = vmatprep.subr.bf16.mxu0 0
        %5350 = vmatpush2.bf16.msra.mxu0 0
        %5351 = vmatprep.subr.bf16.mxu0 0
        %5352 = vmatpush2.bf16.msra.mxu0 0
        %5353 = vmatprep.subr.bf16.mxu0 0
        %5354 = vmatpush2.bf16.msra.mxu0 0
        %5355 = vmatprep.subr.bf16.mxu0 0
        %5356 = vmatpush2.bf16.msra.mxu0 0
        %5357 = vmatprep.subr.bf16.mxu0 0
        %5358 = vmatpush2.bf16.msra.mxu0 0
        %5359 = vmatprep.subr.bf16.mxu0 0
        %5360 = vmatpush2.bf16.msra.mxu0 0
        %5361 = vmatprep.subr.bf16.mxu0 0
        %5362 = vmatpush2.bf16.msra.mxu0 0
        %5363 = vmatprep.subr.bf16.mxu0 0
        %5364 = vmatpush2.bf16.msra.mxu0 0
        %5365 = vmatprep.mubr.bf16.mxu0 0
        %5366 = vmatmul.mubr.bf16.gmra.mxu0 %v940
        %v5367 = vpop.f32.mrf.mxu0
        %v5368 = vadd.f32 0.0, %v5367
        %v5369 = vpop.f32.mrf.mxu0
        %v5370 = vadd.f32 0.0, %v5369
        %v5371 = vpop.f32.mrf.mxu0
        %v5372 = vadd.f32 0.0, %v5371
        %v5373 = vpop.f32.mrf.mxu0
        %v5374 = vadd.f32 0.0, %v5373
        %5375 = vmatprep.mubr.bf16.mxu0 0
        %5376 = vmatmul.mubr.bf16.gmra.mxu0 %v943
        %v5377 = vpop.f32.mrf.mxu0
        %v5378 = vadd.f32 0.0, %v5377
        %v5379 = vpop.f32.mrf.mxu0
        %v5380 = vadd.f32 0.0, %v5379
        %v5381 = vpop.f32.mrf.mxu0
        %v5382 = vadd.f32 0.0, %v5381
        %v5383 = vpop.f32.mrf.mxu0
        %v5384 = vadd.f32 0.0, %v5383
        %5385 = vmatprep.mubr.bf16.mxu0 0
        %5386 = vmatmul.mubr.bf16.gmra.mxu0 %v946
        %v5387 = vpop.f32.mrf.mxu0
        %v5388 = vadd.f32 0.0, %v5387
        %v5389 = vpop.f32.mrf.mxu0
        %v5390 = vadd.f32 0.0, %v5389
        %v5391 = vpop.f32.mrf.mxu0
        %v5392 = vadd.f32 0.0, %v5391
        %v5393 = vpop.f32.mrf.mxu0
        %v5394 = vadd.f32 0.0, %v5393
        %5395 = vmatprep.mubr.bf16.mxu0 0
        %5396 = vmatmul.mubr.bf16.gmra.mxu0 %v1648
        %v5397 = vpop.f32.mrf.mxu0
        %v5398 = vadd.f32 0.0, %v5397
        %v5399 = vpop.f32.mrf.mxu0
        %v5400 = vadd.f32 0.0, %v5399
        %v5401 = vpop.f32.mrf.mxu0
        %v5402 = vadd.f32 0.0, %v5401
        %v5403 = vpop.f32.mrf.mxu0
        %v5404 = vadd.f32 0.0, %v5403
        %5405 = vmatprep.mubr.bf16.mxu0 0
        %5406 = vmatmul.mubr.bf16.gmra.mxu0 %v3873
        %v5407 = vpop.f32.mrf.mxu0
        %v5408 = vpop.f32.mrf.mxu0
        %v5409 = vpop.f32.mrf.mxu0
        %v5410 = vpop.f32.mrf.mxu0
        %5411 = vdwg.mxu0
        %5412 = vmatprep.subr.bf16.mxu0 0
        %5413 = vmatpush1.bf16.msra.mxu0 0
        %5414 = vmatprep.subr.bf16.mxu0 0
        %5415 = vmatpush1.bf16.msra.mxu0 0
        %5416 = vmatprep.subr.bf16.mxu0 0
        %5417 = vmatpush1.bf16.msra.mxu0 0
        %5418 = vmatprep.subr.bf16.mxu0 0
        %5419 = vmatpush1.bf16.msra.mxu0 0
        %5420 = vmatprep.subr.bf16.mxu0 0
        %5421 = vmatpush1.bf16.msra.mxu0 0
        %5422 = vmatprep.subr.bf16.mxu0 0
        %5423 = vmatpush1.bf16.msra.mxu0 0
        %5424 = vmatprep.subr.bf16.mxu0 0
        %5425 = vmatpush1.bf16.msra.mxu0 %v2129
        %5426 = vmatprep.subr.bf16.mxu0 0
        %5427 = vmatpush1.bf16.msra.mxu0 %v2112
        %5428 = vmatprep.subr.bf16.mxu0 0
        %5429 = vmatpush2.bf16.msra.mxu0 0
        %5430 = vmatprep.subr.bf16.mxu0 0
        %5431 = vmatpush2.bf16.msra.mxu0 0
        %5432 = vmatprep.subr.bf16.mxu0 0
        %5433 = vmatpush2.bf16.msra.mxu0 0
        %5434 = vmatprep.subr.bf16.mxu0 0
        %5435 = vmatpush2.bf16.msra.mxu0 0
        %5436 = vmatprep.subr.bf16.mxu0 0
        %5437 = vmatpush2.bf16.msra.mxu0 0
        %5438 = vmatprep.subr.bf16.mxu0 0
        %5439 = vmatpush2.bf16.msra.mxu0 0
        %5440 = vmatprep.subr.bf16.mxu0 0
        %5441 = vmatpush2.bf16.msra.mxu0 0
        %5442 = vmatprep.subr.bf16.mxu0 0
        %5443 = vmatpush2.bf16.msra.mxu0 0
        %5444 = vmatprep.mubr.bf16.mxu0 0
        %5445 = vmatmul.mubr.bf16.gmra.mxu0 %v940
        %v5446 = vpop.f32.mrf.mxu0
        %v5447 = vadd.f32 0.0, %v5446
        %v5448 = vpop.f32.mrf.mxu0
        %v5449 = vpop.f32.mrf.mxu0
        %v5450 = vadd.f32 0.0, %v5449
        %v5451 = vpop.f32.mrf.mxu0
        %5452 = vmatprep.mubr.bf16.mxu0 0
        %5453 = vmatmul.mubr.bf16.gmra.mxu0 %v943
        %v5454 = vpop.f32.mrf.mxu0
        %v5455 = vadd.f32 0.0, %v5454
        %v5456 = vpop.f32.mrf.mxu0
        %v5457 = vpop.f32.mrf.mxu0
        %v5458 = vadd.f32 0.0, %v5457
        %v5459 = vpop.f32.mrf.mxu0
        %5460 = vmatprep.mubr.bf16.mxu0 0
        %5461 = vmatmul.mubr.bf16.gmra.mxu0 %v946
        %v5462 = vpop.f32.mrf.mxu0
        %v5463 = vadd.f32 0.0, %v5462
        %v5464 = vpop.f32.mrf.mxu0
        %v5465 = vpop.f32.mrf.mxu0
        %v5466 = vadd.f32 0.0, %v5465
        %v5467 = vpop.f32.mrf.mxu0
        %5468 = vmatprep.mubr.bf16.mxu0 0
        %5469 = vmatmul.mubr.bf16.gmra.mxu0 %v1648
        %v5470 = vpop.f32.mrf.mxu0
        %v5471 = vadd.f32 0.0, %v5470
        %v5472 = vpop.f32.mrf.mxu0
        %v5473 = vpop.f32.mrf.mxu0
        %v5474 = vadd.f32 0.0, %v5473
        %v5475 = vpop.f32.mrf.mxu0
        %5476 = vmatprep.mubr.bf16.mxu0 0
        %5477 = vmatmul.mubr.bf16.gmra.mxu0 %v3873
        %v5478 = vpop.f32.mrf.mxu0
        %v5479 = vpop.f32.mrf.mxu0
        %v5480 = vpop.f32.mrf.mxu0
        %v5481 = vpop.f32.mrf.mxu0
        %5482 = vdwg.mxu0
        %v5483 = vadd.f32 %v5309, %v5368
        %v5484 = vadd.f32 %v5310, %v5370
        %v5485 = vadd.f32 %v5311, %v5447
        %v5486 = vadd.f32 %v5312, %v5372
        %v5487 = vadd.f32 %v5313, %v5374
        %v5488 = vadd.f32 %v5314, %v5450
        %v5489 = vadd.f32 %v5315, %v5378
        %v5490 = vadd.f32 %v5316, %v5380
        %v5491 = vadd.f32 %v5317, %v5455
        %v5492 = vadd.f32 %v5318, %v5382
        %v5493 = vadd.f32 %v5319, %v5384
        %v5494 = vadd.f32 %v5320, %v5458
        %v5495 = vadd.f32 %v5321, %v5388
        %v5496 = vadd.f32 %v5322, %v5390
        %v5497 = vadd.f32 %v5323, %v5463
        %v5498 = vadd.f32 %v5324, %v5392
        %v5499 = vadd.f32 %v5325, %v5394
        %v5500 = vadd.f32 %v5326, %v5466
        %v5501 = vadd.f32 %v5327, %v5398
        %v5502 = vadd.f32 %v5328, %v5400
        %v5503 = vadd.f32 %v5329, %v5471
        %v5504 = vadd.f32 %v5330, %v5402
        %v5505 = vadd.f32 %v5331, %v5404
        %v5506 = vadd.f32 %v5332, %v5474
        %v5508 = vsel %vm722, %v634, 0
        %5510 = vmatprep.subr.bf16.mxu0 0
        %5511 = vmatpush1.bf16.msra.mxu0 0
        %5512 = vmatprep.subr.bf16.mxu0 0
        %5513 = vmatpush1.bf16.msra.mxu0 0
        %5514 = vmatprep.subr.bf16.mxu0 0
        %5515 = vmatpush1.bf16.msra.mxu0 0
        %5516 = vmatprep.subr.bf16.mxu0 0
        %5517 = vmatpush1.bf16.msra.mxu0 0
        %5518 = vmatprep.subr.bf16.mxu0 0
        %5519 = vmatpush1.bf16.msra.mxu0 0
        %5520 = vmatprep.subr.bf16.mxu0 0
        %5521 = vmatpush1.bf16.msra.mxu0 0
        %5522 = vmatprep.subr.bf16.mxu0 %v2362
        %5523 = vmatpush1.bf16.msra.mxu0 %v2359
        %5524 = vmatprep.subr.bf16.mxu0 %v2347
        %5525 = vmatpush1.bf16.msra.mxu0 %v2346
        %5526 = vmatprep.subr.bf16.mxu0 0
        %5527 = vmatpush2.bf16.msra.mxu0 0
        %5528 = vmatprep.subr.bf16.mxu0 0
        %5529 = vmatpush2.bf16.msra.mxu0 0
        %5530 = vmatprep.subr.bf16.mxu0 0
        %5531 = vmatpush2.bf16.msra.mxu0 0
        %5532 = vmatprep.subr.bf16.mxu0 0
        %5533 = vmatpush2.bf16.msra.mxu0 0
        %5534 = vmatprep.subr.bf16.mxu0 0
        %5535 = vmatpush2.bf16.msra.mxu0 0
        %5536 = vmatprep.subr.bf16.mxu0 0
        %5537 = vmatpush2.bf16.msra.mxu0 0
        %5538 = vmatprep.subr.bf16.mxu0 0
        %5539 = vmatpush2.bf16.msra.mxu0 0
        %5540 = vmatprep.subr.bf16.mxu0 0
        %5541 = vmatpush2.bf16.msra.mxu0 0
        %5542 = vmatprep.mubr.bf16.mxu0 0
        %5543 = vmatmul.mubr.bf16.gmra.mxu0 %v730
        %v5544 = vpop.f32.mrf.mxu0
        %v5545 = vadd.f32 0.0, %v5544
        %v5546 = vpop.f32.mrf.mxu0
        %v5547 = vadd.f32 0.0, %v5546
        %v5548 = vpop.f32.mrf.mxu0
        %v5549 = vadd.f32 0.0, %v5548
        %v5550 = vpop.f32.mrf.mxu0
        %v5551 = vadd.f32 0.0, %v5550
        %5552 = vmatprep.mubr.bf16.mxu0 0
        %5553 = vmatmul.mubr.bf16.gmra.mxu0 %v733
        %v5554 = vpop.f32.mrf.mxu0
        %v5555 = vadd.f32 0.0, %v5554
        %v5556 = vpop.f32.mrf.mxu0
        %v5557 = vadd.f32 0.0, %v5556
        %v5558 = vpop.f32.mrf.mxu0
        %v5559 = vadd.f32 0.0, %v5558
        %v5560 = vpop.f32.mrf.mxu0
        %v5561 = vadd.f32 0.0, %v5560
        %5562 = vmatprep.mubr.bf16.mxu0 0
        %5563 = vmatmul.mubr.bf16.gmra.mxu0 %v736
        %v5564 = vpop.f32.mrf.mxu0
        %v5565 = vadd.f32 0.0, %v5564
        %v5566 = vpop.f32.mrf.mxu0
        %v5567 = vadd.f32 0.0, %v5566
        %v5568 = vpop.f32.mrf.mxu0
        %v5569 = vadd.f32 0.0, %v5568
        %v5570 = vpop.f32.mrf.mxu0
        %v5571 = vadd.f32 0.0, %v5570
        %5572 = vmatprep.mubr.bf16.mxu0 0
        %5573 = vmatmul.mubr.bf16.gmra.mxu0 %v1884
        %v5574 = vpop.f32.mrf.mxu0
        %v5575 = vadd.f32 0.0, %v5574
        %v5576 = vpop.f32.mrf.mxu0
        %v5577 = vadd.f32 0.0, %v5576
        %v5578 = vpop.f32.mrf.mxu0
        %v5579 = vadd.f32 0.0, %v5578
        %v5580 = vpop.f32.mrf.mxu0
        %v5581 = vadd.f32 0.0, %v5580
        %5582 = vmatprep.mubr.bf16.mxu0 0
        %5583 = vmatmul.mubr.bf16.gmra.mxu0 %v5508
        %v5584 = vpop.f32.mrf.mxu0
        %v5585 = vpop.f32.mrf.mxu0
        %v5586 = vpop.f32.mrf.mxu0
        %v5587 = vpop.f32.mrf.mxu0
        %5588 = vdwg.mxu0
        %5589 = vmatprep.subr.bf16.mxu0 0
        %5590 = vmatpush1.bf16.msra.mxu0 0
        %5591 = vmatprep.subr.bf16.mxu0 0
        %5592 = vmatpush1.bf16.msra.mxu0 0
        %5593 = vmatprep.subr.bf16.mxu0 0
        %5594 = vmatpush1.bf16.msra.mxu0 0
        %5595 = vmatprep.subr.bf16.mxu0 0
        %5596 = vmatpush1.bf16.msra.mxu0 0
        %5597 = vmatprep.subr.bf16.mxu0 0
        %5598 = vmatpush1.bf16.msra.mxu0 0
        %5599 = vmatprep.subr.bf16.mxu0 0
        %5600 = vmatpush1.bf16.msra.mxu0 0
        %5601 = vmatprep.subr.bf16.mxu0 0
        %5602 = vmatpush1.bf16.msra.mxu0 %v2365
        %5603 = vmatprep.subr.bf16.mxu0 0
        %5604 = vmatpush1.bf16.msra.mxu0 %v2348
        %5605 = vmatprep.subr.bf16.mxu0 0
        %5606 = vmatpush2.bf16.msra.mxu0 0
        %5607 = vmatprep.subr.bf16.mxu0 0
        %5608 = vmatpush2.bf16.msra.mxu0 0
        %5609 = vmatprep.subr.bf16.mxu0 0
        %5610 = vmatpush2.bf16.msra.mxu0 0
        %5611 = vmatprep.subr.bf16.mxu0 0
        %5612 = vmatpush2.bf16.msra.mxu0 0
        %5613 = vmatprep.subr.bf16.mxu0 0
        %5614 = vmatpush2.bf16.msra.mxu0 0
        %5615 = vmatprep.subr.bf16.mxu0 0
        %5616 = vmatpush2.bf16.msra.mxu0 0
        %5617 = vmatprep.subr.bf16.mxu0 0
        %5618 = vmatpush2.bf16.msra.mxu0 0
        %5619 = vmatprep.subr.bf16.mxu0 0
        %5620 = vmatpush2.bf16.msra.mxu0 0
        %5621 = vmatprep.mubr.bf16.mxu0 0
        %5622 = vmatmul.mubr.bf16.gmra.mxu0 %v730
        %v5623 = vpop.f32.mrf.mxu0
        %v5624 = vadd.f32 0.0, %v5623
        %v5625 = vpop.f32.mrf.mxu0
        %v5626 = vpop.f32.mrf.mxu0
        %v5627 = vadd.f32 0.0, %v5626
        %v5628 = vpop.f32.mrf.mxu0
        %5629 = vmatprep.mubr.bf16.mxu0 0
        %5630 = vmatmul.mubr.bf16.gmra.mxu0 %v733
        %v5631 = vpop.f32.mrf.mxu0
        %v5632 = vadd.f32 0.0, %v5631
        %v5633 = vpop.f32.mrf.mxu0
        %v5634 = vpop.f32.mrf.mxu0
        %v5635 = vadd.f32 0.0, %v5634
        %v5636 = vpop.f32.mrf.mxu0
        %5637 = vmatprep.mubr.bf16.mxu0 0
        %5638 = vmatmul.mubr.bf16.gmra.mxu0 %v736
        %v5639 = vpop.f32.mrf.mxu0
        %v5640 = vadd.f32 0.0, %v5639
        %v5641 = vpop.f32.mrf.mxu0
        %v5642 = vpop.f32.mrf.mxu0
        %v5643 = vadd.f32 0.0, %v5642
        %v5644 = vpop.f32.mrf.mxu0
        %5645 = vmatprep.mubr.bf16.mxu0 0
        %5646 = vmatmul.mubr.bf16.gmra.mxu0 %v1884
        %v5647 = vpop.f32.mrf.mxu0
        %v5648 = vadd.f32 0.0, %v5647
        %v5649 = vpop.f32.mrf.mxu0
        %v5650 = vpop.f32.mrf.mxu0
        %v5651 = vadd.f32 0.0, %v5650
        %v5652 = vpop.f32.mrf.mxu0
        %5653 = vmatprep.mubr.bf16.mxu0 0
        %5654 = vmatmul.mubr.bf16.gmra.mxu0 %v5508
        %v5655 = vpop.f32.mrf.mxu0
        %v5656 = vpop.f32.mrf.mxu0
        %v5657 = vpop.f32.mrf.mxu0
        %v5658 = vpop.f32.mrf.mxu0
        %5659 = vdwg.mxu0
        %v5660 = vadd.f32 %v5483, %v5545
        %v5661 = vadd.f32 %v5484, %v5547
        %v5662 = vadd.f32 %v5485, %v5624
        %v5663 = vadd.f32 %v5486, %v5549
        %v5664 = vadd.f32 %v5487, %v5551
        %v5665 = vadd.f32 %v5488, %v5627
        %v5666 = vadd.f32 %v5489, %v5555
        %v5667 = vadd.f32 %v5490, %v5557
        %v5668 = vadd.f32 %v5491, %v5632
        %v5669 = vadd.f32 %v5492, %v5559
        %v5670 = vadd.f32 %v5493, %v5561
        %v5671 = vadd.f32 %v5494, %v5635
        %v5672 = vadd.f32 %v5495, %v5565
        %v5673 = vadd.f32 %v5496, %v5567
        %v5674 = vadd.f32 %v5497, %v5640
        %v5675 = vadd.f32 %v5498, %v5569
        %v5676 = vadd.f32 %v5499, %v5571
        %v5677 = vadd.f32 %v5500, %v5643
        %v5678 = vadd.f32 %v5501, %v5575
        %v5679 = vadd.f32 %v5502, %v5577
        %v5680 = vadd.f32 %v5503, %v5648
        %v5681 = vadd.f32 %v5504, %v5579
        %v5682 = vadd.f32 %v5505, %v5581
        %v5683 = vadd.f32 %v5506, %v5651
        %v5684 = vadd.f32 %v5660, %v2558
        %v5685 = vadd.f32 %v5661, %v2562
        %v5686 = vadd.f32 %v5662, %v2566
        %v5687 = vadd.f32 %v5663, %v2558
        %v5688 = vadd.f32 %v5664, %v2562
        %v5689 = vadd.f32 %v5665, %v2566
        %v5690 = vadd.f32 %v5666, %v2558
        %v5691 = vadd.f32 %v5667, %v2562
        %v5692 = vadd.f32 %v5668, %v2566
        %v5693 = vadd.f32 %v5669, %v2558
        %v5694 = vadd.f32 %v5670, %v2562
        %v5695 = vadd.f32 %v5671, %v2566
        %v5696 = vadd.f32 %v5672, %v2558
        %v5697 = vadd.f32 %v5673, %v2562
        %v5698 = vadd.f32 %v5674, %v2566
        %v5699 = vadd.f32 %v5675, %v2558
        %v5700 = vadd.f32 %v5676, %v2562
        %v5701 = vadd.f32 %v5677, %v2566
        %v5702 = vadd.f32 %v5678, %v2558
        %v5703 = vadd.f32 %v5679, %v2562
        %v5704 = vadd.f32 %v5680, %v2566
        %v5705 = vadd.f32 %v5681, %v2558
        %v5706 = vadd.f32 %v5682, %v2562
        %v5707 = vadd.f32 %v5683, %v2566
        %v5708 = vmax.f32 %v5684, 0.0
        %v5709 = vmax.f32 %v5685, 0.0
        %v5710 = vmax.f32 %v5686, 0.0
        %v5711 = vmax.f32 %v5687, 0.0
        %v5712 = vmax.f32 %v5688, 0.0
        %v5713 = vmax.f32 %v5689, 0.0
        %v5714 = vmax.f32 %v5690, 0.0
        %v5715 = vmax.f32 %v5691, 0.0
        %v5716 = vmax.f32 %v5692, 0.0
        %v5717 = vmax.f32 %v5693, 0.0
        %v5718 = vmax.f32 %v5694, 0.0
        %v5719 = vmax.f32 %v5695, 0.0
        %v5720 = vmax.f32 %v5696, 0.0
        %v5721 = vmax.f32 %v5697, 0.0
        %v5722 = vmax.f32 %v5698, 0.0
        %v5723 = vmax.f32 %v5699, 0.0
        %v5724 = vmax.f32 %v5700, 0.0
        %v5725 = vmax.f32 %v5701, 0.0
        %v5726 = vmax.f32 %v5702, 0.0
        %v5727 = vmax.f32 %v5703, 0.0
        %v5728 = vmax.f32 %v5704, 0.0
        %v5729 = vmax.f32 %v5705, 0.0
        %v5730 = vmax.f32 %v5706, 0.0
        %v5731 = vmax.f32 %v5707, 0.0
        %5732 = vmatprep.subr.bf16.mxu0 0
        %5733 = vmatpush1.bf16.msra.mxu0 0
        %5734 = vmatprep.subr.bf16.mxu0 0
        %5735 = vmatpush1.bf16.msra.mxu0 0
        %5736 = vmatprep.subr.bf16.mxu0 0
        %5737 = vmatpush1.bf16.msra.mxu0 0
        %5738 = vmatprep.subr.bf16.mxu0 0
        %5739 = vmatpush1.bf16.msra.mxu0 0
        %5740 = vmatprep.subr.bf16.mxu0 0
        %5741 = vmatpush1.bf16.msra.mxu0 0
        %5742 = vmatprep.subr.bf16.mxu0 0
        %5743 = vmatpush1.bf16.msra.mxu0 0
        %5744 = vmatprep.subr.bf16.mxu0 %v743
        %5745 = vmatpush1.bf16.msra.mxu0 %v740
        %5746 = vmatprep.subr.bf16.mxu0 %v714
        %5747 = vmatpush1.bf16.msra.mxu0 %v713
        %5748 = vmatprep.subr.bf16.mxu0 0
        %5749 = vmatpush2.bf16.msra.mxu0 0
        %5750 = vmatprep.subr.bf16.mxu0 0
        %5751 = vmatpush2.bf16.msra.mxu0 0
        %5752 = vmatprep.subr.bf16.mxu0 0
        %5753 = vmatpush2.bf16.msra.mxu0 0
        %5754 = vmatprep.subr.bf16.mxu0 0
        %5755 = vmatpush2.bf16.msra.mxu0 0
        %5756 = vmatprep.subr.bf16.mxu0 0
        %5757 = vmatpush2.bf16.msra.mxu0 0
        %5758 = vmatprep.subr.bf16.mxu0 0
        %5759 = vmatpush2.bf16.msra.mxu0 0
        %5760 = vmatprep.subr.bf16.mxu0 0
        %5761 = vmatpush2.bf16.msra.mxu0 0
        %5762 = vmatprep.subr.bf16.mxu0 0
        %5763 = vmatpush2.bf16.msra.mxu0 0
        %5764 = vmatprep.mubr.bf16.mxu0 0
        %5765 = vmatmul.mubr.bf16.gmra.mxu0 %v937
        %v5766 = vpop.f32.mrf.mxu0
        %v5767 = vadd.f32 0.0, %v5766
        %v5768 = vpop.f32.mrf.mxu0
        %v5769 = vadd.f32 0.0, %v5768
        %v5770 = vpop.f32.mrf.mxu0
        %v5771 = vadd.f32 0.0, %v5770
        %v5772 = vpop.f32.mrf.mxu0
        %v5773 = vadd.f32 0.0, %v5772
        %5774 = vmatprep.mubr.bf16.mxu0 0
        %5775 = vmatmul.mubr.bf16.gmra.mxu0 %v940
        %v5776 = vpop.f32.mrf.mxu0
        %v5777 = vadd.f32 0.0, %v5776
        %v5778 = vpop.f32.mrf.mxu0
        %v5779 = vadd.f32 0.0, %v5778
        %v5780 = vpop.f32.mrf.mxu0
        %v5781 = vadd.f32 0.0, %v5780
        %v5782 = vpop.f32.mrf.mxu0
        %v5783 = vadd.f32 0.0, %v5782
        %5784 = vmatprep.mubr.bf16.mxu0 0
        %5785 = vmatmul.mubr.bf16.gmra.mxu0 %v943
        %v5786 = vpop.f32.mrf.mxu0
        %v5787 = vadd.f32 0.0, %v5786
        %v5788 = vpop.f32.mrf.mxu0
        %v5789 = vadd.f32 0.0, %v5788
        %v5790 = vpop.f32.mrf.mxu0
        %v5791 = vadd.f32 0.0, %v5790
        %v5792 = vpop.f32.mrf.mxu0
        %v5793 = vadd.f32 0.0, %v5792
        %5794 = vmatprep.mubr.bf16.mxu0 0
        %5795 = vmatmul.mubr.bf16.gmra.mxu0 %v946
        %v5796 = vpop.f32.mrf.mxu0
        %v5797 = vadd.f32 0.0, %v5796
        %v5798 = vpop.f32.mrf.mxu0
        %v5799 = vadd.f32 0.0, %v5798
        %v5800 = vpop.f32.mrf.mxu0
        %v5801 = vadd.f32 0.0, %v5800
        %v5802 = vpop.f32.mrf.mxu0
        %v5803 = vadd.f32 0.0, %v5802
        %5804 = vmatprep.mubr.bf16.mxu0 0
        %5805 = vmatmul.mubr.bf16.gmra.mxu0 %v1648
        %v5806 = vpop.f32.mrf.mxu0
        %v5807 = vpop.f32.mrf.mxu0
        %v5808 = vpop.f32.mrf.mxu0
        %v5809 = vpop.f32.mrf.mxu0
        %5810 = vdwg.mxu0
        %5811 = vmatprep.subr.bf16.mxu0 0
        %5812 = vmatpush1.bf16.msra.mxu0 0
        %5813 = vmatprep.subr.bf16.mxu0 0
        %5814 = vmatpush1.bf16.msra.mxu0 0
        %5815 = vmatprep.subr.bf16.mxu0 0
        %5816 = vmatpush1.bf16.msra.mxu0 0
        %5817 = vmatprep.subr.bf16.mxu0 0
        %5818 = vmatpush1.bf16.msra.mxu0 0
        %5819 = vmatprep.subr.bf16.mxu0 0
        %5820 = vmatpush1.bf16.msra.mxu0 0
        %5821 = vmatprep.subr.bf16.mxu0 0
        %5822 = vmatpush1.bf16.msra.mxu0 0
        %5823 = vmatprep.subr.bf16.mxu0 0
        %5824 = vmatpush1.bf16.msra.mxu0 %v746
        %5825 = vmatprep.subr.bf16.mxu0 0
        %5826 = vmatpush1.bf16.msra.mxu0 %v715
        %5827 = vmatprep.subr.bf16.mxu0 0
        %5828 = vmatpush2.bf16.msra.mxu0 0
        %5829 = vmatprep.subr.bf16.mxu0 0
        %5830 = vmatpush2.bf16.msra.mxu0 0
        %5831 = vmatprep.subr.bf16.mxu0 0
        %5832 = vmatpush2.bf16.msra.mxu0 0
        %5833 = vmatprep.subr.bf16.mxu0 0
        %5834 = vmatpush2.bf16.msra.mxu0 0
        %5835 = vmatprep.subr.bf16.mxu0 0
        %5836 = vmatpush2.bf16.msra.mxu0 0
        %5837 = vmatprep.subr.bf16.mxu0 0
        %5838 = vmatpush2.bf16.msra.mxu0 0
        %5839 = vmatprep.subr.bf16.mxu0 0
        %5840 = vmatpush2.bf16.msra.mxu0 0
        %5841 = vmatprep.subr.bf16.mxu0 0
        %5842 = vmatpush2.bf16.msra.mxu0 0
        %5843 = vmatprep.mubr.bf16.mxu0 0
        %5844 = vmatmul.mubr.bf16.gmra.mxu0 %v937
        %v5845 = vpop.f32.mrf.mxu0
        %v5846 = vadd.f32 0.0, %v5845
        %v5847 = vpop.f32.mrf.mxu0
        %v5848 = vpop.f32.mrf.mxu0
        %v5849 = vadd.f32 0.0, %v5848
        %v5850 = vpop.f32.mrf.mxu0
        %5851 = vmatprep.mubr.bf16.mxu0 0
        %5852 = vmatmul.mubr.bf16.gmra.mxu0 %v940
        %v5853 = vpop.f32.mrf.mxu0
        %v5854 = vadd.f32 0.0, %v5853
        %v5855 = vpop.f32.mrf.mxu0
        %v5856 = vpop.f32.mrf.mxu0
        %v5857 = vadd.f32 0.0, %v5856
        %v5858 = vpop.f32.mrf.mxu0
        %5859 = vmatprep.mubr.bf16.mxu0 0
        %5860 = vmatmul.mubr.bf16.gmra.mxu0 %v943
        %v5861 = vpop.f32.mrf.mxu0
        %v5862 = vadd.f32 0.0, %v5861
        %v5863 = vpop.f32.mrf.mxu0
        %v5864 = vpop.f32.mrf.mxu0
        %v5865 = vadd.f32 0.0, %v5864
        %v5866 = vpop.f32.mrf.mxu0
        %5867 = vmatprep.mubr.bf16.mxu0 0
        %5868 = vmatmul.mubr.bf16.gmra.mxu0 %v946
        %v5869 = vpop.f32.mrf.mxu0
        %v5870 = vadd.f32 0.0, %v5869
        %v5871 = vpop.f32.mrf.mxu0
        %v5872 = vpop.f32.mrf.mxu0
        %v5873 = vadd.f32 0.0, %v5872
        %v5874 = vpop.f32.mrf.mxu0
        %5875 = vmatprep.mubr.bf16.mxu0 0
        %5876 = vmatmul.mubr.bf16.gmra.mxu0 %v1648
        %v5877 = vpop.f32.mrf.mxu0
        %v5878 = vpop.f32.mrf.mxu0
        %v5879 = vpop.f32.mrf.mxu0
        %v5880 = vpop.f32.mrf.mxu0
        %5881 = vdwg.mxu0
        %5882 = vmatprep.subr.bf16.mxu0 0
        %5883 = vmatpush1.bf16.msra.mxu0 0
        %5884 = vmatprep.subr.bf16.mxu0 0
        %5885 = vmatpush1.bf16.msra.mxu0 0
        %5886 = vmatprep.subr.bf16.mxu0 0
        %5887 = vmatpush1.bf16.msra.mxu0 0
        %5888 = vmatprep.subr.bf16.mxu0 0
        %5889 = vmatpush1.bf16.msra.mxu0 0
        %5890 = vmatprep.subr.bf16.mxu0 0
        %5891 = vmatpush1.bf16.msra.mxu0 0
        %5892 = vmatprep.subr.bf16.mxu0 0
        %5893 = vmatpush1.bf16.msra.mxu0 0
        %5894 = vmatprep.subr.bf16.mxu0 %v952
        %5895 = vmatpush1.bf16.msra.mxu0 %v949
        %5896 = vmatprep.subr.bf16.mxu0 %v925
        %5897 = vmatpush1.bf16.msra.mxu0 %v924
        %5898 = vmatprep.subr.bf16.mxu0 0
        %5899 = vmatpush2.bf16.msra.mxu0 0
        %5900 = vmatprep.subr.bf16.mxu0 0
        %5901 = vmatpush2.bf16.msra.mxu0 0
        %5902 = vmatprep.subr.bf16.mxu0 0
        %5903 = vmatpush2.bf16.msra.mxu0 0
        %5904 = vmatprep.subr.bf16.mxu0 0
        %5905 = vmatpush2.bf16.msra.mxu0 0
        %5906 = vmatprep.subr.bf16.mxu0 0
        %5907 = vmatpush2.bf16.msra.mxu0 0
        %5908 = vmatprep.subr.bf16.mxu0 0
        %5909 = vmatpush2.bf16.msra.mxu0 0
        %5910 = vmatprep.subr.bf16.mxu0 0
        %5911 = vmatpush2.bf16.msra.mxu0 0
        %5912 = vmatprep.subr.bf16.mxu0 0
        %5913 = vmatpush2.bf16.msra.mxu0 0
        %5914 = vmatprep.mubr.bf16.mxu0 0
        %5915 = vmatmul.mubr.bf16.gmra.mxu0 %v1400
        %v5916 = vpop.f32.mrf.mxu0
        %v5917 = vadd.f32 %v5767, %v5916
        %v5918 = vpop.f32.mrf.mxu0
        %v5919 = vadd.f32 %v5769, %v5918
        %v5920 = vpop.f32.mrf.mxu0
        %v5921 = vadd.f32 %v5771, %v5920
        %v5922 = vpop.f32.mrf.mxu0
        %v5923 = vadd.f32 %v5773, %v5922
        %5924 = vmatprep.mubr.bf16.mxu0 0
        %5925 = vmatmul.mubr.bf16.gmra.mxu0 %v1403
        %v5926 = vpop.f32.mrf.mxu0
        %v5927 = vadd.f32 %v5777, %v5926
        %v5928 = vpop.f32.mrf.mxu0
        %v5929 = vadd.f32 %v5779, %v5928
        %v5930 = vpop.f32.mrf.mxu0
        %v5931 = vadd.f32 %v5781, %v5930
        %v5932 = vpop.f32.mrf.mxu0
        %v5933 = vadd.f32 %v5783, %v5932
        %5934 = vmatprep.mubr.bf16.mxu0 0
        %5935 = vmatmul.mubr.bf16.gmra.mxu0 %v1406
        %v5936 = vpop.f32.mrf.mxu0
        %v5937 = vadd.f32 %v5787, %v5936
        %v5938 = vpop.f32.mrf.mxu0
        %v5939 = vadd.f32 %v5789, %v5938
        %v5940 = vpop.f32.mrf.mxu0
        %v5941 = vadd.f32 %v5791, %v5940
        %v5942 = vpop.f32.mrf.mxu0
        %v5943 = vadd.f32 %v5793, %v5942
        %5944 = vmatprep.mubr.bf16.mxu0 0
        %5945 = vmatmul.mubr.bf16.gmra.mxu0 %v1409
        %v5946 = vpop.f32.mrf.mxu0
        %v5947 = vadd.f32 %v5797, %v5946
        %v5948 = vpop.f32.mrf.mxu0
        %v5949 = vadd.f32 %v5799, %v5948
        %v5950 = vpop.f32.mrf.mxu0
        %v5951 = vadd.f32 %v5801, %v5950
        %v5952 = vpop.f32.mrf.mxu0
        %v5953 = vadd.f32 %v5803, %v5952
        %5954 = vmatprep.mubr.bf16.mxu0 0
        %5955 = vmatmul.mubr.bf16.gmra.mxu0 %v1412
        %v5956 = vpop.f32.mrf.mxu0
        %v5957 = vpop.f32.mrf.mxu0
        %v5958 = vpop.f32.mrf.mxu0
        %v5959 = vpop.f32.mrf.mxu0
        %5960 = vdwg.mxu0
        %5961 = vmatprep.subr.bf16.mxu0 0
        %5962 = vmatpush1.bf16.msra.mxu0 0
        %5963 = vmatprep.subr.bf16.mxu0 0
        %5964 = vmatpush1.bf16.msra.mxu0 0
        %5965 = vmatprep.subr.bf16.mxu0 0
        %5966 = vmatpush1.bf16.msra.mxu0 0
        %5967 = vmatprep.subr.bf16.mxu0 0
        %5968 = vmatpush1.bf16.msra.mxu0 0
        %5969 = vmatprep.subr.bf16.mxu0 0
        %5970 = vmatpush1.bf16.msra.mxu0 0
        %5971 = vmatprep.subr.bf16.mxu0 0
        %5972 = vmatpush1.bf16.msra.mxu0 0
        %5973 = vmatprep.subr.bf16.mxu0 0
        %5974 = vmatpush1.bf16.msra.mxu0 %v955
        %5975 = vmatprep.subr.bf16.mxu0 0
        %5976 = vmatpush1.bf16.msra.mxu0 %v926
        %5977 = vmatprep.subr.bf16.mxu0 0
        %5978 = vmatpush2.bf16.msra.mxu0 0
        %5979 = vmatprep.subr.bf16.mxu0 0
        %5980 = vmatpush2.bf16.msra.mxu0 0
        %5981 = vmatprep.subr.bf16.mxu0 0
        %5982 = vmatpush2.bf16.msra.mxu0 0
        %5983 = vmatprep.subr.bf16.mxu0 0
        %5984 = vmatpush2.bf16.msra.mxu0 0
        %5985 = vmatprep.subr.bf16.mxu0 0
        %5986 = vmatpush2.bf16.msra.mxu0 0
        %5987 = vmatprep.subr.bf16.mxu0 0
        %5988 = vmatpush2.bf16.msra.mxu0 0
        %5989 = vmatprep.subr.bf16.mxu0 0
        %5990 = vmatpush2.bf16.msra.mxu0 0
        %5991 = vmatprep.subr.bf16.mxu0 0
        %5992 = vmatpush2.bf16.msra.mxu0 0
        %5993 = vmatprep.mubr.bf16.mxu0 0
        %5994 = vmatmul.mubr.bf16.gmra.mxu0 %v1400
        %v5995 = vpop.f32.mrf.mxu0
        %v5996 = vadd.f32 %v5846, %v5995
        %v5997 = vpop.f32.mrf.mxu0
        %v5998 = vpop.f32.mrf.mxu0
        %v5999 = vadd.f32 %v5849, %v5998
        %v6000 = vpop.f32.mrf.mxu0
        %6001 = vmatprep.mubr.bf16.mxu0 0
        %6002 = vmatmul.mubr.bf16.gmra.mxu0 %v1403
        %v6003 = vpop.f32.mrf.mxu0
        %v6004 = vadd.f32 %v5854, %v6003
        %v6005 = vpop.f32.mrf.mxu0
        %v6006 = vpop.f32.mrf.mxu0
        %v6007 = vadd.f32 %v5857, %v6006
        %v6008 = vpop.f32.mrf.mxu0
        %6009 = vmatprep.mubr.bf16.mxu0 0
        %6010 = vmatmul.mubr.bf16.gmra.mxu0 %v1406
        %v6011 = vpop.f32.mrf.mxu0
        %v6012 = vadd.f32 %v5862, %v6011
        %v6013 = vpop.f32.mrf.mxu0
        %v6014 = vpop.f32.mrf.mxu0
        %v6015 = vadd.f32 %v5865, %v6014
        %v6016 = vpop.f32.mrf.mxu0
        %6017 = vmatprep.mubr.bf16.mxu0 0
        %6018 = vmatmul.mubr.bf16.gmra.mxu0 %v1409
        %v6019 = vpop.f32.mrf.mxu0
        %v6020 = vadd.f32 %v5870, %v6019
        %v6021 = vpop.f32.mrf.mxu0
        %v6022 = vpop.f32.mrf.mxu0
        %v6023 = vadd.f32 %v5873, %v6022
        %v6024 = vpop.f32.mrf.mxu0
        %6025 = vmatprep.mubr.bf16.mxu0 0
        %6026 = vmatmul.mubr.bf16.gmra.mxu0 %v1412
        %v6027 = vpop.f32.mrf.mxu0
        %v6028 = vpop.f32.mrf.mxu0
        %v6029 = vpop.f32.mrf.mxu0
        %v6030 = vpop.f32.mrf.mxu0
        %6031 = vdwg.mxu0
        %6032 = vmatprep.subr.bf16.mxu0 0
        %6033 = vmatpush1.bf16.msra.mxu0 0
        %6034 = vmatprep.subr.bf16.mxu0 0
        %6035 = vmatpush1.bf16.msra.mxu0 0
        %6036 = vmatprep.subr.bf16.mxu0 0
        %6037 = vmatpush1.bf16.msra.mxu0 0
        %6038 = vmatprep.subr.bf16.mxu0 0
        %6039 = vmatpush1.bf16.msra.mxu0 0
        %6040 = vmatprep.subr.bf16.mxu0 0
        %6041 = vmatpush1.bf16.msra.mxu0 0
        %6042 = vmatprep.subr.bf16.mxu0 0
        %6043 = vmatpush1.bf16.msra.mxu0 0
        %6044 = vmatprep.subr.bf16.mxu0 %v1170
        %6045 = vmatpush1.bf16.msra.mxu0 %v1167
        %6046 = vmatprep.subr.bf16.mxu0 %v1143
        %6047 = vmatpush1.bf16.msra.mxu0 %v1142
        %6048 = vmatprep.subr.bf16.mxu0 0
        %6049 = vmatpush2.bf16.msra.mxu0 0
        %6050 = vmatprep.subr.bf16.mxu0 0
        %6051 = vmatpush2.bf16.msra.mxu0 0
        %6052 = vmatprep.subr.bf16.mxu0 0
        %6053 = vmatpush2.bf16.msra.mxu0 0
        %6054 = vmatprep.subr.bf16.mxu0 0
        %6055 = vmatpush2.bf16.msra.mxu0 0
        %6056 = vmatprep.subr.bf16.mxu0 0
        %6057 = vmatpush2.bf16.msra.mxu0 0
        %6058 = vmatprep.subr.bf16.mxu0 0
        %6059 = vmatpush2.bf16.msra.mxu0 0
        %6060 = vmatprep.subr.bf16.mxu0 0
        %6061 = vmatpush2.bf16.msra.mxu0 0
        %6062 = vmatprep.subr.bf16.mxu0 0
        %6063 = vmatpush2.bf16.msra.mxu0 0
        %6064 = vmatprep.mubr.bf16.mxu0 0
        %6065 = vmatmul.mubr.bf16.gmra.mxu0 %v727
        %v6066 = vpop.f32.mrf.mxu0
        %v6067 = vadd.f32 0.0, %v6066
        %v6068 = vpop.f32.mrf.mxu0
        %v6069 = vadd.f32 0.0, %v6068
        %v6070 = vpop.f32.mrf.mxu0
        %v6071 = vadd.f32 0.0, %v6070
        %v6072 = vpop.f32.mrf.mxu0
        %v6073 = vadd.f32 0.0, %v6072
        %6074 = vmatprep.mubr.bf16.mxu0 0
        %6075 = vmatmul.mubr.bf16.gmra.mxu0 %v730
        %v6076 = vpop.f32.mrf.mxu0
        %v6077 = vadd.f32 0.0, %v6076
        %v6078 = vpop.f32.mrf.mxu0
        %v6079 = vadd.f32 0.0, %v6078
        %v6080 = vpop.f32.mrf.mxu0
        %v6081 = vadd.f32 0.0, %v6080
        %v6082 = vpop.f32.mrf.mxu0
        %v6083 = vadd.f32 0.0, %v6082
        %6084 = vmatprep.mubr.bf16.mxu0 0
        %6085 = vmatmul.mubr.bf16.gmra.mxu0 %v733
        %v6086 = vpop.f32.mrf.mxu0
        %v6087 = vadd.f32 0.0, %v6086
        %v6088 = vpop.f32.mrf.mxu0
        %v6089 = vadd.f32 0.0, %v6088
        %v6090 = vpop.f32.mrf.mxu0
        %v6091 = vadd.f32 0.0, %v6090
        %v6092 = vpop.f32.mrf.mxu0
        %v6093 = vadd.f32 0.0, %v6092
        %6094 = vmatprep.mubr.bf16.mxu0 0
        %6095 = vmatmul.mubr.bf16.gmra.mxu0 %v736
        %v6096 = vpop.f32.mrf.mxu0
        %v6097 = vadd.f32 0.0, %v6096
        %v6098 = vpop.f32.mrf.mxu0
        %v6099 = vadd.f32 0.0, %v6098
        %v6100 = vpop.f32.mrf.mxu0
        %v6101 = vadd.f32 0.0, %v6100
        %v6102 = vpop.f32.mrf.mxu0
        %v6103 = vadd.f32 0.0, %v6102
        %6104 = vmatprep.mubr.bf16.mxu0 0
        %6105 = vmatmul.mubr.bf16.gmra.mxu0 %v1884
        %v6106 = vpop.f32.mrf.mxu0
        %v6107 = vpop.f32.mrf.mxu0
        %v6108 = vpop.f32.mrf.mxu0
        %v6109 = vpop.f32.mrf.mxu0
        %6110 = vdwg.mxu0
        %6111 = vmatprep.subr.bf16.mxu0 0
        %6112 = vmatpush1.bf16.msra.mxu0 0
        %6113 = vmatprep.subr.bf16.mxu0 0
        %6114 = vmatpush1.bf16.msra.mxu0 0
        %6115 = vmatprep.subr.bf16.mxu0 0
        %6116 = vmatpush1.bf16.msra.mxu0 0
        %6117 = vmatprep.subr.bf16.mxu0 0
        %6118 = vmatpush1.bf16.msra.mxu0 0
        %6119 = vmatprep.subr.bf16.mxu0 0
        %6120 = vmatpush1.bf16.msra.mxu0 0
        %6121 = vmatprep.subr.bf16.mxu0 0
        %6122 = vmatpush1.bf16.msra.mxu0 0
        %6123 = vmatprep.subr.bf16.mxu0 0
        %6124 = vmatpush1.bf16.msra.mxu0 %v1173
        %6125 = vmatprep.subr.bf16.mxu0 0
        %6126 = vmatpush1.bf16.msra.mxu0 %v1144
        %6127 = vmatprep.subr.bf16.mxu0 0
        %6128 = vmatpush2.bf16.msra.mxu0 0
        %6129 = vmatprep.subr.bf16.mxu0 0
        %6130 = vmatpush2.bf16.msra.mxu0 0
        %6131 = vmatprep.subr.bf16.mxu0 0
        %6132 = vmatpush2.bf16.msra.mxu0 0
        %6133 = vmatprep.subr.bf16.mxu0 0
        %6134 = vmatpush2.bf16.msra.mxu0 0
        %6135 = vmatprep.subr.bf16.mxu0 0
        %6136 = vmatpush2.bf16.msra.mxu0 0
        %6137 = vmatprep.subr.bf16.mxu0 0
        %6138 = vmatpush2.bf16.msra.mxu0 0
        %6139 = vmatprep.subr.bf16.mxu0 0
        %6140 = vmatpush2.bf16.msra.mxu0 0
        %6141 = vmatprep.subr.bf16.mxu0 0
        %6142 = vmatpush2.bf16.msra.mxu0 0
        %6143 = vmatprep.mubr.bf16.mxu0 0
        %6144 = vmatmul.mubr.bf16.gmra.mxu0 %v727
        %v6145 = vpop.f32.mrf.mxu0
        %v6146 = vadd.f32 0.0, %v6145
        %v6147 = vpop.f32.mrf.mxu0
        %v6148 = vpop.f32.mrf.mxu0
        %v6149 = vadd.f32 0.0, %v6148
        %v6150 = vpop.f32.mrf.mxu0
        %6151 = vmatprep.mubr.bf16.mxu0 0
        %6152 = vmatmul.mubr.bf16.gmra.mxu0 %v730
        %v6153 = vpop.f32.mrf.mxu0
        %v6154 = vadd.f32 0.0, %v6153
        %v6155 = vpop.f32.mrf.mxu0
        %v6156 = vpop.f32.mrf.mxu0
        %v6157 = vadd.f32 0.0, %v6156
        %v6158 = vpop.f32.mrf.mxu0
        %6159 = vmatprep.mubr.bf16.mxu0 0
        %6160 = vmatmul.mubr.bf16.gmra.mxu0 %v733
        %v6161 = vpop.f32.mrf.mxu0
        %v6162 = vadd.f32 0.0, %v6161
        %v6163 = vpop.f32.mrf.mxu0
        %v6164 = vpop.f32.mrf.mxu0
        %v6165 = vadd.f32 0.0, %v6164
        %v6166 = vpop.f32.mrf.mxu0
        %6167 = vmatprep.mubr.bf16.mxu0 0
        %6168 = vmatmul.mubr.bf16.gmra.mxu0 %v736
        %v6169 = vpop.f32.mrf.mxu0
        %v6170 = vadd.f32 0.0, %v6169
        %v6171 = vpop.f32.mrf.mxu0
        %v6172 = vpop.f32.mrf.mxu0
        %v6173 = vadd.f32 0.0, %v6172
        %v6174 = vpop.f32.mrf.mxu0
        %6175 = vmatprep.mubr.bf16.mxu0 0
        %6176 = vmatmul.mubr.bf16.gmra.mxu0 %v1884
        %v6177 = vpop.f32.mrf.mxu0
        %v6178 = vpop.f32.mrf.mxu0
        %v6179 = vpop.f32.mrf.mxu0
        %v6180 = vpop.f32.mrf.mxu0
        %6181 = vdwg.mxu0
        %v6182 = vadd.f32 %v5917, %v6067
        %v6183 = vadd.f32 %v5919, %v6069
        %v6184 = vadd.f32 %v5996, %v6146
        %v6185 = vadd.f32 %v5921, %v6071
        %v6186 = vadd.f32 %v5923, %v6073
        %v6187 = vadd.f32 %v5999, %v6149
        %v6188 = vadd.f32 %v5927, %v6077
        %v6189 = vadd.f32 %v5929, %v6079
        %v6190 = vadd.f32 %v6004, %v6154
        %v6191 = vadd.f32 %v5931, %v6081
        %v6192 = vadd.f32 %v5933, %v6083
        %v6193 = vadd.f32 %v6007, %v6157
        %v6194 = vadd.f32 %v5937, %v6087
        %v6195 = vadd.f32 %v5939, %v6089
        %v6196 = vadd.f32 %v6012, %v6162
        %v6197 = vadd.f32 %v5941, %v6091
        %v6198 = vadd.f32 %v5943, %v6093
        %v6199 = vadd.f32 %v6015, %v6165
        %v6200 = vadd.f32 %v5947, %v6097
        %v6201 = vadd.f32 %v5949, %v6099
        %v6202 = vadd.f32 %v6020, %v6170
        %v6203 = vadd.f32 %v5951, %v6101
        %v6204 = vadd.f32 %v5953, %v6103
        %v6205 = vadd.f32 %v6023, %v6173
        %6206 = vmatprep.subr.bf16.mxu0 0
        %6207 = vmatpush1.bf16.msra.mxu0 0
        %6208 = vmatprep.subr.bf16.mxu0 0
        %6209 = vmatpush1.bf16.msra.mxu0 0
        %6210 = vmatprep.subr.bf16.mxu0 0
        %6211 = vmatpush1.bf16.msra.mxu0 0
        %6212 = vmatprep.subr.bf16.mxu0 0
        %6213 = vmatpush1.bf16.msra.mxu0 0
        %6214 = vmatprep.subr.bf16.mxu0 0
        %6215 = vmatpush1.bf16.msra.mxu0 0
        %6216 = vmatprep.subr.bf16.mxu0 0
        %6217 = vmatpush1.bf16.msra.mxu0 0
        %6218 = vmatprep.subr.bf16.mxu0 %v1418
        %6219 = vmatpush1.bf16.msra.mxu0 %v1415
        %6220 = vmatprep.subr.bf16.mxu0 %v1391
        %6221 = vmatpush1.bf16.msra.mxu0 %v1390
        %6222 = vmatprep.subr.bf16.mxu0 0
        %6223 = vmatpush2.bf16.msra.mxu0 0
        %6224 = vmatprep.subr.bf16.mxu0 0
        %6225 = vmatpush2.bf16.msra.mxu0 0
        %6226 = vmatprep.subr.bf16.mxu0 0
        %6227 = vmatpush2.bf16.msra.mxu0 0
        %6228 = vmatprep.subr.bf16.mxu0 0
        %6229 = vmatpush2.bf16.msra.mxu0 0
        %6230 = vmatprep.subr.bf16.mxu0 0
        %6231 = vmatpush2.bf16.msra.mxu0 0
        %6232 = vmatprep.subr.bf16.mxu0 0
        %6233 = vmatpush2.bf16.msra.mxu0 0
        %6234 = vmatprep.subr.bf16.mxu0 0
        %6235 = vmatpush2.bf16.msra.mxu0 0
        %6236 = vmatprep.subr.bf16.mxu0 0
        %6237 = vmatpush2.bf16.msra.mxu0 0
        %6238 = vmatprep.mubr.bf16.mxu0 0
        %6239 = vmatmul.mubr.bf16.gmra.mxu0 %v1155
        %v6240 = vpop.f32.mrf.mxu0
        %v6241 = vadd.f32 0.0, %v6240
        %v6242 = vpop.f32.mrf.mxu0
        %v6243 = vadd.f32 0.0, %v6242
        %v6244 = vpop.f32.mrf.mxu0
        %v6245 = vadd.f32 0.0, %v6244
        %v6246 = vpop.f32.mrf.mxu0
        %v6247 = vadd.f32 0.0, %v6246
        %6248 = vmatprep.mubr.bf16.mxu0 0
        %6249 = vmatmul.mubr.bf16.gmra.mxu0 %v1158
        %v6250 = vpop.f32.mrf.mxu0
        %v6251 = vadd.f32 0.0, %v6250
        %v6252 = vpop.f32.mrf.mxu0
        %v6253 = vadd.f32 0.0, %v6252
        %v6254 = vpop.f32.mrf.mxu0
        %v6255 = vadd.f32 0.0, %v6254
        %v6256 = vpop.f32.mrf.mxu0
        %v6257 = vadd.f32 0.0, %v6256
        %6258 = vmatprep.mubr.bf16.mxu0 0
        %6259 = vmatmul.mubr.bf16.gmra.mxu0 %v1161
        %v6260 = vpop.f32.mrf.mxu0
        %v6261 = vadd.f32 0.0, %v6260
        %v6262 = vpop.f32.mrf.mxu0
        %v6263 = vadd.f32 0.0, %v6262
        %v6264 = vpop.f32.mrf.mxu0
        %v6265 = vadd.f32 0.0, %v6264
        %v6266 = vpop.f32.mrf.mxu0
        %v6267 = vadd.f32 0.0, %v6266
        %6268 = vmatprep.mubr.bf16.mxu0 0
        %6269 = vmatmul.mubr.bf16.gmra.mxu0 %v1164
        %v6270 = vpop.f32.mrf.mxu0
        %v6271 = vadd.f32 0.0, %v6270
        %v6272 = vpop.f32.mrf.mxu0
        %v6273 = vadd.f32 0.0, %v6272
        %v6274 = vpop.f32.mrf.mxu0
        %v6275 = vadd.f32 0.0, %v6274
        %v6276 = vpop.f32.mrf.mxu0
        %v6277 = vadd.f32 0.0, %v6276
        %6278 = vmatprep.mubr.bf16.mxu0 0
        %6279 = vmatmul.mubr.bf16.gmra.mxu0 %v2120
        %v6280 = vpop.f32.mrf.mxu0
        %v6281 = vpop.f32.mrf.mxu0
        %v6282 = vpop.f32.mrf.mxu0
        %v6283 = vpop.f32.mrf.mxu0
        %6284 = vdwg.mxu0
        %6285 = vmatprep.subr.bf16.mxu0 0
        %6286 = vmatpush1.bf16.msra.mxu0 0
        %6287 = vmatprep.subr.bf16.mxu0 0
        %6288 = vmatpush1.bf16.msra.mxu0 0
        %6289 = vmatprep.subr.bf16.mxu0 0
        %6290 = vmatpush1.bf16.msra.mxu0 0
        %6291 = vmatprep.subr.bf16.mxu0 0
        %6292 = vmatpush1.bf16.msra.mxu0 0
        %6293 = vmatprep.subr.bf16.mxu0 0
        %6294 = vmatpush1.bf16.msra.mxu0 0
        %6295 = vmatprep.subr.bf16.mxu0 0
        %6296 = vmatpush1.bf16.msra.mxu0 0
        %6297 = vmatprep.subr.bf16.mxu0 0
        %6298 = vmatpush1.bf16.msra.mxu0 %v1421
        %6299 = vmatprep.subr.bf16.mxu0 0
        %6300 = vmatpush1.bf16.msra.mxu0 %v1392
        %6301 = vmatprep.subr.bf16.mxu0 0
        %6302 = vmatpush2.bf16.msra.mxu0 0
        %6303 = vmatprep.subr.bf16.mxu0 0
        %6304 = vmatpush2.bf16.msra.mxu0 0
        %6305 = vmatprep.subr.bf16.mxu0 0
        %6306 = vmatpush2.bf16.msra.mxu0 0
        %6307 = vmatprep.subr.bf16.mxu0 0
        %6308 = vmatpush2.bf16.msra.mxu0 0
        %6309 = vmatprep.subr.bf16.mxu0 0
        %6310 = vmatpush2.bf16.msra.mxu0 0
        %6311 = vmatprep.subr.bf16.mxu0 0
        %6312 = vmatpush2.bf16.msra.mxu0 0
        %6313 = vmatprep.subr.bf16.mxu0 0
        %6314 = vmatpush2.bf16.msra.mxu0 0
        %6315 = vmatprep.subr.bf16.mxu0 0
        %6316 = vmatpush2.bf16.msra.mxu0 0
        %6317 = vmatprep.mubr.bf16.mxu0 0
        %6318 = vmatmul.mubr.bf16.gmra.mxu0 %v1155
        %v6319 = vpop.f32.mrf.mxu0
        %v6320 = vadd.f32 0.0, %v6319
        %v6321 = vpop.f32.mrf.mxu0
        %v6322 = vpop.f32.mrf.mxu0
        %v6323 = vadd.f32 0.0, %v6322
        %v6324 = vpop.f32.mrf.mxu0
        %6325 = vmatprep.mubr.bf16.mxu0 0
        %6326 = vmatmul.mubr.bf16.gmra.mxu0 %v1158
        %v6327 = vpop.f32.mrf.mxu0
        %v6328 = vadd.f32 0.0, %v6327
        %v6329 = vpop.f32.mrf.mxu0
        %v6330 = vpop.f32.mrf.mxu0
        %v6331 = vadd.f32 0.0, %v6330
        %v6332 = vpop.f32.mrf.mxu0
        %6333 = vmatprep.mubr.bf16.mxu0 0
        %6334 = vmatmul.mubr.bf16.gmra.mxu0 %v1161
        %v6335 = vpop.f32.mrf.mxu0
        %v6336 = vadd.f32 0.0, %v6335
        %v6337 = vpop.f32.mrf.mxu0
        %v6338 = vpop.f32.mrf.mxu0
        %v6339 = vadd.f32 0.0, %v6338
        %v6340 = vpop.f32.mrf.mxu0
        %6341 = vmatprep.mubr.bf16.mxu0 0
        %6342 = vmatmul.mubr.bf16.gmra.mxu0 %v1164
        %v6343 = vpop.f32.mrf.mxu0
        %v6344 = vadd.f32 0.0, %v6343
        %v6345 = vpop.f32.mrf.mxu0
        %v6346 = vpop.f32.mrf.mxu0
        %v6347 = vadd.f32 0.0, %v6346
        %v6348 = vpop.f32.mrf.mxu0
        %6349 = vmatprep.mubr.bf16.mxu0 0
        %6350 = vmatmul.mubr.bf16.gmra.mxu0 %v2120
        %v6351 = vpop.f32.mrf.mxu0
        %v6352 = vpop.f32.mrf.mxu0
        %v6353 = vpop.f32.mrf.mxu0
        %v6354 = vpop.f32.mrf.mxu0
        %6355 = vdwg.mxu0
        %v6356 = vadd.f32 %v6182, %v6241
        %v6357 = vadd.f32 %v6183, %v6243
        %v6358 = vadd.f32 %v6184, %v6320
        %v6359 = vadd.f32 %v6185, %v6245
        %v6360 = vadd.f32 %v6186, %v6247
        %v6361 = vadd.f32 %v6187, %v6323
        %v6362 = vadd.f32 %v6188, %v6251
        %v6363 = vadd.f32 %v6189, %v6253
        %v6364 = vadd.f32 %v6190, %v6328
        %v6365 = vadd.f32 %v6191, %v6255
        %v6366 = vadd.f32 %v6192, %v6257
        %v6367 = vadd.f32 %v6193, %v6331
        %v6368 = vadd.f32 %v6194, %v6261
        %v6369 = vadd.f32 %v6195, %v6263
        %v6370 = vadd.f32 %v6196, %v6336
        %v6371 = vadd.f32 %v6197, %v6265
        %v6372 = vadd.f32 %v6198, %v6267
        %v6373 = vadd.f32 %v6199, %v6339
        %v6374 = vadd.f32 %v6200, %v6271
        %v6375 = vadd.f32 %v6201, %v6273
        %v6376 = vadd.f32 %v6202, %v6344
        %v6377 = vadd.f32 %v6203, %v6275
        %v6378 = vadd.f32 %v6204, %v6277
        %v6379 = vadd.f32 %v6205, %v6347
        %6380 = vmatprep.subr.bf16.mxu0 0
        %6381 = vmatpush1.bf16.msra.mxu0 0
        %6382 = vmatprep.subr.bf16.mxu0 0
        %6383 = vmatpush1.bf16.msra.mxu0 0
        %6384 = vmatprep.subr.bf16.mxu0 0
        %6385 = vmatpush1.bf16.msra.mxu0 0
        %6386 = vmatprep.subr.bf16.mxu0 0
        %6387 = vmatpush1.bf16.msra.mxu0 0
        %6388 = vmatprep.subr.bf16.mxu0 0
        %6389 = vmatpush1.bf16.msra.mxu0 0
        %6390 = vmatprep.subr.bf16.mxu0 0
        %6391 = vmatpush1.bf16.msra.mxu0 0
        %6392 = vmatprep.subr.bf16.mxu0 %v1654
        %6393 = vmatpush1.bf16.msra.mxu0 %v1651
        %6394 = vmatprep.subr.bf16.mxu0 %v1639
        %6395 = vmatpush1.bf16.msra.mxu0 %v1638
        %6396 = vmatprep.subr.bf16.mxu0 0
        %6397 = vmatpush2.bf16.msra.mxu0 0
        %6398 = vmatprep.subr.bf16.mxu0 0
        %6399 = vmatpush2.bf16.msra.mxu0 0
        %6400 = vmatprep.subr.bf16.mxu0 0
        %6401 = vmatpush2.bf16.msra.mxu0 0
        %6402 = vmatprep.subr.bf16.mxu0 0
        %6403 = vmatpush2.bf16.msra.mxu0 0
        %6404 = vmatprep.subr.bf16.mxu0 0
        %6405 = vmatpush2.bf16.msra.mxu0 0
        %6406 = vmatprep.subr.bf16.mxu0 0
        %6407 = vmatpush2.bf16.msra.mxu0 0
        %6408 = vmatprep.subr.bf16.mxu0 0
        %6409 = vmatpush2.bf16.msra.mxu0 0
        %6410 = vmatprep.subr.bf16.mxu0 0
        %6411 = vmatpush2.bf16.msra.mxu0 0
        %6412 = vmatprep.mubr.bf16.mxu0 0
        %6413 = vmatmul.mubr.bf16.gmra.mxu0 %v1403
        %v6414 = vpop.f32.mrf.mxu0
        %v6415 = vadd.f32 0.0, %v6414
        %v6416 = vpop.f32.mrf.mxu0
        %v6417 = vadd.f32 0.0, %v6416
        %v6418 = vpop.f32.mrf.mxu0
        %v6419 = vadd.f32 0.0, %v6418
        %v6420 = vpop.f32.mrf.mxu0
        %v6421 = vadd.f32 0.0, %v6420
        %6422 = vmatprep.mubr.bf16.mxu0 0
        %6423 = vmatmul.mubr.bf16.gmra.mxu0 %v1406
        %v6424 = vpop.f32.mrf.mxu0
        %v6425 = vadd.f32 0.0, %v6424
        %v6426 = vpop.f32.mrf.mxu0
        %v6427 = vadd.f32 0.0, %v6426
        %v6428 = vpop.f32.mrf.mxu0
        %v6429 = vadd.f32 0.0, %v6428
        %v6430 = vpop.f32.mrf.mxu0
        %v6431 = vadd.f32 0.0, %v6430
        %6432 = vmatprep.mubr.bf16.mxu0 0
        %6433 = vmatmul.mubr.bf16.gmra.mxu0 %v1409
        %v6434 = vpop.f32.mrf.mxu0
        %v6435 = vadd.f32 0.0, %v6434
        %v6436 = vpop.f32.mrf.mxu0
        %v6437 = vadd.f32 0.0, %v6436
        %v6438 = vpop.f32.mrf.mxu0
        %v6439 = vadd.f32 0.0, %v6438
        %v6440 = vpop.f32.mrf.mxu0
        %v6441 = vadd.f32 0.0, %v6440
        %6442 = vmatprep.mubr.bf16.mxu0 0
        %6443 = vmatmul.mubr.bf16.gmra.mxu0 %v1412
        %v6444 = vpop.f32.mrf.mxu0
        %v6445 = vadd.f32 0.0, %v6444
        %v6446 = vpop.f32.mrf.mxu0
        %v6447 = vadd.f32 0.0, %v6446
        %v6448 = vpop.f32.mrf.mxu0
        %v6449 = vadd.f32 0.0, %v6448
        %v6450 = vpop.f32.mrf.mxu0
        %v6451 = vadd.f32 0.0, %v6450
        %6452 = vmatprep.mubr.bf16.mxu0 0
        %6453 = vmatmul.mubr.bf16.gmra.mxu0 %v2356
        %v6454 = vpop.f32.mrf.mxu0
        %v6455 = vpop.f32.mrf.mxu0
        %v6456 = vpop.f32.mrf.mxu0
        %v6457 = vpop.f32.mrf.mxu0
        %6458 = vdwg.mxu0
        %6459 = vmatprep.subr.bf16.mxu0 0
        %6460 = vmatpush1.bf16.msra.mxu0 0
        %6461 = vmatprep.subr.bf16.mxu0 0
        %6462 = vmatpush1.bf16.msra.mxu0 0
        %6463 = vmatprep.subr.bf16.mxu0 0
        %6464 = vmatpush1.bf16.msra.mxu0 0
        %6465 = vmatprep.subr.bf16.mxu0 0
        %6466 = vmatpush1.bf16.msra.mxu0 0
        %6467 = vmatprep.subr.bf16.mxu0 0
        %6468 = vmatpush1.bf16.msra.mxu0 0
        %6469 = vmatprep.subr.bf16.mxu0 0
        %6470 = vmatpush1.bf16.msra.mxu0 0
        %6471 = vmatprep.subr.bf16.mxu0 0
        %6472 = vmatpush1.bf16.msra.mxu0 %v1657
        %6473 = vmatprep.subr.bf16.mxu0 0
        %6474 = vmatpush1.bf16.msra.mxu0 %v1640
        %6475 = vmatprep.subr.bf16.mxu0 0
        %6476 = vmatpush2.bf16.msra.mxu0 0
        %6477 = vmatprep.subr.bf16.mxu0 0
        %6478 = vmatpush2.bf16.msra.mxu0 0
        %6479 = vmatprep.subr.bf16.mxu0 0
        %6480 = vmatpush2.bf16.msra.mxu0 0
        %6481 = vmatprep.subr.bf16.mxu0 0
        %6482 = vmatpush2.bf16.msra.mxu0 0
        %6483 = vmatprep.subr.bf16.mxu0 0
        %6484 = vmatpush2.bf16.msra.mxu0 0
        %6485 = vmatprep.subr.bf16.mxu0 0
        %6486 = vmatpush2.bf16.msra.mxu0 0
        %6487 = vmatprep.subr.bf16.mxu0 0
        %6488 = vmatpush2.bf16.msra.mxu0 0
        %6489 = vmatprep.subr.bf16.mxu0 0
        %6490 = vmatpush2.bf16.msra.mxu0 0
        %6491 = vmatprep.mubr.bf16.mxu0 0
        %6492 = vmatmul.mubr.bf16.gmra.mxu0 %v1403
        %v6493 = vpop.f32.mrf.mxu0
        %v6494 = vadd.f32 0.0, %v6493
        %v6495 = vpop.f32.mrf.mxu0
        %v6496 = vpop.f32.mrf.mxu0
        %v6497 = vadd.f32 0.0, %v6496
        %v6498 = vpop.f32.mrf.mxu0
        %6499 = vmatprep.mubr.bf16.mxu0 0
        %6500 = vmatmul.mubr.bf16.gmra.mxu0 %v1406
        %v6501 = vpop.f32.mrf.mxu0
        %v6502 = vadd.f32 0.0, %v6501
        %v6503 = vpop.f32.mrf.mxu0
        %v6504 = vpop.f32.mrf.mxu0
        %v6505 = vadd.f32 0.0, %v6504
        %v6506 = vpop.f32.mrf.mxu0
        %6507 = vmatprep.mubr.bf16.mxu0 0
        %6508 = vmatmul.mubr.bf16.gmra.mxu0 %v1409
        %v6509 = vpop.f32.mrf.mxu0
        %v6510 = vadd.f32 0.0, %v6509
        %v6511 = vpop.f32.mrf.mxu0
        %v6512 = vpop.f32.mrf.mxu0
        %v6513 = vadd.f32 0.0, %v6512
        %v6514 = vpop.f32.mrf.mxu0
        %6515 = vmatprep.mubr.bf16.mxu0 0
        %6516 = vmatmul.mubr.bf16.gmra.mxu0 %v1412
        %v6517 = vpop.f32.mrf.mxu0
        %v6518 = vadd.f32 0.0, %v6517
        %v6519 = vpop.f32.mrf.mxu0
        %v6520 = vpop.f32.mrf.mxu0
        %v6521 = vadd.f32 0.0, %v6520
        %v6522 = vpop.f32.mrf.mxu0
        %6523 = vmatprep.mubr.bf16.mxu0 0
        %6524 = vmatmul.mubr.bf16.gmra.mxu0 %v2356
        %v6525 = vpop.f32.mrf.mxu0
        %v6526 = vpop.f32.mrf.mxu0
        %v6527 = vpop.f32.mrf.mxu0
        %v6528 = vpop.f32.mrf.mxu0
        %6529 = vdwg.mxu0
        %v6530 = vadd.f32 %v6356, %v6415
        %v6531 = vadd.f32 %v6357, %v6417
        %v6532 = vadd.f32 %v6358, %v6494
        %v6533 = vadd.f32 %v6359, %v6419
        %v6534 = vadd.f32 %v6360, %v6421
        %v6535 = vadd.f32 %v6361, %v6497
        %v6536 = vadd.f32 %v6362, %v6425
        %v6537 = vadd.f32 %v6363, %v6427
        %v6538 = vadd.f32 %v6364, %v6502
        %v6539 = vadd.f32 %v6365, %v6429
        %v6540 = vadd.f32 %v6366, %v6431
        %v6541 = vadd.f32 %v6367, %v6505
        %v6542 = vadd.f32 %v6368, %v6435
        %v6543 = vadd.f32 %v6369, %v6437
        %v6544 = vadd.f32 %v6370, %v6510
        %v6545 = vadd.f32 %v6371, %v6439
        %v6546 = vadd.f32 %v6372, %v6441
        %v6547 = vadd.f32 %v6373, %v6513
        %v6548 = vadd.f32 %v6374, %v6445
        %v6549 = vadd.f32 %v6375, %v6447
        %v6550 = vadd.f32 %v6376, %v6518
        %v6551 = vadd.f32 %v6377, %v6449
        %v6552 = vadd.f32 %v6378, %v6451
        %v6553 = vadd.f32 %v6379, %v6521
        %6554 = vmatprep.subr.bf16.mxu0 0
        %6555 = vmatpush1.bf16.msra.mxu0 0
        %6556 = vmatprep.subr.bf16.mxu0 0
        %6557 = vmatpush1.bf16.msra.mxu0 0
        %6558 = vmatprep.subr.bf16.mxu0 0
        %6559 = vmatpush1.bf16.msra.mxu0 0
        %6560 = vmatprep.subr.bf16.mxu0 0
        %6561 = vmatpush1.bf16.msra.mxu0 0
        %6562 = vmatprep.subr.bf16.mxu0 0
        %6563 = vmatpush1.bf16.msra.mxu0 0
        %6564 = vmatprep.subr.bf16.mxu0 0
        %6565 = vmatpush1.bf16.msra.mxu0 0
        %6566 = vmatprep.subr.bf16.mxu0 %v1890
        %6567 = vmatpush1.bf16.msra.mxu0 %v1887
        %6568 = vmatprep.subr.bf16.mxu0 %v1875
        %6569 = vmatpush1.bf16.msra.mxu0 %v1874
        %6570 = vmatprep.subr.bf16.mxu0 0
        %6571 = vmatpush2.bf16.msra.mxu0 0
        %6572 = vmatprep.subr.bf16.mxu0 0
        %6573 = vmatpush2.bf16.msra.mxu0 0
        %6574 = vmatprep.subr.bf16.mxu0 0
        %6575 = vmatpush2.bf16.msra.mxu0 0
        %6576 = vmatprep.subr.bf16.mxu0 0
        %6577 = vmatpush2.bf16.msra.mxu0 0
        %6578 = vmatprep.subr.bf16.mxu0 0
        %6579 = vmatpush2.bf16.msra.mxu0 0
        %6580 = vmatprep.subr.bf16.mxu0 0
        %6581 = vmatpush2.bf16.msra.mxu0 0
        %6582 = vmatprep.subr.bf16.mxu0 0
        %6583 = vmatpush2.bf16.msra.mxu0 0
        %6584 = vmatprep.subr.bf16.mxu0 0
        %6585 = vmatpush2.bf16.msra.mxu0 0
        %6586 = vmatprep.mubr.bf16.mxu0 0
        %6587 = vmatmul.mubr.bf16.gmra.mxu0 %v940
        %v6588 = vpop.f32.mrf.mxu0
        %v6589 = vadd.f32 0.0, %v6588
        %v6590 = vpop.f32.mrf.mxu0
        %v6591 = vadd.f32 0.0, %v6590
        %v6592 = vpop.f32.mrf.mxu0
        %v6593 = vadd.f32 0.0, %v6592
        %v6594 = vpop.f32.mrf.mxu0
        %v6595 = vadd.f32 0.0, %v6594
        %6596 = vmatprep.mubr.bf16.mxu0 0
        %6597 = vmatmul.mubr.bf16.gmra.mxu0 %v943
        %v6598 = vpop.f32.mrf.mxu0
        %v6599 = vadd.f32 0.0, %v6598
        %v6600 = vpop.f32.mrf.mxu0
        %v6601 = vadd.f32 0.0, %v6600
        %v6602 = vpop.f32.mrf.mxu0
        %v6603 = vadd.f32 0.0, %v6602
        %v6604 = vpop.f32.mrf.mxu0
        %v6605 = vadd.f32 0.0, %v6604
        %6606 = vmatprep.mubr.bf16.mxu0 0
        %6607 = vmatmul.mubr.bf16.gmra.mxu0 %v946
        %v6608 = vpop.f32.mrf.mxu0
        %v6609 = vadd.f32 0.0, %v6608
        %v6610 = vpop.f32.mrf.mxu0
        %v6611 = vadd.f32 0.0, %v6610
        %v6612 = vpop.f32.mrf.mxu0
        %v6613 = vadd.f32 0.0, %v6612
        %v6614 = vpop.f32.mrf.mxu0
        %v6615 = vadd.f32 0.0, %v6614
        %6616 = vmatprep.mubr.bf16.mxu0 0
        %6617 = vmatmul.mubr.bf16.gmra.mxu0 %v1648
        %v6618 = vpop.f32.mrf.mxu0
        %v6619 = vadd.f32 0.0, %v6618
        %v6620 = vpop.f32.mrf.mxu0
        %v6621 = vadd.f32 0.0, %v6620
        %v6622 = vpop.f32.mrf.mxu0
        %v6623 = vadd.f32 0.0, %v6622
        %v6624 = vpop.f32.mrf.mxu0
        %v6625 = vadd.f32 0.0, %v6624
        %6626 = vmatprep.mubr.bf16.mxu0 0
        %6627 = vmatmul.mubr.bf16.gmra.mxu0 %v3873
        %v6628 = vpop.f32.mrf.mxu0
        %v6629 = vpop.f32.mrf.mxu0
        %v6630 = vpop.f32.mrf.mxu0
        %v6631 = vpop.f32.mrf.mxu0
        %6632 = vdwg.mxu0
        %6633 = vmatprep.subr.bf16.mxu0 0
        %6634 = vmatpush1.bf16.msra.mxu0 0
        %6635 = vmatprep.subr.bf16.mxu0 0
        %6636 = vmatpush1.bf16.msra.mxu0 0
        %6637 = vmatprep.subr.bf16.mxu0 0
        %6638 = vmatpush1.bf16.msra.mxu0 0
        %6639 = vmatprep.subr.bf16.mxu0 0
        %6640 = vmatpush1.bf16.msra.mxu0 0
        %6641 = vmatprep.subr.bf16.mxu0 0
        %6642 = vmatpush1.bf16.msra.mxu0 0
        %6643 = vmatprep.subr.bf16.mxu0 0
        %6644 = vmatpush1.bf16.msra.mxu0 0
        %6645 = vmatprep.subr.bf16.mxu0 0
        %6646 = vmatpush1.bf16.msra.mxu0 %v1893
        %6647 = vmatprep.subr.bf16.mxu0 0
        %6648 = vmatpush1.bf16.msra.mxu0 %v1876
        %6649 = vmatprep.subr.bf16.mxu0 0
        %6650 = vmatpush2.bf16.msra.mxu0 0
        %6651 = vmatprep.subr.bf16.mxu0 0
        %6652 = vmatpush2.bf16.msra.mxu0 0
        %6653 = vmatprep.subr.bf16.mxu0 0
        %6654 = vmatpush2.bf16.msra.mxu0 0
        %6655 = vmatprep.subr.bf16.mxu0 0
        %6656 = vmatpush2.bf16.msra.mxu0 0
        %6657 = vmatprep.subr.bf16.mxu0 0
        %6658 = vmatpush2.bf16.msra.mxu0 0
        %6659 = vmatprep.subr.bf16.mxu0 0
        %6660 = vmatpush2.bf16.msra.mxu0 0
        %6661 = vmatprep.subr.bf16.mxu0 0
        %6662 = vmatpush2.bf16.msra.mxu0 0
        %6663 = vmatprep.subr.bf16.mxu0 0
        %6664 = vmatpush2.bf16.msra.mxu0 0
        %6665 = vmatprep.mubr.bf16.mxu0 0
        %6666 = vmatmul.mubr.bf16.gmra.mxu0 %v940
        %v6667 = vpop.f32.mrf.mxu0
        %v6668 = vadd.f32 0.0, %v6667
        %v6669 = vpop.f32.mrf.mxu0
        %v6670 = vpop.f32.mrf.mxu0
        %v6671 = vadd.f32 0.0, %v6670
        %v6672 = vpop.f32.mrf.mxu0
        %6673 = vmatprep.mubr.bf16.mxu0 0
        %6674 = vmatmul.mubr.bf16.gmra.mxu0 %v943
        %v6675 = vpop.f32.mrf.mxu0
        %v6676 = vadd.f32 0.0, %v6675
        %v6677 = vpop.f32.mrf.mxu0
        %v6678 = vpop.f32.mrf.mxu0
        %v6679 = vadd.f32 0.0, %v6678
        %v6680 = vpop.f32.mrf.mxu0
        %6681 = vmatprep.mubr.bf16.mxu0 0
        %6682 = vmatmul.mubr.bf16.gmra.mxu0 %v946
        %v6683 = vpop.f32.mrf.mxu0
        %v6684 = vadd.f32 0.0, %v6683
        %v6685 = vpop.f32.mrf.mxu0
        %v6686 = vpop.f32.mrf.mxu0
        %v6687 = vadd.f32 0.0, %v6686
        %v6688 = vpop.f32.mrf.mxu0
        %6689 = vmatprep.mubr.bf16.mxu0 0
        %6690 = vmatmul.mubr.bf16.gmra.mxu0 %v1648
        %v6691 = vpop.f32.mrf.mxu0
        %v6692 = vadd.f32 0.0, %v6691
        %v6693 = vpop.f32.mrf.mxu0
        %v6694 = vpop.f32.mrf.mxu0
        %v6695 = vadd.f32 0.0, %v6694
        %v6696 = vpop.f32.mrf.mxu0
        %6697 = vmatprep.mubr.bf16.mxu0 0
        %6698 = vmatmul.mubr.bf16.gmra.mxu0 %v3873
        %v6699 = vpop.f32.mrf.mxu0
        %v6700 = vpop.f32.mrf.mxu0
        %v6701 = vpop.f32.mrf.mxu0
        %v6702 = vpop.f32.mrf.mxu0
        %6703 = vdwg.mxu0
        %v6704 = vadd.f32 %v6530, %v6589
        %v6705 = vadd.f32 %v6531, %v6591
        %v6706 = vadd.f32 %v6532, %v6668
        %v6707 = vadd.f32 %v6533, %v6593
        %v6708 = vadd.f32 %v6534, %v6595
        %v6709 = vadd.f32 %v6535, %v6671
        %v6710 = vadd.f32 %v6536, %v6599
        %v6711 = vadd.f32 %v6537, %v6601
        %v6712 = vadd.f32 %v6538, %v6676
        %v6713 = vadd.f32 %v6539, %v6603
        %v6714 = vadd.f32 %v6540, %v6605
        %v6715 = vadd.f32 %v6541, %v6679
        %v6716 = vadd.f32 %v6542, %v6609
        %v6717 = vadd.f32 %v6543, %v6611
        %v6718 = vadd.f32 %v6544, %v6684
        %v6719 = vadd.f32 %v6545, %v6613
        %v6720 = vadd.f32 %v6546, %v6615
        %v6721 = vadd.f32 %v6547, %v6687
        %v6722 = vadd.f32 %v6548, %v6619
        %v6723 = vadd.f32 %v6549, %v6621
        %v6724 = vadd.f32 %v6550, %v6692
        %v6725 = vadd.f32 %v6551, %v6623
        %v6726 = vadd.f32 %v6552, %v6625
        %v6727 = vadd.f32 %v6553, %v6695
        %6728 = vmatprep.subr.bf16.mxu0 0
        %6729 = vmatpush1.bf16.msra.mxu0 0
        %6730 = vmatprep.subr.bf16.mxu0 0
        %6731 = vmatpush1.bf16.msra.mxu0 0
        %6732 = vmatprep.subr.bf16.mxu0 0
        %6733 = vmatpush1.bf16.msra.mxu0 0
        %6734 = vmatprep.subr.bf16.mxu0 0
        %6735 = vmatpush1.bf16.msra.mxu0 0
        %6736 = vmatprep.subr.bf16.mxu0 0
        %6737 = vmatpush1.bf16.msra.mxu0 0
        %6738 = vmatprep.subr.bf16.mxu0 0
        %6739 = vmatpush1.bf16.msra.mxu0 0
        %6740 = vmatprep.subr.bf16.mxu0 %v2126
        %6741 = vmatpush1.bf16.msra.mxu0 %v2123
        %6742 = vmatprep.subr.bf16.mxu0 %v2111
        %6743 = vmatpush1.bf16.msra.mxu0 %v2110
        %6744 = vmatprep.subr.bf16.mxu0 0
        %6745 = vmatpush2.bf16.msra.mxu0 0
        %6746 = vmatprep.subr.bf16.mxu0 0
        %6747 = vmatpush2.bf16.msra.mxu0 0
        %6748 = vmatprep.subr.bf16.mxu0 0
        %6749 = vmatpush2.bf16.msra.mxu0 0
        %6750 = vmatprep.subr.bf16.mxu0 0
        %6751 = vmatpush2.bf16.msra.mxu0 0
        %6752 = vmatprep.subr.bf16.mxu0 0
        %6753 = vmatpush2.bf16.msra.mxu0 0
        %6754 = vmatprep.subr.bf16.mxu0 0
        %6755 = vmatpush2.bf16.msra.mxu0 0
        %6756 = vmatprep.subr.bf16.mxu0 0
        %6757 = vmatpush2.bf16.msra.mxu0 0
        %6758 = vmatprep.subr.bf16.mxu0 0
        %6759 = vmatpush2.bf16.msra.mxu0 0
        %6760 = vmatprep.mubr.bf16.mxu0 0
        %6761 = vmatmul.mubr.bf16.gmra.mxu0 %v730
        %v6762 = vpop.f32.mrf.mxu0
        %v6763 = vadd.f32 0.0, %v6762
        %v6764 = vpop.f32.mrf.mxu0
        %v6765 = vadd.f32 0.0, %v6764
        %v6766 = vpop.f32.mrf.mxu0
        %v6767 = vadd.f32 0.0, %v6766
        %v6768 = vpop.f32.mrf.mxu0
        %v6769 = vadd.f32 0.0, %v6768
        %6770 = vmatprep.mubr.bf16.mxu0 0
        %6771 = vmatmul.mubr.bf16.gmra.mxu0 %v733
        %v6772 = vpop.f32.mrf.mxu0
        %v6773 = vadd.f32 0.0, %v6772
        %v6774 = vpop.f32.mrf.mxu0
        %v6775 = vadd.f32 0.0, %v6774
        %v6776 = vpop.f32.mrf.mxu0
        %v6777 = vadd.f32 0.0, %v6776
        %v6778 = vpop.f32.mrf.mxu0
        %v6779 = vadd.f32 0.0, %v6778
        %6780 = vmatprep.mubr.bf16.mxu0 0
        %6781 = vmatmul.mubr.bf16.gmra.mxu0 %v736
        %v6782 = vpop.f32.mrf.mxu0
        %v6783 = vadd.f32 0.0, %v6782
        %v6784 = vpop.f32.mrf.mxu0
        %v6785 = vadd.f32 0.0, %v6784
        %v6786 = vpop.f32.mrf.mxu0
        %v6787 = vadd.f32 0.0, %v6786
        %v6788 = vpop.f32.mrf.mxu0
        %v6789 = vadd.f32 0.0, %v6788
        %6790 = vmatprep.mubr.bf16.mxu0 0
        %6791 = vmatmul.mubr.bf16.gmra.mxu0 %v1884
        %v6792 = vpop.f32.mrf.mxu0
        %v6793 = vadd.f32 0.0, %v6792
        %v6794 = vpop.f32.mrf.mxu0
        %v6795 = vadd.f32 0.0, %v6794
        %v6796 = vpop.f32.mrf.mxu0
        %v6797 = vadd.f32 0.0, %v6796
        %v6798 = vpop.f32.mrf.mxu0
        %v6799 = vadd.f32 0.0, %v6798
        %6800 = vmatprep.mubr.bf16.mxu0 0
        %6801 = vmatmul.mubr.bf16.gmra.mxu0 %v5508
        %v6802 = vpop.f32.mrf.mxu0
        %v6803 = vpop.f32.mrf.mxu0
        %v6804 = vpop.f32.mrf.mxu0
        %v6805 = vpop.f32.mrf.mxu0
        %6806 = vdwg.mxu0
        %6807 = vmatprep.subr.bf16.mxu0 0
        %6808 = vmatpush1.bf16.msra.mxu0 0
        %6809 = vmatprep.subr.bf16.mxu0 0
        %6810 = vmatpush1.bf16.msra.mxu0 0
        %6811 = vmatprep.subr.bf16.mxu0 0
        %6812 = vmatpush1.bf16.msra.mxu0 0
        %6813 = vmatprep.subr.bf16.mxu0 0
        %6814 = vmatpush1.bf16.msra.mxu0 0
        %6815 = vmatprep.subr.bf16.mxu0 0
        %6816 = vmatpush1.bf16.msra.mxu0 0
        %6817 = vmatprep.subr.bf16.mxu0 0
        %6818 = vmatpush1.bf16.msra.mxu0 0
        %6819 = vmatprep.subr.bf16.mxu0 0
        %6820 = vmatpush1.bf16.msra.mxu0 %v2129
        %6821 = vmatprep.subr.bf16.mxu0 0
        %6822 = vmatpush1.bf16.msra.mxu0 %v2112
        %6823 = vmatprep.subr.bf16.mxu0 0
        %6824 = vmatpush2.bf16.msra.mxu0 0
        %6825 = vmatprep.subr.bf16.mxu0 0
        %6826 = vmatpush2.bf16.msra.mxu0 0
        %6827 = vmatprep.subr.bf16.mxu0 0
        %6828 = vmatpush2.bf16.msra.mxu0 0
        %6829 = vmatprep.subr.bf16.mxu0 0
        %6830 = vmatpush2.bf16.msra.mxu0 0
        %6831 = vmatprep.subr.bf16.mxu0 0
        %6832 = vmatpush2.bf16.msra.mxu0 0
        %6833 = vmatprep.subr.bf16.mxu0 0
        %6834 = vmatpush2.bf16.msra.mxu0 0
        %6835 = vmatprep.subr.bf16.mxu0 0
        %6836 = vmatpush2.bf16.msra.mxu0 0
        %6837 = vmatprep.subr.bf16.mxu0 0
        %6838 = vmatpush2.bf16.msra.mxu0 0
        %6839 = vmatprep.mubr.bf16.mxu0 0
        %6840 = vmatmul.mubr.bf16.gmra.mxu0 %v730
        %v6841 = vpop.f32.mrf.mxu0
        %v6842 = vadd.f32 0.0, %v6841
        %v6843 = vpop.f32.mrf.mxu0
        %v6844 = vpop.f32.mrf.mxu0
        %v6845 = vadd.f32 0.0, %v6844
        %v6846 = vpop.f32.mrf.mxu0
        %6847 = vmatprep.mubr.bf16.mxu0 0
        %6848 = vmatmul.mubr.bf16.gmra.mxu0 %v733
        %v6849 = vpop.f32.mrf.mxu0
        %v6850 = vadd.f32 0.0, %v6849
        %v6851 = vpop.f32.mrf.mxu0
        %v6852 = vpop.f32.mrf.mxu0
        %v6853 = vadd.f32 0.0, %v6852
        %v6854 = vpop.f32.mrf.mxu0
        %6855 = vmatprep.mubr.bf16.mxu0 0
        %6856 = vmatmul.mubr.bf16.gmra.mxu0 %v736
        %v6857 = vpop.f32.mrf.mxu0
        %v6858 = vadd.f32 0.0, %v6857
        %v6859 = vpop.f32.mrf.mxu0
        %v6860 = vpop.f32.mrf.mxu0
        %v6861 = vadd.f32 0.0, %v6860
        %v6862 = vpop.f32.mrf.mxu0
        %6863 = vmatprep.mubr.bf16.mxu0 0
        %6864 = vmatmul.mubr.bf16.gmra.mxu0 %v1884
        %v6865 = vpop.f32.mrf.mxu0
        %v6866 = vadd.f32 0.0, %v6865
        %v6867 = vpop.f32.mrf.mxu0
        %v6868 = vpop.f32.mrf.mxu0
        %v6869 = vadd.f32 0.0, %v6868
        %v6870 = vpop.f32.mrf.mxu0
        %6871 = vmatprep.mubr.bf16.mxu0 0
        %6872 = vmatmul.mubr.bf16.gmra.mxu0 %v5508
        %v6873 = vpop.f32.mrf.mxu0
        %v6874 = vpop.f32.mrf.mxu0
        %v6875 = vpop.f32.mrf.mxu0
        %v6876 = vpop.f32.mrf.mxu0
        %6877 = vdwg.mxu0
        %v6878 = vadd.f32 %v6704, %v6763
        %v6879 = vadd.f32 %v6705, %v6765
        %v6880 = vadd.f32 %v6706, %v6842
        %v6881 = vadd.f32 %v6707, %v6767
        %v6882 = vadd.f32 %v6708, %v6769
        %v6883 = vadd.f32 %v6709, %v6845
        %v6884 = vadd.f32 %v6710, %v6773
        %v6885 = vadd.f32 %v6711, %v6775
        %v6886 = vadd.f32 %v6712, %v6850
        %v6887 = vadd.f32 %v6713, %v6777
        %v6888 = vadd.f32 %v6714, %v6779
        %v6889 = vadd.f32 %v6715, %v6853
        %v6890 = vadd.f32 %v6716, %v6783
        %v6891 = vadd.f32 %v6717, %v6785
        %v6892 = vadd.f32 %v6718, %v6858
        %v6893 = vadd.f32 %v6719, %v6787
        %v6894 = vadd.f32 %v6720, %v6789
        %v6895 = vadd.f32 %v6721, %v6861
        %v6896 = vadd.f32 %v6722, %v6793
        %v6897 = vadd.f32 %v6723, %v6795
        %v6898 = vadd.f32 %v6724, %v6866
        %v6899 = vadd.f32 %v6725, %v6797
        %v6900 = vadd.f32 %v6726, %v6799
        %v6901 = vadd.f32 %v6727, %v6869
        %v6903 = vsel %vm722, %v656, 0
        %6905 = vmatprep.subr.bf16.mxu0 0
        %6906 = vmatpush1.bf16.msra.mxu0 0
        %6907 = vmatprep.subr.bf16.mxu0 0
        %6908 = vmatpush1.bf16.msra.mxu0 0
        %6909 = vmatprep.subr.bf16.mxu0 0
        %6910 = vmatpush1.bf16.msra.mxu0 0
        %6911 = vmatprep.subr.bf16.mxu0 0
        %6912 = vmatpush1.bf16.msra.mxu0 0
        %6913 = vmatprep.subr.bf16.mxu0 0
        %6914 = vmatpush1.bf16.msra.mxu0 0
        %6915 = vmatprep.subr.bf16.mxu0 0
        %6916 = vmatpush1.bf16.msra.mxu0 0
        %6917 = vmatprep.subr.bf16.mxu0 %v2362
        %6918 = vmatpush1.bf16.msra.mxu0 %v2359
        %6919 = vmatprep.subr.bf16.mxu0 %v2347
        %6920 = vmatpush1.bf16.msra.mxu0 %v2346
        %6921 = vmatprep.subr.bf16.mxu0 0
        %6922 = vmatpush2.bf16.msra.mxu0 0
        %6923 = vmatprep.subr.bf16.mxu0 0
        %6924 = vmatpush2.bf16.msra.mxu0 0
        %6925 = vmatprep.subr.bf16.mxu0 0
        %6926 = vmatpush2.bf16.msra.mxu0 0
        %6927 = vmatprep.subr.bf16.mxu0 0
        %6928 = vmatpush2.bf16.msra.mxu0 0
        %6929 = vmatprep.subr.bf16.mxu0 0
        %6930 = vmatpush2.bf16.msra.mxu0 0
        %6931 = vmatprep.subr.bf16.mxu0 0
        %6932 = vmatpush2.bf16.msra.mxu0 0
        %6933 = vmatprep.subr.bf16.mxu0 0
        %6934 = vmatpush2.bf16.msra.mxu0 0
        %6935 = vmatprep.subr.bf16.mxu0 0
        %6936 = vmatpush2.bf16.msra.mxu0 0
        %6937 = vmatprep.mubr.bf16.mxu0 0
        %6938 = vmatmul.mubr.bf16.gmra.mxu0 %v1158
        %v6939 = vpop.f32.mrf.mxu0
        %v6940 = vadd.f32 0.0, %v6939
        %v6941 = vpop.f32.mrf.mxu0
        %v6942 = vadd.f32 0.0, %v6941
        %v6943 = vpop.f32.mrf.mxu0
        %v6944 = vadd.f32 0.0, %v6943
        %v6945 = vpop.f32.mrf.mxu0
        %v6946 = vadd.f32 0.0, %v6945
        %6947 = vmatprep.mubr.bf16.mxu0 0
        %6948 = vmatmul.mubr.bf16.gmra.mxu0 %v1161
        %v6949 = vpop.f32.mrf.mxu0
        %v6950 = vadd.f32 0.0, %v6949
        %v6951 = vpop.f32.mrf.mxu0
        %v6952 = vadd.f32 0.0, %v6951
        %v6953 = vpop.f32.mrf.mxu0
        %v6954 = vadd.f32 0.0, %v6953
        %v6955 = vpop.f32.mrf.mxu0
        %v6956 = vadd.f32 0.0, %v6955
        %6957 = vmatprep.mubr.bf16.mxu0 0
        %6958 = vmatmul.mubr.bf16.gmra.mxu0 %v1164
        %v6959 = vpop.f32.mrf.mxu0
        %v6960 = vadd.f32 0.0, %v6959
        %v6961 = vpop.f32.mrf.mxu0
        %v6962 = vadd.f32 0.0, %v6961
        %v6963 = vpop.f32.mrf.mxu0
        %v6964 = vadd.f32 0.0, %v6963
        %v6965 = vpop.f32.mrf.mxu0
        %v6966 = vadd.f32 0.0, %v6965
        %6967 = vmatprep.mubr.bf16.mxu0 0
        %6968 = vmatmul.mubr.bf16.gmra.mxu0 %v2120
        %v6969 = vpop.f32.mrf.mxu0
        %v6970 = vadd.f32 0.0, %v6969
        %v6971 = vpop.f32.mrf.mxu0
        %v6972 = vadd.f32 0.0, %v6971
        %v6973 = vpop.f32.mrf.mxu0
        %v6974 = vadd.f32 0.0, %v6973
        %v6975 = vpop.f32.mrf.mxu0
        %v6976 = vadd.f32 0.0, %v6975
        %6977 = vmatprep.mubr.bf16.mxu0 0
        %6978 = vmatmul.mubr.bf16.gmra.mxu0 %v6903
        %v6979 = vpop.f32.mrf.mxu0
        %v6980 = vpop.f32.mrf.mxu0
        %v6981 = vpop.f32.mrf.mxu0
        %v6982 = vpop.f32.mrf.mxu0
        %6983 = vdwg.mxu0
        %6984 = vmatprep.subr.bf16.mxu0 0
        %6985 = vmatpush1.bf16.msra.mxu0 0
        %6986 = vmatprep.subr.bf16.mxu0 0
        %6987 = vmatpush1.bf16.msra.mxu0 0
        %6988 = vmatprep.subr.bf16.mxu0 0
        %6989 = vmatpush1.bf16.msra.mxu0 0
        %6990 = vmatprep.subr.bf16.mxu0 0
        %6991 = vmatpush1.bf16.msra.mxu0 0
        %6992 = vmatprep.subr.bf16.mxu0 0
        %6993 = vmatpush1.bf16.msra.mxu0 0
        %6994 = vmatprep.subr.bf16.mxu0 0
        %6995 = vmatpush1.bf16.msra.mxu0 0
        %6996 = vmatprep.subr.bf16.mxu0 0
        %6997 = vmatpush1.bf16.msra.mxu0 %v2365
        %6998 = vmatprep.subr.bf16.mxu0 0
        %6999 = vmatpush1.bf16.msra.mxu0 %v2348
        %7000 = vmatprep.subr.bf16.mxu0 0
        %7001 = vmatpush2.bf16.msra.mxu0 0
        %7002 = vmatprep.subr.bf16.mxu0 0
        %7003 = vmatpush2.bf16.msra.mxu0 0
        %7004 = vmatprep.subr.bf16.mxu0 0
        %7005 = vmatpush2.bf16.msra.mxu0 0
        %7006 = vmatprep.subr.bf16.mxu0 0
        %7007 = vmatpush2.bf16.msra.mxu0 0
        %7008 = vmatprep.subr.bf16.mxu0 0
        %7009 = vmatpush2.bf16.msra.mxu0 0
        %7010 = vmatprep.subr.bf16.mxu0 0
        %7011 = vmatpush2.bf16.msra.mxu0 0
        %7012 = vmatprep.subr.bf16.mxu0 0
        %7013 = vmatpush2.bf16.msra.mxu0 0
        %7014 = vmatprep.subr.bf16.mxu0 0
        %7015 = vmatpush2.bf16.msra.mxu0 0
        %7016 = vmatprep.mubr.bf16.mxu0 0
        %7017 = vmatmul.mubr.bf16.gmra.mxu0 %v1158
        %v7018 = vpop.f32.mrf.mxu0
        %v7019 = vadd.f32 0.0, %v7018
        %v7020 = vpop.f32.mrf.mxu0
        %v7021 = vpop.f32.mrf.mxu0
        %v7022 = vadd.f32 0.0, %v7021
        %v7023 = vpop.f32.mrf.mxu0
        %7024 = vmatprep.mubr.bf16.mxu0 0
        %7025 = vmatmul.mubr.bf16.gmra.mxu0 %v1161
        %v7026 = vpop.f32.mrf.mxu0
        %v7027 = vadd.f32 0.0, %v7026
        %v7028 = vpop.f32.mrf.mxu0
        %v7029 = vpop.f32.mrf.mxu0
        %v7030 = vadd.f32 0.0, %v7029
        %v7031 = vpop.f32.mrf.mxu0
        %7032 = vmatprep.mubr.bf16.mxu0 0
        %7033 = vmatmul.mubr.bf16.gmra.mxu0 %v1164
        %v7034 = vpop.f32.mrf.mxu0
        %v7035 = vadd.f32 0.0, %v7034
        %v7036 = vpop.f32.mrf.mxu0
        %v7037 = vpop.f32.mrf.mxu0
        %v7038 = vadd.f32 0.0, %v7037
        %v7039 = vpop.f32.mrf.mxu0
        %7040 = vmatprep.mubr.bf16.mxu0 0
        %7041 = vmatmul.mubr.bf16.gmra.mxu0 %v2120
        %v7042 = vpop.f32.mrf.mxu0
        %v7043 = vadd.f32 0.0, %v7042
        %v7044 = vpop.f32.mrf.mxu0
        %v7045 = vpop.f32.mrf.mxu0
        %v7046 = vadd.f32 0.0, %v7045
        %v7047 = vpop.f32.mrf.mxu0
        %7048 = vmatprep.mubr.bf16.mxu0 0
        %7049 = vmatmul.mubr.bf16.gmra.mxu0 %v6903
        %v7050 = vpop.f32.mrf.mxu0
        %v7051 = vpop.f32.mrf.mxu0
        %v7052 = vpop.f32.mrf.mxu0
        %v7053 = vpop.f32.mrf.mxu0
        %7054 = vdwg.mxu0
        %v7055 = vadd.f32 %v6878, %v6940
        %v7056 = vadd.f32 %v6879, %v6942
        %v7057 = vadd.f32 %v6880, %v7019
        %v7058 = vadd.f32 %v6881, %v6944
        %v7059 = vadd.f32 %v6882, %v6946
        %v7060 = vadd.f32 %v6883, %v7022
        %v7061 = vadd.f32 %v6884, %v6950
        %v7062 = vadd.f32 %v6885, %v6952
        %v7063 = vadd.f32 %v6886, %v7027
        %v7064 = vadd.f32 %v6887, %v6954
        %v7065 = vadd.f32 %v6888, %v6956
        %v7066 = vadd.f32 %v6889, %v7030
        %v7067 = vadd.f32 %v6890, %v6960
        %v7068 = vadd.f32 %v6891, %v6962
        %v7069 = vadd.f32 %v6892, %v7035
        %v7070 = vadd.f32 %v6893, %v6964
        %v7071 = vadd.f32 %v6894, %v6966
        %v7072 = vadd.f32 %v6895, %v7038
        %v7073 = vadd.f32 %v6896, %v6970
        %v7074 = vadd.f32 %v6897, %v6972
        %v7075 = vadd.f32 %v6898, %v7043
        %v7076 = vadd.f32 %v6899, %v6974
        %v7077 = vadd.f32 %v6900, %v6976
        %v7078 = vadd.f32 %v6901, %v7046
        %v7079 = vadd.f32 %v7055, %v2558
        %v7080 = vadd.f32 %v7056, %v2562
        %v7081 = vadd.f32 %v7057, %v2566
        %v7082 = vadd.f32 %v7058, %v2558
        %v7083 = vadd.f32 %v7059, %v2562
        %v7084 = vadd.f32 %v7060, %v2566
        %v7085 = vadd.f32 %v7061, %v2558
        %v7086 = vadd.f32 %v7062, %v2562
        %v7087 = vadd.f32 %v7063, %v2566
        %v7088 = vadd.f32 %v7064, %v2558
        %v7089 = vadd.f32 %v7065, %v2562
        %v7090 = vadd.f32 %v7066, %v2566
        %v7091 = vadd.f32 %v7067, %v2558
        %v7092 = vadd.f32 %v7068, %v2562
        %v7093 = vadd.f32 %v7069, %v2566
        %v7094 = vadd.f32 %v7070, %v2558
        %v7095 = vadd.f32 %v7071, %v2562
        %v7096 = vadd.f32 %v7072, %v2566
        %v7097 = vadd.f32 %v7073, %v2558
        %v7098 = vadd.f32 %v7074, %v2562
        %v7099 = vadd.f32 %v7075, %v2566
        %v7100 = vadd.f32 %v7076, %v2558
        %v7101 = vadd.f32 %v7077, %v2562
        %v7102 = vadd.f32 %v7078, %v2566
        %v7103 = vmax.f32 %v7079, 0.0
        %v7104 = vmax.f32 %v7080, 0.0
        %v7105 = vmax.f32 %v7081, 0.0
        %v7106 = vmax.f32 %v7082, 0.0
        %v7107 = vmax.f32 %v7083, 0.0
        %v7108 = vmax.f32 %v7084, 0.0
        %v7109 = vmax.f32 %v7085, 0.0
        %v7110 = vmax.f32 %v7086, 0.0
        %v7111 = vmax.f32 %v7087, 0.0
        %v7112 = vmax.f32 %v7088, 0.0
        %v7113 = vmax.f32 %v7089, 0.0
        %v7114 = vmax.f32 %v7090, 0.0
        %v7115 = vmax.f32 %v7091, 0.0
        %v7116 = vmax.f32 %v7092, 0.0
        %v7117 = vmax.f32 %v7093, 0.0
        %v7118 = vmax.f32 %v7094, 0.0
        %v7119 = vmax.f32 %v7095, 0.0
        %v7120 = vmax.f32 %v7096, 0.0
        %v7121 = vmax.f32 %v7097, 0.0
        %v7122 = vmax.f32 %v7098, 0.0
        %v7123 = vmax.f32 %v7099, 0.0
        %v7124 = vmax.f32 %v7100, 0.0
        %v7125 = vmax.f32 %v7101, 0.0
        %v7126 = vmax.f32 %v7102, 0.0
        %v7127 = vmax.f32 %v5708, %v7103
        %v7128 = vmax.f32 %v5709, %v7104
        %v7129 = vmax.f32 %v5710, %v7105
        %v7130 = vmax.f32 %v5711, %v7106
        %v7131 = vmax.f32 %v5712, %v7107
        %v7132 = vmax.f32 %v5713, %v7108
        %v7133 = vmax.f32 %v5714, %v7109
        %v7134 = vmax.f32 %v5715, %v7110
        %v7135 = vmax.f32 %v5716, %v7111
        %v7136 = vmax.f32 %v5717, %v7112
        %v7137 = vmax.f32 %v5718, %v7113
        %v7138 = vmax.f32 %v5719, %v7114
        %v7139 = vmax.f32 %v5720, %v7115
        %v7140 = vmax.f32 %v5721, %v7116
        %v7141 = vmax.f32 %v5722, %v7117
        %v7142 = vmax.f32 %v5723, %v7118
        %v7143 = vmax.f32 %v5724, %v7119
        %v7144 = vmax.f32 %v5725, %v7120
        %v7145 = vmax.f32 %v5726, %v7121
        %v7146 = vmax.f32 %v5727, %v7122
        %v7147 = vmax.f32 %v5728, %v7123
        %v7148 = vmax.f32 %v5729, %v7124
        %v7149 = vmax.f32 %v5730, %v7125
        %v7150 = vmax.f32 %v5731, %v7126
        %7175 = vrot.lane.b32.xlu0 %v7127, 112
        %v7176 = vpop.permute.xlu0 %7175
        %7177 = vrot.lane.b32.xlu0 %v7128, 112
        %v7178 = vpop.permute.xlu0 %7177
        %7179 = vrot.lane.b32.xlu0 %v7129, 112
        %v7180 = vpop.permute.xlu0 %7179
        %7181 = vrot.lane.b32.xlu0 %v7130, 112
        %v7182 = vpop.permute.xlu0 %7181
        %7183 = vrot.lane.b32.xlu0 %v7131, 112
        %v7184 = vpop.permute.xlu0 %7183
        %7185 = vrot.lane.b32.xlu0 %v7132, 112
        %v7186 = vpop.permute.xlu0 %7185
        %7187 = vrot.lane.b32.xlu0 %v7133, 112
        %v7188 = vpop.permute.xlu0 %7187
        %7189 = vrot.lane.b32.xlu0 %v7134, 112
        %v7190 = vpop.permute.xlu0 %7189
        %7191 = vrot.lane.b32.xlu0 %v7135, 112
        %v7192 = vpop.permute.xlu0 %7191
        %7193 = vrot.lane.b32.xlu0 %v7136, 112
        %v7194 = vpop.permute.xlu0 %7193
        %7195 = vrot.lane.b32.xlu0 %v7137, 112
        %v7196 = vpop.permute.xlu0 %7195
        %7197 = vrot.lane.b32.xlu0 %v7138, 112
        %v7198 = vpop.permute.xlu0 %7197
        %7199 = vrot.lane.b32.xlu0 %v7139, 112
        %v7200 = vpop.permute.xlu0 %7199
        %7201 = vrot.lane.b32.xlu0 %v7140, 112
        %v7202 = vpop.permute.xlu0 %7201
        %7203 = vrot.lane.b32.xlu0 %v7141, 112
        %v7204 = vpop.permute.xlu0 %7203
        %7205 = vrot.lane.b32.xlu0 %v7142, 112
        %v7206 = vpop.permute.xlu0 %7205
        %7207 = vrot.lane.b32.xlu0 %v7143, 112
        %v7208 = vpop.permute.xlu0 %7207
        %7209 = vrot.lane.b32.xlu0 %v7144, 112
        %v7210 = vpop.permute.xlu0 %7209
        %7211 = vrot.lane.b32.xlu0 %v7145, 112
        %v7212 = vpop.permute.xlu0 %7211
        %7213 = vrot.lane.b32.xlu0 %v7146, 112
        %v7214 = vpop.permute.xlu0 %7213
        %7215 = vrot.lane.b32.xlu0 %v7147, 112
        %v7216 = vpop.permute.xlu0 %7215
        %7217 = vrot.lane.b32.xlu0 %v7148, 112
        %v7218 = vpop.permute.xlu0 %7217
        %7219 = vrot.lane.b32.xlu0 %v7149, 112
        %v7220 = vpop.permute.xlu0 %7219
        %7221 = vrot.lane.b32.xlu0 %v7150, 112
        %v7222 = vpop.permute.xlu0 %7221
        %v7223 = vsel %vm4241, %v7176, %v7178
        %v7224 = vsel %vm4241, %v7178, %v7180
        %v7225 = vsel %vm4241, %v7182, %v7184
        %v7226 = vsel %vm4241, %v7184, %v7186
        %v7227 = vsel %vm4241, %v7188, %v7190
        %v7228 = vsel %vm4241, %v7190, %v7192
        %v7229 = vsel %vm4241, %v7194, %v7196
        %v7230 = vsel %vm4241, %v7196, %v7198
        %v7231 = vsel %vm4241, %v7200, %v7202
        %v7232 = vsel %vm4241, %v7202, %v7204
        %v7233 = vsel %vm4241, %v7206, %v7208
        %v7234 = vsel %vm4241, %v7208, %v7210
        %v7235 = vsel %vm4241, %v7212, %v7214
        %v7236 = vsel %vm4241, %v7214, %v7216
        %v7237 = vsel %vm4241, %v7218, %v7220
        %v7238 = vsel %vm4241, %v7220, %v7222
        %v7263 = vmax.f32 %v7127, %v7223
        %v7264 = vmax.f32 %v7128, %v7224
        %v7265 = vmax.f32 %v7129, %v7180
        %v7266 = vmax.f32 %v7130, %v7225
        %v7267 = vmax.f32 %v7131, %v7226
        %v7268 = vmax.f32 %v7132, %v7186
        %v7269 = vmax.f32 %v7133, %v7227
        %v7270 = vmax.f32 %v7134, %v7228
        %v7271 = vmax.f32 %v7135, %v7192
        %v7272 = vmax.f32 %v7136, %v7229
        %v7273 = vmax.f32 %v7137, %v7230
        %v7274 = vmax.f32 %v7138, %v7198
        %v7275 = vmax.f32 %v7139, %v7231
        %v7276 = vmax.f32 %v7140, %v7232
        %v7277 = vmax.f32 %v7141, %v7204
        %v7278 = vmax.f32 %v7142, %v7233
        %v7279 = vmax.f32 %v7143, %v7234
        %v7280 = vmax.f32 %v7144, %v7210
        %v7281 = vmax.f32 %v7145, %v7235
        %v7282 = vmax.f32 %v7146, %v7236
        %v7283 = vmax.f32 %v7147, %v7216
        %v7284 = vmax.f32 %v7148, %v7237
        %v7285 = vmax.f32 %v7149, %v7238
        %v7286 = vmax.f32 %v7150, %v7222
        %v7287 = vpack.c.bf16 %v7266, %v7263
        %v7288 = vpack.c.bf16 %v7267, %v7264
        %v7289 = vpack.c.bf16 %v7268, %v7265
        %v7290 = vpack.c.bf16 %v7272, %v7269
        %v7291 = vpack.c.bf16 %v7273, %v7270
        %v7292 = vpack.c.bf16 %v7274, %v7271
        %v7293 = vpack.c.bf16 %v7278, %v7275
        %v7294 = vpack.c.bf16 %v7279, %v7276
        %v7295 = vpack.c.bf16 %v7280, %v7277
        %v7296 = vpack.c.bf16 %v7284, %v7281
        %v7297 = vpack.c.bf16 %v7285, %v7282
        %v7298 = vpack.c.bf16 %v7286, %v7283
        %v7299 = vld [vmem:[%s3] sm:$0xff]
        %v7300 = vld [vmem:[%s3 + $0x8] sm:$0xff]
        %v7301 = vld [vmem:[%s3 + $0x10] sm:$0xff]
        %v7302 = vld [vmem:[%s3 + $0x18] sm:$0xff]
        %v7303 = vld [vmem:[%s3 + $0x20] sm:$0xff]
        %v7304 = vld [vmem:[%s3 + $0x28] sm:$0xff]
        %v7305 = vld [vmem:[%s3 + $0x30] sm:$0xff]
        %v7306 = vld [vmem:[%s3 + $0x38] sm:$0xff]
        %v7307 = vld [vmem:[%s3 + $0x40] sm:$0xff]
        %v7308 = vld [vmem:[%s3 + $0x48] sm:$0xff]
        %v7309 = vld [vmem:[%s3 + $0x50] sm:$0xff]
        %v7310 = vld [vmem:[%s3 + $0x58] sm:$0xff]
        %v7311 = vld [vmem:[%s3 + $0x60] sm:$0xff]
        %v7312 = vld [vmem:[%s3 + $0x68] sm:$0xff]
        %v7313 = vld [vmem:[%s3 + $0x70] sm:$0xff]
        %v7314 = vld [vmem:[%s3 + $0x78] sm:$0xff]
        %v7315 = vld [vmem:[%s3 + $0x80] sm:$0xff]
        %v7316 = vld [vmem:[%s3 + $0x88] sm:$0xff]
        %v7317 = vld [vmem:[%s3 + $0x90] sm:$0xff]
        %v7318 = vld [vmem:[%s3 + $0x98] sm:$0xff]
        %v7319 = vld [vmem:[%s3 + $0xa0] sm:$0xff]
        %v7320 = vld [vmem:[%s3 + $0xa8] sm:$0xff]
        %v7321 = vld [vmem:[%s3 + $0xb0] sm:$0xff]
        %v7322 = vld [vmem:[%s3 + $0xb8] sm:$0xff]
        %v7323 = vld [vmem:[%s3 + $0xc0] sm:$0xff]
        %v7324 = vld [vmem:[%s3 + $0xc8] sm:$0xff]
        %v7325 = vld [vmem:[%s3 + $0xd0] sm:$0xff]
        %v7326 = vld [vmem:[%s3 + $0xd8] sm:$0xff]
        %v7327 = vld [vmem:[%s3 + $0xe0] sm:$0xff]
        %v7328 = vld [vmem:[%s3 + $0xe8] sm:$0xff]
        %v7329 = vld [vmem:[%s3 + $0xf0] sm:$0xff]
        %v7330 = vld [vmem:[%s3 + $0xf8] sm:$0xff]
        %v7331 = vld [vmem:[%s3 + $0x100] sm:$0xff]
        %v7332 = vld [vmem:[%s3 + $0x108] sm:$0xff]
        %v7333 = vld [vmem:[%s3 + $0x110] sm:$0xff]
        %v7334 = vld [vmem:[%s3 + $0x118] sm:$0xff]
        %v7335 = vld [vmem:[%s3 + $0x120] sm:$0xff]
        %v7336 = vld [vmem:[%s3 + $0x128] sm:$0xff]
        %v7337 = vld [vmem:[%s3 + $0x130] sm:$0xff]
        %v7338 = vld [vmem:[%s3 + $0x138] sm:$0xff]
        %s7339 = scalar_lea.vmem %s3, 320
        %v7340 = vld [vmem:[%s7339] sm:$0xff]
        %v7341 = vld [vmem:[%s7339 + $0x8] sm:$0xff]
        %v7342 = vld [vmem:[%s7339 + $0x10] sm:$0xff]
        %v7343 = vld [vmem:[%s7339 + $0x18] sm:$0xff]
        %v7344 = vld [vmem:[%s7339 + $0x20] sm:$0xff]
        %v7345 = vld [vmem:[%s7339 + $0x28] sm:$0xff]
        %v7346 = vld [vmem:[%s7339 + $0x30] sm:$0xff]
        %v7347 = vld [vmem:[%s7339 + $0x38] sm:$0xff]
        %v7348 = vld [vmem:[%s7339 + $0x40] sm:$0xff]
        %v7349 = vld [vmem:[%s7339 + $0x48] sm:$0xff]
        %v7350 = vld [vmem:[%s7339 + $0x50] sm:$0xff]
        %v7351 = vld [vmem:[%s7339 + $0x58] sm:$0xff]
        %v7352 = vld [vmem:[%s7339 + $0x60] sm:$0xff]
        %v7353 = vld [vmem:[%s7339 + $0x68] sm:$0xff]
        %v7354 = vld [vmem:[%s7339 + $0x70] sm:$0xff]
        %v7355 = vld [vmem:[%s7339 + $0x78] sm:$0xff]
        %v7356 = vld [vmem:[%s7339 + $0x80] sm:$0xff]
        %v7357 = vld [vmem:[%s7339 + $0x88] sm:$0xff]
        %v7358 = vld [vmem:[%s7339 + $0x90] sm:$0xff]
        %v7359 = vld [vmem:[%s7339 + $0x98] sm:$0xff]
        %v7360 = vld [vmem:[%s7339 + $0xa0] sm:$0xff]
        %v7361 = vld [vmem:[%s7339 + $0xa8] sm:$0xff]
        %v7362 = vld [vmem:[%s7339 + $0xb0] sm:$0xff]
        %v7363 = vld [vmem:[%s7339 + $0xb8] sm:$0xff]
        %v7364 = vld [vmem:[%s7339 + $0xc0] sm:$0xff]
        %v7365 = vld [vmem:[%s7339 + $0xc8] sm:$0xff]
        %v7366 = vld [vmem:[%s7339 + $0xd0] sm:$0xff]
        %v7367 = vld [vmem:[%s7339 + $0xd8] sm:$0xff]
        %v7368 = vld [vmem:[%s7339 + $0xe0] sm:$0xff]
        %v7369 = vld [vmem:[%s7339 + $0xe8] sm:$0xff]
        %v7370 = vld [vmem:[%s7339 + $0xf0] sm:$0xff]
        %v7371 = vld [vmem:[%s7339 + $0xf8] sm:$0xff]
        %v7372 = vld [vmem:[%s7339 + $0x100] sm:$0xff]
        %v7373 = vld [vmem:[%s7339 + $0x108] sm:$0xff]
        %v7374 = vld [vmem:[%s7339 + $0x110] sm:$0xff]
        %v7375 = vld [vmem:[%s7339 + $0x118] sm:$0xff]
        %v7376 = vld [vmem:[%s7339 + $0x120] sm:$0xff]
        %v7377 = vld [vmem:[%s7339 + $0x128] sm:$0xff]
        %v7378 = vld [vmem:[%s7339 + $0x130] sm:$0xff]
        %v7379 = vld [vmem:[%s7339 + $0x138] sm:$0xff]
        %v7420 = vunpack.c.l.b16 %v7340
        %v7421 = vunpack.c.h.b16 %v7340
        %v7422 = vunpack.c.l.b16 %v7341
        %v7423 = vunpack.c.h.b16 %v7341
        %v7424 = vunpack.c.l.b16 %v7342
        %v7425 = vunpack.c.h.b16 %v7342
        %v7426 = vunpack.c.l.b16 %v7343
        %v7427 = vunpack.c.h.b16 %v7343
        %v7428 = vunpack.c.l.b16 %v7344
        %v7429 = vunpack.c.h.b16 %v7344
        %v7430 = vunpack.c.l.b16 %v7345
        %v7431 = vunpack.c.h.b16 %v7345
        %v7432 = vunpack.c.l.b16 %v7346
        %v7433 = vunpack.c.h.b16 %v7346
        %v7434 = vunpack.c.l.b16 %v7347
        %v7435 = vunpack.c.h.b16 %v7347
        %v7436 = vunpack.c.l.b16 %v7348
        %v7437 = vunpack.c.h.b16 %v7348
        %v7438 = vunpack.c.l.b16 %v7349
        %v7439 = vunpack.c.h.b16 %v7349
        %v7440 = vunpack.c.l.b16 %v7350
        %v7441 = vunpack.c.h.b16 %v7350
        %v7442 = vunpack.c.l.b16 %v7351
        %v7443 = vunpack.c.h.b16 %v7351
        %v7444 = vunpack.c.l.b16 %v7352
        %v7445 = vunpack.c.h.b16 %v7352
        %v7446 = vunpack.c.l.b16 %v7353
        %v7447 = vunpack.c.h.b16 %v7353
        %v7448 = vunpack.c.l.b16 %v7354
        %v7449 = vunpack.c.h.b16 %v7354
        %v7450 = vunpack.c.l.b16 %v7355
        %v7451 = vunpack.c.h.b16 %v7355
        %v7452 = vunpack.c.l.b16 %v7356
        %v7453 = vunpack.c.h.b16 %v7356
        %v7454 = vunpack.c.l.b16 %v7357
        %v7455 = vunpack.c.h.b16 %v7357
        %v7456 = vunpack.c.l.b16 %v7358
        %v7457 = vunpack.c.h.b16 %v7358
        %v7458 = vunpack.c.l.b16 %v7359
        %v7459 = vunpack.c.h.b16 %v7359
        %v7460 = vunpack.c.l.b16 %v7360
        %v7461 = vunpack.c.h.b16 %v7360
        %v7462 = vunpack.c.l.b16 %v7361
        %v7463 = vunpack.c.h.b16 %v7361
        %v7464 = vunpack.c.l.b16 %v7362
        %v7465 = vunpack.c.h.b16 %v7362
        %v7466 = vunpack.c.l.b16 %v7363
        %v7467 = vunpack.c.h.b16 %v7363
        %v7468 = vunpack.c.l.b16 %v7364
        %v7469 = vunpack.c.h.b16 %v7364
        %v7470 = vunpack.c.l.b16 %v7365
        %v7471 = vunpack.c.h.b16 %v7365
        %v7472 = vunpack.c.l.b16 %v7366
        %v7473 = vunpack.c.h.b16 %v7366
        %v7474 = vunpack.c.l.b16 %v7367
        %v7475 = vunpack.c.h.b16 %v7367
        %v7476 = vunpack.c.l.b16 %v7368
        %v7477 = vunpack.c.h.b16 %v7368
        %v7478 = vunpack.c.l.b16 %v7369
        %v7479 = vunpack.c.h.b16 %v7369
        %v7480 = vunpack.c.l.b16 %v7370
        %v7481 = vunpack.c.h.b16 %v7370
        %v7482 = vunpack.c.l.b16 %v7371
        %v7483 = vunpack.c.h.b16 %v7371
        %v7484 = vunpack.c.l.b16 %v7372
        %v7485 = vunpack.c.h.b16 %v7372
        %v7486 = vunpack.c.l.b16 %v7373
        %v7487 = vunpack.c.h.b16 %v7373
        %v7488 = vunpack.c.l.b16 %v7374
        %v7489 = vunpack.c.h.b16 %v7374
        %v7490 = vunpack.c.l.b16 %v7375
        %v7491 = vunpack.c.h.b16 %v7375
        %v7492 = vunpack.c.l.b16 %v7376
        %v7493 = vunpack.c.h.b16 %v7376
        %v7494 = vunpack.c.l.b16 %v7377
        %v7495 = vunpack.c.h.b16 %v7377
        %v7496 = vunpack.c.l.b16 %v7378
        %v7497 = vunpack.c.h.b16 %v7378
        %v7498 = vunpack.c.l.b16 %v7379
        %v7499 = vunpack.c.h.b16 %v7379
        %v7500 = vpack.c.b16 %v7422, %v7420
        %v7501 = vpack.c.b16 %v7423, %v7421
        %v7502 = vpack.c.b16 %v7426, %v7424
        %v7503 = vpack.c.b16 %v7427, %v7425
        %v7504 = vpack.c.b16 %v7430, %v7428
        %v7505 = vpack.c.b16 %v7431, %v7429
        %v7506 = vpack.c.b16 %v7434, %v7432
        %v7507 = vpack.c.b16 %v7435, %v7433
        %v7508 = vpack.c.b16 %v7438, %v7436
        %v7509 = vpack.c.b16 %v7439, %v7437
        %v7510 = vpack.c.b16 %v7442, %v7440
        %v7511 = vpack.c.b16 %v7443, %v7441
        %v7512 = vpack.c.b16 %v7446, %v7444
        %v7513 = vpack.c.b16 %v7447, %v7445
        %v7514 = vpack.c.b16 %v7450, %v7448
        %v7515 = vpack.c.b16 %v7451, %v7449
        %v7516 = vpack.c.b16 %v7454, %v7452
        %v7517 = vpack.c.b16 %v7455, %v7453
        %v7518 = vpack.c.b16 %v7458, %v7456
        %v7519 = vpack.c.b16 %v7459, %v7457
        %v7520 = vpack.c.b16 %v7462, %v7460
        %v7521 = vpack.c.b16 %v7463, %v7461
        %v7522 = vpack.c.b16 %v7466, %v7464
        %v7523 = vpack.c.b16 %v7467, %v7465
        %v7524 = vpack.c.b16 %v7470, %v7468
        %v7525 = vpack.c.b16 %v7471, %v7469
        %v7526 = vpack.c.b16 %v7474, %v7472
        %v7527 = vpack.c.b16 %v7475, %v7473
        %v7528 = vpack.c.b16 %v7478, %v7476
        %v7529 = vpack.c.b16 %v7479, %v7477
        %v7530 = vpack.c.b16 %v7482, %v7480
        %v7531 = vpack.c.b16 %v7483, %v7481
        %v7532 = vpack.c.b16 %v7486, %v7484
        %v7533 = vpack.c.b16 %v7487, %v7485
        %v7534 = vpack.c.b16 %v7490, %v7488
        %v7535 = vpack.c.b16 %v7491, %v7489
        %v7536 = vpack.c.b16 %v7494, %v7492
        %v7537 = vpack.c.b16 %v7495, %v7493
        %v7538 = vpack.c.b16 %v7498, %v7496
        %v7539 = vpack.c.b16 %v7499, %v7497
        %vm7580 = vcmask 523264
        %v7582 = vsel %vm7580, %v7289, 0
        %v7585 = vsel %vm7580, %v7292, 0
        %v7588 = vsel %vm7580, %v7295, 0
        %7590 = vmatprep.subr.bf16.mxu0 %v7515
        %7591 = vmatpush1.bf16.msra.mxu0 %v7514
        %7592 = vmatprep.subr.bf16.mxu0 %v7513
        %7593 = vmatpush1.bf16.msra.mxu0 %v7512
        %7594 = vmatprep.subr.bf16.mxu0 %v7511
        %7595 = vmatpush1.bf16.msra.mxu0 %v7510
        %7596 = vmatprep.subr.bf16.mxu0 %v7509
        %7597 = vmatpush1.bf16.msra.mxu0 %v7508
        %7598 = vmatprep.subr.bf16.mxu0 %v7507
        %7599 = vmatpush1.bf16.msra.mxu0 %v7506
        %7600 = vmatprep.subr.bf16.mxu0 %v7505
        %7601 = vmatpush1.bf16.msra.mxu0 %v7504
        %7602 = vmatprep.subr.bf16.mxu0 %v7503
        %7603 = vmatpush1.bf16.msra.mxu0 %v7502
        %7604 = vmatprep.subr.bf16.mxu0 %v7501
        %7605 = vmatpush1.bf16.msra.mxu0 %v7500
        %7606 = vmatprep.subr.bf16.mxu0 %v7531
        %7607 = vmatpush2.bf16.msra.mxu0 %v7530
        %7608 = vmatprep.subr.bf16.mxu0 %v7529
        %7609 = vmatpush2.bf16.msra.mxu0 %v7528
        %7610 = vmatprep.subr.bf16.mxu0 %v7527
        %7611 = vmatpush2.bf16.msra.mxu0 %v7526
        %7612 = vmatprep.subr.bf16.mxu0 %v7525
        %7613 = vmatpush2.bf16.msra.mxu0 %v7524
        %7614 = vmatprep.subr.bf16.mxu0 %v7523
        %7615 = vmatpush2.bf16.msra.mxu0 %v7522
        %7616 = vmatprep.subr.bf16.mxu0 %v7521
        %7617 = vmatpush2.bf16.msra.mxu0 %v7520
        %7618 = vmatprep.subr.bf16.mxu0 %v7519
        %7619 = vmatpush2.bf16.msra.mxu0 %v7518
        %7620 = vmatprep.subr.bf16.mxu0 %v7517
        %7621 = vmatpush2.bf16.msra.mxu0 %v7516
        %7622 = vmatprep.mubr.bf16.mxu0 %v7288
        %7623 = vmatmul.mubr.bf16.gmra.mxu0 %v7287
        %v7624 = vpop.f32.mrf.mxu0
        %v7625 = vadd.f32 0.0, %v7624
        %v7626 = vpop.f32.mrf.mxu0
        %v7627 = vadd.f32 0.0, %v7626
        %v7628 = vpop.f32.mrf.mxu0
        %v7629 = vadd.f32 0.0, %v7628
        %v7630 = vpop.f32.mrf.mxu0
        %v7631 = vadd.f32 0.0, %v7630
        %7632 = vmatprep.mubr.bf16.mxu0 %v7291
        %7633 = vmatmul.mubr.bf16.gmra.mxu0 %v7290
        %v7634 = vpop.f32.mrf.mxu0
        %v7635 = vadd.f32 0.0, %v7634
        %v7636 = vpop.f32.mrf.mxu0
        %v7637 = vadd.f32 0.0, %v7636
        %v7638 = vpop.f32.mrf.mxu0
        %v7639 = vadd.f32 0.0, %v7638
        %v7640 = vpop.f32.mrf.mxu0
        %v7641 = vadd.f32 0.0, %v7640
        %7642 = vmatprep.mubr.bf16.mxu0 %v7294
        %7643 = vmatmul.mubr.bf16.gmra.mxu0 %v7293
        %v7644 = vpop.f32.mrf.mxu0
        %v7645 = vadd.f32 0.0, %v7644
        %v7646 = vpop.f32.mrf.mxu0
        %v7647 = vadd.f32 0.0, %v7646
        %v7648 = vpop.f32.mrf.mxu0
        %v7649 = vadd.f32 0.0, %v7648
        %v7650 = vpop.f32.mrf.mxu0
        %v7651 = vadd.f32 0.0, %v7650
        %7652 = vdwg.mxu0
        %7653 = vmatprep.subr.bf16.mxu0 0
        %7654 = vmatpush1.bf16.msra.mxu0 0
        %7655 = vmatprep.subr.bf16.mxu0 0
        %7656 = vmatpush1.bf16.msra.mxu0 0
        %7657 = vmatprep.subr.bf16.mxu0 0
        %7658 = vmatpush1.bf16.msra.mxu0 0
        %7659 = vmatprep.subr.bf16.mxu0 0
        %7660 = vmatpush1.bf16.msra.mxu0 0
        %7661 = vmatprep.subr.bf16.mxu0 %v7539
        %7662 = vmatpush1.bf16.msra.mxu0 %v7538
        %7663 = vmatprep.subr.bf16.mxu0 %v7537
        %7664 = vmatpush1.bf16.msra.mxu0 %v7536
        %7665 = vmatprep.subr.bf16.mxu0 %v7535
        %7666 = vmatpush1.bf16.msra.mxu0 %v7534
        %7667 = vmatprep.subr.bf16.mxu0 %v7533
        %7668 = vmatpush1.bf16.msra.mxu0 %v7532
        %7669 = vmatprep.subr.bf16.mxu0 0
        %7670 = vmatpush2.bf16.msra.mxu0 0
        %7671 = vmatprep.subr.bf16.mxu0 0
        %7672 = vmatpush2.bf16.msra.mxu0 0
        %7673 = vmatprep.subr.bf16.mxu0 0
        %7674 = vmatpush2.bf16.msra.mxu0 0
        %7675 = vmatprep.subr.bf16.mxu0 0
        %7676 = vmatpush2.bf16.msra.mxu0 0
        %7677 = vmatprep.subr.bf16.mxu0 0
        %7678 = vmatpush2.bf16.msra.mxu0 0
        %7679 = vmatprep.subr.bf16.mxu0 0
        %7680 = vmatpush2.bf16.msra.mxu0 0
        %7681 = vmatprep.subr.bf16.mxu0 0
        %7682 = vmatpush2.bf16.msra.mxu0 0
        %7683 = vmatprep.subr.bf16.mxu0 0
        %7684 = vmatpush2.bf16.msra.mxu0 0
        %7685 = vmatprep.mubr.bf16.mxu0 0
        %7686 = vmatmul.mubr.bf16.gmra.mxu0 %v7582
        %v7687 = vpop.f32.mrf.mxu0
        %v7688 = vadd.f32 %v7625, %v7687
        %v7689 = vpop.f32.mrf.mxu0
        %v7690 = vadd.f32 %v7627, %v7689
        %v7691 = vpop.f32.mrf.mxu0
        %v7692 = vadd.f32 %v7629, %v7691
        %v7693 = vpop.f32.mrf.mxu0
        %v7694 = vadd.f32 %v7631, %v7693
        %7695 = vmatprep.mubr.bf16.mxu0 0
        %7696 = vmatmul.mubr.bf16.gmra.mxu0 %v7585
        %v7697 = vpop.f32.mrf.mxu0
        %v7698 = vadd.f32 %v7635, %v7697
        %v7699 = vpop.f32.mrf.mxu0
        %v7700 = vadd.f32 %v7637, %v7699
        %v7701 = vpop.f32.mrf.mxu0
        %v7702 = vadd.f32 %v7639, %v7701
        %v7703 = vpop.f32.mrf.mxu0
        %v7704 = vadd.f32 %v7641, %v7703
        %7705 = vmatprep.mubr.bf16.mxu0 0
        %7706 = vmatmul.mubr.bf16.gmra.mxu0 %v7588
        %v7707 = vpop.f32.mrf.mxu0
        %v7708 = vadd.f32 %v7645, %v7707
        %v7709 = vpop.f32.mrf.mxu0
        %v7710 = vadd.f32 %v7647, %v7709
        %v7711 = vpop.f32.mrf.mxu0
        %v7712 = vadd.f32 %v7649, %v7711
        %v7713 = vpop.f32.mrf.mxu0
        %v7714 = vadd.f32 %v7651, %v7713
        %7715 = vdwg.mxu0
        %v7756 = vunpack.c.l.b16 %v7299
        %v7757 = vunpack.c.h.b16 %v7299
        %v7758 = vunpack.c.l.b16 %v7300
        %v7759 = vunpack.c.h.b16 %v7300
        %v7760 = vunpack.c.l.b16 %v7301
        %v7761 = vunpack.c.h.b16 %v7301
        %v7762 = vunpack.c.l.b16 %v7302
        %v7763 = vunpack.c.h.b16 %v7302
        %v7764 = vunpack.c.l.b16 %v7303
        %v7765 = vunpack.c.h.b16 %v7303
        %v7766 = vunpack.c.l.b16 %v7304
        %v7767 = vunpack.c.h.b16 %v7304
        %v7768 = vunpack.c.l.b16 %v7305
        %v7769 = vunpack.c.h.b16 %v7305
        %v7770 = vunpack.c.l.b16 %v7306
        %v7771 = vunpack.c.h.b16 %v7306
        %v7772 = vunpack.c.l.b16 %v7307
        %v7773 = vunpack.c.h.b16 %v7307
        %v7774 = vunpack.c.l.b16 %v7308
        %v7775 = vunpack.c.h.b16 %v7308
        %v7776 = vunpack.c.l.b16 %v7309
        %v7777 = vunpack.c.h.b16 %v7309
        %v7778 = vunpack.c.l.b16 %v7310
        %v7779 = vunpack.c.h.b16 %v7310
        %v7780 = vunpack.c.l.b16 %v7311
        %v7781 = vunpack.c.h.b16 %v7311
        %v7782 = vunpack.c.l.b16 %v7312
        %v7783 = vunpack.c.h.b16 %v7312
        %v7784 = vunpack.c.l.b16 %v7313
        %v7785 = vunpack.c.h.b16 %v7313
        %v7786 = vunpack.c.l.b16 %v7314
        %v7787 = vunpack.c.h.b16 %v7314
        %v7788 = vunpack.c.l.b16 %v7315
        %v7789 = vunpack.c.h.b16 %v7315
        %v7790 = vunpack.c.l.b16 %v7316
        %v7791 = vunpack.c.h.b16 %v7316
        %v7792 = vunpack.c.l.b16 %v7317
        %v7793 = vunpack.c.h.b16 %v7317
        %v7794 = vunpack.c.l.b16 %v7318
        %v7795 = vunpack.c.h.b16 %v7318
        %v7796 = vunpack.c.l.b16 %v7319
        %v7797 = vunpack.c.h.b16 %v7319
        %v7798 = vunpack.c.l.b16 %v7320
        %v7799 = vunpack.c.h.b16 %v7320
        %v7800 = vunpack.c.l.b16 %v7321
        %v7801 = vunpack.c.h.b16 %v7321
        %v7802 = vunpack.c.l.b16 %v7322
        %v7803 = vunpack.c.h.b16 %v7322
        %v7804 = vunpack.c.l.b16 %v7323
        %v7805 = vunpack.c.h.b16 %v7323
        %v7806 = vunpack.c.l.b16 %v7324
        %v7807 = vunpack.c.h.b16 %v7324
        %v7808 = vunpack.c.l.b16 %v7325
        %v7809 = vunpack.c.h.b16 %v7325
        %v7810 = vunpack.c.l.b16 %v7326
        %v7811 = vunpack.c.h.b16 %v7326
        %v7812 = vunpack.c.l.b16 %v7327
        %v7813 = vunpack.c.h.b16 %v7327
        %v7814 = vunpack.c.l.b16 %v7328
        %v7815 = vunpack.c.h.b16 %v7328
        %v7816 = vunpack.c.l.b16 %v7329
        %v7817 = vunpack.c.h.b16 %v7329
        %v7818 = vunpack.c.l.b16 %v7330
        %v7819 = vunpack.c.h.b16 %v7330
        %v7820 = vunpack.c.l.b16 %v7331
        %v7821 = vunpack.c.h.b16 %v7331
        %v7822 = vunpack.c.l.b16 %v7332
        %v7823 = vunpack.c.h.b16 %v7332
        %v7824 = vunpack.c.l.b16 %v7333
        %v7825 = vunpack.c.h.b16 %v7333
        %v7826 = vunpack.c.l.b16 %v7334
        %v7827 = vunpack.c.h.b16 %v7334
        %v7828 = vunpack.c.l.b16 %v7335
        %v7829 = vunpack.c.h.b16 %v7335
        %v7830 = vunpack.c.l.b16 %v7336
        %v7831 = vunpack.c.h.b16 %v7336
        %v7832 = vunpack.c.l.b16 %v7337
        %v7833 = vunpack.c.h.b16 %v7337
        %v7834 = vunpack.c.l.b16 %v7338
        %v7835 = vunpack.c.h.b16 %v7338
        %v7836 = vpack.c.b16 %v7758, %v7756
        %v7837 = vpack.c.b16 %v7759, %v7757
        %v7838 = vpack.c.b16 %v7762, %v7760
        %v7839 = vpack.c.b16 %v7763, %v7761
        %v7840 = vpack.c.b16 %v7766, %v7764
        %v7841 = vpack.c.b16 %v7767, %v7765
        %v7842 = vpack.c.b16 %v7770, %v7768
        %v7843 = vpack.c.b16 %v7771, %v7769
        %v7844 = vpack.c.b16 %v7774, %v7772
        %v7845 = vpack.c.b16 %v7775, %v7773
        %v7846 = vpack.c.b16 %v7778, %v7776
        %v7847 = vpack.c.b16 %v7779, %v7777
        %v7848 = vpack.c.b16 %v7782, %v7780
        %v7849 = vpack.c.b16 %v7783, %v7781
        %v7850 = vpack.c.b16 %v7786, %v7784
        %v7851 = vpack.c.b16 %v7787, %v7785
        %v7852 = vpack.c.b16 %v7790, %v7788
        %v7853 = vpack.c.b16 %v7791, %v7789
        %v7854 = vpack.c.b16 %v7794, %v7792
        %v7855 = vpack.c.b16 %v7795, %v7793
        %v7856 = vpack.c.b16 %v7798, %v7796
        %v7857 = vpack.c.b16 %v7799, %v7797
        %v7858 = vpack.c.b16 %v7802, %v7800
        %v7859 = vpack.c.b16 %v7803, %v7801
        %v7860 = vpack.c.b16 %v7806, %v7804
        %v7861 = vpack.c.b16 %v7807, %v7805
        %v7862 = vpack.c.b16 %v7810, %v7808
        %v7863 = vpack.c.b16 %v7811, %v7809
        %v7864 = vpack.c.b16 %v7814, %v7812
        %v7865 = vpack.c.b16 %v7815, %v7813
        %v7866 = vpack.c.b16 %v7818, %v7816
        %v7867 = vpack.c.b16 %v7819, %v7817
        %v7868 = vpack.c.b16 %v7822, %v7820
        %v7869 = vpack.c.b16 %v7823, %v7821
        %v7870 = vpack.c.b16 %v7826, %v7824
        %v7871 = vpack.c.b16 %v7827, %v7825
        %v7872 = vpack.c.b16 %v7830, %v7828
        %v7873 = vpack.c.b16 %v7831, %v7829
        %v7874 = vpack.c.b16 %v7834, %v7832
        %v7875 = vpack.c.b16 %v7835, %v7833
        %v7917 = vsel %vm7580, %v4324, 0
        %v7920 = vsel %vm7580, %v4327, 0
        %v7923 = vsel %vm7580, %v4330, 0
        %7925 = vmatprep.subr.bf16.mxu0 %v7851
        %7926 = vmatpush1.bf16.msra.mxu0 %v7850
        %7927 = vmatprep.subr.bf16.mxu0 %v7849
        %7928 = vmatpush1.bf16.msra.mxu0 %v7848
        %7929 = vmatprep.subr.bf16.mxu0 %v7847
        %7930 = vmatpush1.bf16.msra.mxu0 %v7846
        %7931 = vmatprep.subr.bf16.mxu0 %v7845
        %7932 = vmatpush1.bf16.msra.mxu0 %v7844
        %7933 = vmatprep.subr.bf16.mxu0 %v7843
        %7934 = vmatpush1.bf16.msra.mxu0 %v7842
        %7935 = vmatprep.subr.bf16.mxu0 %v7841
        %7936 = vmatpush1.bf16.msra.mxu0 %v7840
        %7937 = vmatprep.subr.bf16.mxu0 %v7839
        %7938 = vmatpush1.bf16.msra.mxu0 %v7838
        %7939 = vmatprep.subr.bf16.mxu0 %v7837
        %7940 = vmatpush1.bf16.msra.mxu0 %v7836
        %7941 = vmatprep.subr.bf16.mxu0 %v7867
        %7942 = vmatpush2.bf16.msra.mxu0 %v7866
        %7943 = vmatprep.subr.bf16.mxu0 %v7865
        %7944 = vmatpush2.bf16.msra.mxu0 %v7864
        %7945 = vmatprep.subr.bf16.mxu0 %v7863
        %7946 = vmatpush2.bf16.msra.mxu0 %v7862
        %7947 = vmatprep.subr.bf16.mxu0 %v7861
        %7948 = vmatpush2.bf16.msra.mxu0 %v7860
        %7949 = vmatprep.subr.bf16.mxu0 %v7859
        %7950 = vmatpush2.bf16.msra.mxu0 %v7858
        %7951 = vmatprep.subr.bf16.mxu0 %v7857
        %7952 = vmatpush2.bf16.msra.mxu0 %v7856
        %7953 = vmatprep.subr.bf16.mxu0 %v7855
        %7954 = vmatpush2.bf16.msra.mxu0 %v7854
        %7955 = vmatprep.subr.bf16.mxu0 %v7853
        %7956 = vmatpush2.bf16.msra.mxu0 %v7852
        %7957 = vmatprep.mubr.bf16.mxu0 %v4323
        %7958 = vmatmul.mubr.bf16.gmra.mxu0 %v4322
        %v7959 = vpop.f32.mrf.mxu0
        %v7960 = vadd.f32 %v7688, %v7959
        %v7961 = vpop.f32.mrf.mxu0
        %v7962 = vadd.f32 %v7690, %v7961
        %v7963 = vpop.f32.mrf.mxu0
        %v7964 = vadd.f32 %v7692, %v7963
        %v7965 = vpop.f32.mrf.mxu0
        %v7966 = vadd.f32 %v7694, %v7965
        %7967 = vmatprep.mubr.bf16.mxu0 %v4326
        %7968 = vmatmul.mubr.bf16.gmra.mxu0 %v4325
        %v7969 = vpop.f32.mrf.mxu0
        %v7970 = vadd.f32 %v7698, %v7969
        %v7971 = vpop.f32.mrf.mxu0
        %v7972 = vadd.f32 %v7700, %v7971
        %v7973 = vpop.f32.mrf.mxu0
        %v7974 = vadd.f32 %v7702, %v7973
        %v7975 = vpop.f32.mrf.mxu0
        %v7976 = vadd.f32 %v7704, %v7975
        %7977 = vmatprep.mubr.bf16.mxu0 %v4329
        %7978 = vmatmul.mubr.bf16.gmra.mxu0 %v4328
        %v7979 = vpop.f32.mrf.mxu0
        %v7980 = vadd.f32 %v7708, %v7979
        %v7981 = vpop.f32.mrf.mxu0
        %v7982 = vadd.f32 %v7710, %v7981
        %v7983 = vpop.f32.mrf.mxu0
        %v7984 = vadd.f32 %v7712, %v7983
        %v7985 = vpop.f32.mrf.mxu0
        %v7986 = vadd.f32 %v7714, %v7985
        %7987 = vdwg.mxu0
        %7988 = vmatprep.subr.bf16.mxu0 0
        %7989 = vmatpush1.bf16.msra.mxu0 0
        %7990 = vmatprep.subr.bf16.mxu0 0
        %7991 = vmatpush1.bf16.msra.mxu0 0
        %7992 = vmatprep.subr.bf16.mxu0 0
        %7993 = vmatpush1.bf16.msra.mxu0 0
        %7994 = vmatprep.subr.bf16.mxu0 0
        %7995 = vmatpush1.bf16.msra.mxu0 0
        %7996 = vmatprep.subr.bf16.mxu0 %v7875
        %7997 = vmatpush1.bf16.msra.mxu0 %v7874
        %7998 = vmatprep.subr.bf16.mxu0 %v7873
        %7999 = vmatpush1.bf16.msra.mxu0 %v7872
        %8000 = vmatprep.subr.bf16.mxu0 %v7871
        %8001 = vmatpush1.bf16.msra.mxu0 %v7870
        %8002 = vmatprep.subr.bf16.mxu0 %v7869
        %8003 = vmatpush1.bf16.msra.mxu0 %v7868
        %8004 = vmatprep.subr.bf16.mxu0 0
        %8005 = vmatpush2.bf16.msra.mxu0 0
        %8006 = vmatprep.subr.bf16.mxu0 0
        %8007 = vmatpush2.bf16.msra.mxu0 0
        %8008 = vmatprep.subr.bf16.mxu0 0
        %8009 = vmatpush2.bf16.msra.mxu0 0
        %8010 = vmatprep.subr.bf16.mxu0 0
        %8011 = vmatpush2.bf16.msra.mxu0 0
        %8012 = vmatprep.subr.bf16.mxu0 0
        %8013 = vmatpush2.bf16.msra.mxu0 0
        %8014 = vmatprep.subr.bf16.mxu0 0
        %8015 = vmatpush2.bf16.msra.mxu0 0
        %8016 = vmatprep.subr.bf16.mxu0 0
        %8017 = vmatpush2.bf16.msra.mxu0 0
        %8018 = vmatprep.subr.bf16.mxu0 0
        %8019 = vmatpush2.bf16.msra.mxu0 0
        %8020 = vmatprep.mubr.bf16.mxu0 0
        %8021 = vmatmul.mubr.bf16.gmra.mxu0 %v7917
        %v8022 = vpop.f32.mrf.mxu0
        %v8023 = vadd.f32 %v7960, %v8022
        %v8024 = vpop.f32.mrf.mxu0
        %v8025 = vadd.f32 %v7962, %v8024
        %v8026 = vpop.f32.mrf.mxu0
        %v8027 = vadd.f32 %v7964, %v8026
        %v8028 = vpop.f32.mrf.mxu0
        %v8029 = vadd.f32 %v7966, %v8028
        %8030 = vmatprep.mubr.bf16.mxu0 0
        %8031 = vmatmul.mubr.bf16.gmra.mxu0 %v7920
        %v8032 = vpop.f32.mrf.mxu0
        %v8033 = vadd.f32 %v7970, %v8032
        %v8034 = vpop.f32.mrf.mxu0
        %v8035 = vadd.f32 %v7972, %v8034
        %v8036 = vpop.f32.mrf.mxu0
        %v8037 = vadd.f32 %v7974, %v8036
        %v8038 = vpop.f32.mrf.mxu0
        %v8039 = vadd.f32 %v7976, %v8038
        %8040 = vmatprep.mubr.bf16.mxu0 0
        %8041 = vmatmul.mubr.bf16.gmra.mxu0 %v7923
        %v8042 = vpop.f32.mrf.mxu0
        %v8043 = vadd.f32 %v7980, %v8042
        %v8044 = vpop.f32.mrf.mxu0
        %v8045 = vadd.f32 %v7982, %v8044
        %v8046 = vpop.f32.mrf.mxu0
        %v8047 = vadd.f32 %v7984, %v8046
        %v8048 = vpop.f32.mrf.mxu0
        %v8049 = vadd.f32 %v7986, %v8048
        %8050 = vdwg.mxu0
        %v8052 = vsel %vm7580, %v4333, 0
        %8054 = vmatprep.subr.bf16.mxu0 %v7515
        %8055 = vmatpush1.bf16.msra.mxu0 %v7514
        %8056 = vmatprep.subr.bf16.mxu0 %v7513
        %8057 = vmatpush1.bf16.msra.mxu0 %v7512
        %8058 = vmatprep.subr.bf16.mxu0 %v7511
        %8059 = vmatpush1.bf16.msra.mxu0 %v7510
        %8060 = vmatprep.subr.bf16.mxu0 %v7509
        %8061 = vmatpush1.bf16.msra.mxu0 %v7508
        %8062 = vmatprep.subr.bf16.mxu0 %v7507
        %8063 = vmatpush1.bf16.msra.mxu0 %v7506
        %8064 = vmatprep.subr.bf16.mxu0 %v7505
        %8065 = vmatpush1.bf16.msra.mxu0 %v7504
        %8066 = vmatprep.subr.bf16.mxu0 %v7503
        %8067 = vmatpush1.bf16.msra.mxu0 %v7502
        %8068 = vmatprep.subr.bf16.mxu0 %v7501
        %8069 = vmatpush1.bf16.msra.mxu0 %v7500
        %8070 = vmatprep.subr.bf16.mxu0 %v7531
        %8071 = vmatpush2.bf16.msra.mxu0 %v7530
        %8072 = vmatprep.subr.bf16.mxu0 %v7529
        %8073 = vmatpush2.bf16.msra.mxu0 %v7528
        %8074 = vmatprep.subr.bf16.mxu0 %v7527
        %8075 = vmatpush2.bf16.msra.mxu0 %v7526
        %8076 = vmatprep.subr.bf16.mxu0 %v7525
        %8077 = vmatpush2.bf16.msra.mxu0 %v7524
        %8078 = vmatprep.subr.bf16.mxu0 %v7523
        %8079 = vmatpush2.bf16.msra.mxu0 %v7522
        %8080 = vmatprep.subr.bf16.mxu0 %v7521
        %8081 = vmatpush2.bf16.msra.mxu0 %v7520
        %8082 = vmatprep.subr.bf16.mxu0 %v7519
        %8083 = vmatpush2.bf16.msra.mxu0 %v7518
        %8084 = vmatprep.subr.bf16.mxu0 %v7517
        %8085 = vmatpush2.bf16.msra.mxu0 %v7516
        %8086 = vmatprep.mubr.bf16.mxu0 %v4326
        %8087 = vmatmul.mubr.bf16.gmra.mxu0 %v4325
        %v8088 = vpop.f32.mrf.mxu0
        %v8089 = vadd.f32 0.0, %v8088
        %v8090 = vpop.f32.mrf.mxu0
        %v8091 = vadd.f32 0.0, %v8090
        %v8092 = vpop.f32.mrf.mxu0
        %v8093 = vadd.f32 0.0, %v8092
        %v8094 = vpop.f32.mrf.mxu0
        %v8095 = vadd.f32 0.0, %v8094
        %8096 = vmatprep.mubr.bf16.mxu0 %v4329
        %8097 = vmatmul.mubr.bf16.gmra.mxu0 %v4328
        %v8098 = vpop.f32.mrf.mxu0
        %v8099 = vadd.f32 0.0, %v8098
        %v8100 = vpop.f32.mrf.mxu0
        %v8101 = vadd.f32 0.0, %v8100
        %v8102 = vpop.f32.mrf.mxu0
        %v8103 = vadd.f32 0.0, %v8102
        %v8104 = vpop.f32.mrf.mxu0
        %v8105 = vadd.f32 0.0, %v8104
        %8106 = vmatprep.mubr.bf16.mxu0 %v4332
        %8107 = vmatmul.mubr.bf16.gmra.mxu0 %v4331
        %v8108 = vpop.f32.mrf.mxu0
        %v8109 = vadd.f32 0.0, %v8108
        %v8110 = vpop.f32.mrf.mxu0
        %v8111 = vadd.f32 0.0, %v8110
        %v8112 = vpop.f32.mrf.mxu0
        %v8113 = vadd.f32 0.0, %v8112
        %v8114 = vpop.f32.mrf.mxu0
        %v8115 = vadd.f32 0.0, %v8114
        %8116 = vdwg.mxu0
        %8117 = vmatprep.subr.bf16.mxu0 0
        %8118 = vmatpush1.bf16.msra.mxu0 0
        %8119 = vmatprep.subr.bf16.mxu0 0
        %8120 = vmatpush1.bf16.msra.mxu0 0
        %8121 = vmatprep.subr.bf16.mxu0 0
        %8122 = vmatpush1.bf16.msra.mxu0 0
        %8123 = vmatprep.subr.bf16.mxu0 0
        %8124 = vmatpush1.bf16.msra.mxu0 0
        %8125 = vmatprep.subr.bf16.mxu0 %v7539
        %8126 = vmatpush1.bf16.msra.mxu0 %v7538
        %8127 = vmatprep.subr.bf16.mxu0 %v7537
        %8128 = vmatpush1.bf16.msra.mxu0 %v7536
        %8129 = vmatprep.subr.bf16.mxu0 %v7535
        %8130 = vmatpush1.bf16.msra.mxu0 %v7534
        %8131 = vmatprep.subr.bf16.mxu0 %v7533
        %8132 = vmatpush1.bf16.msra.mxu0 %v7532
        %8133 = vmatprep.subr.bf16.mxu0 0
        %8134 = vmatpush2.bf16.msra.mxu0 0
        %8135 = vmatprep.subr.bf16.mxu0 0
        %8136 = vmatpush2.bf16.msra.mxu0 0
        %8137 = vmatprep.subr.bf16.mxu0 0
        %8138 = vmatpush2.bf16.msra.mxu0 0
        %8139 = vmatprep.subr.bf16.mxu0 0
        %8140 = vmatpush2.bf16.msra.mxu0 0
        %8141 = vmatprep.subr.bf16.mxu0 0
        %8142 = vmatpush2.bf16.msra.mxu0 0
        %8143 = vmatprep.subr.bf16.mxu0 0
        %8144 = vmatpush2.bf16.msra.mxu0 0
        %8145 = vmatprep.subr.bf16.mxu0 0
        %8146 = vmatpush2.bf16.msra.mxu0 0
        %8147 = vmatprep.subr.bf16.mxu0 0
        %8148 = vmatpush2.bf16.msra.mxu0 0
        %8149 = vmatprep.mubr.bf16.mxu0 0
        %8150 = vmatmul.mubr.bf16.gmra.mxu0 %v7920
        %v8151 = vpop.f32.mrf.mxu0
        %v8152 = vadd.f32 %v8089, %v8151
        %v8153 = vpop.f32.mrf.mxu0
        %v8154 = vadd.f32 %v8091, %v8153
        %v8155 = vpop.f32.mrf.mxu0
        %v8156 = vadd.f32 %v8093, %v8155
        %v8157 = vpop.f32.mrf.mxu0
        %v8158 = vadd.f32 %v8095, %v8157
        %8159 = vmatprep.mubr.bf16.mxu0 0
        %8160 = vmatmul.mubr.bf16.gmra.mxu0 %v7923
        %v8161 = vpop.f32.mrf.mxu0
        %v8162 = vadd.f32 %v8099, %v8161
        %v8163 = vpop.f32.mrf.mxu0
        %v8164 = vadd.f32 %v8101, %v8163
        %v8165 = vpop.f32.mrf.mxu0
        %v8166 = vadd.f32 %v8103, %v8165
        %v8167 = vpop.f32.mrf.mxu0
        %v8168 = vadd.f32 %v8105, %v8167
        %8169 = vmatprep.mubr.bf16.mxu0 0
        %8170 = vmatmul.mubr.bf16.gmra.mxu0 %v8052
        %v8171 = vpop.f32.mrf.mxu0
        %v8172 = vadd.f32 %v8109, %v8171
        %v8173 = vpop.f32.mrf.mxu0
        %v8174 = vadd.f32 %v8111, %v8173
        %v8175 = vpop.f32.mrf.mxu0
        %v8176 = vadd.f32 %v8113, %v8175
        %v8177 = vpop.f32.mrf.mxu0
        %v8178 = vadd.f32 %v8115, %v8177
        %8179 = vdwg.mxu0
        %8180 = vmatprep.subr.bf16.mxu0 %v7851
        %8181 = vmatpush1.bf16.msra.mxu0 %v7850
        %8182 = vmatprep.subr.bf16.mxu0 %v7849
        %8183 = vmatpush1.bf16.msra.mxu0 %v7848
        %8184 = vmatprep.subr.bf16.mxu0 %v7847
        %8185 = vmatpush1.bf16.msra.mxu0 %v7846
        %8186 = vmatprep.subr.bf16.mxu0 %v7845
        %8187 = vmatpush1.bf16.msra.mxu0 %v7844
        %8188 = vmatprep.subr.bf16.mxu0 %v7843
        %8189 = vmatpush1.bf16.msra.mxu0 %v7842
        %8190 = vmatprep.subr.bf16.mxu0 %v7841
        %8191 = vmatpush1.bf16.msra.mxu0 %v7840
        %8192 = vmatprep.subr.bf16.mxu0 %v7839
        %8193 = vmatpush1.bf16.msra.mxu0 %v7838
        %8194 = vmatprep.subr.bf16.mxu0 %v7837
        %8195 = vmatpush1.bf16.msra.mxu0 %v7836
        %8196 = vmatprep.subr.bf16.mxu0 %v7867
        %8197 = vmatpush2.bf16.msra.mxu0 %v7866
        %8198 = vmatprep.subr.bf16.mxu0 %v7865
        %8199 = vmatpush2.bf16.msra.mxu0 %v7864
        %8200 = vmatprep.subr.bf16.mxu0 %v7863
        %8201 = vmatpush2.bf16.msra.mxu0 %v7862
        %8202 = vmatprep.subr.bf16.mxu0 %v7861
        %8203 = vmatpush2.bf16.msra.mxu0 %v7860
        %8204 = vmatprep.subr.bf16.mxu0 %v7859
        %8205 = vmatpush2.bf16.msra.mxu0 %v7858
        %8206 = vmatprep.subr.bf16.mxu0 %v7857
        %8207 = vmatpush2.bf16.msra.mxu0 %v7856
        %8208 = vmatprep.subr.bf16.mxu0 %v7855
        %8209 = vmatpush2.bf16.msra.mxu0 %v7854
        %8210 = vmatprep.subr.bf16.mxu0 %v7853
        %8211 = vmatpush2.bf16.msra.mxu0 %v7852
        %8212 = vmatprep.mubr.bf16.mxu0 %v7288
        %8213 = vmatmul.mubr.bf16.gmra.mxu0 %v7287
        %v8214 = vpop.f32.mrf.mxu0
        %v8215 = vadd.f32 %v8152, %v8214
        %v8216 = vpop.f32.mrf.mxu0
        %v8217 = vadd.f32 %v8154, %v8216
        %v8218 = vpop.f32.mrf.mxu0
        %v8219 = vadd.f32 %v8156, %v8218
        %v8220 = vpop.f32.mrf.mxu0
        %v8221 = vadd.f32 %v8158, %v8220
        %8222 = vmatprep.mubr.bf16.mxu0 %v7291
        %8223 = vmatmul.mubr.bf16.gmra.mxu0 %v7290
        %v8224 = vpop.f32.mrf.mxu0
        %v8225 = vadd.f32 %v8162, %v8224
        %v8226 = vpop.f32.mrf.mxu0
        %v8227 = vadd.f32 %v8164, %v8226
        %v8228 = vpop.f32.mrf.mxu0
        %v8229 = vadd.f32 %v8166, %v8228
        %v8230 = vpop.f32.mrf.mxu0
        %v8231 = vadd.f32 %v8168, %v8230
        %8232 = vmatprep.mubr.bf16.mxu0 %v7294
        %8233 = vmatmul.mubr.bf16.gmra.mxu0 %v7293
        %v8234 = vpop.f32.mrf.mxu0
        %v8235 = vadd.f32 %v8172, %v8234
        %v8236 = vpop.f32.mrf.mxu0
        %v8237 = vadd.f32 %v8174, %v8236
        %v8238 = vpop.f32.mrf.mxu0
        %v8239 = vadd.f32 %v8176, %v8238
        %v8240 = vpop.f32.mrf.mxu0
        %v8241 = vadd.f32 %v8178, %v8240
        %8242 = vdwg.mxu0
        %8243 = vmatprep.subr.bf16.mxu0 0
        %8244 = vmatpush1.bf16.msra.mxu0 0
        %8245 = vmatprep.subr.bf16.mxu0 0
        %8246 = vmatpush1.bf16.msra.mxu0 0
        %8247 = vmatprep.subr.bf16.mxu0 0
        %8248 = vmatpush1.bf16.msra.mxu0 0
        %8249 = vmatprep.subr.bf16.mxu0 0
        %8250 = vmatpush1.bf16.msra.mxu0 0
        %8251 = vmatprep.subr.bf16.mxu0 %v7875
        %8252 = vmatpush1.bf16.msra.mxu0 %v7874
        %8253 = vmatprep.subr.bf16.mxu0 %v7873
        %8254 = vmatpush1.bf16.msra.mxu0 %v7872
        %8255 = vmatprep.subr.bf16.mxu0 %v7871
        %8256 = vmatpush1.bf16.msra.mxu0 %v7870
        %8257 = vmatprep.subr.bf16.mxu0 %v7869
        %8258 = vmatpush1.bf16.msra.mxu0 %v7868
        %8259 = vmatprep.subr.bf16.mxu0 0
        %8260 = vmatpush2.bf16.msra.mxu0 0
        %8261 = vmatprep.subr.bf16.mxu0 0
        %8262 = vmatpush2.bf16.msra.mxu0 0
        %8263 = vmatprep.subr.bf16.mxu0 0
        %8264 = vmatpush2.bf16.msra.mxu0 0
        %8265 = vmatprep.subr.bf16.mxu0 0
        %8266 = vmatpush2.bf16.msra.mxu0 0
        %8267 = vmatprep.subr.bf16.mxu0 0
        %8268 = vmatpush2.bf16.msra.mxu0 0
        %8269 = vmatprep.subr.bf16.mxu0 0
        %8270 = vmatpush2.bf16.msra.mxu0 0
        %8271 = vmatprep.subr.bf16.mxu0 0
        %8272 = vmatpush2.bf16.msra.mxu0 0
        %8273 = vmatprep.subr.bf16.mxu0 0
        %8274 = vmatpush2.bf16.msra.mxu0 0
        %8275 = vmatprep.mubr.bf16.mxu0 0
        %8276 = vmatmul.mubr.bf16.gmra.mxu0 %v7582
        %v8277 = vpop.f32.mrf.mxu0
        %v8278 = vadd.f32 %v8215, %v8277
        %v8279 = vpop.f32.mrf.mxu0
        %v8280 = vadd.f32 %v8217, %v8279
        %v8281 = vpop.f32.mrf.mxu0
        %v8282 = vadd.f32 %v8219, %v8281
        %v8283 = vpop.f32.mrf.mxu0
        %v8284 = vadd.f32 %v8221, %v8283
        %8285 = vmatprep.mubr.bf16.mxu0 0
        %8286 = vmatmul.mubr.bf16.gmra.mxu0 %v7585
        %v8287 = vpop.f32.mrf.mxu0
        %v8288 = vadd.f32 %v8225, %v8287
        %v8289 = vpop.f32.mrf.mxu0
        %v8290 = vadd.f32 %v8227, %v8289
        %v8291 = vpop.f32.mrf.mxu0
        %v8292 = vadd.f32 %v8229, %v8291
        %v8293 = vpop.f32.mrf.mxu0
        %v8294 = vadd.f32 %v8231, %v8293
        %8295 = vmatprep.mubr.bf16.mxu0 0
        %8296 = vmatmul.mubr.bf16.gmra.mxu0 %v7588
        %v8297 = vpop.f32.mrf.mxu0
        %v8298 = vadd.f32 %v8235, %v8297
        %v8299 = vpop.f32.mrf.mxu0
        %v8300 = vadd.f32 %v8237, %v8299
        %v8301 = vpop.f32.mrf.mxu0
        %v8302 = vadd.f32 %v8239, %v8301
        %v8303 = vpop.f32.mrf.mxu0
        %v8304 = vadd.f32 %v8241, %v8303
        %8305 = vdwg.mxu0
        %s8306 = scalar_lea.vmem %s3, 640
        %v8307 = vld [vmem:[%s8306] sm:$0xff]
        %v8308 = vld [vmem:[%s8306 + $0x8] sm:$0xff]
        %v8309 = vld [vmem:[%s8306 + $0x10] sm:$0xff]
        %v8310 = vld [vmem:[%s8306 + $0x18] sm:$0xff]
        %v8311 = vld [vmem:[%s8306 + $0x20] sm:$0xff]
        %v8312 = vld [vmem:[%s8306 + $0x28] sm:$0xff]
        %v8313 = vld [vmem:[%s8306 + $0x30] sm:$0xff]
        %v8314 = vld [vmem:[%s8306 + $0x38] sm:$0xff]
        %v8315 = vld [vmem:[%s8306 + $0x40] sm:$0xff]
        %v8316 = vld [vmem:[%s8306 + $0x48] sm:$0xff]
        %v8317 = vld [vmem:[%s8306 + $0x50] sm:$0xff]
        %v8318 = vld [vmem:[%s8306 + $0x58] sm:$0xff]
        %v8319 = vld [vmem:[%s8306 + $0x60] sm:$0xff]
        %v8320 = vld [vmem:[%s8306 + $0x68] sm:$0xff]
        %v8321 = vld [vmem:[%s8306 + $0x70] sm:$0xff]
        %v8322 = vld [vmem:[%s8306 + $0x78] sm:$0xff]
        %v8323 = vld [vmem:[%s8306 + $0x80] sm:$0xff]
        %v8324 = vld [vmem:[%s8306 + $0x88] sm:$0xff]
        %v8325 = vld [vmem:[%s8306 + $0x90] sm:$0xff]
        %v8326 = vld [vmem:[%s8306 + $0x98] sm:$0xff]
        %v8327 = vld [vmem:[%s8306 + $0xa0] sm:$0xff]
        %v8328 = vld [vmem:[%s8306 + $0xa8] sm:$0xff]
        %v8329 = vld [vmem:[%s8306 + $0xb0] sm:$0xff]
        %v8330 = vld [vmem:[%s8306 + $0xb8] sm:$0xff]
        %v8331 = vld [vmem:[%s8306 + $0xc0] sm:$0xff]
        %v8332 = vld [vmem:[%s8306 + $0xc8] sm:$0xff]
        %v8333 = vld [vmem:[%s8306 + $0xd0] sm:$0xff]
        %v8334 = vld [vmem:[%s8306 + $0xd8] sm:$0xff]
        %v8335 = vld [vmem:[%s8306 + $0xe0] sm:$0xff]
        %v8336 = vld [vmem:[%s8306 + $0xe8] sm:$0xff]
        %v8337 = vld [vmem:[%s8306 + $0xf0] sm:$0xff]
        %v8338 = vld [vmem:[%s8306 + $0xf8] sm:$0xff]
        %v8339 = vld [vmem:[%s8306 + $0x100] sm:$0xff]
        %v8340 = vld [vmem:[%s8306 + $0x108] sm:$0xff]
        %v8341 = vld [vmem:[%s8306 + $0x110] sm:$0xff]
        %v8342 = vld [vmem:[%s8306 + $0x118] sm:$0xff]
        %v8343 = vld [vmem:[%s8306 + $0x120] sm:$0xff]
        %v8344 = vld [vmem:[%s8306 + $0x128] sm:$0xff]
        %v8345 = vld [vmem:[%s8306 + $0x130] sm:$0xff]
        %v8346 = vld [vmem:[%s8306 + $0x138] sm:$0xff]
        %v8387 = vunpack.c.l.b16 %v8307
        %v8388 = vunpack.c.h.b16 %v8307
        %v8389 = vunpack.c.l.b16 %v8308
        %v8390 = vunpack.c.h.b16 %v8308
        %v8391 = vunpack.c.l.b16 %v8309
        %v8392 = vunpack.c.h.b16 %v8309
        %v8393 = vunpack.c.l.b16 %v8310
        %v8394 = vunpack.c.h.b16 %v8310
        %v8395 = vunpack.c.l.b16 %v8311
        %v8396 = vunpack.c.h.b16 %v8311
        %v8397 = vunpack.c.l.b16 %v8312
        %v8398 = vunpack.c.h.b16 %v8312
        %v8399 = vunpack.c.l.b16 %v8313
        %v8400 = vunpack.c.h.b16 %v8313
        %v8401 = vunpack.c.l.b16 %v8314
        %v8402 = vunpack.c.h.b16 %v8314
        %v8403 = vunpack.c.l.b16 %v8315
        %v8404 = vunpack.c.h.b16 %v8315
        %v8405 = vunpack.c.l.b16 %v8316
        %v8406 = vunpack.c.h.b16 %v8316
        %v8407 = vunpack.c.l.b16 %v8317
        %v8408 = vunpack.c.h.b16 %v8317
        %v8409 = vunpack.c.l.b16 %v8318
        %v8410 = vunpack.c.h.b16 %v8318
        %v8411 = vunpack.c.l.b16 %v8319
        %v8412 = vunpack.c.h.b16 %v8319
        %v8413 = vunpack.c.l.b16 %v8320
        %v8414 = vunpack.c.h.b16 %v8320
        %v8415 = vunpack.c.l.b16 %v8321
        %v8416 = vunpack.c.h.b16 %v8321
        %v8417 = vunpack.c.l.b16 %v8322
        %v8418 = vunpack.c.h.b16 %v8322
        %v8419 = vunpack.c.l.b16 %v8323
        %v8420 = vunpack.c.h.b16 %v8323
        %v8421 = vunpack.c.l.b16 %v8324
        %v8422 = vunpack.c.h.b16 %v8324
        %v8423 = vunpack.c.l.b16 %v8325
        %v8424 = vunpack.c.h.b16 %v8325
        %v8425 = vunpack.c.l.b16 %v8326
        %v8426 = vunpack.c.h.b16 %v8326
        %v8427 = vunpack.c.l.b16 %v8327
        %v8428 = vunpack.c.h.b16 %v8327
        %v8429 = vunpack.c.l.b16 %v8328
        %v8430 = vunpack.c.h.b16 %v8328
        %v8431 = vunpack.c.l.b16 %v8329
        %v8432 = vunpack.c.h.b16 %v8329
        %v8433 = vunpack.c.l.b16 %v8330
        %v8434 = vunpack.c.h.b16 %v8330
        %v8435 = vunpack.c.l.b16 %v8331
        %v8436 = vunpack.c.h.b16 %v8331
        %v8437 = vunpack.c.l.b16 %v8332
        %v8438 = vunpack.c.h.b16 %v8332
        %v8439 = vunpack.c.l.b16 %v8333
        %v8440 = vunpack.c.h.b16 %v8333
        %v8441 = vunpack.c.l.b16 %v8334
        %v8442 = vunpack.c.h.b16 %v8334
        %v8443 = vunpack.c.l.b16 %v8335
        %v8444 = vunpack.c.h.b16 %v8335
        %v8445 = vunpack.c.l.b16 %v8336
        %v8446 = vunpack.c.h.b16 %v8336
        %v8447 = vunpack.c.l.b16 %v8337
        %v8448 = vunpack.c.h.b16 %v8337
        %v8449 = vunpack.c.l.b16 %v8338
        %v8450 = vunpack.c.h.b16 %v8338
        %v8451 = vunpack.c.l.b16 %v8339
        %v8452 = vunpack.c.h.b16 %v8339
        %v8453 = vunpack.c.l.b16 %v8340
        %v8454 = vunpack.c.h.b16 %v8340
        %v8455 = vunpack.c.l.b16 %v8341
        %v8456 = vunpack.c.h.b16 %v8341
        %v8457 = vunpack.c.l.b16 %v8342
        %v8458 = vunpack.c.h.b16 %v8342
        %v8459 = vunpack.c.l.b16 %v8343
        %v8460 = vunpack.c.h.b16 %v8343
        %v8461 = vunpack.c.l.b16 %v8344
        %v8462 = vunpack.c.h.b16 %v8344
        %v8463 = vunpack.c.l.b16 %v8345
        %v8464 = vunpack.c.h.b16 %v8345
        %v8465 = vunpack.c.l.b16 %v8346
        %v8466 = vunpack.c.h.b16 %v8346
        %v8467 = vpack.c.b16 %v8389, %v8387
        %v8468 = vpack.c.b16 %v8390, %v8388
        %v8469 = vpack.c.b16 %v8393, %v8391
        %v8470 = vpack.c.b16 %v8394, %v8392
        %v8471 = vpack.c.b16 %v8397, %v8395
        %v8472 = vpack.c.b16 %v8398, %v8396
        %v8473 = vpack.c.b16 %v8401, %v8399
        %v8474 = vpack.c.b16 %v8402, %v8400
        %v8475 = vpack.c.b16 %v8405, %v8403
        %v8476 = vpack.c.b16 %v8406, %v8404
        %v8477 = vpack.c.b16 %v8409, %v8407
        %v8478 = vpack.c.b16 %v8410, %v8408
        %v8479 = vpack.c.b16 %v8413, %v8411
        %v8480 = vpack.c.b16 %v8414, %v8412
        %v8481 = vpack.c.b16 %v8417, %v8415
        %v8482 = vpack.c.b16 %v8418, %v8416
        %v8483 = vpack.c.b16 %v8421, %v8419
        %v8484 = vpack.c.b16 %v8422, %v8420
        %v8485 = vpack.c.b16 %v8425, %v8423
        %v8486 = vpack.c.b16 %v8426, %v8424
        %v8487 = vpack.c.b16 %v8429, %v8427
        %v8488 = vpack.c.b16 %v8430, %v8428
        %v8489 = vpack.c.b16 %v8433, %v8431
        %v8490 = vpack.c.b16 %v8434, %v8432
        %v8491 = vpack.c.b16 %v8437, %v8435
        %v8492 = vpack.c.b16 %v8438, %v8436
        %v8493 = vpack.c.b16 %v8441, %v8439
        %v8494 = vpack.c.b16 %v8442, %v8440
        %v8495 = vpack.c.b16 %v8445, %v8443
        %v8496 = vpack.c.b16 %v8446, %v8444
        %v8497 = vpack.c.b16 %v8449, %v8447
        %v8498 = vpack.c.b16 %v8450, %v8448
        %v8499 = vpack.c.b16 %v8453, %v8451
        %v8500 = vpack.c.b16 %v8454, %v8452
        %v8501 = vpack.c.b16 %v8457, %v8455
        %v8502 = vpack.c.b16 %v8458, %v8456
        %v8503 = vpack.c.b16 %v8461, %v8459
        %v8504 = vpack.c.b16 %v8462, %v8460
        %v8505 = vpack.c.b16 %v8465, %v8463
        %v8506 = vpack.c.b16 %v8466, %v8464
        %8547 = vmatprep.subr.bf16.mxu0 %v8482
        %8548 = vmatpush1.bf16.msra.mxu0 %v8481
        %8549 = vmatprep.subr.bf16.mxu0 %v8480
        %8550 = vmatpush1.bf16.msra.mxu0 %v8479
        %8551 = vmatprep.subr.bf16.mxu0 %v8478
        %8552 = vmatpush1.bf16.msra.mxu0 %v8477
        %8553 = vmatprep.subr.bf16.mxu0 %v8476
        %8554 = vmatpush1.bf16.msra.mxu0 %v8475
        %8555 = vmatprep.subr.bf16.mxu0 %v8474
        %8556 = vmatpush1.bf16.msra.mxu0 %v8473
        %8557 = vmatprep.subr.bf16.mxu0 %v8472
        %8558 = vmatpush1.bf16.msra.mxu0 %v8471
        %8559 = vmatprep.subr.bf16.mxu0 %v8470
        %8560 = vmatpush1.bf16.msra.mxu0 %v8469
        %8561 = vmatprep.subr.bf16.mxu0 %v8468
        %8562 = vmatpush1.bf16.msra.mxu0 %v8467
        %8563 = vmatprep.subr.bf16.mxu0 %v8498
        %8564 = vmatpush2.bf16.msra.mxu0 %v8497
        %8565 = vmatprep.subr.bf16.mxu0 %v8496
        %8566 = vmatpush2.bf16.msra.mxu0 %v8495
        %8567 = vmatprep.subr.bf16.mxu0 %v8494
        %8568 = vmatpush2.bf16.msra.mxu0 %v8493
        %8569 = vmatprep.subr.bf16.mxu0 %v8492
        %8570 = vmatpush2.bf16.msra.mxu0 %v8491
        %8571 = vmatprep.subr.bf16.mxu0 %v8490
        %8572 = vmatpush2.bf16.msra.mxu0 %v8489
        %8573 = vmatprep.subr.bf16.mxu0 %v8488
        %8574 = vmatpush2.bf16.msra.mxu0 %v8487
        %8575 = vmatprep.subr.bf16.mxu0 %v8486
        %8576 = vmatpush2.bf16.msra.mxu0 %v8485
        %8577 = vmatprep.subr.bf16.mxu0 %v8484
        %8578 = vmatpush2.bf16.msra.mxu0 %v8483
        %8579 = vmatprep.mubr.bf16.mxu0 %v4326
        %8580 = vmatmul.mubr.bf16.gmra.mxu0 %v4325
        %v8581 = vpop.f32.mrf.mxu0
        %v8582 = vadd.f32 0.0, %v8581
        %v8583 = vpop.f32.mrf.mxu0
        %v8584 = vadd.f32 0.0, %v8583
        %v8585 = vpop.f32.mrf.mxu0
        %v8586 = vadd.f32 0.0, %v8585
        %v8587 = vpop.f32.mrf.mxu0
        %v8588 = vadd.f32 0.0, %v8587
        %8589 = vmatprep.mubr.bf16.mxu0 %v4329
        %8590 = vmatmul.mubr.bf16.gmra.mxu0 %v4328
        %v8591 = vpop.f32.mrf.mxu0
        %v8592 = vadd.f32 0.0, %v8591
        %v8593 = vpop.f32.mrf.mxu0
        %v8594 = vadd.f32 0.0, %v8593
        %v8595 = vpop.f32.mrf.mxu0
        %v8596 = vadd.f32 0.0, %v8595
        %v8597 = vpop.f32.mrf.mxu0
        %v8598 = vadd.f32 0.0, %v8597
        %8599 = vmatprep.mubr.bf16.mxu0 %v4332
        %8600 = vmatmul.mubr.bf16.gmra.mxu0 %v4331
        %v8601 = vpop.f32.mrf.mxu0
        %v8602 = vadd.f32 0.0, %v8601
        %v8603 = vpop.f32.mrf.mxu0
        %v8604 = vadd.f32 0.0, %v8603
        %v8605 = vpop.f32.mrf.mxu0
        %v8606 = vadd.f32 0.0, %v8605
        %v8607 = vpop.f32.mrf.mxu0
        %v8608 = vadd.f32 0.0, %v8607
        %8609 = vdwg.mxu0
        %8610 = vmatprep.subr.bf16.mxu0 0
        %8611 = vmatpush1.bf16.msra.mxu0 0
        %8612 = vmatprep.subr.bf16.mxu0 0
        %8613 = vmatpush1.bf16.msra.mxu0 0
        %8614 = vmatprep.subr.bf16.mxu0 0
        %8615 = vmatpush1.bf16.msra.mxu0 0
        %8616 = vmatprep.subr.bf16.mxu0 0
        %8617 = vmatpush1.bf16.msra.mxu0 0
        %8618 = vmatprep.subr.bf16.mxu0 %v8506
        %8619 = vmatpush1.bf16.msra.mxu0 %v8505
        %8620 = vmatprep.subr.bf16.mxu0 %v8504
        %8621 = vmatpush1.bf16.msra.mxu0 %v8503
        %8622 = vmatprep.subr.bf16.mxu0 %v8502
        %8623 = vmatpush1.bf16.msra.mxu0 %v8501
        %8624 = vmatprep.subr.bf16.mxu0 %v8500
        %8625 = vmatpush1.bf16.msra.mxu0 %v8499
        %8626 = vmatprep.subr.bf16.mxu0 0
        %8627 = vmatpush2.bf16.msra.mxu0 0
        %8628 = vmatprep.subr.bf16.mxu0 0
        %8629 = vmatpush2.bf16.msra.mxu0 0
        %8630 = vmatprep.subr.bf16.mxu0 0
        %8631 = vmatpush2.bf16.msra.mxu0 0
        %8632 = vmatprep.subr.bf16.mxu0 0
        %8633 = vmatpush2.bf16.msra.mxu0 0
        %8634 = vmatprep.subr.bf16.mxu0 0
        %8635 = vmatpush2.bf16.msra.mxu0 0
        %8636 = vmatprep.subr.bf16.mxu0 0
        %8637 = vmatpush2.bf16.msra.mxu0 0
        %8638 = vmatprep.subr.bf16.mxu0 0
        %8639 = vmatpush2.bf16.msra.mxu0 0
        %8640 = vmatprep.subr.bf16.mxu0 0
        %8641 = vmatpush2.bf16.msra.mxu0 0
        %8642 = vmatprep.mubr.bf16.mxu0 0
        %8643 = vmatmul.mubr.bf16.gmra.mxu0 %v7920
        %v8644 = vpop.f32.mrf.mxu0
        %v8645 = vadd.f32 %v8582, %v8644
        %v8646 = vpop.f32.mrf.mxu0
        %v8647 = vadd.f32 %v8584, %v8646
        %v8648 = vpop.f32.mrf.mxu0
        %v8649 = vadd.f32 %v8586, %v8648
        %v8650 = vpop.f32.mrf.mxu0
        %v8651 = vadd.f32 %v8588, %v8650
        %8652 = vmatprep.mubr.bf16.mxu0 0
        %8653 = vmatmul.mubr.bf16.gmra.mxu0 %v7923
        %v8654 = vpop.f32.mrf.mxu0
        %v8655 = vadd.f32 %v8592, %v8654
        %v8656 = vpop.f32.mrf.mxu0
        %v8657 = vadd.f32 %v8594, %v8656
        %v8658 = vpop.f32.mrf.mxu0
        %v8659 = vadd.f32 %v8596, %v8658
        %v8660 = vpop.f32.mrf.mxu0
        %v8661 = vadd.f32 %v8598, %v8660
        %8662 = vmatprep.mubr.bf16.mxu0 0
        %8663 = vmatmul.mubr.bf16.gmra.mxu0 %v8052
        %v8664 = vpop.f32.mrf.mxu0
        %v8665 = vadd.f32 %v8602, %v8664
        %v8666 = vpop.f32.mrf.mxu0
        %v8667 = vadd.f32 %v8604, %v8666
        %v8668 = vpop.f32.mrf.mxu0
        %v8669 = vadd.f32 %v8606, %v8668
        %v8670 = vpop.f32.mrf.mxu0
        %v8671 = vadd.f32 %v8608, %v8670
        %8672 = vdwg.mxu0
        %v8673 = vadd.f32 %v8023, %v8645
        %v8674 = vadd.f32 %v8025, %v8647
        %v8675 = vadd.f32 %v8027, %v8649
        %v8676 = vadd.f32 %v8029, %v8651
        %v8677 = vadd.f32 %v8033, %v8655
        %v8678 = vadd.f32 %v8035, %v8657
        %v8679 = vadd.f32 %v8037, %v8659
        %v8680 = vadd.f32 %v8039, %v8661
        %v8681 = vadd.f32 %v8043, %v8665
        %v8682 = vadd.f32 %v8045, %v8667
        %v8683 = vadd.f32 %v8047, %v8669
        %v8684 = vadd.f32 %v8049, %v8671
        %v8686 = vsel %vm7580, %v7298, 0
        %8688 = vmatprep.subr.bf16.mxu0 %v8482
        %8689 = vmatpush1.bf16.msra.mxu0 %v8481
        %8690 = vmatprep.subr.bf16.mxu0 %v8480
        %8691 = vmatpush1.bf16.msra.mxu0 %v8479
        %8692 = vmatprep.subr.bf16.mxu0 %v8478
        %8693 = vmatpush1.bf16.msra.mxu0 %v8477
        %8694 = vmatprep.subr.bf16.mxu0 %v8476
        %8695 = vmatpush1.bf16.msra.mxu0 %v8475
        %8696 = vmatprep.subr.bf16.mxu0 %v8474
        %8697 = vmatpush1.bf16.msra.mxu0 %v8473
        %8698 = vmatprep.subr.bf16.mxu0 %v8472
        %8699 = vmatpush1.bf16.msra.mxu0 %v8471
        %8700 = vmatprep.subr.bf16.mxu0 %v8470
        %8701 = vmatpush1.bf16.msra.mxu0 %v8469
        %8702 = vmatprep.subr.bf16.mxu0 %v8468
        %8703 = vmatpush1.bf16.msra.mxu0 %v8467
        %8704 = vmatprep.subr.bf16.mxu0 %v8498
        %8705 = vmatpush2.bf16.msra.mxu0 %v8497
        %8706 = vmatprep.subr.bf16.mxu0 %v8496
        %8707 = vmatpush2.bf16.msra.mxu0 %v8495
        %8708 = vmatprep.subr.bf16.mxu0 %v8494
        %8709 = vmatpush2.bf16.msra.mxu0 %v8493
        %8710 = vmatprep.subr.bf16.mxu0 %v8492
        %8711 = vmatpush2.bf16.msra.mxu0 %v8491
        %8712 = vmatprep.subr.bf16.mxu0 %v8490
        %8713 = vmatpush2.bf16.msra.mxu0 %v8489
        %8714 = vmatprep.subr.bf16.mxu0 %v8488
        %8715 = vmatpush2.bf16.msra.mxu0 %v8487
        %8716 = vmatprep.subr.bf16.mxu0 %v8486
        %8717 = vmatpush2.bf16.msra.mxu0 %v8485
        %8718 = vmatprep.subr.bf16.mxu0 %v8484
        %8719 = vmatpush2.bf16.msra.mxu0 %v8483
        %8720 = vmatprep.mubr.bf16.mxu0 %v7291
        %8721 = vmatmul.mubr.bf16.gmra.mxu0 %v7290
        %v8722 = vpop.f32.mrf.mxu0
        %v8723 = vadd.f32 0.0, %v8722
        %v8724 = vpop.f32.mrf.mxu0
        %v8725 = vadd.f32 0.0, %v8724
        %v8726 = vpop.f32.mrf.mxu0
        %v8727 = vadd.f32 0.0, %v8726
        %v8728 = vpop.f32.mrf.mxu0
        %v8729 = vadd.f32 0.0, %v8728
        %8730 = vmatprep.mubr.bf16.mxu0 %v7294
        %8731 = vmatmul.mubr.bf16.gmra.mxu0 %v7293
        %v8732 = vpop.f32.mrf.mxu0
        %v8733 = vadd.f32 0.0, %v8732
        %v8734 = vpop.f32.mrf.mxu0
        %v8735 = vadd.f32 0.0, %v8734
        %v8736 = vpop.f32.mrf.mxu0
        %v8737 = vadd.f32 0.0, %v8736
        %v8738 = vpop.f32.mrf.mxu0
        %v8739 = vadd.f32 0.0, %v8738
        %8740 = vmatprep.mubr.bf16.mxu0 %v7297
        %8741 = vmatmul.mubr.bf16.gmra.mxu0 %v7296
        %v8742 = vpop.f32.mrf.mxu0
        %v8743 = vadd.f32 0.0, %v8742
        %v8744 = vpop.f32.mrf.mxu0
        %v8745 = vadd.f32 0.0, %v8744
        %v8746 = vpop.f32.mrf.mxu0
        %v8747 = vadd.f32 0.0, %v8746
        %v8748 = vpop.f32.mrf.mxu0
        %v8749 = vadd.f32 0.0, %v8748
        %8750 = vdwg.mxu0
        %8751 = vmatprep.subr.bf16.mxu0 0
        %8752 = vmatpush1.bf16.msra.mxu0 0
        %8753 = vmatprep.subr.bf16.mxu0 0
        %8754 = vmatpush1.bf16.msra.mxu0 0
        %8755 = vmatprep.subr.bf16.mxu0 0
        %8756 = vmatpush1.bf16.msra.mxu0 0
        %8757 = vmatprep.subr.bf16.mxu0 0
        %8758 = vmatpush1.bf16.msra.mxu0 0
        %8759 = vmatprep.subr.bf16.mxu0 %v8506
        %8760 = vmatpush1.bf16.msra.mxu0 %v8505
        %8761 = vmatprep.subr.bf16.mxu0 %v8504
        %8762 = vmatpush1.bf16.msra.mxu0 %v8503
        %8763 = vmatprep.subr.bf16.mxu0 %v8502
        %8764 = vmatpush1.bf16.msra.mxu0 %v8501
        %8765 = vmatprep.subr.bf16.mxu0 %v8500
        %8766 = vmatpush1.bf16.msra.mxu0 %v8499
        %8767 = vmatprep.subr.bf16.mxu0 0
        %8768 = vmatpush2.bf16.msra.mxu0 0
        %8769 = vmatprep.subr.bf16.mxu0 0
        %8770 = vmatpush2.bf16.msra.mxu0 0
        %8771 = vmatprep.subr.bf16.mxu0 0
        %8772 = vmatpush2.bf16.msra.mxu0 0
        %8773 = vmatprep.subr.bf16.mxu0 0
        %8774 = vmatpush2.bf16.msra.mxu0 0
        %8775 = vmatprep.subr.bf16.mxu0 0
        %8776 = vmatpush2.bf16.msra.mxu0 0
        %8777 = vmatprep.subr.bf16.mxu0 0
        %8778 = vmatpush2.bf16.msra.mxu0 0
        %8779 = vmatprep.subr.bf16.mxu0 0
        %8780 = vmatpush2.bf16.msra.mxu0 0
        %8781 = vmatprep.subr.bf16.mxu0 0
        %8782 = vmatpush2.bf16.msra.mxu0 0
        %8783 = vmatprep.mubr.bf16.mxu0 0
        %8784 = vmatmul.mubr.bf16.gmra.mxu0 %v7585
        %v8785 = vpop.f32.mrf.mxu0
        %v8786 = vadd.f32 %v8723, %v8785
        %v8787 = vpop.f32.mrf.mxu0
        %v8788 = vadd.f32 %v8725, %v8787
        %v8789 = vpop.f32.mrf.mxu0
        %v8790 = vadd.f32 %v8727, %v8789
        %v8791 = vpop.f32.mrf.mxu0
        %v8792 = vadd.f32 %v8729, %v8791
        %8793 = vmatprep.mubr.bf16.mxu0 0
        %8794 = vmatmul.mubr.bf16.gmra.mxu0 %v7588
        %v8795 = vpop.f32.mrf.mxu0
        %v8796 = vadd.f32 %v8733, %v8795
        %v8797 = vpop.f32.mrf.mxu0
        %v8798 = vadd.f32 %v8735, %v8797
        %v8799 = vpop.f32.mrf.mxu0
        %v8800 = vadd.f32 %v8737, %v8799
        %v8801 = vpop.f32.mrf.mxu0
        %v8802 = vadd.f32 %v8739, %v8801
        %8803 = vmatprep.mubr.bf16.mxu0 0
        %8804 = vmatmul.mubr.bf16.gmra.mxu0 %v8686
        %v8805 = vpop.f32.mrf.mxu0
        %v8806 = vadd.f32 %v8743, %v8805
        %v8807 = vpop.f32.mrf.mxu0
        %v8808 = vadd.f32 %v8745, %v8807
        %v8809 = vpop.f32.mrf.mxu0
        %v8810 = vadd.f32 %v8747, %v8809
        %v8811 = vpop.f32.mrf.mxu0
        %v8812 = vadd.f32 %v8749, %v8811
        %8813 = vdwg.mxu0
        %v8814 = vadd.f32 %v8278, %v8786
        %v8815 = vadd.f32 %v8280, %v8788
        %v8816 = vadd.f32 %v8282, %v8790
        %v8817 = vadd.f32 %v8284, %v8792
        %v8818 = vadd.f32 %v8288, %v8796
        %v8819 = vadd.f32 %v8290, %v8798
        %v8820 = vadd.f32 %v8292, %v8800
        %v8821 = vadd.f32 %v8294, %v8802
        %v8822 = vadd.f32 %v8298, %v8806
        %v8823 = vadd.f32 %v8300, %v8808
        %v8824 = vadd.f32 %v8302, %v8810
        %v8825 = vadd.f32 %v8304, %v8812
        %s8826 = scalar_lea.vmem %s3, 960
        %v8827 = vld [vmem:[%s8826] sm:$0xff]
        %v8828 = vld [vmem:[%s8826 + $0x8] sm:$0xff]
        %v8829 = vld [vmem:[%s8826 + $0x10] sm:$0xff]
        %v8830 = vld [vmem:[%s8826 + $0x18] sm:$0xff]
        %v8831 = vld [vmem:[%s8826 + $0x20] sm:$0xff]
        %v8832 = vld [vmem:[%s8826 + $0x28] sm:$0xff]
        %v8833 = vld [vmem:[%s8826 + $0x30] sm:$0xff]
        %v8834 = vld [vmem:[%s8826 + $0x38] sm:$0xff]
        %v8835 = vld [vmem:[%s8826 + $0x40] sm:$0xff]
        %v8836 = vld [vmem:[%s8826 + $0x48] sm:$0xff]
        %v8837 = vld [vmem:[%s8826 + $0x50] sm:$0xff]
        %v8838 = vld [vmem:[%s8826 + $0x58] sm:$0xff]
        %v8839 = vld [vmem:[%s8826 + $0x60] sm:$0xff]
        %v8840 = vld [vmem:[%s8826 + $0x68] sm:$0xff]
        %v8841 = vld [vmem:[%s8826 + $0x70] sm:$0xff]
        %v8842 = vld [vmem:[%s8826 + $0x78] sm:$0xff]
        %v8843 = vld [vmem:[%s8826 + $0x80] sm:$0xff]
        %v8844 = vld [vmem:[%s8826 + $0x88] sm:$0xff]
        %v8845 = vld [vmem:[%s8826 + $0x90] sm:$0xff]
        %v8846 = vld [vmem:[%s8826 + $0x98] sm:$0xff]
        %v8847 = vld [vmem:[%s8826 + $0xa0] sm:$0xff]
        %v8848 = vld [vmem:[%s8826 + $0xa8] sm:$0xff]
        %v8849 = vld [vmem:[%s8826 + $0xb0] sm:$0xff]
        %v8850 = vld [vmem:[%s8826 + $0xb8] sm:$0xff]
        %v8851 = vld [vmem:[%s8826 + $0xc0] sm:$0xff]
        %v8852 = vld [vmem:[%s8826 + $0xc8] sm:$0xff]
        %v8853 = vld [vmem:[%s8826 + $0xd0] sm:$0xff]
        %v8854 = vld [vmem:[%s8826 + $0xd8] sm:$0xff]
        %v8855 = vld [vmem:[%s8826 + $0xe0] sm:$0xff]
        %v8856 = vld [vmem:[%s8826 + $0xe8] sm:$0xff]
        %v8857 = vld [vmem:[%s8826 + $0xf0] sm:$0xff]
        %v8858 = vld [vmem:[%s8826 + $0xf8] sm:$0xff]
        %v8859 = vld [vmem:[%s8826 + $0x100] sm:$0xff]
        %v8860 = vld [vmem:[%s8826 + $0x108] sm:$0xff]
        %v8861 = vld [vmem:[%s8826 + $0x110] sm:$0xff]
        %v8862 = vld [vmem:[%s8826 + $0x118] sm:$0xff]
        %v8863 = vld [vmem:[%s8826 + $0x120] sm:$0xff]
        %v8864 = vld [vmem:[%s8826 + $0x128] sm:$0xff]
        %v8865 = vld [vmem:[%s8826 + $0x130] sm:$0xff]
        %v8866 = vld [vmem:[%s8826 + $0x138] sm:$0xff]
        %v8907 = vunpack.c.l.b16 %v8827
        %v8908 = vunpack.c.h.b16 %v8827
        %v8909 = vunpack.c.l.b16 %v8828
        %v8910 = vunpack.c.h.b16 %v8828
        %v8911 = vunpack.c.l.b16 %v8829
        %v8912 = vunpack.c.h.b16 %v8829
        %v8913 = vunpack.c.l.b16 %v8830
        %v8914 = vunpack.c.h.b16 %v8830
        %v8915 = vunpack.c.l.b16 %v8831
        %v8916 = vunpack.c.h.b16 %v8831
        %v8917 = vunpack.c.l.b16 %v8832
        %v8918 = vunpack.c.h.b16 %v8832
        %v8919 = vunpack.c.l.b16 %v8833
        %v8920 = vunpack.c.h.b16 %v8833
        %v8921 = vunpack.c.l.b16 %v8834
        %v8922 = vunpack.c.h.b16 %v8834
        %v8923 = vunpack.c.l.b16 %v8835
        %v8924 = vunpack.c.h.b16 %v8835
        %v8925 = vunpack.c.l.b16 %v8836
        %v8926 = vunpack.c.h.b16 %v8836
        %v8927 = vunpack.c.l.b16 %v8837
        %v8928 = vunpack.c.h.b16 %v8837
        %v8929 = vunpack.c.l.b16 %v8838
        %v8930 = vunpack.c.h.b16 %v8838
        %v8931 = vunpack.c.l.b16 %v8839
        %v8932 = vunpack.c.h.b16 %v8839
        %v8933 = vunpack.c.l.b16 %v8840
        %v8934 = vunpack.c.h.b16 %v8840
        %v8935 = vunpack.c.l.b16 %v8841
        %v8936 = vunpack.c.h.b16 %v8841
        %v8937 = vunpack.c.l.b16 %v8842
        %v8938 = vunpack.c.h.b16 %v8842
        %v8939 = vunpack.c.l.b16 %v8843
        %v8940 = vunpack.c.h.b16 %v8843
        %v8941 = vunpack.c.l.b16 %v8844
        %v8942 = vunpack.c.h.b16 %v8844
        %v8943 = vunpack.c.l.b16 %v8845
        %v8944 = vunpack.c.h.b16 %v8845
        %v8945 = vunpack.c.l.b16 %v8846
        %v8946 = vunpack.c.h.b16 %v8846
        %v8947 = vunpack.c.l.b16 %v8847
        %v8948 = vunpack.c.h.b16 %v8847
        %v8949 = vunpack.c.l.b16 %v8848
        %v8950 = vunpack.c.h.b16 %v8848
        %v8951 = vunpack.c.l.b16 %v8849
        %v8952 = vunpack.c.h.b16 %v8849
        %v8953 = vunpack.c.l.b16 %v8850
        %v8954 = vunpack.c.h.b16 %v8850
        %v8955 = vunpack.c.l.b16 %v8851
        %v8956 = vunpack.c.h.b16 %v8851
        %v8957 = vunpack.c.l.b16 %v8852
        %v8958 = vunpack.c.h.b16 %v8852
        %v8959 = vunpack.c.l.b16 %v8853
        %v8960 = vunpack.c.h.b16 %v8853
        %v8961 = vunpack.c.l.b16 %v8854
        %v8962 = vunpack.c.h.b16 %v8854
        %v8963 = vunpack.c.l.b16 %v8855
        %v8964 = vunpack.c.h.b16 %v8855
        %v8965 = vunpack.c.l.b16 %v8856
        %v8966 = vunpack.c.h.b16 %v8856
        %v8967 = vunpack.c.l.b16 %v8857
        %v8968 = vunpack.c.h.b16 %v8857
        %v8969 = vunpack.c.l.b16 %v8858
        %v8970 = vunpack.c.h.b16 %v8858
        %v8971 = vunpack.c.l.b16 %v8859
        %v8972 = vunpack.c.h.b16 %v8859
        %v8973 = vunpack.c.l.b16 %v8860
        %v8974 = vunpack.c.h.b16 %v8860
        %v8975 = vunpack.c.l.b16 %v8861
        %v8976 = vunpack.c.h.b16 %v8861
        %v8977 = vunpack.c.l.b16 %v8862
        %v8978 = vunpack.c.h.b16 %v8862
        %v8979 = vunpack.c.l.b16 %v8863
        %v8980 = vunpack.c.h.b16 %v8863
        %v8981 = vunpack.c.l.b16 %v8864
        %v8982 = vunpack.c.h.b16 %v8864
        %v8983 = vunpack.c.l.b16 %v8865
        %v8984 = vunpack.c.h.b16 %v8865
        %v8985 = vunpack.c.l.b16 %v8866
        %v8986 = vunpack.c.h.b16 %v8866
        %v8987 = vpack.c.b16 %v8909, %v8907
        %v8988 = vpack.c.b16 %v8910, %v8908
        %v8989 = vpack.c.b16 %v8913, %v8911
        %v8990 = vpack.c.b16 %v8914, %v8912
        %v8991 = vpack.c.b16 %v8917, %v8915
        %v8992 = vpack.c.b16 %v8918, %v8916
        %v8993 = vpack.c.b16 %v8921, %v8919
        %v8994 = vpack.c.b16 %v8922, %v8920
        %v8995 = vpack.c.b16 %v8925, %v8923
        %v8996 = vpack.c.b16 %v8926, %v8924
        %v8997 = vpack.c.b16 %v8929, %v8927
        %v8998 = vpack.c.b16 %v8930, %v8928
        %v8999 = vpack.c.b16 %v8933, %v8931
        %v9000 = vpack.c.b16 %v8934, %v8932
        %v9001 = vpack.c.b16 %v8937, %v8935
        %v9002 = vpack.c.b16 %v8938, %v8936
        %v9003 = vpack.c.b16 %v8941, %v8939
        %v9004 = vpack.c.b16 %v8942, %v8940
        %v9005 = vpack.c.b16 %v8945, %v8943
        %v9006 = vpack.c.b16 %v8946, %v8944
        %v9007 = vpack.c.b16 %v8949, %v8947
        %v9008 = vpack.c.b16 %v8950, %v8948
        %v9009 = vpack.c.b16 %v8953, %v8951
        %v9010 = vpack.c.b16 %v8954, %v8952
        %v9011 = vpack.c.b16 %v8957, %v8955
        %v9012 = vpack.c.b16 %v8958, %v8956
        %v9013 = vpack.c.b16 %v8961, %v8959
        %v9014 = vpack.c.b16 %v8962, %v8960
        %v9015 = vpack.c.b16 %v8965, %v8963
        %v9016 = vpack.c.b16 %v8966, %v8964
        %v9017 = vpack.c.b16 %v8969, %v8967
        %v9018 = vpack.c.b16 %v8970, %v8968
        %v9019 = vpack.c.b16 %v8973, %v8971
        %v9020 = vpack.c.b16 %v8974, %v8972
        %v9021 = vpack.c.b16 %v8977, %v8975
        %v9022 = vpack.c.b16 %v8978, %v8976
        %v9023 = vpack.c.b16 %v8981, %v8979
        %v9024 = vpack.c.b16 %v8982, %v8980
        %v9025 = vpack.c.b16 %v8985, %v8983
        %v9026 = vpack.c.b16 %v8986, %v8984
        %9067 = vmatprep.subr.bf16.mxu0 %v9002
        %9068 = vmatpush1.bf16.msra.mxu0 %v9001
        %9069 = vmatprep.subr.bf16.mxu0 %v9000
        %9070 = vmatpush1.bf16.msra.mxu0 %v8999
        %9071 = vmatprep.subr.bf16.mxu0 %v8998
        %9072 = vmatpush1.bf16.msra.mxu0 %v8997
        %9073 = vmatprep.subr.bf16.mxu0 %v8996
        %9074 = vmatpush1.bf16.msra.mxu0 %v8995
        %9075 = vmatprep.subr.bf16.mxu0 %v8994
        %9076 = vmatpush1.bf16.msra.mxu0 %v8993
        %9077 = vmatprep.subr.bf16.mxu0 %v8992
        %9078 = vmatpush1.bf16.msra.mxu0 %v8991
        %9079 = vmatprep.subr.bf16.mxu0 %v8990
        %9080 = vmatpush1.bf16.msra.mxu0 %v8989
        %9081 = vmatprep.subr.bf16.mxu0 %v8988
        %9082 = vmatpush1.bf16.msra.mxu0 %v8987
        %9083 = vmatprep.subr.bf16.mxu0 %v9018
        %9084 = vmatpush2.bf16.msra.mxu0 %v9017
        %9085 = vmatprep.subr.bf16.mxu0 %v9016
        %9086 = vmatpush2.bf16.msra.mxu0 %v9015
        %9087 = vmatprep.subr.bf16.mxu0 %v9014
        %9088 = vmatpush2.bf16.msra.mxu0 %v9013
        %9089 = vmatprep.subr.bf16.mxu0 %v9012
        %9090 = vmatpush2.bf16.msra.mxu0 %v9011
        %9091 = vmatprep.subr.bf16.mxu0 %v9010
        %9092 = vmatpush2.bf16.msra.mxu0 %v9009
        %9093 = vmatprep.subr.bf16.mxu0 %v9008
        %9094 = vmatpush2.bf16.msra.mxu0 %v9007
        %9095 = vmatprep.subr.bf16.mxu0 %v9006
        %9096 = vmatpush2.bf16.msra.mxu0 %v9005
        %9097 = vmatprep.subr.bf16.mxu0 %v9004
        %9098 = vmatpush2.bf16.msra.mxu0 %v9003
        %9099 = vmatprep.mubr.bf16.mxu0 %v7291
        %9100 = vmatmul.mubr.bf16.gmra.mxu0 %v7290
        %v9101 = vpop.f32.mrf.mxu0
        %v9102 = vadd.f32 0.0, %v9101
        %v9103 = vpop.f32.mrf.mxu0
        %v9104 = vadd.f32 0.0, %v9103
        %v9105 = vpop.f32.mrf.mxu0
        %v9106 = vadd.f32 0.0, %v9105
        %v9107 = vpop.f32.mrf.mxu0
        %v9108 = vadd.f32 0.0, %v9107
        %9109 = vmatprep.mubr.bf16.mxu0 %v7294
        %9110 = vmatmul.mubr.bf16.gmra.mxu0 %v7293
        %v9111 = vpop.f32.mrf.mxu0
        %v9112 = vadd.f32 0.0, %v9111
        %v9113 = vpop.f32.mrf.mxu0
        %v9114 = vadd.f32 0.0, %v9113
        %v9115 = vpop.f32.mrf.mxu0
        %v9116 = vadd.f32 0.0, %v9115
        %v9117 = vpop.f32.mrf.mxu0
        %v9118 = vadd.f32 0.0, %v9117
        %9119 = vmatprep.mubr.bf16.mxu0 %v7297
        %9120 = vmatmul.mubr.bf16.gmra.mxu0 %v7296
        %v9121 = vpop.f32.mrf.mxu0
        %v9122 = vadd.f32 0.0, %v9121
        %v9123 = vpop.f32.mrf.mxu0
        %v9124 = vadd.f32 0.0, %v9123
        %v9125 = vpop.f32.mrf.mxu0
        %v9126 = vadd.f32 0.0, %v9125
        %v9127 = vpop.f32.mrf.mxu0
        %v9128 = vadd.f32 0.0, %v9127
        %9129 = vdwg.mxu0
        %9130 = vmatprep.subr.bf16.mxu0 0
        %9131 = vmatpush1.bf16.msra.mxu0 0
        %9132 = vmatprep.subr.bf16.mxu0 0
        %9133 = vmatpush1.bf16.msra.mxu0 0
        %9134 = vmatprep.subr.bf16.mxu0 0
        %9135 = vmatpush1.bf16.msra.mxu0 0
        %9136 = vmatprep.subr.bf16.mxu0 0
        %9137 = vmatpush1.bf16.msra.mxu0 0
        %9138 = vmatprep.subr.bf16.mxu0 %v9026
        %9139 = vmatpush1.bf16.msra.mxu0 %v9025
        %9140 = vmatprep.subr.bf16.mxu0 %v9024
        %9141 = vmatpush1.bf16.msra.mxu0 %v9023
        %9142 = vmatprep.subr.bf16.mxu0 %v9022
        %9143 = vmatpush1.bf16.msra.mxu0 %v9021
        %9144 = vmatprep.subr.bf16.mxu0 %v9020
        %9145 = vmatpush1.bf16.msra.mxu0 %v9019
        %9146 = vmatprep.subr.bf16.mxu0 0
        %9147 = vmatpush2.bf16.msra.mxu0 0
        %9148 = vmatprep.subr.bf16.mxu0 0
        %9149 = vmatpush2.bf16.msra.mxu0 0
        %9150 = vmatprep.subr.bf16.mxu0 0
        %9151 = vmatpush2.bf16.msra.mxu0 0
        %9152 = vmatprep.subr.bf16.mxu0 0
        %9153 = vmatpush2.bf16.msra.mxu0 0
        %9154 = vmatprep.subr.bf16.mxu0 0
        %9155 = vmatpush2.bf16.msra.mxu0 0
        %9156 = vmatprep.subr.bf16.mxu0 0
        %9157 = vmatpush2.bf16.msra.mxu0 0
        %9158 = vmatprep.subr.bf16.mxu0 0
        %9159 = vmatpush2.bf16.msra.mxu0 0
        %9160 = vmatprep.subr.bf16.mxu0 0
        %9161 = vmatpush2.bf16.msra.mxu0 0
        %9162 = vmatprep.mubr.bf16.mxu0 0
        %9163 = vmatmul.mubr.bf16.gmra.mxu0 %v7585
        %v9164 = vpop.f32.mrf.mxu0
        %v9165 = vadd.f32 %v9102, %v9164
        %v9166 = vpop.f32.mrf.mxu0
        %v9167 = vadd.f32 %v9104, %v9166
        %v9168 = vpop.f32.mrf.mxu0
        %v9169 = vadd.f32 %v9106, %v9168
        %v9170 = vpop.f32.mrf.mxu0
        %v9171 = vadd.f32 %v9108, %v9170
        %9172 = vmatprep.mubr.bf16.mxu0 0
        %9173 = vmatmul.mubr.bf16.gmra.mxu0 %v7588
        %v9174 = vpop.f32.mrf.mxu0
        %v9175 = vadd.f32 %v9112, %v9174
        %v9176 = vpop.f32.mrf.mxu0
        %v9177 = vadd.f32 %v9114, %v9176
        %v9178 = vpop.f32.mrf.mxu0
        %v9179 = vadd.f32 %v9116, %v9178
        %v9180 = vpop.f32.mrf.mxu0
        %v9181 = vadd.f32 %v9118, %v9180
        %9182 = vmatprep.mubr.bf16.mxu0 0
        %9183 = vmatmul.mubr.bf16.gmra.mxu0 %v8686
        %v9184 = vpop.f32.mrf.mxu0
        %v9185 = vadd.f32 %v9122, %v9184
        %v9186 = vpop.f32.mrf.mxu0
        %v9187 = vadd.f32 %v9124, %v9186
        %v9188 = vpop.f32.mrf.mxu0
        %v9189 = vadd.f32 %v9126, %v9188
        %v9190 = vpop.f32.mrf.mxu0
        %v9191 = vadd.f32 %v9128, %v9190
        %9192 = vdwg.mxu0
        %v9193 = vadd.f32 %v8673, %v9165
        %v9194 = vadd.f32 %v8674, %v9167
        %v9195 = vadd.f32 %v8675, %v9169
        %v9196 = vadd.f32 %v8676, %v9171
        %v9197 = vadd.f32 %v8677, %v9175
        %v9198 = vadd.f32 %v8678, %v9177
        %v9199 = vadd.f32 %v8679, %v9179
        %v9200 = vadd.f32 %v8680, %v9181
        %v9201 = vadd.f32 %v8681, %v9185
        %v9202 = vadd.f32 %v8682, %v9187
        %v9203 = vadd.f32 %v8683, %v9189
        %v9204 = vadd.f32 %v8684, %v9191
        %v9206 = vsel %vm7580, %v4336, 0
        %9208 = vmatprep.subr.bf16.mxu0 %v9002
        %9209 = vmatpush1.bf16.msra.mxu0 %v9001
        %9210 = vmatprep.subr.bf16.mxu0 %v9000
        %9211 = vmatpush1.bf16.msra.mxu0 %v8999
        %9212 = vmatprep.subr.bf16.mxu0 %v8998
        %9213 = vmatpush1.bf16.msra.mxu0 %v8997
        %9214 = vmatprep.subr.bf16.mxu0 %v8996
        %9215 = vmatpush1.bf16.msra.mxu0 %v8995
        %9216 = vmatprep.subr.bf16.mxu0 %v8994
        %9217 = vmatpush1.bf16.msra.mxu0 %v8993
        %9218 = vmatprep.subr.bf16.mxu0 %v8992
        %9219 = vmatpush1.bf16.msra.mxu0 %v8991
        %9220 = vmatprep.subr.bf16.mxu0 %v8990
        %9221 = vmatpush1.bf16.msra.mxu0 %v8989
        %9222 = vmatprep.subr.bf16.mxu0 %v8988
        %9223 = vmatpush1.bf16.msra.mxu0 %v8987
        %9224 = vmatprep.subr.bf16.mxu0 %v9018
        %9225 = vmatpush2.bf16.msra.mxu0 %v9017
        %9226 = vmatprep.subr.bf16.mxu0 %v9016
        %9227 = vmatpush2.bf16.msra.mxu0 %v9015
        %9228 = vmatprep.subr.bf16.mxu0 %v9014
        %9229 = vmatpush2.bf16.msra.mxu0 %v9013
        %9230 = vmatprep.subr.bf16.mxu0 %v9012
        %9231 = vmatpush2.bf16.msra.mxu0 %v9011
        %9232 = vmatprep.subr.bf16.mxu0 %v9010
        %9233 = vmatpush2.bf16.msra.mxu0 %v9009
        %9234 = vmatprep.subr.bf16.mxu0 %v9008
        %9235 = vmatpush2.bf16.msra.mxu0 %v9007
        %9236 = vmatprep.subr.bf16.mxu0 %v9006
        %9237 = vmatpush2.bf16.msra.mxu0 %v9005
        %9238 = vmatprep.subr.bf16.mxu0 %v9004
        %9239 = vmatpush2.bf16.msra.mxu0 %v9003
        %9240 = vmatprep.mubr.bf16.mxu0 %v4329
        %9241 = vmatmul.mubr.bf16.gmra.mxu0 %v4328
        %v9242 = vpop.f32.mrf.mxu0
        %v9243 = vadd.f32 0.0, %v9242
        %v9244 = vpop.f32.mrf.mxu0
        %v9245 = vadd.f32 0.0, %v9244
        %v9246 = vpop.f32.mrf.mxu0
        %v9247 = vadd.f32 0.0, %v9246
        %v9248 = vpop.f32.mrf.mxu0
        %v9249 = vadd.f32 0.0, %v9248
        %9250 = vmatprep.mubr.bf16.mxu0 %v4332
        %9251 = vmatmul.mubr.bf16.gmra.mxu0 %v4331
        %v9252 = vpop.f32.mrf.mxu0
        %v9253 = vadd.f32 0.0, %v9252
        %v9254 = vpop.f32.mrf.mxu0
        %v9255 = vadd.f32 0.0, %v9254
        %v9256 = vpop.f32.mrf.mxu0
        %v9257 = vadd.f32 0.0, %v9256
        %v9258 = vpop.f32.mrf.mxu0
        %v9259 = vadd.f32 0.0, %v9258
        %9260 = vmatprep.mubr.bf16.mxu0 %v4335
        %9261 = vmatmul.mubr.bf16.gmra.mxu0 %v4334
        %v9262 = vpop.f32.mrf.mxu0
        %v9263 = vadd.f32 0.0, %v9262
        %v9264 = vpop.f32.mrf.mxu0
        %v9265 = vadd.f32 0.0, %v9264
        %v9266 = vpop.f32.mrf.mxu0
        %v9267 = vadd.f32 0.0, %v9266
        %v9268 = vpop.f32.mrf.mxu0
        %v9269 = vadd.f32 0.0, %v9268
        %9270 = vdwg.mxu0
        %9271 = vmatprep.subr.bf16.mxu0 0
        %9272 = vmatpush1.bf16.msra.mxu0 0
        %9273 = vmatprep.subr.bf16.mxu0 0
        %9274 = vmatpush1.bf16.msra.mxu0 0
        %9275 = vmatprep.subr.bf16.mxu0 0
        %9276 = vmatpush1.bf16.msra.mxu0 0
        %9277 = vmatprep.subr.bf16.mxu0 0
        %9278 = vmatpush1.bf16.msra.mxu0 0
        %9279 = vmatprep.subr.bf16.mxu0 %v9026
        %9280 = vmatpush1.bf16.msra.mxu0 %v9025
        %9281 = vmatprep.subr.bf16.mxu0 %v9024
        %9282 = vmatpush1.bf16.msra.mxu0 %v9023
        %9283 = vmatprep.subr.bf16.mxu0 %v9022
        %9284 = vmatpush1.bf16.msra.mxu0 %v9021
        %9285 = vmatprep.subr.bf16.mxu0 %v9020
        %9286 = vmatpush1.bf16.msra.mxu0 %v9019
        %9287 = vmatprep.subr.bf16.mxu0 0
        %9288 = vmatpush2.bf16.msra.mxu0 0
        %9289 = vmatprep.subr.bf16.mxu0 0
        %9290 = vmatpush2.bf16.msra.mxu0 0
        %9291 = vmatprep.subr.bf16.mxu0 0
        %9292 = vmatpush2.bf16.msra.mxu0 0
        %9293 = vmatprep.subr.bf16.mxu0 0
        %9294 = vmatpush2.bf16.msra.mxu0 0
        %9295 = vmatprep.subr.bf16.mxu0 0
        %9296 = vmatpush2.bf16.msra.mxu0 0
        %9297 = vmatprep.subr.bf16.mxu0 0
        %9298 = vmatpush2.bf16.msra.mxu0 0
        %9299 = vmatprep.subr.bf16.mxu0 0
        %9300 = vmatpush2.bf16.msra.mxu0 0
        %9301 = vmatprep.subr.bf16.mxu0 0
        %9302 = vmatpush2.bf16.msra.mxu0 0
        %9303 = vmatprep.mubr.bf16.mxu0 0
        %9304 = vmatmul.mubr.bf16.gmra.mxu0 %v7923
        %v9305 = vpop.f32.mrf.mxu0
        %v9306 = vadd.f32 %v9243, %v9305
        %v9307 = vpop.f32.mrf.mxu0
        %v9308 = vadd.f32 %v9245, %v9307
        %v9309 = vpop.f32.mrf.mxu0
        %v9310 = vadd.f32 %v9247, %v9309
        %v9311 = vpop.f32.mrf.mxu0
        %v9312 = vadd.f32 %v9249, %v9311
        %9313 = vmatprep.mubr.bf16.mxu0 0
        %9314 = vmatmul.mubr.bf16.gmra.mxu0 %v8052
        %v9315 = vpop.f32.mrf.mxu0
        %v9316 = vadd.f32 %v9253, %v9315
        %v9317 = vpop.f32.mrf.mxu0
        %v9318 = vadd.f32 %v9255, %v9317
        %v9319 = vpop.f32.mrf.mxu0
        %v9320 = vadd.f32 %v9257, %v9319
        %v9321 = vpop.f32.mrf.mxu0
        %v9322 = vadd.f32 %v9259, %v9321
        %9323 = vmatprep.mubr.bf16.mxu0 0
        %9324 = vmatmul.mubr.bf16.gmra.mxu0 %v9206
        %v9325 = vpop.f32.mrf.mxu0
        %v9326 = vadd.f32 %v9263, %v9325
        %v9327 = vpop.f32.mrf.mxu0
        %v9328 = vadd.f32 %v9265, %v9327
        %v9329 = vpop.f32.mrf.mxu0
        %v9330 = vadd.f32 %v9267, %v9329
        %v9331 = vpop.f32.mrf.mxu0
        %v9332 = vadd.f32 %v9269, %v9331
        %9333 = vdwg.mxu0
        %v9334 = vadd.f32 %v8814, %v9306
        %v9335 = vadd.f32 %v8815, %v9308
        %v9336 = vadd.f32 %v8816, %v9310
        %v9337 = vadd.f32 %v8817, %v9312
        %v9338 = vadd.f32 %v8818, %v9316
        %v9339 = vadd.f32 %v8819, %v9318
        %v9340 = vadd.f32 %v8820, %v9320
        %v9341 = vadd.f32 %v8821, %v9322
        %v9342 = vadd.f32 %v8822, %v9326
        %v9343 = vadd.f32 %v8823, %v9328
        %v9344 = vadd.f32 %v8824, %v9330
        %v9345 = vadd.f32 %v8825, %v9332
        %v9346 = vld [vmem:[%s4] sm:$0x3]
        %v9348 = vlaneseq
        %v9349 = vshrl.u32 %v9348, 7
        %v9350 = vsub.s32 0, %v9349
        %v9351 = vrot.slane %v9346, %v9350
        %v9352 = vlaneseq
        %v9353 = vshrl.u32 %v9352, 7
        %v9354 = vsub.s32 1, %v9353
        %v9355 = vrot.slane %v9346, %v9354
        %v9358 = vadd.f32 %v9193, %v9351
        %v9359 = vadd.f32 %v9194, %v9355
        %v9360 = vadd.f32 %v9195, %v9351
        %v9361 = vadd.f32 %v9196, %v9355
        %v9362 = vadd.f32 %v9197, %v9351
        %v9363 = vadd.f32 %v9198, %v9355
        %v9364 = vadd.f32 %v9199, %v9351
        %v9365 = vadd.f32 %v9200, %v9355
        %v9366 = vadd.f32 %v9201, %v9351
        %v9367 = vadd.f32 %v9202, %v9355
        %v9368 = vadd.f32 %v9203, %v9351
        %v9369 = vadd.f32 %v9204, %v9355
        %v9370 = vmax.f32 %v9358, 0.0
        %v9371 = vmax.f32 %v9359, 0.0
        %v9372 = vmax.f32 %v9360, 0.0
        %v9373 = vmax.f32 %v9361, 0.0
        %v9374 = vmax.f32 %v9362, 0.0
        %v9375 = vmax.f32 %v9363, 0.0
        %v9376 = vmax.f32 %v9364, 0.0
        %v9377 = vmax.f32 %v9365, 0.0
        %v9378 = vmax.f32 %v9366, 0.0
        %v9379 = vmax.f32 %v9367, 0.0
        %v9380 = vmax.f32 %v9368, 0.0
        %v9381 = vmax.f32 %v9369, 0.0
        %v9382 = vadd.f32 %v9334, %v9351
        %v9383 = vadd.f32 %v9335, %v9355
        %v9384 = vadd.f32 %v9336, %v9351
        %v9385 = vadd.f32 %v9337, %v9355
        %v9386 = vadd.f32 %v9338, %v9351
        %v9387 = vadd.f32 %v9339, %v9355
        %v9388 = vadd.f32 %v9340, %v9351
        %v9389 = vadd.f32 %v9341, %v9355
        %v9390 = vadd.f32 %v9342, %v9351
        %v9391 = vadd.f32 %v9343, %v9355
        %v9392 = vadd.f32 %v9344, %v9351
        %v9393 = vadd.f32 %v9345, %v9355
        %v9394 = vmax.f32 %v9382, 0.0
        %v9395 = vmax.f32 %v9383, 0.0
        %v9396 = vmax.f32 %v9384, 0.0
        %v9397 = vmax.f32 %v9385, 0.0
        %v9398 = vmax.f32 %v9386, 0.0
        %v9399 = vmax.f32 %v9387, 0.0
        %v9400 = vmax.f32 %v9388, 0.0
        %v9401 = vmax.f32 %v9389, 0.0
        %v9402 = vmax.f32 %v9390, 0.0
        %v9403 = vmax.f32 %v9391, 0.0
        %v9404 = vmax.f32 %v9392, 0.0
        %v9405 = vmax.f32 %v9393, 0.0
        %v9406 = vmax.f32 %v9370, %v9394
        %v9407 = vmax.f32 %v9371, %v9395
        %v9408 = vmax.f32 %v9372, %v9396
        %v9409 = vmax.f32 %v9373, %v9397
        %v9410 = vmax.f32 %v9374, %v9398
        %v9411 = vmax.f32 %v9375, %v9399
        %v9412 = vmax.f32 %v9376, %v9400
        %v9413 = vmax.f32 %v9377, %v9401
        %v9414 = vmax.f32 %v9378, %v9402
        %v9415 = vmax.f32 %v9379, %v9403
        %v9416 = vmax.f32 %v9380, %v9404
        %v9417 = vmax.f32 %v9381, %v9405
        %9430 = vrot.lane.b32.xlu0 %v9406, 96
        %v9431 = vpop.permute.xlu0 %9430
        %9432 = vrot.lane.b32.xlu0 %v9407, 96
        %v9433 = vpop.permute.xlu0 %9432
        %9434 = vrot.lane.b32.xlu0 %v9408, 96
        %v9435 = vpop.permute.xlu0 %9434
        %9436 = vrot.lane.b32.xlu0 %v9409, 96
        %v9437 = vpop.permute.xlu0 %9436
        %9438 = vrot.lane.b32.xlu0 %v9410, 96
        %v9439 = vpop.permute.xlu0 %9438
        %9440 = vrot.lane.b32.xlu0 %v9411, 96
        %v9441 = vpop.permute.xlu0 %9440
        %9442 = vrot.lane.b32.xlu0 %v9412, 96
        %v9443 = vpop.permute.xlu0 %9442
        %9444 = vrot.lane.b32.xlu0 %v9413, 96
        %v9445 = vpop.permute.xlu0 %9444
        %9446 = vrot.lane.b32.xlu0 %v9414, 96
        %v9447 = vpop.permute.xlu0 %9446
        %9448 = vrot.lane.b32.xlu0 %v9415, 96
        %v9449 = vpop.permute.xlu0 %9448
        %9450 = vrot.lane.b32.xlu0 %v9416, 96
        %v9451 = vpop.permute.xlu0 %9450
        %9452 = vrot.lane.b32.xlu0 %v9417, 96
        %v9453 = vpop.permute.xlu0 %9452
        %vm9454 = vcmask 785408
        %v9455 = vsel %vm9454, %v9431, %v9433
        %v9456 = vsel %vm9454, %v9435, %v9437
        %v9457 = vsel %vm9454, %v9439, %v9441
        %v9458 = vsel %vm9454, %v9443, %v9445
        %v9459 = vsel %vm9454, %v9447, %v9449
        %v9460 = vsel %vm9454, %v9451, %v9453
        %v9473 = vmax.f32 %v9406, %v9455
        %v9474 = vmax.f32 %v9407, %v9433
        %v9475 = vmax.f32 %v9408, %v9456
        %v9476 = vmax.f32 %v9409, %v9437
        %v9477 = vmax.f32 %v9410, %v9457
        %v9478 = vmax.f32 %v9411, %v9441
        %v9479 = vmax.f32 %v9412, %v9458
        %v9480 = vmax.f32 %v9413, %v9445
        %v9481 = vmax.f32 %v9414, %v9459
        %v9482 = vmax.f32 %v9415, %v9449
        %v9483 = vmax.f32 %v9416, %v9460
        %v9484 = vmax.f32 %v9417, %v9453
        %v9485 = vpack.c.bf16 %v9475, %v9473
        %v9486 = vpack.c.bf16 %v9476, %v9474
        %v9487 = vpack.c.bf16 %v9479, %v9477
        %v9488 = vpack.c.bf16 %v9480, %v9478
        %v9489 = vpack.c.bf16 %v9483, %v9481
        %v9490 = vpack.c.bf16 %v9484, %v9482
        %v9491 = vld [vmem:[%s5] sm:$0xf]
        %v9492 = vld [vmem:[%s5 + $0x4] sm:$0xf]
        %v9493 = vld [vmem:[%s5 + $0x8] sm:$0xf]
        %v9494 = vld [vmem:[%s5 + $0xc] sm:$0xf]
        %v9495 = vld [vmem:[%s5 + $0x10] sm:$0xf]
        %v9496 = vld [vmem:[%s5 + $0x14] sm:$0xf]
        %v9497 = vld [vmem:[%s5 + $0x18] sm:$0xf]
        %v9498 = vld [vmem:[%s5 + $0x1c] sm:$0xf]
        %v9499 = vld [vmem:[%s5 + $0x20] sm:$0xf]
        %v9500 = vld [vmem:[%s5 + $0x24] sm:$0xf]
        %v9501 = vld [vmem:[%s5 + $0x28] sm:$0xf]
        %v9502 = vld [vmem:[%s5 + $0x2c] sm:$0xf]
        %v9503 = vld [vmem:[%s5 + $0x30] sm:$0xf]
        %v9504 = vld [vmem:[%s5 + $0x34] sm:$0xf]
        %v9505 = vld [vmem:[%s5 + $0x38] sm:$0xf]
        %v9506 = vld [vmem:[%s5 + $0x3c] sm:$0xf]
        %v9507 = vld [vmem:[%s5 + $0x40] sm:$0xf]
        %v9508 = vld [vmem:[%s5 + $0x44] sm:$0xf]
        %v9509 = vld [vmem:[%s5 + $0x48] sm:$0xf]
        %v9510 = vld [vmem:[%s5 + $0x4c] sm:$0xf]
        %v9511 = vld [vmem:[%s5 + $0x50] sm:$0xf]
        %v9512 = vld [vmem:[%s5 + $0x54] sm:$0xf]
        %v9513 = vld [vmem:[%s5 + $0x58] sm:$0xf]
        %v9514 = vld [vmem:[%s5 + $0x5c] sm:$0xf]
        %s9515 = scalar_lea.vmem %s5, 96
        %v9516 = vld [vmem:[%s9515] sm:$0xf]
        %v9517 = vld [vmem:[%s9515 + $0x4] sm:$0xf]
        %v9518 = vld [vmem:[%s9515 + $0x8] sm:$0xf]
        %v9519 = vld [vmem:[%s9515 + $0xc] sm:$0xf]
        %v9520 = vld [vmem:[%s9515 + $0x10] sm:$0xf]
        %v9521 = vld [vmem:[%s9515 + $0x14] sm:$0xf]
        %v9522 = vld [vmem:[%s9515 + $0x18] sm:$0xf]
        %v9523 = vld [vmem:[%s9515 + $0x1c] sm:$0xf]
        %v9524 = vld [vmem:[%s9515 + $0x20] sm:$0xf]
        %v9525 = vld [vmem:[%s9515 + $0x24] sm:$0xf]
        %v9526 = vld [vmem:[%s9515 + $0x28] sm:$0xf]
        %v9527 = vld [vmem:[%s9515 + $0x2c] sm:$0xf]
        %v9528 = vld [vmem:[%s9515 + $0x30] sm:$0xf]
        %v9529 = vld [vmem:[%s9515 + $0x34] sm:$0xf]
        %v9530 = vld [vmem:[%s9515 + $0x38] sm:$0xf]
        %v9531 = vld [vmem:[%s9515 + $0x3c] sm:$0xf]
        %v9532 = vld [vmem:[%s9515 + $0x40] sm:$0xf]
        %v9533 = vld [vmem:[%s9515 + $0x44] sm:$0xf]
        %v9534 = vld [vmem:[%s9515 + $0x48] sm:$0xf]
        %v9535 = vld [vmem:[%s9515 + $0x4c] sm:$0xf]
        %v9536 = vld [vmem:[%s9515 + $0x50] sm:$0xf]
        %v9537 = vld [vmem:[%s9515 + $0x54] sm:$0xf]
        %v9538 = vld [vmem:[%s9515 + $0x58] sm:$0xf]
        %v9539 = vld [vmem:[%s9515 + $0x5c] sm:$0xf]
        %v9564 = vunpack.c.l.b16 %v9516
        %v9565 = vunpack.c.l.b16 %v9517
        %v9566 = vunpack.c.l.b16 %v9518
        %v9567 = vunpack.c.l.b16 %v9519
        %v9568 = vunpack.c.l.b16 %v9520
        %v9569 = vunpack.c.l.b16 %v9521
        %v9570 = vunpack.c.l.b16 %v9522
        %v9571 = vunpack.c.l.b16 %v9523
        %v9572 = vunpack.c.l.b16 %v9524
        %v9573 = vunpack.c.l.b16 %v9525
        %v9574 = vunpack.c.l.b16 %v9526
        %v9575 = vunpack.c.l.b16 %v9527
        %v9576 = vunpack.c.l.b16 %v9528
        %v9577 = vunpack.c.l.b16 %v9529
        %v9578 = vunpack.c.l.b16 %v9530
        %v9579 = vunpack.c.l.b16 %v9531
        %v9580 = vunpack.c.l.b16 %v9532
        %v9581 = vunpack.c.l.b16 %v9533
        %v9582 = vunpack.c.l.b16 %v9534
        %v9583 = vunpack.c.l.b16 %v9535
        %v9584 = vunpack.c.l.b16 %v9536
        %v9585 = vunpack.c.l.b16 %v9537
        %v9586 = vunpack.c.l.b16 %v9538
        %v9587 = vunpack.c.l.b16 %v9539
        %v9588 = vpack.c.b16 %v9565, %v9564
        %v9589 = vpack.c.b16 %v9567, %v9566
        %v9590 = vpack.c.b16 %v9569, %v9568
        %v9591 = vpack.c.b16 %v9571, %v9570
        %v9592 = vpack.c.b16 %v9573, %v9572
        %v9593 = vpack.c.b16 %v9575, %v9574
        %v9594 = vpack.c.b16 %v9577, %v9576
        %v9595 = vpack.c.b16 %v9579, %v9578
        %v9596 = vpack.c.b16 %v9581, %v9580
        %v9597 = vpack.c.b16 %v9583, %v9582
        %v9598 = vpack.c.b16 %v9585, %v9584
        %v9599 = vpack.c.b16 %v9587, %v9586
        %v9613 = vsel %vm7580, %v9488, 0
        %9615 = vmatprep.subr.bf16.mxu0 0
        %9616 = vmatpush1.bf16.msra.mxu0 %v9595
        %9617 = vmatprep.subr.bf16.mxu0 0
        %9618 = vmatpush1.bf16.msra.mxu0 %v9594
        %9619 = vmatprep.subr.bf16.mxu0 0
        %9620 = vmatpush1.bf16.msra.mxu0 %v9593
        %9621 = vmatprep.subr.bf16.mxu0 0
        %9622 = vmatpush1.bf16.msra.mxu0 %v9592
        %9623 = vmatprep.subr.bf16.mxu0 0
        %9624 = vmatpush1.bf16.msra.mxu0 %v9591
        %9625 = vmatprep.subr.bf16.mxu0 0
        %9626 = vmatpush1.bf16.msra.mxu0 %v9590
        %9627 = vmatprep.subr.bf16.mxu0 0
        %9628 = vmatpush1.bf16.msra.mxu0 %v9589
        %9629 = vmatprep.subr.bf16.mxu0 0
        %9630 = vmatpush1.bf16.msra.mxu0 %v9588
        %9631 = vmatprep.subr.bf16.mxu0 0
        %9632 = vmatpush2.bf16.msra.mxu0 0
        %9633 = vmatprep.subr.bf16.mxu0 0
        %9634 = vmatpush2.bf16.msra.mxu0 0
        %9635 = vmatprep.subr.bf16.mxu0 0
        %9636 = vmatpush2.bf16.msra.mxu0 0
        %9637 = vmatprep.subr.bf16.mxu0 0
        %9638 = vmatpush2.bf16.msra.mxu0 0
        %9639 = vmatprep.subr.bf16.mxu0 0
        %9640 = vmatpush2.bf16.msra.mxu0 %v9599
        %9641 = vmatprep.subr.bf16.mxu0 0
        %9642 = vmatpush2.bf16.msra.mxu0 %v9598
        %9643 = vmatprep.subr.bf16.mxu0 0
        %9644 = vmatpush2.bf16.msra.mxu0 %v9597
        %9645 = vmatprep.subr.bf16.mxu0 0
        %9646 = vmatpush2.bf16.msra.mxu0 %v9596
        %9647 = vmatprep.mubr.bf16.mxu0 %v9613
        %9648 = vmatmul.mubr.bf16.gmra.mxu0 %v9487
        %v9649 = vpop.f32.mrf.mxu0
        %v9650 = vadd.f32 0.0, %v9649
        %v9651 = vpop.f32.mrf.mxu0
        %v9652 = vpop.f32.mrf.mxu0
        %v9653 = vadd.f32 0.0, %v9652
        %v9654 = vpop.f32.mrf.mxu0
        %9655 = vdwg.mxu0
        %v9680 = vunpack.c.l.b16 %v9491
        %v9681 = vunpack.c.l.b16 %v9492
        %v9682 = vunpack.c.l.b16 %v9493
        %v9683 = vunpack.c.l.b16 %v9494
        %v9684 = vunpack.c.l.b16 %v9495
        %v9685 = vunpack.c.l.b16 %v9496
        %v9686 = vunpack.c.l.b16 %v9497
        %v9687 = vunpack.c.l.b16 %v9498
        %v9688 = vunpack.c.l.b16 %v9499
        %v9689 = vunpack.c.l.b16 %v9500
        %v9690 = vunpack.c.l.b16 %v9501
        %v9691 = vunpack.c.l.b16 %v9502
        %v9692 = vunpack.c.l.b16 %v9503
        %v9693 = vunpack.c.l.b16 %v9504
        %v9694 = vunpack.c.l.b16 %v9505
        %v9695 = vunpack.c.l.b16 %v9506
        %v9696 = vunpack.c.l.b16 %v9507
        %v9697 = vunpack.c.l.b16 %v9508
        %v9698 = vunpack.c.l.b16 %v9509
        %v9699 = vunpack.c.l.b16 %v9510
        %v9700 = vunpack.c.l.b16 %v9511
        %v9701 = vunpack.c.l.b16 %v9512
        %v9702 = vunpack.c.l.b16 %v9513
        %v9703 = vunpack.c.l.b16 %v9514
        %v9704 = vpack.c.b16 %v9681, %v9680
        %v9705 = vpack.c.b16 %v9683, %v9682
        %v9706 = vpack.c.b16 %v9685, %v9684
        %v9707 = vpack.c.b16 %v9687, %v9686
        %v9708 = vpack.c.b16 %v9689, %v9688
        %v9709 = vpack.c.b16 %v9691, %v9690
        %v9710 = vpack.c.b16 %v9693, %v9692
        %v9711 = vpack.c.b16 %v9695, %v9694
        %v9712 = vpack.c.b16 %v9697, %v9696
        %v9713 = vpack.c.b16 %v9699, %v9698
        %v9714 = vpack.c.b16 %v9701, %v9700
        %v9715 = vpack.c.b16 %v9703, %v9702
        %v9729 = vsel %vm7580, %v9486, 0
        %9731 = vmatprep.subr.bf16.mxu0 0
        %9732 = vmatpush1.bf16.msra.mxu0 %v9711
        %9733 = vmatprep.subr.bf16.mxu0 0
        %9734 = vmatpush1.bf16.msra.mxu0 %v9710
        %9735 = vmatprep.subr.bf16.mxu0 0
        %9736 = vmatpush1.bf16.msra.mxu0 %v9709
        %9737 = vmatprep.subr.bf16.mxu0 0
        %9738 = vmatpush1.bf16.msra.mxu0 %v9708
        %9739 = vmatprep.subr.bf16.mxu0 0
        %9740 = vmatpush1.bf16.msra.mxu0 %v9707
        %9741 = vmatprep.subr.bf16.mxu0 0
        %9742 = vmatpush1.bf16.msra.mxu0 %v9706
        %9743 = vmatprep.subr.bf16.mxu0 0
        %9744 = vmatpush1.bf16.msra.mxu0 %v9705
        %9745 = vmatprep.subr.bf16.mxu0 0
        %9746 = vmatpush1.bf16.msra.mxu0 %v9704
        %9747 = vmatprep.subr.bf16.mxu0 0
        %9748 = vmatpush2.bf16.msra.mxu0 0
        %9749 = vmatprep.subr.bf16.mxu0 0
        %9750 = vmatpush2.bf16.msra.mxu0 0
        %9751 = vmatprep.subr.bf16.mxu0 0
        %9752 = vmatpush2.bf16.msra.mxu0 0
        %9753 = vmatprep.subr.bf16.mxu0 0
        %9754 = vmatpush2.bf16.msra.mxu0 0
        %9755 = vmatprep.subr.bf16.mxu0 0
        %9756 = vmatpush2.bf16.msra.mxu0 %v9715
        %9757 = vmatprep.subr.bf16.mxu0 0
        %9758 = vmatpush2.bf16.msra.mxu0 %v9714
        %9759 = vmatprep.subr.bf16.mxu0 0
        %9760 = vmatpush2.bf16.msra.mxu0 %v9713
        %9761 = vmatprep.subr.bf16.mxu0 0
        %9762 = vmatpush2.bf16.msra.mxu0 %v9712
        %9763 = vmatprep.mubr.bf16.mxu0 %v9729
        %9764 = vmatmul.mubr.bf16.gmra.mxu0 %v9485
        %v9765 = vpop.f32.mrf.mxu0
        %v9766 = vadd.f32 %v9650, %v9765
        %v9767 = vpop.f32.mrf.mxu0
        %v9768 = vpop.f32.mrf.mxu0
        %v9769 = vadd.f32 %v9653, %v9768
        %v9770 = vpop.f32.mrf.mxu0
        %9771 = vdwg.mxu0
        %s9772 = scalar_lea.vmem %s5, 192
        %v9773 = vld [vmem:[%s9772] sm:$0xf]
        %v9774 = vld [vmem:[%s9772 + $0x4] sm:$0xf]
        %v9775 = vld [vmem:[%s9772 + $0x8] sm:$0xf]
        %v9776 = vld [vmem:[%s9772 + $0xc] sm:$0xf]
        %v9777 = vld [vmem:[%s9772 + $0x10] sm:$0xf]
        %v9778 = vld [vmem:[%s9772 + $0x14] sm:$0xf]
        %v9779 = vld [vmem:[%s9772 + $0x18] sm:$0xf]
        %v9780 = vld [vmem:[%s9772 + $0x1c] sm:$0xf]
        %v9781 = vld [vmem:[%s9772 + $0x20] sm:$0xf]
        %v9782 = vld [vmem:[%s9772 + $0x24] sm:$0xf]
        %v9783 = vld [vmem:[%s9772 + $0x28] sm:$0xf]
        %v9784 = vld [vmem:[%s9772 + $0x2c] sm:$0xf]
        %v9785 = vld [vmem:[%s9772 + $0x30] sm:$0xf]
        %v9786 = vld [vmem:[%s9772 + $0x34] sm:$0xf]
        %v9787 = vld [vmem:[%s9772 + $0x38] sm:$0xf]
        %v9788 = vld [vmem:[%s9772 + $0x3c] sm:$0xf]
        %v9789 = vld [vmem:[%s9772 + $0x40] sm:$0xf]
        %v9790 = vld [vmem:[%s9772 + $0x44] sm:$0xf]
        %v9791 = vld [vmem:[%s9772 + $0x48] sm:$0xf]
        %v9792 = vld [vmem:[%s9772 + $0x4c] sm:$0xf]
        %v9793 = vld [vmem:[%s9772 + $0x50] sm:$0xf]
        %v9794 = vld [vmem:[%s9772 + $0x54] sm:$0xf]
        %v9795 = vld [vmem:[%s9772 + $0x58] sm:$0xf]
        %v9796 = vld [vmem:[%s9772 + $0x5c] sm:$0xf]
        %v9821 = vunpack.c.l.b16 %v9773
        %v9822 = vunpack.c.l.b16 %v9774
        %v9823 = vunpack.c.l.b16 %v9775
        %v9824 = vunpack.c.l.b16 %v9776
        %v9825 = vunpack.c.l.b16 %v9777
        %v9826 = vunpack.c.l.b16 %v9778
        %v9827 = vunpack.c.l.b16 %v9779
        %v9828 = vunpack.c.l.b16 %v9780
        %v9829 = vunpack.c.l.b16 %v9781
        %v9830 = vunpack.c.l.b16 %v9782
        %v9831 = vunpack.c.l.b16 %v9783
        %v9832 = vunpack.c.l.b16 %v9784
        %v9833 = vunpack.c.l.b16 %v9785
        %v9834 = vunpack.c.l.b16 %v9786
        %v9835 = vunpack.c.l.b16 %v9787
        %v9836 = vunpack.c.l.b16 %v9788
        %v9837 = vunpack.c.l.b16 %v9789
        %v9838 = vunpack.c.l.b16 %v9790
        %v9839 = vunpack.c.l.b16 %v9791
        %v9840 = vunpack.c.l.b16 %v9792
        %v9841 = vunpack.c.l.b16 %v9793
        %v9842 = vunpack.c.l.b16 %v9794
        %v9843 = vunpack.c.l.b16 %v9795
        %v9844 = vunpack.c.l.b16 %v9796
        %v9845 = vpack.c.b16 %v9822, %v9821
        %v9846 = vpack.c.b16 %v9824, %v9823
        %v9847 = vpack.c.b16 %v9826, %v9825
        %v9848 = vpack.c.b16 %v9828, %v9827
        %v9849 = vpack.c.b16 %v9830, %v9829
        %v9850 = vpack.c.b16 %v9832, %v9831
        %v9851 = vpack.c.b16 %v9834, %v9833
        %v9852 = vpack.c.b16 %v9836, %v9835
        %v9853 = vpack.c.b16 %v9838, %v9837
        %v9854 = vpack.c.b16 %v9840, %v9839
        %v9855 = vpack.c.b16 %v9842, %v9841
        %v9856 = vpack.c.b16 %v9844, %v9843
        %v9870 = vsel %vm7580, %v9490, 0
        %9872 = vmatprep.subr.bf16.mxu0 0
        %9873 = vmatpush1.bf16.msra.mxu0 %v9852
        %9874 = vmatprep.subr.bf16.mxu0 0
        %9875 = vmatpush1.bf16.msra.mxu0 %v9851
        %9876 = vmatprep.subr.bf16.mxu0 0
        %9877 = vmatpush1.bf16.msra.mxu0 %v9850
        %9878 = vmatprep.subr.bf16.mxu0 0
        %9879 = vmatpush1.bf16.msra.mxu0 %v9849
        %9880 = vmatprep.subr.bf16.mxu0 0
        %9881 = vmatpush1.bf16.msra.mxu0 %v9848
        %9882 = vmatprep.subr.bf16.mxu0 0
        %9883 = vmatpush1.bf16.msra.mxu0 %v9847
        %9884 = vmatprep.subr.bf16.mxu0 0
        %9885 = vmatpush1.bf16.msra.mxu0 %v9846
        %9886 = vmatprep.subr.bf16.mxu0 0
        %9887 = vmatpush1.bf16.msra.mxu0 %v9845
        %9888 = vmatprep.subr.bf16.mxu0 0
        %9889 = vmatpush2.bf16.msra.mxu0 0
        %9890 = vmatprep.subr.bf16.mxu0 0
        %9891 = vmatpush2.bf16.msra.mxu0 0
        %9892 = vmatprep.subr.bf16.mxu0 0
        %9893 = vmatpush2.bf16.msra.mxu0 0
        %9894 = vmatprep.subr.bf16.mxu0 0
        %9895 = vmatpush2.bf16.msra.mxu0 0
        %9896 = vmatprep.subr.bf16.mxu0 0
        %9897 = vmatpush2.bf16.msra.mxu0 %v9856
        %9898 = vmatprep.subr.bf16.mxu0 0
        %9899 = vmatpush2.bf16.msra.mxu0 %v9855
        %9900 = vmatprep.subr.bf16.mxu0 0
        %9901 = vmatpush2.bf16.msra.mxu0 %v9854
        %9902 = vmatprep.subr.bf16.mxu0 0
        %9903 = vmatpush2.bf16.msra.mxu0 %v9853
        %9904 = vmatprep.mubr.bf16.mxu0 %v9870
        %9905 = vmatmul.mubr.bf16.gmra.mxu0 %v9489
        %v9906 = vpop.f32.mrf.mxu0
        %v9907 = vadd.f32 0.0, %v9906
        %v9908 = vpop.f32.mrf.mxu0
        %v9909 = vpop.f32.mrf.mxu0
        %v9910 = vadd.f32 0.0, %v9909
        %v9911 = vpop.f32.mrf.mxu0
        %9912 = vdwg.mxu0
        %v9913 = vadd.f32 %v9766, %v9907
        %v9914 = vadd.f32 %v9769, %v9910
        %v9915 = vld [vmem:[%s6] sm:$0x1]
        %v9917 = vlaneseq
        %v9918 = vshrl.u32 %v9917, 7
        %v9919 = vsub.s32 0, %v9918
        %v9920 = vrot.slane %v9915, %v9919
        %v9922 = vadd.f32 %v9913, %v9920
        %v9923 = vadd.f32 %v9914, %v9920
        %v9924 = vmax.f32 %v9922, 0.0
        %v9925 = vmax.f32 %v9923, 0.0
        %v9926 = vpack.c.bf16 %v9925, %v9924
        %v9927 = vld [vmem:[%s7] sm:$0xf]
        %v9928 = vld [vmem:[%s7 + $0x4] sm:$0xf]
        %v9929 = vld [vmem:[%s7 + $0x8] sm:$0xf]
        %v9930 = vld [vmem:[%s7 + $0xc] sm:$0xf]
        %v9931 = vld [vmem:[%s7 + $0x10] sm:$0xf]
        %v9932 = vld [vmem:[%s7 + $0x14] sm:$0xf]
        %v9933 = vld [vmem:[%s7 + $0x18] sm:$0x1]
        %v9934 = vld [vmem:[%s8] sm:$0x1]
        %v9936 = vlaneseq
        %v9937 = vshrl.u32 %v9936, 7
        %v9938 = vsub.s32 0, %v9937
        %v9939 = vrot.slane %v9934, %v9938
        %v9948 = vunpack.c.l.b16 %v9927
        %v9949 = vunpack.c.l.b16 %v9928
        %v9950 = vunpack.c.l.b16 %v9929
        %v9951 = vunpack.c.l.b16 %v9930
        %v9952 = vunpack.c.l.b16 %v9931
        %v9953 = vunpack.c.l.b16 %v9932
        %v9954 = vunpack.c.l.b16 %v9933
        %v9955 = vpack.c.b16 %v9949, %v9948
        %v9956 = vpack.c.b16 %v9951, %v9950
        %v9957 = vpack.c.b16 %v9953, %v9952
        %v9958 = vpack.c.b16 %v9954, %v9954
        %vm9962 = vcmask 408576
        %v9964 = vsel %vm9962, %v9926, 0
        %vm9966 = vcmask 1040384
        %v9968 = vsel %vm9966, %v9958, 0
        %9970 = vmatprep.subr.bf16.mxu0 0
        %9971 = vmatpush1.bf16.msra.mxu0 0
        %9972 = vmatprep.subr.bf16.mxu0 0
        %9973 = vmatpush1.bf16.msra.mxu0 0
        %9974 = vmatprep.subr.bf16.mxu0 0
        %9975 = vmatpush1.bf16.msra.mxu0 0
        %9976 = vmatprep.subr.bf16.mxu0 0
        %9977 = vmatpush1.bf16.msra.mxu0 0
        %9978 = vmatprep.subr.bf16.mxu0 0
        %9979 = vmatpush1.bf16.msra.mxu0 %v9968
        %9980 = vmatprep.subr.bf16.mxu0 0
        %9981 = vmatpush1.bf16.msra.mxu0 %v9957
        %9982 = vmatprep.subr.bf16.mxu0 0
        %9983 = vmatpush1.bf16.msra.mxu0 %v9956
        %9984 = vmatprep.subr.bf16.mxu0 0
        %9985 = vmatpush1.bf16.msra.mxu0 %v9955
        %9986 = vmatprep.subr.bf16.mxu0 0
        %9987 = vmatpush2.bf16.msra.mxu0 0
        %9988 = vmatprep.subr.bf16.mxu0 0
        %9989 = vmatpush2.bf16.msra.mxu0 0
        %9990 = vmatprep.subr.bf16.mxu0 0
        %9991 = vmatpush2.bf16.msra.mxu0 0
        %9992 = vmatprep.subr.bf16.mxu0 0
        %9993 = vmatpush2.bf16.msra.mxu0 0
        %9994 = vmatprep.subr.bf16.mxu0 0
        %9995 = vmatpush2.bf16.msra.mxu0 0
        %9996 = vmatprep.subr.bf16.mxu0 0
        %9997 = vmatpush2.bf16.msra.mxu0 0
        %9998 = vmatprep.subr.bf16.mxu0 0
        %9999 = vmatpush2.bf16.msra.mxu0 0
        %10000 = vmatprep.subr.bf16.mxu0 0
        %10001 = vmatpush2.bf16.msra.mxu0 0
        %10002 = vmatprep.mubr.bf16.mxu0 0
        %10003 = vmatmul.mubr.bf16.gmra.mxu0 %v9964
        %v10004 = vpop.f32.mrf.mxu0
        %v10005 = vadd.f32 %v9939, %v10004
        %v10006 = vpop.f32.mrf.mxu0
        %v10007 = vpop.f32.mrf.mxu0
        %v10008 = vadd.f32 %v9939, %v10007
        %v10009 = vpop.f32.mrf.mxu0
        %10010 = vdwg.mxu0
        %10011 = vmax.xlane.f32.xlu0 %v10005
        %v10012 = vpop.xlane.xlu0 %10011
        %10013 = vmax.xlane.f32.xlu0 %v10008
        %v10014 = vpop.xlane.xlu0 %10013
        %v10015 = vsub.f32 %v10005, %v10012
        %v10016 = vsub.f32 %v10008, %v10014
        %v10017 = vmul.f32 %v10015, 1.442695
        %v10018 = vpow.pop %v10017
        %v10019 = vmul.f32 %v10016, 1.442695
        %v10020 = vpow.pop %v10019
        %10021 = vadd.xlane.f32.xlu0 %v10018
        %v10022 = vpop.xlane.xlu0 %10021
        %10023 = vadd.xlane.f32.xlu0 %v10020
        %v10024 = vpop.xlane.xlu0 %10023
        %v10025 = vlog2.pop %v10022
        %v10026 = vmul.f32 %v10025, 0.6931472
        %v10027 = vlog2.pop %v10024
        %v10028 = vmul.f32 %v10027, 0.6931472
        %v10029 = vsub.f32 %v10015, %v10026
        %v10030 = vsub.f32 %v10016, %v10028
        %10031 = vst [vmem:[%s589] sm:$0xff] %v10029
        %10032 = vst [vmem:[%s589 + $0x8] sm:$0xff] %v10030
        %s10033 = smul.u32 2, %s20
        %p10034 = scmp.lt.s32.totalorder %s10033, 3
        %s10035 = scalar_select %p10034, %s10033, 3
        %s10036 = smul.addr %s10035, 8
        %s10037 = scalar_lea.vmem %s9, %s10036
        // Predicated region
        $region95: #{net_forward.1} parent=89 // pred_check
          %p10038 = pneg %p232
        $region96: #{net_forward.1} parent=89 // pred_check_branch
          %10040 = sbr.rel (%p10038) target = $region98
        $region97: #{net_forward.1} parent=89 // pred_region
          %s10041 = smul.u32 2, %s20
        $region98: #{net_forward.1} parent=89 // pred_fallthru
          _
      $region90: #{net_forward.1} parent=5 // pred_fallthru
        _
      %p10042 = scmp.le.s32.totalorder 2, %s15
      // Predicated region
      $region99: #{net_forward.1} parent=5 // pred_check
        %p10043 = pneg %p10042
      $region100: #{net_forward.1} parent=5 // pred_check_branch
        %10045 = sbr.rel (%p10043) target = $region102
      $region101: #{net_forward.1} parent=5 // pred_region
        %s10046 = ssub.s32 %s15, 2
        // Predicated region
        $region103: #{net_forward.1} parent=101 // pred_check
          %p10047 = pneg %p238
        $region104: #{net_forward.1} parent=101 // pred_check_branch
          %10049 = sbr.rel (%p10047) target = $region106
        $region105: #{net_forward.1} parent=101 // pred_region
          %s10050 = smul.u32 2, %s21
          %p10051 = scmp.lt.s32.totalorder %s10050, 3
          %s10052 = scalar_select %p10051, %s10050, 3
          %s10053 = smul.addr %s10052, 8
          %s10054 = scalar_lea.vmem %s9, %s10053
        $region106: #{net_forward.1} parent=101 // pred_fallthru
          _
      $region102: #{net_forward.1} parent=5 // pred_fallthru
        _
    $region6: #{net_forward.1} parent=1 // loop_footer
      %s19 = sadd.s32 1, %s15
    $region7: #{net_forward.1} parent=1 // loop_footer_branch
      %14 = sbr.rel target = $region3
    $region8: #{net_forward.1} parent=1 // loop_exit
      _

</llo_original>
